<compile_context>
chip_gen: v7x
topology: tpu7x:2x2x1
jax: 0.10.0
libtpu: 0.0.40
codegen_flags: <defaults>
</compile_context>

<pallas_src>
import functools
import math

import jax
import jax.numpy as jnp
from jax.experimental import pallas as pl
from jax.experimental.pallas import tpu as pltpu


# ----------------------------- helpers (wrapper) ----------------------------

def _pad_and_phase(x, pad, stride):
    """Zero-pad spatially and (for stride>1) polyphase-decompose the rows/cols.

    Returns (xph, hph, wph, rtot) where xph has shape (N, rtot, wph, C) and the
    rows for polyphase (a, b) live at [ (a*stride+b)*hph : (a*stride+b+1)*hph ).
    For stride==1 this is just the padded tensor.
    """
    xp = jnp.pad(x, ((0, 0), (pad, pad), (pad, pad), (0, 0)))
    N, Hp, Wp, C = xp.shape
    if stride == 1:
        return xp, Hp, Wp, Hp
    assert Hp % stride == 0 and Wp % stride == 0
    phases = [xp[:, a::stride, b::stride, :]
              for a in range(stride) for b in range(stride)]
    xph = jnp.concatenate(phases, axis=1)  # (N, s*s*Hp//s, Wp//s, C)
    return xph, Hp // stride, Wp // stride, stride * stride * (Hp // stride)


# ------------------------------ Pallas kernels ------------------------------

def _conv_taps(x_ref, w_ref, *, ksize, stride, hph, hout, wout, cin):
    """Accumulate the ksize x ksize conv taps for one image block.

    x_ref : (1, rtot, wph, cin) bf16   padded (phase-decomposed) activations
    w_ref : (ksize*ksize, cin, cout) bf16
    Returns (acc f32 (hout*wout, cout), center_patch bf16 (hout*wout, cin)).
    """
    # Upcast the whole block once so all shifted slicing happens on 32-bit
    # layouts; tap matmuls still run in bf16 on the MXU.
    xv = x_ref[...].astype(jnp.float32)        # (1, rtot, wph, cin)
    acc = None
    center = None
    mid_tap = (ksize // 2) * ksize + (ksize // 2)
    for dy in range(ksize):
        for dx in range(ksize):
            ph = (dy % stride) * stride + (dx % stride)
            rs = ph * hph + dy // stride
            cs = dx // stride
            patch = xv[0, rs:rs + hout, cs:cs + wout, :]
            patch = patch.reshape(hout * wout, cin).astype(jnp.bfloat16)
            if dy * ksize + dx == mid_tap:
                center = patch
            contrib = jnp.dot(patch, w_ref[dy * ksize + dx],
                              preferred_element_type=jnp.float32)
            acc = contrib if acc is None else acc + contrib
    return acc, center


def _conv_bn_relu_kernel(x_ref, w_ref, s_ref, b_ref, *rest,
                         ksize, stride, hph, hout, wout, cin, fuse_shortcut):
    """mid = relu(bn2(conv3x3(x)));  optionally sc = conv1x1(x) (same stride)."""
    if fuse_shortcut:
        wsc_ref = rest[0]
        out_refs = rest[1:]
    else:
        wsc_ref = None
        out_refs = rest
    acc, center = _conv_taps(x_ref, w_ref, ksize=ksize, stride=stride,
                             hph=hph, hout=hout, wout=wout, cin=cin)
    cout = acc.shape[1]
    mid = jnp.maximum(acc * s_ref[...] + b_ref[...], 0.0)
    out_refs[0][...] = mid.reshape(1, hout, wout, cout).astype(out_refs[0].dtype)
    if fuse_shortcut:
        # 1x1 shortcut conv == center tap of the 3x3 window; reuses the patch
        # already extracted above (single read of the activated input).
        sc = jnp.dot(center, wsc_ref[...], preferred_element_type=jnp.float32)
        out_refs[1][...] = sc.reshape(1, hout, wout, sc.shape[1]).astype(
            out_refs[1].dtype)


def _conv_res_bn_relu_kernel(x_ref, w_ref, s_ref, b_ref, *rest,
                             ksize, stride, hph, hout, wout, cin, has_residual):
    """raw = conv3x3(x) (+ residual);  act = relu(next_bn(raw))."""
    if has_residual:
        res_ref, raw_ref, act_ref = rest
    else:
        raw_ref, act_ref = rest
    acc, _ = _conv_taps(x_ref, w_ref, ksize=ksize, stride=stride,
                        hph=hph, hout=hout, wout=wout, cin=cin)
    cout = acc.shape[1]
    if has_residual:
        acc = acc + res_ref[...].reshape(hout * wout, cout).astype(jnp.float32)
    raw_ref[...] = acc.reshape(1, hout, wout, cout).astype(raw_ref.dtype)
    act = jnp.maximum(acc * s_ref[...] + b_ref[...], 0.0)
    act_ref[...] = act.reshape(1, hout, wout, cout).astype(act_ref.dtype)


def _gap_fc_kernel(x_ref, w_ref, b_ref, enc_ref, logit_ref):
    x = x_ref[...].astype(jnp.float32)            # (N, H*W, C)
    enc = jnp.mean(x, axis=1)                     # global average pool
    enc_ref[...] = enc
    logit_ref[...] = (jnp.dot(enc, w_ref[...],
                              preferred_element_type=jnp.float32) + b_ref[...])


def _linear_kernel(x_ref, w_ref, b_ref, o_ref):
    o_ref[...] = (jnp.dot(x_ref[...].astype(jnp.float32), w_ref[...],
                          preferred_element_type=jnp.float32) + b_ref[...])


# ----------------------------- kernel wrappers ------------------------------

_PARALLEL = pltpu.CompilerParams(dimension_semantics=("parallel",))


def conv_bn_relu(x_act, w, w_sc, scale, bias, *, stride):
    """Fused conv1 of a block: relu(bn2(conv3x3(x_act))) (+ 1x1 shortcut)."""
    N, H, W, Cin = x_act.shape
    ksize = 3
    Ho, Wo = H // stride, W // stride
    xph, hph, wph, rtot = _pad_and_phase(x_act, pad=1, stride=stride)
    Cout = w.shape[2]
    fuse_sc = w_sc is not None
    kern = functools.partial(_conv_bn_relu_kernel, ksize=ksize, stride=stride,
                             hph=hph, hout=Ho, wout=Wo, cin=Cin,
                             fuse_shortcut=fuse_sc)
    in_specs = [
        pl.BlockSpec((1, rtot, wph, Cin), lambda n: (n, 0, 0, 0)),
        pl.BlockSpec((ksize * ksize, Cin, Cout), lambda n: (0, 0, 0)),
        pl.BlockSpec((1, Cout), lambda n: (0, 0)),
        pl.BlockSpec((1, Cout), lambda n: (0, 0)),
    ]
    args = [xph, w, scale.reshape(1, Cout).astype(jnp.float32),
            bias.reshape(1, Cout).astype(jnp.float32)]
    if fuse_sc:
        Csc = w_sc.shape[1]
        in_specs.append(pl.BlockSpec((Cin, Csc), lambda n: (0, 0)))
        args.append(w_sc)
        out_shape = (jax.ShapeDtypeStruct((N, Ho, Wo, Cout), jnp.bfloat16),
                     jax.ShapeDtypeStruct((N, Ho, Wo, Csc), jnp.float32))
        out_specs = (pl.BlockSpec((1, Ho, Wo, Cout), lambda n: (n, 0, 0, 0)),
                     pl.BlockSpec((1, Ho, Wo, Csc), lambda n: (n, 0, 0, 0)))
        mid, sc = pl.pallas_call(
            kern, out_shape=out_shape, grid=(N,), in_specs=in_specs,
            out_specs=out_specs, compiler_params=_PARALLEL)(*args)
        return mid, sc
    mid = pl.pallas_call(
        kern,
        out_shape=jax.ShapeDtypeStruct((N, Ho, Wo, Cout), jnp.bfloat16),
        grid=(N,), in_specs=in_specs,
        out_specs=pl.BlockSpec((1, Ho, Wo, Cout), lambda n: (n, 0, 0, 0)),
        compiler_params=_PARALLEL)(*args)
    return mid, None


def conv_raw_act(x_act, w, residual, scale_next, bias_next):
    """Fused conv (stride 1) + optional residual add + next-stage BN+ReLU.

    Returns (raw f32, act bf16) where raw = conv(x_act) (+ residual) and
    act = relu(scale_next * raw + bias_next).
    """
    N, H, W, Cin = x_act.shape
    ksize, stride = 3, 1
    Ho, Wo = H, W
    xph, hph, wph, rtot = _pad_and_phase(x_act, pad=1, stride=stride)
    Cout = w.shape[2]
    has_res = residual is not None
    kern = functools.partial(_conv_res_bn_relu_kernel, ksize=ksize,
                             stride=stride, hph=hph, hout=Ho, wout=Wo,
                             cin=Cin, has_residual=has_res)
    in_specs = [
        pl.BlockSpec((1, rtot, wph, Cin), lambda n: (n, 0, 0, 0)),
        pl.BlockSpec((ksize * ksize, Cin, Cout), lambda n: (0, 0, 0)),
        pl.BlockSpec((1, Cout), lambda n: (0, 0)),
        pl.BlockSpec((1, Cout), lambda n: (0, 0)),
    ]
    args = [xph, w, scale_next.reshape(1, Cout).astype(jnp.float32),
            bias_next.reshape(1, Cout).astype(jnp.float32)]
    if has_res:
        in_specs.append(pl.BlockSpec((1, Ho, Wo, Cout), lambda n: (n, 0, 0, 0)))
        args.append(residual.astype(jnp.float32))
    raw, act = pl.pallas_call(
        kern,
        out_shape=(jax.ShapeDtypeStruct((N, Ho, Wo, Cout), jnp.float32),
                   jax.ShapeDtypeStruct((N, Ho, Wo, Cout), jnp.bfloat16)),
        grid=(N,),
        in_specs=in_specs,
        out_specs=(pl.BlockSpec((1, Ho, Wo, Cout), lambda n: (n, 0, 0, 0)),
                   pl.BlockSpec((1, Ho, Wo, Cout), lambda n: (n, 0, 0, 0))),
        compiler_params=_PARALLEL)(*args)
    return raw, act


def gap_fc(act, fc_w, fc_b):
    """Global average pool + linear classifier in one small kernel."""
    N, H, W, C = act.shape
    nc = fc_w.shape[1]
    enc, logits = pl.pallas_call(
        _gap_fc_kernel,
        out_shape=(jax.ShapeDtypeStruct((N, C), jnp.float32),
                   jax.ShapeDtypeStruct((N, nc), jnp.float32)),
    )(act.reshape(N, H * W, C), fc_w.astype(jnp.float32),
      fc_b.reshape(1, nc).astype(jnp.float32))
    return enc, logits


def linear(x, w, b):
    M = x.shape[0]
    N = w.shape[1]
    return pl.pallas_call(
        _linear_kernel,
        out_shape=jax.ShapeDtypeStruct((M, N), jnp.float32),
    )(x, w.astype(jnp.float32), b.reshape(1, N).astype(jnp.float32))


# --------------------------- parameter initialization -----------------------

def init_params(key, depth=10, widen_factor=2, num_classes=10, in_ch=3, eps=1e-5):
    assert (depth - 4) % 6 == 0
    n = (depth - 4) // 6
    widths = [16, 16 * widen_factor, 32 * widen_factor, 64 * widen_factor]
    counter = [0]

    def next_key():
        counter[0] += 1
        return jax.random.fold_in(key, counter[0])

    def conv_w(k, cin, cout):
        std = math.sqrt(2.0 / (k * k * cout))
        w = std * jax.random.normal(next_key(), (k * k, cin, cout), jnp.float32)
        return w.astype(jnp.bfloat16)

    def bn_folded(c):
        # Inference-folded BatchNorm -> per-channel (scale, bias), f32.
        gamma = 1.0 + 0.1 * jax.random.normal(next_key(), (c,), jnp.float32)
        beta = 0.1 * jax.random.normal(next_key(), (c,), jnp.float32)
        mean = 0.1 * jax.random.normal(next_key(), (c,), jnp.float32)
        var = 1.0 + 0.1 * jnp.abs(jax.random.normal(next_key(), (c,), jnp.float32))
        scale = gamma / jnp.sqrt(var + eps)
        bias = beta - mean * scale
        return scale, bias

    params = {'conv1_w': conv_w(3, in_ch, widths[0])}
    blocks = []
    in_planes = widths[0]
    for g in range(3):
        out_planes = widths[g + 1]
        for b in range(n):
            stride = (1 if g == 0 else 2) if b == 0 else 1
            equal = (in_planes == out_planes)
            blk = {
                'bn1': bn_folded(in_planes),
                'w1': conv_w(3, in_planes, out_planes),
                'w_sc': None if equal else conv_w(1, in_planes, out_planes)[0],
                'bn2': bn_folded(out_planes),
                'w2': conv_w(3, out_planes, out_planes),
                'stride': stride,
                'equal': equal,
            }
            blocks.append(blk)
            in_planes = out_planes
    params['blocks'] = blocks
    params['bn_final'] = bn_folded(widths[3])
    fan_in = widths[3]
    bound = 1.0 / math.sqrt(fan_in)
    params['fc_w'] = jax.random.uniform(next_key(), (fan_in, num_classes),
                                        jnp.float32, -bound, bound)
    params['fc_b'] = jax.random.uniform(next_key(), (num_classes,),
                                        jnp.float32, -bound, bound)
    params['out_features'] = fan_in
    return params


# -------------------------------- forward pass ------------------------------

def encoder_core(params, x_nchw):
    """WRN encoder up to (and including) relu(bn_final(.)), NHWC output."""
    x = jnp.transpose(x_nchw, (0, 2, 3, 1)).astype(jnp.bfloat16)  # -> NHWC bf16
    blocks = params['blocks']

    # First conv; its epilogue applies block-0's bn1+ReLU (pre-activation).
    s0, b0 = blocks[0]['bn1']
    raw, act = conv_raw_act(x, params['conv1_w'], None, s0, b0)

    for i, blk in enumerate(blocks):
        s2, b2 = blk['bn2']
        if blk['equal']:
            mid, _ = conv_bn_relu(act, blk['w1'], None, s2, b2,
                                  stride=blk['stride'])
            shortcut = raw            # identity shortcut uses the raw input
        else:
            mid, shortcut = conv_bn_relu(act, blk['w1'], blk['w_sc'], s2, b2,
                                         stride=blk['stride'])
        # conv2 + residual add, fused with the NEXT stage's bn+ReLU epilogue.
        if i + 1 < len(blocks):
            ns, nb = blocks[i + 1]['bn1']
        else:
            ns, nb = params['bn_final']
        raw, act = conv_raw_act(mid, blk['w2'], shortcut, ns, nb)

    return act  # (N, 8, 8, C_final) == relu(bn_final(encoder output))


def wideresnet_forward(params, x, return_encoding=False, classifier=False,
                       training=True):
    """Mirrors WideResNet.forward default path (fc2_enable=False)."""
    if classifier:
        # x is already an encoding of shape (N, out_features)
        return linear(x, params['fc_w'], params['fc_b'])
    act = encoder_core(params, x)
    enc, logits = gap_fc(act, params['fc_w'], params['fc_b'])
    if return_encoding:
        return enc
    # training flag does not change the default path (fc2 disabled).
    return logits


# ------------------------------------ main -----------------------------------

if __name__ == "__main__":
    key = jax.random.PRNGKey(0)
    num_classes = 10
    depth = 10          # WRN-10-2 (structure parametric; reference default is 28)
    widen_factor = 2

    params = init_params(jax.random.fold_in(key, 123), depth=depth,
                         widen_factor=widen_factor, num_classes=num_classes,
                         in_ch=3)

    # PyTorch-style NCHW input: CIFAR-like 32x32 RGB, batch=2.
    x = jax.random.normal(jax.random.fold_in(key, 7), (2, 3, 32, 32), jnp.float32)

    logits = wideresnet_forward(params, x, training=True)
    logits = jax.block_until_ready(logits)
    assert logits.shape == (2, num_classes), logits.shape
    assert bool(jnp.all(jnp.isfinite(logits)))

    # return_encoding path
    enc = jax.block_until_ready(wideresnet_forward(params, x, return_encoding=True))
    assert enc.shape == (2, params['out_features']), enc.shape

    # classifier-only path (input is an encoding)
    logits2 = jax.block_until_ready(wideresnet_forward(params, enc, classifier=True))
    assert logits2.shape == (2, num_classes), logits2.shape

    print("KERNEL_OK")
</pallas_src>

<mosaic_0001>
module attributes {stable_mosaic.version = 11 : i64} {
  func.func @_conv_res_bn_relu_kernel(%arg0: i32, %arg1: memref<1x34x34x3xbf16, #tpu.memory_space<vmem>>, %arg2: memref<9x3x16xbf16, #tpu.memory_space<vmem>>, %arg3: memref<1x16xf32, #tpu.memory_space<vmem>>, %arg4: memref<1x16xf32, #tpu.memory_space<vmem>>, %arg5: memref<1x32x32x16xf32, #tpu.memory_space<vmem>>, %arg6: memref<1x32x32x16xbf16, #tpu.memory_space<vmem>>) attributes {dimension_semantics = [#tpu.dimension_semantics<parallel>], iteration_bounds = array<i64: 2>, scalar_prefetch = 0 : i64, scratch_operands = 0 : i64, tpu.core_type = #tpu.core_type<tc>, window_params = [{transform_indices = @transform_0, window_bounds = array<i64: 1, 34, 34, 3>}, {pipeline_mode = #tpu.pipeline_mode<synchronous>, transform_indices = @transform_1, window_bounds = array<i64: 9, 3, 16>}, {pipeline_mode = #tpu.pipeline_mode<synchronous>, transform_indices = @transform_2, window_bounds = array<i64: 1, 16>}, {pipeline_mode = #tpu.pipeline_mode<synchronous>, transform_indices = @transform_3, window_bounds = array<i64: 1, 16>}, {transform_indices = @transform_4, window_bounds = array<i64: 1, 32, 32, 16>}, {transform_indices = @transform_5, window_bounds = array<i64: 1, 32, 32, 16>}]} {
    %c0 = arith.constant 0 : index
    %c0_0 = arith.constant 0 : index
    %c0_1 = arith.constant 0 : index
    %c0_2 = arith.constant 0 : index
    %0 = vector.load %arg1[%c0, %c0_0, %c0_1, %c0_2] : memref<1x34x34x3xbf16, #tpu.memory_space<vmem>>, vector<1x34x34x3xbf16>
    %1 = arith.extf %0 : vector<1x34x34x3xbf16> to vector<1x34x34x3xf32>
    %2 = vector.extract_strided_slice %1 {offsets = [0, 0, 0, 0], sizes = [1, 32, 32, 3], strides = [1, 1, 1, 1]} : vector<1x34x34x3xf32> to vector<1x32x32x3xf32>
    %3 = vector.shape_cast %2 : vector<1x32x32x3xf32> to vector<32x32x3xf32>
    %4 = vector.shape_cast %3 : vector<32x32x3xf32> to vector<1024x3xf32>
    %5 = arith.truncf %4 : vector<1024x3xf32> to vector<1024x3xbf16>
    %c0_3 = arith.constant 0 : index
    %c0_4 = arith.constant 0 : index
    %c0_5 = arith.constant 0 : index
    %6 = vector.load %arg2[%c0_3, %c0_4, %c0_5] : memref<9x3x16xbf16, #tpu.memory_space<vmem>>, vector<1x3x16xbf16>
    %7 = vector.shape_cast %6 : vector<1x3x16xbf16> to vector<3x16xbf16>
    %cst = arith.constant dense<0.000000e+00> : vector<1024x16xf32>
    %8 = tpu.matmul %5, %7, %cst {dimension_numbers = #tpu.dot_dimension_numbers<[1], [0], [0], [1], [0, 0, 1, 1], [], []>} : vector<1024x3xbf16>, vector<3x16xbf16>, vector<1024x16xf32> -> vector<1024x16xf32>
    %9 = vector.extract_strided_slice %1 {offsets = [0, 0, 1, 0], sizes = [1, 32, 32, 3], strides = [1, 1, 1, 1]} : vector<1x34x34x3xf32> to vector<1x32x32x3xf32>
    %10 = vector.shape_cast %9 : vector<1x32x32x3xf32> to vector<32x32x3xf32>
    %11 = vector.shape_cast %10 : vector<32x32x3xf32> to vector<1024x3xf32>
    %12 = arith.truncf %11 : vector<1024x3xf32> to vector<1024x3xbf16>
    %c1 = arith.constant 1 : index
    %c0_6 = arith.constant 0 : index
    %c0_7 = arith.constant 0 : index
    %13 = vector.load %arg2[%c1, %c0_6, %c0_7] : memref<9x3x16xbf16, #tpu.memory_space<vmem>>, vector<1x3x16xbf16>
    %14 = vector.shape_cast %13 : vector<1x3x16xbf16> to vector<3x16xbf16>
    %cst_8 = arith.constant dense<0.000000e+00> : vector<1024x16xf32>
    %15 = tpu.matmul %12, %14, %cst_8 {dimension_numbers = #tpu.dot_dimension_numbers<[1], [0], [0], [1], [0, 0, 1, 1], [], []>} : vector<1024x3xbf16>, vector<3x16xbf16>, vector<1024x16xf32> -> vector<1024x16xf32>
    %16 = arith.addf %8, %15 : vector<1024x16xf32>
    %17 = vector.extract_strided_slice %1 {offsets = [0, 0, 2, 0], sizes = [1, 32, 32, 3], strides = [1, 1, 1, 1]} : vector<1x34x34x3xf32> to vector<1x32x32x3xf32>
    %18 = vector.shape_cast %17 : vector<1x32x32x3xf32> to vector<32x32x3xf32>
    %19 = vector.shape_cast %18 : vector<32x32x3xf32> to vector<1024x3xf32>
    %20 = arith.truncf %19 : vector<1024x3xf32> to vector<1024x3xbf16>
    %c2 = arith.constant 2 : index
    %c0_9 = arith.constant 0 : index
    %c0_10 = arith.constant 0 : index
    %21 = vector.load %arg2[%c2, %c0_9, %c0_10] : memref<9x3x16xbf16, #tpu.memory_space<vmem>>, vector<1x3x16xbf16>
    %22 = vector.shape_cast %21 : vector<1x3x16xbf16> to vector<3x16xbf16>
    %cst_11 = arith.constant dense<0.000000e+00> : vector<1024x16xf32>
    %23 = tpu.matmul %20, %22, %cst_11 {dimension_numbers = #tpu.dot_dimension_numbers<[1], [0], [0], [1], [0, 0, 1, 1], [], []>} : vector<1024x3xbf16>, vector<3x16xbf16>, vector<1024x16xf32> -> vector<1024x16xf32>
    %24 = arith.addf %16, %23 : vector<1024x16xf32>
    %25 = vector.extract_strided_slice %1 {offsets = [0, 1, 0, 0], sizes = [1, 32, 32, 3], strides = [1, 1, 1, 1]} : vector<1x34x34x3xf32> to vector<1x32x32x3xf32>
    %26 = vector.shape_cast %25 : vector<1x32x32x3xf32> to vector<32x32x3xf32>
    %27 = vector.shape_cast %26 : vector<32x32x3xf32> to vector<1024x3xf32>
    %28 = arith.truncf %27 : vector<1024x3xf32> to vector<1024x3xbf16>
    %c3 = arith.constant 3 : index
    %c0_12 = arith.constant 0 : index
    %c0_13 = arith.constant 0 : index
    %29 = vector.load %arg2[%c3, %c0_12, %c0_13] : memref<9x3x16xbf16, #tpu.memory_space<vmem>>, vector<1x3x16xbf16>
    %30 = vector.shape_cast %29 : vector<1x3x16xbf16> to vector<3x16xbf16>
    %cst_14 = arith.constant dense<0.000000e+00> : vector<1024x16xf32>
    %31 = tpu.matmul %28, %30, %cst_14 {dimension_numbers = #tpu.dot_dimension_numbers<[1], [0], [0], [1], [0, 0, 1, 1], [], []>} : vector<1024x3xbf16>, vector<3x16xbf16>, vector<1024x16xf32> -> vector<1024x16xf32>
    %32 = arith.addf %24, %31 : vector<1024x16xf32>
    %33 = vector.extract_strided_slice %1 {offsets = [0, 1, 1, 0], sizes = [1, 32, 32, 3], strides = [1, 1, 1, 1]} : vector<1x34x34x3xf32> to vector<1x32x32x3xf32>
    %34 = vector.shape_cast %33 : vector<1x32x32x3xf32> to vector<32x32x3xf32>
    %35 = vector.shape_cast %34 : vector<32x32x3xf32> to vector<1024x3xf32>
    %36 = arith.truncf %35 : vector<1024x3xf32> to vector<1024x3xbf16>
    %c4 = arith.constant 4 : index
    %c0_15 = arith.constant 0 : index
    %c0_16 = arith.constant 0 : index
    %37 = vector.load %arg2[%c4, %c0_15, %c0_16] : memref<9x3x16xbf16, #tpu.memory_space<vmem>>, vector<1x3x16xbf16>
    %38 = vector.shape_cast %37 : vector<1x3x16xbf16> to vector<3x16xbf16>
    %cst_17 = arith.constant dense<0.000000e+00> : vector<1024x16xf32>
    %39 = tpu.matmul %36, %38, %cst_17 {dimension_numbers = #tpu.dot_dimension_numbers<[1], [0], [0], [1], [0, 0, 1, 1], [], []>} : vector<1024x3xbf16>, vector<3x16xbf16>, vector<1024x16xf32> -> vector<1024x16xf32>
    %40 = arith.addf %32, %39 : vector<1024x16xf32>
    %41 = vector.extract_strided_slice %1 {offsets = [0, 1, 2, 0], sizes = [1, 32, 32, 3], strides = [1, 1, 1, 1]} : vector<1x34x34x3xf32> to vector<1x32x32x3xf32>
    %42 = vector.shape_cast %41 : vector<1x32x32x3xf32> to vector<32x32x3xf32>
    %43 = vector.shape_cast %42 : vector<32x32x3xf32> to vector<1024x3xf32>
    %44 = arith.truncf %43 : vector<1024x3xf32> to vector<1024x3xbf16>
    %c5 = arith.constant 5 : index
    %c0_18 = arith.constant 0 : index
    %c0_19 = arith.constant 0 : index
    %45 = vector.load %arg2[%c5, %c0_18, %c0_19] : memref<9x3x16xbf16, #tpu.memory_space<vmem>>, vector<1x3x16xbf16>
    %46 = vector.shape_cast %45 : vector<1x3x16xbf16> to vector<3x16xbf16>
    %cst_20 = arith.constant dense<0.000000e+00> : vector<1024x16xf32>
    %47 = tpu.matmul %44, %46, %cst_20 {dimension_numbers = #tpu.dot_dimension_numbers<[1], [0], [0], [1], [0, 0, 1, 1], [], []>} : vector<1024x3xbf16>, vector<3x16xbf16>, vector<1024x16xf32> -> vector<1024x16xf32>
    %48 = arith.addf %40, %47 : vector<1024x16xf32>
    %49 = vector.extract_strided_slice %1 {offsets = [0, 2, 0, 0], sizes = [1, 32, 32, 3], strides = [1, 1, 1, 1]} : vector<1x34x34x3xf32> to vector<1x32x32x3xf32>
    %50 = vector.shape_cast %49 : vector<1x32x32x3xf32> to vector<32x32x3xf32>
    %51 = vector.shape_cast %50 : vector<32x32x3xf32> to vector<1024x3xf32>
    %52 = arith.truncf %51 : vector<1024x3xf32> to vector<1024x3xbf16>
    %c6 = arith.constant 6 : index
    %c0_21 = arith.constant 0 : index
    %c0_22 = arith.constant 0 : index
    %53 = vector.load %arg2[%c6, %c0_21, %c0_22] : memref<9x3x16xbf16, #tpu.memory_space<vmem>>, vector<1x3x16xbf16>
    %54 = vector.shape_cast %53 : vector<1x3x16xbf16> to vector<3x16xbf16>
    %cst_23 = arith.constant dense<0.000000e+00> : vector<1024x16xf32>
    %55 = tpu.matmul %52, %54, %cst_23 {dimension_numbers = #tpu.dot_dimension_numbers<[1], [0], [0], [1], [0, 0, 1, 1], [], []>} : vector<1024x3xbf16>, vector<3x16xbf16>, vector<1024x16xf32> -> vector<1024x16xf32>
    %56 = arith.addf %48, %55 : vector<1024x16xf32>
    %57 = vector.extract_strided_slice %1 {offsets = [0, 2, 1, 0], sizes = [1, 32, 32, 3], strides = [1, 1, 1, 1]} : vector<1x34x34x3xf32> to vector<1x32x32x3xf32>
    %58 = vector.shape_cast %57 : vector<1x32x32x3xf32> to vector<32x32x3xf32>
    %59 = vector.shape_cast %58 : vector<32x32x3xf32> to vector<1024x3xf32>
    %60 = arith.truncf %59 : vector<1024x3xf32> to vector<1024x3xbf16>
    %c7 = arith.constant 7 : index
    %c0_24 = arith.constant 0 : index
    %c0_25 = arith.constant 0 : index
    %61 = vector.load %arg2[%c7, %c0_24, %c0_25] : memref<9x3x16xbf16, #tpu.memory_space<vmem>>, vector<1x3x16xbf16>
    %62 = vector.shape_cast %61 : vector<1x3x16xbf16> to vector<3x16xbf16>
    %cst_26 = arith.constant dense<0.000000e+00> : vector<1024x16xf32>
    %63 = tpu.matmul %60, %62, %cst_26 {dimension_numbers = #tpu.dot_dimension_numbers<[1], [0], [0], [1], [0, 0, 1, 1], [], []>} : vector<1024x3xbf16>, vector<3x16xbf16>, vector<1024x16xf32> -> vector<1024x16xf32>
    %64 = arith.addf %56, %63 : vector<1024x16xf32>
    %65 = vector.extract_strided_slice %1 {offsets = [0, 2, 2, 0], sizes = [1, 32, 32, 3], strides = [1, 1, 1, 1]} : vector<1x34x34x3xf32> to vector<1x32x32x3xf32>
    %66 = vector.shape_cast %65 : vector<1x32x32x3xf32> to vector<32x32x3xf32>
    %67 = vector.shape_cast %66 : vector<32x32x3xf32> to vector<1024x3xf32>
    %68 = arith.truncf %67 : vector<1024x3xf32> to vector<1024x3xbf16>
    %c8 = arith.constant 8 : index
    %c0_27 = arith.constant 0 : index
    %c0_28 = arith.constant 0 : index
    %69 = vector.load %arg2[%c8, %c0_27, %c0_28] : memref<9x3x16xbf16, #tpu.memory_space<vmem>>, vector<1x3x16xbf16>
    %70 = vector.shape_cast %69 : vector<1x3x16xbf16> to vector<3x16xbf16>
    %cst_29 = arith.constant dense<0.000000e+00> : vector<1024x16xf32>
    %71 = tpu.matmul %68, %70, %cst_29 {dimension_numbers = #tpu.dot_dimension_numbers<[1], [0], [0], [1], [0, 0, 1, 1], [], []>} : vector<1024x3xbf16>, vector<3x16xbf16>, vector<1024x16xf32> -> vector<1024x16xf32>
    %72 = arith.addf %64, %71 : vector<1024x16xf32>
    %73 = vector.shape_cast %72 : vector<1024x16xf32> to vector<1x32x32x16xf32>
    %c0_30 = arith.constant 0 : index
    %c0_31 = arith.constant 0 : index
    %c0_32 = arith.constant 0 : index
    %c0_33 = arith.constant 0 : index
    %74 = vector.load %arg5[%c0_30, %c0_31, %c0_32, %c0_33] : memref<1x32x32x16xf32, #tpu.memory_space<vmem>>, vector<1x32x32x16xf32>
    tpu.vector_store %arg5[%c0_30, %c0_31, %c0_32, %c0_33], %73 {strides = array<i32>} : memref<1x32x32x16xf32, #tpu.memory_space<vmem>>, vector<1x32x32x16xf32>,
    %c0_34 = arith.constant 0 : index
    %c0_35 = arith.constant 0 : index
    %75 = vector.load %arg3[%c0_34, %c0_35] : memref<1x16xf32, #tpu.memory_space<vmem>>, vector<1x16xf32>
    %76 = vector.broadcast %75 : vector<1x16xf32> to vector<1024x16xf32>
    %77 = arith.mulf %72, %76 : vector<1024x16xf32>
    %c0_36 = arith.constant 0 : index
    %c0_37 = arith.constant 0 : index
    %78 = vector.load %arg4[%c0_36, %c0_37] : memref<1x16xf32, #tpu.memory_space<vmem>>, vector<1x16xf32>
    %79 = vector.broadcast %78 : vector<1x16xf32> to vector<1024x16xf32>
    %80 = arith.addf %77, %79 : vector<1024x16xf32>
    %cst_38 = arith.constant 0.000000e+00 : f32
    %81 = vector.broadcast %cst_38 : f32 to vector<1024x16xf32>
    %82 = arith.maximumf %80, %81 : vector<1024x16xf32>
    %83 = vector.shape_cast %82 : vector<1024x16xf32> to vector<1x32x32x16xf32>
    %84 = arith.truncf %83 : vector<1x32x32x16xf32> to vector<1x32x32x16xbf16>
    %c0_39 = arith.constant 0 : index
    %c0_40 = arith.constant 0 : index
    %c0_41 = arith.constant 0 : index
    %c0_42 = arith.constant 0 : index
    %85 = vector.load %arg6[%c0_39, %c0_40, %c0_41, %c0_42] : memref<1x32x32x16xbf16, #tpu.memory_space<vmem>>, vector<1x32x32x16xbf16>
    tpu.vector_store %arg6[%c0_39, %c0_40, %c0_41, %c0_42], %84 {strides = array<i32>} : memref<1x32x32x16xbf16, #tpu.memory_space<vmem>>, vector<1x32x32x16xbf16>,
    return
  }
  func.func @transform_0(%arg0: i32) -> (i32, i32, i32, i32) {
    %c0_i32 = arith.constant 0 : i32
    %c0_i32_0 = arith.constant 0 : i32
    %c0_i32_1 = arith.constant 0 : i32
    %c0_i32_2 = arith.constant 0 : i32
    return %arg0, %c0_i32, %c0_i32_0, %c0_i32_1 : i32, i32, i32, i32
  }
  func.func @transform_1(%arg0: i32) -> (i32, i32, i32) {
    %c0_i32 = arith.constant 0 : i32
    %c0_i32_0 = arith.constant 0 : i32
    %c0_i32_1 = arith.constant 0 : i32
    %c0_i32_2 = arith.constant 0 : i32
    return %c0_i32, %c0_i32_0, %c0_i32_1 : i32, i32, i32
  }
  func.func @transform_2(%arg0: i32) -> (i32, i32) {
    %c0_i32 = arith.constant 0 : i32
    %c0_i32_0 = arith.constant 0 : i32
    %c0_i32_1 = arith.constant 0 : i32
    return %c0_i32, %c0_i32_0 : i32, i32
  }
  func.func @transform_3(%arg0: i32) -> (i32, i32) {
    %c0_i32 = arith.constant 0 : i32
    %c0_i32_0 = arith.constant 0 : i32
    %c0_i32_1 = arith.constant 0 : i32
    return %c0_i32, %c0_i32_0 : i32, i32
  }
  func.func @transform_4(%arg0: i32) -> (i32, i32, i32, i32) {
    %c0_i32 = arith.constant 0 : i32
    %c0_i32_0 = arith.constant 0 : i32
    %c0_i32_1 = arith.constant 0 : i32
    %c0_i32_2 = arith.constant 0 : i32
    return %arg0, %c0_i32, %c0_i32_0, %c0_i32_1 : i32, i32, i32, i32
  }
  func.func @transform_5(%arg0: i32) -> (i32, i32, i32, i32) {
    %c0_i32 = arith.constant 0 : i32
    %c0_i32_0 = arith.constant 0 : i32
    %c0_i32_1 = arith.constant 0 : i32
    %c0_i32_2 = arith.constant 0 : i32
    return %arg0, %c0_i32, %c0_i32_0, %c0_i32_1 : i32, i32, i32, i32
  }
}

</mosaic_0001>

<llo_original>
// kernel: tpu_custom_call.1
$region0: #{tpu_custom_call.1}
  #allocation0 [shape = 'u32[]', space=smem, size = 0x4, offset = 0x4, fixed_abs, tag = 'smem constant byte address 0x4 - core index']
  #allocation1 [shape = 'u32[144,128]{1,0:T(1,128)}', space=vmem, size = 0x12000, scoped, tag = 'internal scratch']
  %s0 = inlined_call_operand.vmem [shape: bf16[2,34,34,3], index: 0, kind: input, shape index: {}]
  %s1 = inlined_call_operand.vmem [shape: bf16[9,3,16], index: 1, kind: input, shape index: {}]
  %s2 = inlined_call_operand.vmem [shape: f32[1,16], index: 2, kind: input, shape index: {}]
  %s3 = inlined_call_operand.vmem [shape: f32[1,16], index: 3, kind: input, shape index: {}]
  %s4 = inlined_call_operand.vmem [shape: f32[2,32,32,16], index: 4, kind: output, shape index: {0}]
  %s5 = inlined_call_operand.vmem [shape: bf16[2,32,32,16], index: 5, kind: output, shape index: {1}]
  %6 = xla_tuple %s4, %s5
  %s7 = sld [smem:[#allocation0]]
  $region57: #{tpu_custom_call.1} parent=0
    _
  %s9 = ssub.s32 1, %s7
  %s10 = scalar_select 0, %s9, %s7
  loop: start=0, step=1, limit=4
  $region2: #{tpu_custom_call.1} parent=0 // loop_pre_header
    _
  $region3: #{tpu_custom_call.1} parent=0 // loop_header
    %s12 = sphi 0, %s16
    %p13 = scmp.ge.s32.totalorder %s12, 4
    %s22 = sphi 0, %s24
    %s25 = sphi 0, %s22
    %s26 = sphi 0, %s25
    %s42 = sphi 0, %s26
    %s46 = sphi 0, %s46
    %s48 = sphi 0, %s46
    %s49 = sphi 0, %s48
    %s63 = sphi 0, %s49
    %s67 = sphi 0, %s67
    %s69 = sphi 0, %s67
    %s70 = sphi 0, %s69
    %s84 = sphi 0, %s70
    %s88 = sphi 0, %s88
    %s90 = sphi 0, %s88
    %s91 = sphi 0, %s90
    %s105 = sphi 0, %s91
    %s111 = sphi 0, %s113
    %s114 = sphi 0, %s111
    %s115 = sphi 0, %s114
    %s131 = sphi 0, %s115
    %s137 = sphi 0, %s139
    %s140 = sphi 0, %s137
    %s141 = sphi 0, %s140
    %s157 = sphi 0, %s141
  $region4: #{tpu_custom_call.1} parent=0 // loop_header_branch
    %15 = sbr.rel (%p13) target = $region8
  $region5: #{tpu_custom_call.1} parent=0 // loop_body
    %s17 = ssub.s32 %s12, 1
    %s18 = ssub.s32 %s12, 2
    %s19 = sadd.s32 %s12, 1
    %s20 = ssub.s32 %s12, %s19
    %p21 = scmp.eq.s32.totalorder %s20, 0
    %s23 = sadd.s32 %s22, 1
    %s24 = scalar_select %p21, %s22, %s23
    %p27 = pneg %p21
    %p28 = scmp.eq.s32.totalorder %s12, 1
    %p29 = por %p27, %p28
    %p30 = scmp.ne.s32.totalorder %s22, %s25
    %p31 = scmp.eq.s32.totalorder %s12, 0
    %p32 = por %p30, %p31
    %p33 = scmp.ne.s32.totalorder %s22, %s25
    %p34 = scmp.eq.s32.totalorder %s17, 1
    %p35 = por %p33, %p34
    %p36 = scmp.ne.s32.totalorder %s25, %s26
    %p37 = scmp.eq.s32.totalorder %s17, 0
    %p38 = por %p36, %p37
    %p39 = scmp.ne.s32.totalorder %s25, %s26
    %p40 = scmp.eq.s32.totalorder %s18, 1
    %p41 = por %p39, %p40
    %p43 = scmp.ne.s32.totalorder %s26, %s42
    %p44 = scmp.eq.s32.totalorder %s18, 0
    %p45 = por %p43, %p44
    %s47 = sadd.s32 %s46, 1
    %p50 = scmp.eq.s32.totalorder %s12, 1
    %p51 = scmp.ne.s32.totalorder %s46, %s48
    %p52 = scmp.eq.s32.totalorder %s12, 0
    %p53 = por %p51, %p52
    %p54 = scmp.ne.s32.totalorder %s46, %s48
    %p55 = scmp.eq.s32.totalorder %s17, 1
    %p56 = por %p54, %p55
    %p57 = scmp.ne.s32.totalorder %s48, %s49
    %p58 = scmp.eq.s32.totalorder %s17, 0
    %p59 = por %p57, %p58
    %p60 = scmp.ne.s32.totalorder %s48, %s49
    %p61 = scmp.eq.s32.totalorder %s18, 1
    %p62 = por %p60, %p61
    %p64 = scmp.ne.s32.totalorder %s49, %s63
    %p65 = scmp.eq.s32.totalorder %s18, 0
    %p66 = por %p64, %p65
    %s68 = sadd.s32 %s67, 1
    %p71 = scmp.eq.s32.totalorder %s12, 1
    %p72 = scmp.ne.s32.totalorder %s67, %s69
    %p73 = scmp.eq.s32.totalorder %s12, 0
    %p74 = por %p72, %p73
    %p75 = scmp.ne.s32.totalorder %s67, %s69
    %p76 = scmp.eq.s32.totalorder %s17, 1
    %p77 = por %p75, %p76
    %p78 = scmp.ne.s32.totalorder %s69, %s70
    %p79 = scmp.eq.s32.totalorder %s17, 0
    %p80 = por %p78, %p79
    %p81 = scmp.ne.s32.totalorder %s69, %s70
    %p82 = scmp.eq.s32.totalorder %s18, 1
    %p83 = por %p81, %p82
    %p85 = scmp.ne.s32.totalorder %s70, %s84
    %p86 = scmp.eq.s32.totalorder %s18, 0
    %p87 = por %p85, %p86
    %s89 = sadd.s32 %s88, 1
    %p92 = scmp.eq.s32.totalorder %s12, 1
    %p93 = scmp.ne.s32.totalorder %s88, %s90
    %p94 = scmp.eq.s32.totalorder %s12, 0
    %p95 = por %p93, %p94
    %p96 = scmp.ne.s32.totalorder %s88, %s90
    %p97 = scmp.eq.s32.totalorder %s17, 1
    %p98 = por %p96, %p97
    %p99 = scmp.ne.s32.totalorder %s90, %s91
    %p100 = scmp.eq.s32.totalorder %s17, 0
    %p101 = por %p99, %p100
    %p102 = scmp.ne.s32.totalorder %s90, %s91
    %p103 = scmp.eq.s32.totalorder %s18, 1
    %p104 = por %p102, %p103
    %p106 = scmp.ne.s32.totalorder %s91, %s105
    %p107 = scmp.eq.s32.totalorder %s18, 0
    %p108 = por %p106, %p107
    %s109 = ssub.s32 %s12, %s19
    %p110 = scmp.eq.s32.totalorder %s109, 0
    %s112 = sadd.s32 %s111, 1
    %s113 = scalar_select %p110, %s111, %s112
    %p116 = pneg %p110
    %p117 = scmp.eq.s32.totalorder %s12, 1
    %p118 = por %p116, %p117
    %p119 = scmp.ne.s32.totalorder %s111, %s114
    %p120 = scmp.eq.s32.totalorder %s12, 0
    %p121 = por %p119, %p120
    %p122 = scmp.ne.s32.totalorder %s111, %s114
    %p123 = scmp.eq.s32.totalorder %s17, 1
    %p124 = por %p122, %p123
    %p125 = scmp.ne.s32.totalorder %s114, %s115
    %p126 = scmp.eq.s32.totalorder %s17, 0
    %p127 = por %p125, %p126
    %p128 = scmp.ne.s32.totalorder %s114, %s115
    %p129 = scmp.eq.s32.totalorder %s18, 1
    %p130 = por %p128, %p129
    %p132 = scmp.ne.s32.totalorder %s115, %s131
    %p133 = scmp.eq.s32.totalorder %s18, 0
    %p134 = por %p132, %p133
    %s135 = ssub.s32 %s12, %s19
    %p136 = scmp.eq.s32.totalorder %s135, 0
    %s138 = sadd.s32 %s137, 1
    %s139 = scalar_select %p136, %s137, %s138
    %p142 = pneg %p136
    %p143 = scmp.eq.s32.totalorder %s12, 1
    %p144 = por %p142, %p143
    %p145 = scmp.ne.s32.totalorder %s137, %s140
    %p146 = scmp.eq.s32.totalorder %s12, 0
    %p147 = por %p145, %p146
    %p148 = scmp.ne.s32.totalorder %s137, %s140
    %p149 = scmp.eq.s32.totalorder %s17, 1
    %p150 = por %p148, %p149
    %p151 = scmp.ne.s32.totalorder %s140, %s141
    %p152 = scmp.eq.s32.totalorder %s17, 0
    %p153 = por %p151, %p152
    %p154 = scmp.ne.s32.totalorder %s140, %s141
    %p155 = scmp.eq.s32.totalorder %s18, 1
    %p156 = por %p154, %p155
    %p158 = scmp.ne.s32.totalorder %s141, %s157
    %p159 = scmp.eq.s32.totalorder %s18, 0
    %p160 = por %p158, %p159
    %p161 = scmp.le.s32.totalorder 1, %s12
    %p162 = scmp.lt.s32.totalorder %s12, 3
    %p163 = pnand %p161, %p162
    %p164 = pneg %p163
    // Predicated region
    $region9: #{tpu_custom_call.1} parent=5 // pred_check
      _
    $region10: #{tpu_custom_call.1} parent=5 // pred_check_branch
      %166 = sbr.rel (%p163) target = $region12
    $region11: #{tpu_custom_call.1} parent=5 // pred_region
      %s167 = ssub.s32 %s12, 1
      // Predicated region
      $region13: #{tpu_custom_call.1} parent=11 // pred_check
        %p168 = pneg %p59
      $region14: #{tpu_custom_call.1} parent=11 // pred_check_branch
        %170 = sbr.rel (%p168) target = $region16
      $region15: #{tpu_custom_call.1} parent=11 // pred_region
        _
      $region16: #{tpu_custom_call.1} parent=11 // pred_fallthru
        _
      // Predicated region
      $region17: #{tpu_custom_call.1} parent=11 // pred_check
        %p171 = pneg %p80
      $region18: #{tpu_custom_call.1} parent=11 // pred_check_branch
        %173 = sbr.rel (%p171) target = $region20
      $region19: #{tpu_custom_call.1} parent=11 // pred_region
        _
      $region20: #{tpu_custom_call.1} parent=11 // pred_fallthru
        _
      // Predicated region
      $region21: #{tpu_custom_call.1} parent=11 // pred_check
        %p174 = pneg %p101
      $region22: #{tpu_custom_call.1} parent=11 // pred_check_branch
        %176 = sbr.rel (%p174) target = $region24
      $region23: #{tpu_custom_call.1} parent=11 // pred_region
        _
      $region24: #{tpu_custom_call.1} parent=11 // pred_fallthru
        _
    $region12: #{tpu_custom_call.1} parent=5 // pred_fallthru
      _
    %p177 = scmp.lt.s32.totalorder %s12, 2
    // Predicated region
    $region25: #{tpu_custom_call.1} parent=5 // pred_check
      %p178 = pneg %p177
    $region26: #{tpu_custom_call.1} parent=5 // pred_check_branch
      %180 = sbr.rel (%p178) target = $region28
    $region27: #{tpu_custom_call.1} parent=5 // pred_region
      // Predicated region
      $region29: #{tpu_custom_call.1} parent=27 // pred_check
        %p181 = pneg %p32
      $region30: #{tpu_custom_call.1} parent=27 // pred_check_branch
        %183 = sbr.rel (%p181) target = $region32
      $region31: #{tpu_custom_call.1} parent=27 // pred_region
        %p184 = scmp.lt.s32.totalorder %s12, 1
        %s185 = scalar_select %p184, %s12, 1
        %s186 = smul.addr %s185, 170
        %s187 = smul.addr %s186, 4
        %s188 = scalar_lea.vmem %s0, %s187
      $region32: #{tpu_custom_call.1} parent=27 // pred_fallthru
        _
    $region28: #{tpu_custom_call.1} parent=5 // pred_fallthru
      _
    %p189 = scmp.le.s32.totalorder 1, %s12
    %p190 = scmp.lt.s32.totalorder %s12, 3
    %p191 = pnand %p189, %p190
    %p192 = pneg %p191
    // Predicated region
    $region33: #{tpu_custom_call.1} parent=5 // pred_check
      _
    $region34: #{tpu_custom_call.1} parent=5 // pred_check_branch
      %194 = sbr.rel (%p191) target = $region36
    $region35: #{tpu_custom_call.1} parent=5 // pred_region
      %s195 = ssub.s32 %s12, 1
      %p196 = scmp.lt.s32.totalorder %s17, 1
      %s197 = scalar_select %p196, %s17, 1
      %s198 = smul.addr %s197, 170
      %s199 = smul.addr %s198, 4
      %s200 = scalar_lea.vmem %s0, %s199
      %p201 = pneg %p38
      %p202 = pneg %p35
      %p203 = pneg %p59
      %p204 = pneg %p56
      %p205 = pneg %p80
      %p206 = pneg %p77
      %p207 = pneg %p101
      %p208 = pneg %p98
      %p209 = pneg %p127
      %p210 = pneg %p124
      %p211 = scmp.lt.s32.totalorder %s17, 1
      %s212 = scalar_select %p211, %s17, 1
      %s213 = smul.addr %s212, 128
      %s214 = smul.addr %s213, 8
      %s215 = scalar_lea.vmem %s4, %s214
      %p216 = pneg %p153
      %p217 = pneg %p150
      %p218 = scmp.lt.s32.totalorder %s17, 1
      %s219 = scalar_select %p218, %s17, 1
      %s220 = smul.addr %s219, 128
      %s221 = smul.addr %s220, 4
      %s222 = scalar_lea.vmem %s5, %s221
      %p223 = scmp.lt.s32.totalorder %s17, 1
      %s224 = scalar_select %p223, %s17, 1
      %s225 = smul.addr %s224, 170
      %s226 = smul.addr %s225, 4
      %s227 = scalar_lea.vmem %s0, %s226
      %p228 = scmp.lt.s32.totalorder %s17, 1
      %s229 = scalar_select %p228, %s17, 1
      %s230 = smul.addr %s229, 128
      %s231 = smul.addr %s230, 8
      %s232 = scalar_lea.vmem %s4, %s231
      %p233 = scmp.lt.s32.totalorder %s17, 1
      %s234 = scalar_select %p233, %s17, 1
      %s235 = smul.addr %s234, 128
      %s236 = smul.addr %s235, 4
      %s237 = scalar_lea.vmem %s5, %s236
      %v239 = vld [vmem:[%s227] sm:$0xf]
      %v240 = vld [vmem:[%s227 + $0x4] sm:$0xf]
      %v241 = vld [vmem:[%s227 + $0x8] sm:$0xf]
      %v242 = vld [vmem:[%s227 + $0xc] sm:$0xf]
      %v243 = vld [vmem:[%s227 + $0x10] sm:$0x1]
      %v244 = vld [vmem:[%s227 + $0x14] sm:$0xf]
      %v245 = vld [vmem:[%s227 + $0x18] sm:$0xf]
      %v246 = vld [vmem:[%s227 + $0x1c] sm:$0xf]
      %v247 = vld [vmem:[%s227 + $0x20] sm:$0xf]
      %v248 = vld [vmem:[%s227 + $0x24] sm:$0x1]
      %v249 = vld [vmem:[%s227 + $0x28] sm:$0xf]
      %v250 = vld [vmem:[%s227 + $0x2c] sm:$0xf]
      %v251 = vld [vmem:[%s227 + $0x30] sm:$0xf]
      %v252 = vld [vmem:[%s227 + $0x34] sm:$0xf]
      %v253 = vld [vmem:[%s227 + $0x38] sm:$0x1]
      %v254 = vld [vmem:[%s227 + $0x3c] sm:$0xf]
      %v255 = vld [vmem:[%s227 + $0x40] sm:$0xf]
      %v256 = vld [vmem:[%s227 + $0x44] sm:$0xf]
      %v257 = vld [vmem:[%s227 + $0x48] sm:$0xf]
      %v258 = vld [vmem:[%s227 + $0x4c] sm:$0x1]
      %v259 = vld [vmem:[%s227 + $0x50] sm:$0xf]
      %v260 = vld [vmem:[%s227 + $0x54] sm:$0xf]
      %v261 = vld [vmem:[%s227 + $0x58] sm:$0xf]
      %v262 = vld [vmem:[%s227 + $0x5c] sm:$0xf]
      %v263 = vld [vmem:[%s227 + $0x60] sm:$0x1]
      %v264 = vld [vmem:[%s227 + $0x64] sm:$0xf]
      %v265 = vld [vmem:[%s227 + $0x68] sm:$0xf]
      %v266 = vld [vmem:[%s227 + $0x6c] sm:$0xf]
      %v267 = vld [vmem:[%s227 + $0x70] sm:$0xf]
      %v268 = vld [vmem:[%s227 + $0x74] sm:$0x1]
      %v269 = vld [vmem:[%s227 + $0x78] sm:$0xf]
      %v270 = vld [vmem:[%s227 + $0x7c] sm:$0xf]
      %v271 = vld [vmem:[%s227 + $0x80] sm:$0xf]
      %v272 = vld [vmem:[%s227 + $0x84] sm:$0xf]
      %v273 = vld [vmem:[%s227 + $0x88] sm:$0x1]
      %v274 = vld [vmem:[%s227 + $0x8c] sm:$0xf]
      %v275 = vld [vmem:[%s227 + $0x90] sm:$0xf]
      %v276 = vld [vmem:[%s227 + $0x94] sm:$0xf]
      %v277 = vld [vmem:[%s227 + $0x98] sm:$0xf]
      %v278 = vld [vmem:[%s227 + $0x9c] sm:$0x1]
      %v279 = vld [vmem:[%s227 + $0xa0] sm:$0xf]
      %v280 = vld [vmem:[%s227 + $0xa4] sm:$0xf]
      %v281 = vld [vmem:[%s227 + $0xa8] sm:$0xf]
      %v282 = vld [vmem:[%s227 + $0xac] sm:$0xf]
      %v283 = vld [vmem:[%s227 + $0xb0] sm:$0x1]
      %v284 = vld [vmem:[%s227 + $0xb4] sm:$0xf]
      %v285 = vld [vmem:[%s227 + $0xb8] sm:$0xf]
      %v286 = vld [vmem:[%s227 + $0xbc] sm:$0xf]
      %v287 = vld [vmem:[%s227 + $0xc0] sm:$0xf]
      %v288 = vld [vmem:[%s227 + $0xc4] sm:$0x1]
      %v289 = vld [vmem:[%s227 + $0xc8] sm:$0xf]
      %v290 = vld [vmem:[%s227 + $0xcc] sm:$0xf]
      %v291 = vld [vmem:[%s227 + $0xd0] sm:$0xf]
      %v292 = vld [vmem:[%s227 + $0xd4] sm:$0xf]
      %v293 = vld [vmem:[%s227 + $0xd8] sm:$0x1]
      %v294 = vld [vmem:[%s227 + $0xdc] sm:$0xf]
      %v295 = vld [vmem:[%s227 + $0xe0] sm:$0xf]
      %v296 = vld [vmem:[%s227 + $0xe4] sm:$0xf]
      %v297 = vld [vmem:[%s227 + $0xe8] sm:$0xf]
      %v298 = vld [vmem:[%s227 + $0xec] sm:$0x1]
      %v299 = vld [vmem:[%s227 + $0xf0] sm:$0xf]
      %v300 = vld [vmem:[%s227 + $0xf4] sm:$0xf]
      %v301 = vld [vmem:[%s227 + $0xf8] sm:$0xf]
      %v302 = vld [vmem:[%s227 + $0xfc] sm:$0xf]
      %v303 = vld [vmem:[%s227 + $0x100] sm:$0x1]
      %v304 = vld [vmem:[%s227 + $0x104] sm:$0xf]
      %v305 = vld [vmem:[%s227 + $0x108] sm:$0xf]
      %v306 = vld [vmem:[%s227 + $0x10c] sm:$0xf]
      %v307 = vld [vmem:[%s227 + $0x110] sm:$0xf]
      %v308 = vld [vmem:[%s227 + $0x114] sm:$0x1]
      %v309 = vld [vmem:[%s227 + $0x118] sm:$0xf]
      %v310 = vld [vmem:[%s227 + $0x11c] sm:$0xf]
      %v311 = vld [vmem:[%s227 + $0x120] sm:$0xf]
      %v312 = vld [vmem:[%s227 + $0x124] sm:$0xf]
      %v313 = vld [vmem:[%s227 + $0x128] sm:$0x1]
      %v314 = vld [vmem:[%s227 + $0x12c] sm:$0xf]
      %v315 = vld [vmem:[%s227 + $0x130] sm:$0xf]
      %v316 = vld [vmem:[%s227 + $0x134] sm:$0xf]
      %v317 = vld [vmem:[%s227 + $0x138] sm:$0xf]
      %v318 = vld [vmem:[%s227 + $0x13c] sm:$0x1]
      %v319 = vld [vmem:[%s227 + $0x140] sm:$0xf]
      %v320 = vld [vmem:[%s227 + $0x144] sm:$0xf]
      %v321 = vld [vmem:[%s227 + $0x148] sm:$0xf]
      %v322 = vld [vmem:[%s227 + $0x14c] sm:$0xf]
      %v323 = vld [vmem:[%s227 + $0x150] sm:$0x1]
      %v324 = vld [vmem:[%s227 + $0x154] sm:$0xf]
      %v325 = vld [vmem:[%s227 + $0x158] sm:$0xf]
      %v326 = vld [vmem:[%s227 + $0x15c] sm:$0xf]
      %v327 = vld [vmem:[%s227 + $0x160] sm:$0xf]
      %v328 = vld [vmem:[%s227 + $0x164] sm:$0x1]
      %v329 = vld [vmem:[%s227 + $0x168] sm:$0xf]
      %v330 = vld [vmem:[%s227 + $0x16c] sm:$0xf]
      %v331 = vld [vmem:[%s227 + $0x170] sm:$0xf]
      %v332 = vld [vmem:[%s227 + $0x174] sm:$0xf]
      %v333 = vld [vmem:[%s227 + $0x178] sm:$0x1]
      %v334 = vld [vmem:[%s227 + $0x17c] sm:$0xf]
      %v335 = vld [vmem:[%s227 + $0x180] sm:$0xf]
      %v336 = vld [vmem:[%s227 + $0x184] sm:$0xf]
      %v337 = vld [vmem:[%s227 + $0x188] sm:$0xf]
      %v338 = vld [vmem:[%s227 + $0x18c] sm:$0x1]
      %v339 = vld [vmem:[%s227 + $0x190] sm:$0xf]
      %v340 = vld [vmem:[%s227 + $0x194] sm:$0xf]
      %v341 = vld [vmem:[%s227 + $0x198] sm:$0xf]
      %v342 = vld [vmem:[%s227 + $0x19c] sm:$0xf]
      %v343 = vld [vmem:[%s227 + $0x1a0] sm:$0x1]
      %v344 = vld [vmem:[%s227 + $0x1a4] sm:$0xf]
      %v345 = vld [vmem:[%s227 + $0x1a8] sm:$0xf]
      %v346 = vld [vmem:[%s227 + $0x1ac] sm:$0xf]
      %v347 = vld [vmem:[%s227 + $0x1b0] sm:$0xf]
      %v348 = vld [vmem:[%s227 + $0x1b4] sm:$0x1]
      %v349 = vld [vmem:[%s227 + $0x1b8] sm:$0xf]
      %v350 = vld [vmem:[%s227 + $0x1bc] sm:$0xf]
      %v351 = vld [vmem:[%s227 + $0x1c0] sm:$0xf]
      %v352 = vld [vmem:[%s227 + $0x1c4] sm:$0xf]
      %v353 = vld [vmem:[%s227 + $0x1c8] sm:$0x1]
      %v354 = vld [vmem:[%s227 + $0x1cc] sm:$0xf]
      %v355 = vld [vmem:[%s227 + $0x1d0] sm:$0xf]
      %v356 = vld [vmem:[%s227 + $0x1d4] sm:$0xf]
      %v357 = vld [vmem:[%s227 + $0x1d8] sm:$0xf]
      %v358 = vld [vmem:[%s227 + $0x1dc] sm:$0x1]
      %v359 = vld [vmem:[%s227 + $0x1e0] sm:$0xf]
      %v360 = vld [vmem:[%s227 + $0x1e4] sm:$0xf]
      %v361 = vld [vmem:[%s227 + $0x1e8] sm:$0xf]
      %v362 = vld [vmem:[%s227 + $0x1ec] sm:$0xf]
      %v363 = vld [vmem:[%s227 + $0x1f0] sm:$0x1]
      %v364 = vld [vmem:[%s227 + $0x1f4] sm:$0xf]
      %v365 = vld [vmem:[%s227 + $0x1f8] sm:$0xf]
      %v366 = vld [vmem:[%s227 + $0x1fc] sm:$0xf]
      %v367 = vld [vmem:[%s227 + $0x200] sm:$0xf]
      %v368 = vld [vmem:[%s227 + $0x204] sm:$0x1]
      %v369 = vld [vmem:[%s227 + $0x208] sm:$0xf]
      %v370 = vld [vmem:[%s227 + $0x20c] sm:$0xf]
      %v371 = vld [vmem:[%s227 + $0x210] sm:$0xf]
      %v372 = vld [vmem:[%s227 + $0x214] sm:$0xf]
      %v373 = vld [vmem:[%s227 + $0x218] sm:$0x1]
      %v374 = vld [vmem:[%s227 + $0x21c] sm:$0xf]
      %v375 = vld [vmem:[%s227 + $0x220] sm:$0xf]
      %v376 = vld [vmem:[%s227 + $0x224] sm:$0xf]
      %v377 = vld [vmem:[%s227 + $0x228] sm:$0xf]
      %v378 = vld [vmem:[%s227 + $0x22c] sm:$0x1]
      %v379 = vld [vmem:[%s227 + $0x230] sm:$0xf]
      %v380 = vld [vmem:[%s227 + $0x234] sm:$0xf]
      %v381 = vld [vmem:[%s227 + $0x238] sm:$0xf]
      %v382 = vld [vmem:[%s227 + $0x23c] sm:$0xf]
      %v383 = vld [vmem:[%s227 + $0x240] sm:$0x1]
      %v384 = vld [vmem:[%s227 + $0x244] sm:$0xf]
      %v385 = vld [vmem:[%s227 + $0x248] sm:$0xf]
      %v386 = vld [vmem:[%s227 + $0x24c] sm:$0xf]
      %v387 = vld [vmem:[%s227 + $0x250] sm:$0xf]
      %v388 = vld [vmem:[%s227 + $0x254] sm:$0x1]
      %v389 = vld [vmem:[%s227 + $0x258] sm:$0xf]
      %v390 = vld [vmem:[%s227 + $0x25c] sm:$0xf]
      %v391 = vld [vmem:[%s227 + $0x260] sm:$0xf]
      %v392 = vld [vmem:[%s227 + $0x264] sm:$0xf]
      %v393 = vld [vmem:[%s227 + $0x268] sm:$0x1]
      %v394 = vld [vmem:[%s227 + $0x26c] sm:$0xf]
      %v395 = vld [vmem:[%s227 + $0x270] sm:$0xf]
      %v396 = vld [vmem:[%s227 + $0x274] sm:$0xf]
      %v397 = vld [vmem:[%s227 + $0x278] sm:$0xf]
      %v398 = vld [vmem:[%s227 + $0x27c] sm:$0x1]
      %v399 = vld [vmem:[%s227 + $0x280] sm:$0xf]
      %v400 = vld [vmem:[%s227 + $0x284] sm:$0xf]
      %v401 = vld [vmem:[%s227 + $0x288] sm:$0xf]
      %v402 = vld [vmem:[%s227 + $0x28c] sm:$0xf]
      %v403 = vld [vmem:[%s227 + $0x290] sm:$0x1]
      %v404 = vld [vmem:[%s227 + $0x294] sm:$0xf]
      %v405 = vld [vmem:[%s227 + $0x298] sm:$0xf]
      %v406 = vld [vmem:[%s227 + $0x29c] sm:$0xf]
      %v407 = vld [vmem:[%s227 + $0x2a0] sm:$0xf]
      %v408 = vld [vmem:[%s227 + $0x2a4] sm:$0x1]
      %v409 = vunpack.c.l.bf16 %v239
      %v410 = vunpack.c.l.bf16 %v240
      %v411 = vunpack.c.l.bf16 %v241
      %v412 = vunpack.c.l.bf16 %v242
      %v413 = vunpack.c.l.bf16 %v243
      %v414 = vunpack.c.l.bf16 %v244
      %v415 = vunpack.c.l.bf16 %v245
      %v416 = vunpack.c.l.bf16 %v246
      %v417 = vunpack.c.l.bf16 %v247
      %v418 = vunpack.c.l.bf16 %v248
      %v419 = vunpack.c.l.bf16 %v249
      %v420 = vunpack.c.l.bf16 %v250
      %v421 = vunpack.c.l.bf16 %v251
      %v422 = vunpack.c.l.bf16 %v252
      %v423 = vunpack.c.l.bf16 %v253
      %v424 = vunpack.c.l.bf16 %v254
      %v425 = vunpack.c.l.bf16 %v255
      %v426 = vunpack.c.l.bf16 %v256
      %v427 = vunpack.c.l.bf16 %v257
      %v428 = vunpack.c.l.bf16 %v258
      %v429 = vunpack.c.l.bf16 %v259
      %v430 = vunpack.c.l.bf16 %v260
      %v431 = vunpack.c.l.bf16 %v261
      %v432 = vunpack.c.l.bf16 %v262
      %v433 = vunpack.c.l.bf16 %v263
      %v434 = vunpack.c.l.bf16 %v264
      %v435 = vunpack.c.l.bf16 %v265
      %v436 = vunpack.c.l.bf16 %v266
      %v437 = vunpack.c.l.bf16 %v267
      %v438 = vunpack.c.l.bf16 %v268
      %v439 = vunpack.c.l.bf16 %v269
      %v440 = vunpack.c.l.bf16 %v270
      %v441 = vunpack.c.l.bf16 %v271
      %v442 = vunpack.c.l.bf16 %v272
      %v443 = vunpack.c.l.bf16 %v273
      %v444 = vunpack.c.l.bf16 %v274
      %v445 = vunpack.c.l.bf16 %v275
      %v446 = vunpack.c.l.bf16 %v276
      %v447 = vunpack.c.l.bf16 %v277
      %v448 = vunpack.c.l.bf16 %v278
      %v449 = vunpack.c.l.bf16 %v279
      %v450 = vunpack.c.l.bf16 %v280
      %v451 = vunpack.c.l.bf16 %v281
      %v452 = vunpack.c.l.bf16 %v282
      %v453 = vunpack.c.l.bf16 %v283
      %v454 = vunpack.c.l.bf16 %v284
      %v455 = vunpack.c.l.bf16 %v285
      %v456 = vunpack.c.l.bf16 %v286
      %v457 = vunpack.c.l.bf16 %v287
      %v458 = vunpack.c.l.bf16 %v288
      %v459 = vunpack.c.l.bf16 %v289
      %v460 = vunpack.c.l.bf16 %v290
      %v461 = vunpack.c.l.bf16 %v291
      %v462 = vunpack.c.l.bf16 %v292
      %v463 = vunpack.c.l.bf16 %v293
      %v464 = vunpack.c.l.bf16 %v294
      %v465 = vunpack.c.l.bf16 %v295
      %v466 = vunpack.c.l.bf16 %v296
      %v467 = vunpack.c.l.bf16 %v297
      %v468 = vunpack.c.l.bf16 %v298
      %v469 = vunpack.c.l.bf16 %v299
      %v470 = vunpack.c.l.bf16 %v300
      %v471 = vunpack.c.l.bf16 %v301
      %v472 = vunpack.c.l.bf16 %v302
      %v473 = vunpack.c.l.bf16 %v303
      %v474 = vunpack.c.l.bf16 %v304
      %v475 = vunpack.c.l.bf16 %v305
      %v476 = vunpack.c.l.bf16 %v306
      %v477 = vunpack.c.l.bf16 %v307
      %v478 = vunpack.c.l.bf16 %v308
      %v479 = vunpack.c.l.bf16 %v309
      %v480 = vunpack.c.l.bf16 %v310
      %v481 = vunpack.c.l.bf16 %v311
      %v482 = vunpack.c.l.bf16 %v312
      %v483 = vunpack.c.l.bf16 %v313
      %v484 = vunpack.c.l.bf16 %v314
      %v485 = vunpack.c.l.bf16 %v315
      %v486 = vunpack.c.l.bf16 %v316
      %v487 = vunpack.c.l.bf16 %v317
      %v488 = vunpack.c.l.bf16 %v318
      %v489 = vunpack.c.l.bf16 %v319
      %v490 = vunpack.c.l.bf16 %v320
      %v491 = vunpack.c.l.bf16 %v321
      %v492 = vunpack.c.l.bf16 %v322
      %v493 = vunpack.c.l.bf16 %v323
      %v494 = vunpack.c.l.bf16 %v324
      %v495 = vunpack.c.l.bf16 %v325
      %v496 = vunpack.c.l.bf16 %v326
      %v497 = vunpack.c.l.bf16 %v327
      %v498 = vunpack.c.l.bf16 %v328
      %v499 = vunpack.c.l.bf16 %v329
      %v500 = vunpack.c.l.bf16 %v330
      %v501 = vunpack.c.l.bf16 %v331
      %v502 = vunpack.c.l.bf16 %v332
      %v503 = vunpack.c.l.bf16 %v333
      %v504 = vunpack.c.l.bf16 %v334
      %v505 = vunpack.c.l.bf16 %v335
      %v506 = vunpack.c.l.bf16 %v336
      %v507 = vunpack.c.l.bf16 %v337
      %v508 = vunpack.c.l.bf16 %v338
      %v509 = vunpack.c.l.bf16 %v339
      %v510 = vunpack.c.l.bf16 %v340
      %v511 = vunpack.c.l.bf16 %v341
      %v512 = vunpack.c.l.bf16 %v342
      %v513 = vunpack.c.l.bf16 %v343
      %v514 = vunpack.c.l.bf16 %v344
      %v515 = vunpack.c.l.bf16 %v345
      %v516 = vunpack.c.l.bf16 %v346
      %v517 = vunpack.c.l.bf16 %v347
      %v518 = vunpack.c.l.bf16 %v348
      %v519 = vunpack.c.l.bf16 %v349
      %v520 = vunpack.c.l.bf16 %v350
      %v521 = vunpack.c.l.bf16 %v351
      %v522 = vunpack.c.l.bf16 %v352
      %v523 = vunpack.c.l.bf16 %v353
      %v524 = vunpack.c.l.bf16 %v354
      %v525 = vunpack.c.l.bf16 %v355
      %v526 = vunpack.c.l.bf16 %v356
      %v527 = vunpack.c.l.bf16 %v357
      %v528 = vunpack.c.l.bf16 %v358
      %v529 = vunpack.c.l.bf16 %v359
      %v530 = vunpack.c.l.bf16 %v360
      %v531 = vunpack.c.l.bf16 %v361
      %v532 = vunpack.c.l.bf16 %v362
      %v533 = vunpack.c.l.bf16 %v363
      %v534 = vunpack.c.l.bf16 %v364
      %v535 = vunpack.c.l.bf16 %v365
      %v536 = vunpack.c.l.bf16 %v366
      %v537 = vunpack.c.l.bf16 %v367
      %v538 = vunpack.c.l.bf16 %v368
      %v539 = vunpack.c.l.bf16 %v369
      %v540 = vunpack.c.l.bf16 %v370
      %v541 = vunpack.c.l.bf16 %v371
      %v542 = vunpack.c.l.bf16 %v372
      %v543 = vunpack.c.l.bf16 %v373
      %v544 = vunpack.c.l.bf16 %v374
      %v545 = vunpack.c.l.bf16 %v375
      %v546 = vunpack.c.l.bf16 %v376
      %v547 = vunpack.c.l.bf16 %v377
      %v548 = vunpack.c.l.bf16 %v378
      %v549 = vunpack.c.l.bf16 %v379
      %v550 = vunpack.c.l.bf16 %v380
      %v551 = vunpack.c.l.bf16 %v381
      %v552 = vunpack.c.l.bf16 %v382
      %v553 = vunpack.c.l.bf16 %v383
      %v554 = vunpack.c.l.bf16 %v384
      %v555 = vunpack.c.l.bf16 %v385
      %v556 = vunpack.c.l.bf16 %v386
      %v557 = vunpack.c.l.bf16 %v387
      %v558 = vunpack.c.l.bf16 %v388
      %v559 = vunpack.c.l.bf16 %v389
      %v560 = vunpack.c.l.bf16 %v390
      %v561 = vunpack.c.l.bf16 %v391
      %v562 = vunpack.c.l.bf16 %v392
      %v563 = vunpack.c.l.bf16 %v393
      %v564 = vunpack.c.l.bf16 %v394
      %v565 = vunpack.c.l.bf16 %v395
      %v566 = vunpack.c.l.bf16 %v396
      %v567 = vunpack.c.l.bf16 %v397
      %v568 = vunpack.c.l.bf16 %v398
      %v569 = vunpack.c.l.bf16 %v399
      %v570 = vunpack.c.l.bf16 %v400
      %v571 = vunpack.c.l.bf16 %v401
      %v572 = vunpack.c.l.bf16 %v402
      %v573 = vunpack.c.l.bf16 %v403
      %v574 = vunpack.c.l.bf16 %v404
      %v575 = vunpack.c.l.bf16 %v405
      %v576 = vunpack.c.l.bf16 %v406
      %v577 = vunpack.c.l.bf16 %v407
      %v578 = vunpack.c.l.bf16 %v408
      %v579 = vpack.c.bf16 %v410, %v409
      %v580 = vpack.c.bf16 %v412, %v411
      %v581 = vpack.c.bf16 %v415, %v414
      %v582 = vpack.c.bf16 %v417, %v416
      %v583 = vpack.c.bf16 %v420, %v419
      %v584 = vpack.c.bf16 %v422, %v421
      %v585 = vpack.c.bf16 %v425, %v424
      %v586 = vpack.c.bf16 %v427, %v426
      %v587 = vpack.c.bf16 %v430, %v429
      %v588 = vpack.c.bf16 %v432, %v431
      %v589 = vpack.c.bf16 %v435, %v434
      %v590 = vpack.c.bf16 %v437, %v436
      %v591 = vpack.c.bf16 %v440, %v439
      %v592 = vpack.c.bf16 %v442, %v441
      %v593 = vpack.c.bf16 %v445, %v444
      %v594 = vpack.c.bf16 %v447, %v446
      %v595 = vpack.c.bf16 %v450, %v449
      %v596 = vpack.c.bf16 %v452, %v451
      %v597 = vpack.c.bf16 %v455, %v454
      %v598 = vpack.c.bf16 %v457, %v456
      %v599 = vpack.c.bf16 %v460, %v459
      %v600 = vpack.c.bf16 %v462, %v461
      %v601 = vpack.c.bf16 %v465, %v464
      %v602 = vpack.c.bf16 %v467, %v466
      %v603 = vpack.c.bf16 %v470, %v469
      %v604 = vpack.c.bf16 %v472, %v471
      %v605 = vpack.c.bf16 %v475, %v474
      %v606 = vpack.c.bf16 %v477, %v476
      %v607 = vpack.c.bf16 %v480, %v479
      %v608 = vpack.c.bf16 %v482, %v481
      %v609 = vpack.c.bf16 %v485, %v484
      %v610 = vpack.c.bf16 %v487, %v486
      %v611 = vpack.c.bf16 %v490, %v489
      %v612 = vpack.c.bf16 %v492, %v491
      %v613 = vpack.c.bf16 %v495, %v494
      %v614 = vpack.c.bf16 %v497, %v496
      %v615 = vpack.c.bf16 %v500, %v499
      %v616 = vpack.c.bf16 %v502, %v501
      %v617 = vpack.c.bf16 %v505, %v504
      %v618 = vpack.c.bf16 %v507, %v506
      %v619 = vpack.c.bf16 %v510, %v509
      %v620 = vpack.c.bf16 %v512, %v511
      %v621 = vpack.c.bf16 %v515, %v514
      %v622 = vpack.c.bf16 %v517, %v516
      %v623 = vpack.c.bf16 %v520, %v519
      %v624 = vpack.c.bf16 %v522, %v521
      %v625 = vpack.c.bf16 %v525, %v524
      %v626 = vpack.c.bf16 %v527, %v526
      %v627 = vpack.c.bf16 %v530, %v529
      %v628 = vpack.c.bf16 %v532, %v531
      %v629 = vpack.c.bf16 %v535, %v534
      %v630 = vpack.c.bf16 %v537, %v536
      %v631 = vpack.c.bf16 %v540, %v539
      %v632 = vpack.c.bf16 %v542, %v541
      %v633 = vpack.c.bf16 %v545, %v544
      %v634 = vpack.c.bf16 %v547, %v546
      %v635 = vpack.c.bf16 %v550, %v549
      %v636 = vpack.c.bf16 %v552, %v551
      %v637 = vpack.c.bf16 %v555, %v554
      %v638 = vpack.c.bf16 %v557, %v556
      %v639 = vpack.c.bf16 %v560, %v559
      %v640 = vpack.c.bf16 %v562, %v561
      %v641 = vpack.c.bf16 %v565, %v564
      %v642 = vpack.c.bf16 %v567, %v566
      %v643 = vld [vmem:[%s1] sm:$0x3]
      %vm804 = vcmask 1046528
      %v805 = vrot.slane %v409, 1
      %v806 = vrot.slane %v410, 1
      %v807 = vsel %vm804, %v805, %v806
      %v808 = vrot.slane %v411, 1
      %v809 = vsel %vm804, %v806, %v808
      %v810 = vrot.slane %v412, 1
      %v811 = vsel %vm804, %v808, %v810
      %v812 = vrot.slane %v413, 1
      %v813 = vsel %vm804, %v810, %v812
      %v814 = vrot.slane %v414, 1
      %v815 = vrot.slane %v415, 1
      %v816 = vsel %vm804, %v814, %v815
      %v817 = vrot.slane %v416, 1
      %v818 = vsel %vm804, %v815, %v817
      %v819 = vrot.slane %v417, 1
      %v820 = vsel %vm804, %v817, %v819
      %v821 = vrot.slane %v418, 1
      %v822 = vsel %vm804, %v819, %v821
      %v823 = vrot.slane %v419, 1
      %v824 = vrot.slane %v420, 1
      %v825 = vsel %vm804, %v823, %v824
      %v826 = vrot.slane %v421, 1
      %v827 = vsel %vm804, %v824, %v826
      %v828 = vrot.slane %v422, 1
      %v829 = vsel %vm804, %v826, %v828
      %v830 = vrot.slane %v423, 1
      %v831 = vsel %vm804, %v828, %v830
      %v832 = vrot.slane %v424, 1
      %v833 = vrot.slane %v425, 1
      %v834 = vsel %vm804, %v832, %v833
      %v835 = vrot.slane %v426, 1
      %v836 = vsel %vm804, %v833, %v835
      %v837 = vrot.slane %v427, 1
      %v838 = vsel %vm804, %v835, %v837
      %v839 = vrot.slane %v428, 1
      %v840 = vsel %vm804, %v837, %v839
      %v841 = vrot.slane %v429, 1
      %v842 = vrot.slane %v430, 1
      %v843 = vsel %vm804, %v841, %v842
      %v844 = vrot.slane %v431, 1
      %v845 = vsel %vm804, %v842, %v844
      %v846 = vrot.slane %v432, 1
      %v847 = vsel %vm804, %v844, %v846
      %v848 = vrot.slane %v433, 1
      %v849 = vsel %vm804, %v846, %v848
      %v850 = vrot.slane %v434, 1
      %v851 = vrot.slane %v435, 1
      %v852 = vsel %vm804, %v850, %v851
      %v853 = vrot.slane %v436, 1
      %v854 = vsel %vm804, %v851, %v853
      %v855 = vrot.slane %v437, 1
      %v856 = vsel %vm804, %v853, %v855
      %v857 = vrot.slane %v438, 1
      %v858 = vsel %vm804, %v855, %v857
      %v859 = vrot.slane %v439, 1
      %v860 = vrot.slane %v440, 1
      %v861 = vsel %vm804, %v859, %v860
      %v862 = vrot.slane %v441, 1
      %v863 = vsel %vm804, %v860, %v862
      %v864 = vrot.slane %v442, 1
      %v865 = vsel %vm804, %v862, %v864
      %v866 = vrot.slane %v443, 1
      %v867 = vsel %vm804, %v864, %v866
      %v868 = vrot.slane %v444, 1
      %v869 = vrot.slane %v445, 1
      %v870 = vsel %vm804, %v868, %v869
      %v871 = vrot.slane %v446, 1
      %v872 = vsel %vm804, %v869, %v871
      %v873 = vrot.slane %v447, 1
      %v874 = vsel %vm804, %v871, %v873
      %v875 = vrot.slane %v448, 1
      %v876 = vsel %vm804, %v873, %v875
      %v877 = vrot.slane %v449, 1
      %v878 = vrot.slane %v450, 1
      %v879 = vsel %vm804, %v877, %v878
      %v880 = vrot.slane %v451, 1
      %v881 = vsel %vm804, %v878, %v880
      %v882 = vrot.slane %v452, 1
      %v883 = vsel %vm804, %v880, %v882
      %v884 = vrot.slane %v453, 1
      %v885 = vsel %vm804, %v882, %v884
      %v886 = vrot.slane %v454, 1
      %v887 = vrot.slane %v455, 1
      %v888 = vsel %vm804, %v886, %v887
      %v889 = vrot.slane %v456, 1
      %v890 = vsel %vm804, %v887, %v889
      %v891 = vrot.slane %v457, 1
      %v892 = vsel %vm804, %v889, %v891
      %v893 = vrot.slane %v458, 1
      %v894 = vsel %vm804, %v891, %v893
      %v895 = vrot.slane %v459, 1
      %v896 = vrot.slane %v460, 1
      %v897 = vsel %vm804, %v895, %v896
      %v898 = vrot.slane %v461, 1
      %v899 = vsel %vm804, %v896, %v898
      %v900 = vrot.slane %v462, 1
      %v901 = vsel %vm804, %v898, %v900
      %v902 = vrot.slane %v463, 1
      %v903 = vsel %vm804, %v900, %v902
      %v904 = vrot.slane %v464, 1
      %v905 = vrot.slane %v465, 1
      %v906 = vsel %vm804, %v904, %v905
      %v907 = vrot.slane %v466, 1
      %v908 = vsel %vm804, %v905, %v907
      %v909 = vrot.slane %v467, 1
      %v910 = vsel %vm804, %v907, %v909
      %v911 = vrot.slane %v468, 1
      %v912 = vsel %vm804, %v909, %v911
      %v913 = vrot.slane %v469, 1
      %v914 = vrot.slane %v470, 1
      %v915 = vsel %vm804, %v913, %v914
      %v916 = vrot.slane %v471, 1
      %v917 = vsel %vm804, %v914, %v916
      %v918 = vrot.slane %v472, 1
      %v919 = vsel %vm804, %v916, %v918
      %v920 = vrot.slane %v473, 1
      %v921 = vsel %vm804, %v918, %v920
      %v922 = vrot.slane %v474, 1
      %v923 = vrot.slane %v475, 1
      %v924 = vsel %vm804, %v922, %v923
      %v925 = vrot.slane %v476, 1
      %v926 = vsel %vm804, %v923, %v925
      %v927 = vrot.slane %v477, 1
      %v928 = vsel %vm804, %v925, %v927
      %v929 = vrot.slane %v478, 1
      %v930 = vsel %vm804, %v927, %v929
      %v931 = vrot.slane %v479, 1
      %v932 = vrot.slane %v480, 1
      %v933 = vsel %vm804, %v931, %v932
      %v934 = vrot.slane %v481, 1
      %v935 = vsel %vm804, %v932, %v934
      %v936 = vrot.slane %v482, 1
      %v937 = vsel %vm804, %v934, %v936
      %v938 = vrot.slane %v483, 1
      %v939 = vsel %vm804, %v936, %v938
      %v940 = vrot.slane %v484, 1
      %v941 = vrot.slane %v485, 1
      %v942 = vsel %vm804, %v940, %v941
      %v943 = vrot.slane %v486, 1
      %v944 = vsel %vm804, %v941, %v943
      %v945 = vrot.slane %v487, 1
      %v946 = vsel %vm804, %v943, %v945
      %v947 = vrot.slane %v488, 1
      %v948 = vsel %vm804, %v945, %v947
      %v949 = vrot.slane %v489, 1
      %v950 = vrot.slane %v490, 1
      %v951 = vsel %vm804, %v949, %v950
      %v952 = vrot.slane %v491, 1
      %v953 = vsel %vm804, %v950, %v952
      %v954 = vrot.slane %v492, 1
      %v955 = vsel %vm804, %v952, %v954
      %v956 = vrot.slane %v493, 1
      %v957 = vsel %vm804, %v954, %v956
      %v958 = vrot.slane %v494, 1
      %v959 = vrot.slane %v495, 1
      %v960 = vsel %vm804, %v958, %v959
      %v961 = vrot.slane %v496, 1
      %v962 = vsel %vm804, %v959, %v961
      %v963 = vrot.slane %v497, 1
      %v964 = vsel %vm804, %v961, %v963
      %v965 = vrot.slane %v498, 1
      %v966 = vsel %vm804, %v963, %v965
      %v967 = vrot.slane %v499, 1
      %v968 = vrot.slane %v500, 1
      %v969 = vsel %vm804, %v967, %v968
      %v970 = vrot.slane %v501, 1
      %v971 = vsel %vm804, %v968, %v970
      %v972 = vrot.slane %v502, 1
      %v973 = vsel %vm804, %v970, %v972
      %v974 = vrot.slane %v503, 1
      %v975 = vsel %vm804, %v972, %v974
      %v976 = vrot.slane %v504, 1
      %v977 = vrot.slane %v505, 1
      %v978 = vsel %vm804, %v976, %v977
      %v979 = vrot.slane %v506, 1
      %v980 = vsel %vm804, %v977, %v979
      %v981 = vrot.slane %v507, 1
      %v982 = vsel %vm804, %v979, %v981
      %v983 = vrot.slane %v508, 1
      %v984 = vsel %vm804, %v981, %v983
      %v985 = vrot.slane %v509, 1
      %v986 = vrot.slane %v510, 1
      %v987 = vsel %vm804, %v985, %v986
      %v988 = vrot.slane %v511, 1
      %v989 = vsel %vm804, %v986, %v988
      %v990 = vrot.slane %v512, 1
      %v991 = vsel %vm804, %v988, %v990
      %v992 = vrot.slane %v513, 1
      %v993 = vsel %vm804, %v990, %v992
      %v994 = vrot.slane %v514, 1
      %v995 = vrot.slane %v515, 1
      %v996 = vsel %vm804, %v994, %v995
      %v997 = vrot.slane %v516, 1
      %v998 = vsel %vm804, %v995, %v997
      %v999 = vrot.slane %v517, 1
      %v1000 = vsel %vm804, %v997, %v999
      %v1001 = vrot.slane %v518, 1
      %v1002 = vsel %vm804, %v999, %v1001
      %v1003 = vrot.slane %v519, 1
      %v1004 = vrot.slane %v520, 1
      %v1005 = vsel %vm804, %v1003, %v1004
      %v1006 = vrot.slane %v521, 1
      %v1007 = vsel %vm804, %v1004, %v1006
      %v1008 = vrot.slane %v522, 1
      %v1009 = vsel %vm804, %v1006, %v1008
      %v1010 = vrot.slane %v523, 1
      %v1011 = vsel %vm804, %v1008, %v1010
      %v1012 = vrot.slane %v524, 1
      %v1013 = vrot.slane %v525, 1
      %v1014 = vsel %vm804, %v1012, %v1013
      %v1015 = vrot.slane %v526, 1
      %v1016 = vsel %vm804, %v1013, %v1015
      %v1017 = vrot.slane %v527, 1
      %v1018 = vsel %vm804, %v1015, %v1017
      %v1019 = vrot.slane %v528, 1
      %v1020 = vsel %vm804, %v1017, %v1019
      %v1021 = vrot.slane %v529, 1
      %v1022 = vrot.slane %v530, 1
      %v1023 = vsel %vm804, %v1021, %v1022
      %v1024 = vrot.slane %v531, 1
      %v1025 = vsel %vm804, %v1022, %v1024
      %v1026 = vrot.slane %v532, 1
      %v1027 = vsel %vm804, %v1024, %v1026
      %v1028 = vrot.slane %v533, 1
      %v1029 = vsel %vm804, %v1026, %v1028
      %v1030 = vrot.slane %v534, 1
      %v1031 = vrot.slane %v535, 1
      %v1032 = vsel %vm804, %v1030, %v1031
      %v1033 = vrot.slane %v536, 1
      %v1034 = vsel %vm804, %v1031, %v1033
      %v1035 = vrot.slane %v537, 1
      %v1036 = vsel %vm804, %v1033, %v1035
      %v1037 = vrot.slane %v538, 1
      %v1038 = vsel %vm804, %v1035, %v1037
      %v1039 = vrot.slane %v539, 1
      %v1040 = vrot.slane %v540, 1
      %v1041 = vsel %vm804, %v1039, %v1040
      %v1042 = vrot.slane %v541, 1
      %v1043 = vsel %vm804, %v1040, %v1042
      %v1044 = vrot.slane %v542, 1
      %v1045 = vsel %vm804, %v1042, %v1044
      %v1046 = vrot.slane %v543, 1
      %v1047 = vsel %vm804, %v1044, %v1046
      %v1048 = vrot.slane %v544, 1
      %v1049 = vrot.slane %v545, 1
      %v1050 = vsel %vm804, %v1048, %v1049
      %v1051 = vrot.slane %v546, 1
      %v1052 = vsel %vm804, %v1049, %v1051
      %v1053 = vrot.slane %v547, 1
      %v1054 = vsel %vm804, %v1051, %v1053
      %v1055 = vrot.slane %v548, 1
      %v1056 = vsel %vm804, %v1053, %v1055
      %v1057 = vrot.slane %v549, 1
      %v1058 = vrot.slane %v550, 1
      %v1059 = vsel %vm804, %v1057, %v1058
      %v1060 = vrot.slane %v551, 1
      %v1061 = vsel %vm804, %v1058, %v1060
      %v1062 = vrot.slane %v552, 1
      %v1063 = vsel %vm804, %v1060, %v1062
      %v1064 = vrot.slane %v553, 1
      %v1065 = vsel %vm804, %v1062, %v1064
      %v1066 = vrot.slane %v554, 1
      %v1067 = vrot.slane %v555, 1
      %v1068 = vsel %vm804, %v1066, %v1067
      %v1069 = vrot.slane %v556, 1
      %v1070 = vsel %vm804, %v1067, %v1069
      %v1071 = vrot.slane %v557, 1
      %v1072 = vsel %vm804, %v1069, %v1071
      %v1073 = vrot.slane %v558, 1
      %v1074 = vsel %vm804, %v1071, %v1073
      %v1075 = vrot.slane %v559, 1
      %v1076 = vrot.slane %v560, 1
      %v1077 = vsel %vm804, %v1075, %v1076
      %v1078 = vrot.slane %v561, 1
      %v1079 = vsel %vm804, %v1076, %v1078
      %v1080 = vrot.slane %v562, 1
      %v1081 = vsel %vm804, %v1078, %v1080
      %v1082 = vrot.slane %v563, 1
      %v1083 = vsel %vm804, %v1080, %v1082
      %v1084 = vrot.slane %v564, 1
      %v1085 = vrot.slane %v565, 1
      %v1086 = vsel %vm804, %v1084, %v1085
      %v1087 = vrot.slane %v566, 1
      %v1088 = vsel %vm804, %v1085, %v1087
      %v1089 = vrot.slane %v567, 1
      %v1090 = vsel %vm804, %v1087, %v1089
      %v1091 = vrot.slane %v568, 1
      %v1092 = vsel %vm804, %v1089, %v1091
      %v1221 = vpack.c.bf16 %v809, %v807
      %v1222 = vpack.c.bf16 %v813, %v811
      %v1223 = vpack.c.bf16 %v818, %v816
      %v1224 = vpack.c.bf16 %v822, %v820
      %v1225 = vpack.c.bf16 %v827, %v825
      %v1226 = vpack.c.bf16 %v831, %v829
      %v1227 = vpack.c.bf16 %v836, %v834
      %v1228 = vpack.c.bf16 %v840, %v838
      %v1229 = vpack.c.bf16 %v845, %v843
      %v1230 = vpack.c.bf16 %v849, %v847
      %v1231 = vpack.c.bf16 %v854, %v852
      %v1232 = vpack.c.bf16 %v858, %v856
      %v1233 = vpack.c.bf16 %v863, %v861
      %v1234 = vpack.c.bf16 %v867, %v865
      %v1235 = vpack.c.bf16 %v872, %v870
      %v1236 = vpack.c.bf16 %v876, %v874
      %v1237 = vpack.c.bf16 %v881, %v879
      %v1238 = vpack.c.bf16 %v885, %v883
      %v1239 = vpack.c.bf16 %v890, %v888
      %v1240 = vpack.c.bf16 %v894, %v892
      %v1241 = vpack.c.bf16 %v899, %v897
      %v1242 = vpack.c.bf16 %v903, %v901
      %v1243 = vpack.c.bf16 %v908, %v906
      %v1244 = vpack.c.bf16 %v912, %v910
      %v1245 = vpack.c.bf16 %v917, %v915
      %v1246 = vpack.c.bf16 %v921, %v919
      %v1247 = vpack.c.bf16 %v926, %v924
      %v1248 = vpack.c.bf16 %v930, %v928
      %v1249 = vpack.c.bf16 %v935, %v933
      %v1250 = vpack.c.bf16 %v939, %v937
      %v1251 = vpack.c.bf16 %v944, %v942
      %v1252 = vpack.c.bf16 %v948, %v946
      %v1253 = vpack.c.bf16 %v953, %v951
      %v1254 = vpack.c.bf16 %v957, %v955
      %v1255 = vpack.c.bf16 %v962, %v960
      %v1256 = vpack.c.bf16 %v966, %v964
      %v1257 = vpack.c.bf16 %v971, %v969
      %v1258 = vpack.c.bf16 %v975, %v973
      %v1259 = vpack.c.bf16 %v980, %v978
      %v1260 = vpack.c.bf16 %v984, %v982
      %v1261 = vpack.c.bf16 %v989, %v987
      %v1262 = vpack.c.bf16 %v993, %v991
      %v1263 = vpack.c.bf16 %v998, %v996
      %v1264 = vpack.c.bf16 %v1002, %v1000
      %v1265 = vpack.c.bf16 %v1007, %v1005
      %v1266 = vpack.c.bf16 %v1011, %v1009
      %v1267 = vpack.c.bf16 %v1016, %v1014
      %v1268 = vpack.c.bf16 %v1020, %v1018
      %v1269 = vpack.c.bf16 %v1025, %v1023
      %v1270 = vpack.c.bf16 %v1029, %v1027
      %v1271 = vpack.c.bf16 %v1034, %v1032
      %v1272 = vpack.c.bf16 %v1038, %v1036
      %v1273 = vpack.c.bf16 %v1043, %v1041
      %v1274 = vpack.c.bf16 %v1047, %v1045
      %v1275 = vpack.c.bf16 %v1052, %v1050
      %v1276 = vpack.c.bf16 %v1056, %v1054
      %v1277 = vpack.c.bf16 %v1061, %v1059
      %v1278 = vpack.c.bf16 %v1065, %v1063
      %v1279 = vpack.c.bf16 %v1070, %v1068
      %v1280 = vpack.c.bf16 %v1074, %v1072
      %v1281 = vpack.c.bf16 %v1079, %v1077
      %v1282 = vpack.c.bf16 %v1083, %v1081
      %v1283 = vpack.c.bf16 %v1088, %v1086
      %v1284 = vpack.c.bf16 %v1092, %v1090
      %s1285 = scalar_lea.vmem %s1, 2
      %v1286 = vld [vmem:[%s1285] sm:$0x3]
      %vm1287 = vcmask 23552
      %v1289 = vsel %vm1287, %v1221, 0
      %v1292 = vsel %vm1287, %v1222, 0
      %v1295 = vsel %vm1287, %v1223, 0
      %v1298 = vsel %vm1287, %v1224, 0
      %v1301 = vsel %vm1287, %v1225, 0
      %v1304 = vsel %vm1287, %v1226, 0
      %v1307 = vsel %vm1287, %v1227, 0
      %v1310 = vsel %vm1287, %v1228, 0
      %v1313 = vsel %vm1287, %v1229, 0
      %v1316 = vsel %vm1287, %v1230, 0
      %v1319 = vsel %vm1287, %v1231, 0
      %v1322 = vsel %vm1287, %v1232, 0
      %v1325 = vsel %vm1287, %v1233, 0
      %v1328 = vsel %vm1287, %v1234, 0
      %v1331 = vsel %vm1287, %v1235, 0
      %v1334 = vsel %vm1287, %v1236, 0
      %v1337 = vsel %vm1287, %v1237, 0
      %v1340 = vsel %vm1287, %v1238, 0
      %v1343 = vsel %vm1287, %v1239, 0
      %v1346 = vsel %vm1287, %v1240, 0
      %v1349 = vsel %vm1287, %v1241, 0
      %v1352 = vsel %vm1287, %v1242, 0
      %v1355 = vsel %vm1287, %v1243, 0
      %v1358 = vsel %vm1287, %v1244, 0
      %v1361 = vsel %vm1287, %v1245, 0
      %v1364 = vsel %vm1287, %v1246, 0
      %v1367 = vsel %vm1287, %v1247, 0
      %v1370 = vsel %vm1287, %v1248, 0
      %v1373 = vsel %vm1287, %v1249, 0
      %v1376 = vsel %vm1287, %v1250, 0
      %v1379 = vsel %vm1287, %v1251, 0
      %v1382 = vsel %vm1287, %v1252, 0
      %v1385 = vsel %vm1287, %v1253, 0
      %v1388 = vsel %vm1287, %v1254, 0
      %v1391 = vsel %vm1287, %v1255, 0
      %v1394 = vsel %vm1287, %v1256, 0
      %v1397 = vsel %vm1287, %v1257, 0
      %v1400 = vsel %vm1287, %v1258, 0
      %v1403 = vsel %vm1287, %v1259, 0
      %v1406 = vsel %vm1287, %v1260, 0
      %v1409 = vsel %vm1287, %v1261, 0
      %v1412 = vsel %vm1287, %v1262, 0
      %v1415 = vsel %vm1287, %v1263, 0
      %v1418 = vsel %vm1287, %v1264, 0
      %v1421 = vsel %vm1287, %v1265, 0
      %v1424 = vsel %vm1287, %v1266, 0
      %v1427 = vsel %vm1287, %v1267, 0
      %v1430 = vsel %vm1287, %v1268, 0
      %v1433 = vsel %vm1287, %v1269, 0
      %v1436 = vsel %vm1287, %v1270, 0
      %v1439 = vsel %vm1287, %v1271, 0
      %v1442 = vsel %vm1287, %v1272, 0
      %v1445 = vsel %vm1287, %v1273, 0
      %v1448 = vsel %vm1287, %v1274, 0
      %v1451 = vsel %vm1287, %v1275, 0
      %v1454 = vsel %vm1287, %v1276, 0
      %v1457 = vsel %vm1287, %v1277, 0
      %v1460 = vsel %vm1287, %v1278, 0
      %v1463 = vsel %vm1287, %v1279, 0
      %v1466 = vsel %vm1287, %v1280, 0
      %v1469 = vsel %vm1287, %v1281, 0
      %v1472 = vsel %vm1287, %v1282, 0
      %v1475 = vsel %vm1287, %v1283, 0
      %v1478 = vsel %vm1287, %v1284, 0
      %vm1480 = vcmask 1040384
      %vm1481 = vcmask 1041408
      %v1482 = vsel %vm1480, 4294967295, 65535
      %v1483 = vsel %vm1481, %v1482, 0
      %v1485 = vand.u32 %v1286, %v1483
      %1487 = vmatprep.subr.bf16.mxu0 0
      %1488 = vmatpush1.bf16.msra.mxu0 %v1485
      %1489 = vmatprep.subr.bf16.mxu0 0
      %1490 = vmatpush1.bf16.msra.mxu0 0
      %1491 = vmatprep.subr.bf16.mxu0 0
      %1492 = vmatpush1.bf16.msra.mxu0 0
      %1493 = vmatprep.subr.bf16.mxu0 0
      %1494 = vmatpush1.bf16.msra.mxu0 0
      %1495 = vmatprep.subr.bf16.mxu0 0
      %1496 = vmatpush1.bf16.msra.mxu0 0
      %1497 = vmatprep.subr.bf16.mxu0 0
      %1498 = vmatpush1.bf16.msra.mxu0 0
      %1499 = vmatprep.subr.bf16.mxu0 0
      %1500 = vmatpush1.bf16.msra.mxu0 0
      %1501 = vmatprep.subr.bf16.mxu0 0
      %1502 = vmatpush1.bf16.msra.mxu0 0
      %1503 = vmatprep.subr.bf16.mxu0 0
      %1504 = vmatpush1.bf16.msra.mxu0 0
      %1505 = vmatprep.subr.bf16.mxu0 0
      %1506 = vmatpush1.bf16.msra.mxu0 0
      %1507 = vmatprep.subr.bf16.mxu0 0
      %1508 = vmatpush1.bf16.msra.mxu0 0
      %1509 = vmatprep.subr.bf16.mxu0 0
      %1510 = vmatpush1.bf16.msra.mxu0 0
      %1511 = vmatprep.subr.bf16.mxu0 0
      %1512 = vmatpush1.bf16.msra.mxu0 0
      %1513 = vmatprep.subr.bf16.mxu0 0
      %1514 = vmatpush1.bf16.msra.mxu0 0
      %1515 = vmatprep.subr.bf16.mxu0 0
      %1516 = vmatpush1.bf16.msra.mxu0 0
      %1517 = vmatprep.subr.bf16.mxu0 0
      %1518 = vmatpush1.bf16.msra.mxu0 0
      %1519 = vmatprep.mubr.bf16.mxu0 0
      %1520 = vmatmul.mubr.bf16.gmra.mrb[0].mxu0 %v1289
      %v1521 = vpop.f32.mrb[0].mxu0
      %v1522 = vadd.f32 0.0, %v1521
      %v1523 = vpop.f32.mrb[0].mxu0
      %v1524 = vpop.f32.mrb[0].mxu0
      %v1525 = vadd.f32 0.0, %v1524
      %v1526 = vpop.f32.mrb[0].mxu0
      %1527 = vmatprep.mubr.bf16.mxu0 0
      %1528 = vmatmul.mubr.bf16.gmra.mrb[0].mxu0 %v1292
      %v1529 = vpop.f32.mrb[0].mxu0
      %v1530 = vadd.f32 0.0, %v1529
      %v1531 = vpop.f32.mrb[0].mxu0
      %v1532 = vpop.f32.mrb[0].mxu0
      %v1533 = vadd.f32 0.0, %v1532
      %v1534 = vpop.f32.mrb[0].mxu0
      %1535 = vmatprep.mubr.bf16.mxu0 0
      %1536 = vmatmul.mubr.bf16.gmra.mrb[0].mxu0 %v1295
      %v1537 = vpop.f32.mrb[0].mxu0
      %v1538 = vadd.f32 0.0, %v1537
      %v1539 = vpop.f32.mrb[0].mxu0
      %v1540 = vpop.f32.mrb[0].mxu0
      %v1541 = vadd.f32 0.0, %v1540
      %v1542 = vpop.f32.mrb[0].mxu0
      %1543 = vmatprep.mubr.bf16.mxu0 0
      %1544 = vmatmul.mubr.bf16.gmra.mrb[0].mxu0 %v1298
      %v1545 = vpop.f32.mrb[0].mxu0
      %v1546 = vadd.f32 0.0, %v1545
      %v1547 = vpop.f32.mrb[0].mxu0
      %v1548 = vpop.f32.mrb[0].mxu0
      %v1549 = vadd.f32 0.0, %v1548
      %v1550 = vpop.f32.mrb[0].mxu0
      %1551 = vmatprep.mubr.bf16.mxu0 0
      %1552 = vmatmul.mubr.bf16.gmra.mrb[0].mxu0 %v1301
      %v1553 = vpop.f32.mrb[0].mxu0
      %v1554 = vadd.f32 0.0, %v1553
      %v1555 = vpop.f32.mrb[0].mxu0
      %v1556 = vpop.f32.mrb[0].mxu0
      %v1557 = vadd.f32 0.0, %v1556
      %v1558 = vpop.f32.mrb[0].mxu0
      %1559 = vmatprep.mubr.bf16.mxu0 0
      %1560 = vmatmul.mubr.bf16.gmra.mrb[0].mxu0 %v1304
      %v1561 = vpop.f32.mrb[0].mxu0
      %v1562 = vadd.f32 0.0, %v1561
      %v1563 = vpop.f32.mrb[0].mxu0
      %v1564 = vpop.f32.mrb[0].mxu0
      %v1565 = vadd.f32 0.0, %v1564
      %v1566 = vpop.f32.mrb[0].mxu0
      %1567 = vmatprep.mubr.bf16.mxu0 0
      %1568 = vmatmul.mubr.bf16.gmra.mrb[0].mxu0 %v1307
      %v1569 = vpop.f32.mrb[0].mxu0
      %v1570 = vadd.f32 0.0, %v1569
      %v1571 = vpop.f32.mrb[0].mxu0
      %v1572 = vpop.f32.mrb[0].mxu0
      %v1573 = vadd.f32 0.0, %v1572
      %v1574 = vpop.f32.mrb[0].mxu0
      %1575 = vmatprep.mubr.bf16.mxu0 0
      %1576 = vmatmul.mubr.bf16.gmra.mrb[0].mxu0 %v1310
      %v1577 = vpop.f32.mrb[0].mxu0
      %v1578 = vadd.f32 0.0, %v1577
      %v1579 = vpop.f32.mrb[0].mxu0
      %v1580 = vpop.f32.mrb[0].mxu0
      %v1581 = vadd.f32 0.0, %v1580
      %v1582 = vpop.f32.mrb[0].mxu0
      %1583 = vmatprep.mubr.bf16.mxu0 0
      %1584 = vmatmul.mubr.bf16.gmra.mrb[0].mxu0 %v1313
      %v1585 = vpop.f32.mrb[0].mxu0
      %v1586 = vadd.f32 0.0, %v1585
      %v1587 = vpop.f32.mrb[0].mxu0
      %v1588 = vpop.f32.mrb[0].mxu0
      %v1589 = vadd.f32 0.0, %v1588
      %v1590 = vpop.f32.mrb[0].mxu0
      %1591 = vmatprep.mubr.bf16.mxu0 0
      %1592 = vmatmul.mubr.bf16.gmra.mrb[0].mxu0 %v1316
      %v1593 = vpop.f32.mrb[0].mxu0
      %v1594 = vadd.f32 0.0, %v1593
      %v1595 = vpop.f32.mrb[0].mxu0
      %v1596 = vpop.f32.mrb[0].mxu0
      %v1597 = vadd.f32 0.0, %v1596
      %v1598 = vpop.f32.mrb[0].mxu0
      %1599 = vmatprep.mubr.bf16.mxu0 0
      %1600 = vmatmul.mubr.bf16.gmra.mrb[0].mxu0 %v1319
      %v1601 = vpop.f32.mrb[0].mxu0
      %v1602 = vadd.f32 0.0, %v1601
      %v1603 = vpop.f32.mrb[0].mxu0
      %v1604 = vpop.f32.mrb[0].mxu0
      %v1605 = vadd.f32 0.0, %v1604
      %v1606 = vpop.f32.mrb[0].mxu0
      %1607 = vmatprep.mubr.bf16.mxu0 0
      %1608 = vmatmul.mubr.bf16.gmra.mrb[0].mxu0 %v1322
      %v1609 = vpop.f32.mrb[0].mxu0
      %v1610 = vadd.f32 0.0, %v1609
      %v1611 = vpop.f32.mrb[0].mxu0
      %v1612 = vpop.f32.mrb[0].mxu0
      %v1613 = vadd.f32 0.0, %v1612
      %v1614 = vpop.f32.mrb[0].mxu0
      %1615 = vmatprep.mubr.bf16.mxu0 0
      %1616 = vmatmul.mubr.bf16.gmra.mrb[0].mxu0 %v1325
      %v1617 = vpop.f32.mrb[0].mxu0
      %v1618 = vadd.f32 0.0, %v1617
      %v1619 = vpop.f32.mrb[0].mxu0
      %v1620 = vpop.f32.mrb[0].mxu0
      %v1621 = vadd.f32 0.0, %v1620
      %v1622 = vpop.f32.mrb[0].mxu0
      %1623 = vmatprep.mubr.bf16.mxu0 0
      %1624 = vmatmul.mubr.bf16.gmra.mrb[0].mxu0 %v1328
      %v1625 = vpop.f32.mrb[0].mxu0
      %v1626 = vadd.f32 0.0, %v1625
      %v1627 = vpop.f32.mrb[0].mxu0
      %v1628 = vpop.f32.mrb[0].mxu0
      %v1629 = vadd.f32 0.0, %v1628
      %v1630 = vpop.f32.mrb[0].mxu0
      %1631 = vmatprep.mubr.bf16.mxu0 0
      %1632 = vmatmul.mubr.bf16.gmra.mrb[0].mxu0 %v1331
      %v1633 = vpop.f32.mrb[0].mxu0
      %v1634 = vadd.f32 0.0, %v1633
      %v1635 = vpop.f32.mrb[0].mxu0
      %v1636 = vpop.f32.mrb[0].mxu0
      %v1637 = vadd.f32 0.0, %v1636
      %v1638 = vpop.f32.mrb[0].mxu0
      %1639 = vmatprep.mubr.bf16.mxu0 0
      %1640 = vmatmul.mubr.bf16.gmra.mrb[0].mxu0 %v1334
      %v1641 = vpop.f32.mrb[0].mxu0
      %v1642 = vadd.f32 0.0, %v1641
      %v1643 = vpop.f32.mrb[0].mxu0
      %v1644 = vpop.f32.mrb[0].mxu0
      %v1645 = vadd.f32 0.0, %v1644
      %v1646 = vpop.f32.mrb[0].mxu0
      %1647 = vmatprep.mubr.bf16.mxu0 0
      %1648 = vmatmul.mubr.bf16.gmra.mrb[0].mxu0 %v1337
      %v1649 = vpop.f32.mrb[0].mxu0
      %v1650 = vadd.f32 0.0, %v1649
      %v1651 = vpop.f32.mrb[0].mxu0
      %v1652 = vpop.f32.mrb[0].mxu0
      %v1653 = vadd.f32 0.0, %v1652
      %v1654 = vpop.f32.mrb[0].mxu0
      %1655 = vmatprep.mubr.bf16.mxu0 0
      %1656 = vmatmul.mubr.bf16.gmra.mrb[0].mxu0 %v1340
      %v1657 = vpop.f32.mrb[0].mxu0
      %v1658 = vadd.f32 0.0, %v1657
      %v1659 = vpop.f32.mrb[0].mxu0
      %v1660 = vpop.f32.mrb[0].mxu0
      %v1661 = vadd.f32 0.0, %v1660
      %v1662 = vpop.f32.mrb[0].mxu0
      %1663 = vmatprep.mubr.bf16.mxu0 0
      %1664 = vmatmul.mubr.bf16.gmra.mrb[0].mxu0 %v1343
      %v1665 = vpop.f32.mrb[0].mxu0
      %v1666 = vadd.f32 0.0, %v1665
      %v1667 = vpop.f32.mrb[0].mxu0
      %v1668 = vpop.f32.mrb[0].mxu0
      %v1669 = vadd.f32 0.0, %v1668
      %v1670 = vpop.f32.mrb[0].mxu0
      %1671 = vmatprep.mubr.bf16.mxu0 0
      %1672 = vmatmul.mubr.bf16.gmra.mrb[0].mxu0 %v1346
      %v1673 = vpop.f32.mrb[0].mxu0
      %v1674 = vadd.f32 0.0, %v1673
      %v1675 = vpop.f32.mrb[0].mxu0
      %v1676 = vpop.f32.mrb[0].mxu0
      %v1677 = vadd.f32 0.0, %v1676
      %v1678 = vpop.f32.mrb[0].mxu0
      %1679 = vmatprep.mubr.bf16.mxu0 0
      %1680 = vmatmul.mubr.bf16.gmra.mrb[0].mxu0 %v1349
      %v1681 = vpop.f32.mrb[0].mxu0
      %v1682 = vadd.f32 0.0, %v1681
      %v1683 = vpop.f32.mrb[0].mxu0
      %v1684 = vpop.f32.mrb[0].mxu0
      %v1685 = vadd.f32 0.0, %v1684
      %v1686 = vpop.f32.mrb[0].mxu0
      %1687 = vmatprep.mubr.bf16.mxu0 0
      %1688 = vmatmul.mubr.bf16.gmra.mrb[0].mxu0 %v1352
      %v1689 = vpop.f32.mrb[0].mxu0
      %v1690 = vadd.f32 0.0, %v1689
      %v1691 = vpop.f32.mrb[0].mxu0
      %v1692 = vpop.f32.mrb[0].mxu0
      %v1693 = vadd.f32 0.0, %v1692
      %v1694 = vpop.f32.mrb[0].mxu0
      %1695 = vmatprep.mubr.bf16.mxu0 0
      %1696 = vmatmul.mubr.bf16.gmra.mrb[0].mxu0 %v1355
      %v1697 = vpop.f32.mrb[0].mxu0
      %v1698 = vadd.f32 0.0, %v1697
      %v1699 = vpop.f32.mrb[0].mxu0
      %v1700 = vpop.f32.mrb[0].mxu0
      %v1701 = vadd.f32 0.0, %v1700
      %v1702 = vpop.f32.mrb[0].mxu0
      %1703 = vmatprep.mubr.bf16.mxu0 0
      %1704 = vmatmul.mubr.bf16.gmra.mrb[0].mxu0 %v1358
      %v1705 = vpop.f32.mrb[0].mxu0
      %v1706 = vadd.f32 0.0, %v1705
      %v1707 = vpop.f32.mrb[0].mxu0
      %v1708 = vpop.f32.mrb[0].mxu0
      %v1709 = vadd.f32 0.0, %v1708
      %v1710 = vpop.f32.mrb[0].mxu0
      %1711 = vmatprep.mubr.bf16.mxu0 0
      %1712 = vmatmul.mubr.bf16.gmra.mrb[0].mxu0 %v1361
      %v1713 = vpop.f32.mrb[0].mxu0
      %v1714 = vadd.f32 0.0, %v1713
      %v1715 = vpop.f32.mrb[0].mxu0
      %v1716 = vpop.f32.mrb[0].mxu0
      %v1717 = vadd.f32 0.0, %v1716
      %v1718 = vpop.f32.mrb[0].mxu0
      %1719 = vmatprep.mubr.bf16.mxu0 0
      %1720 = vmatmul.mubr.bf16.gmra.mrb[0].mxu0 %v1364
      %v1721 = vpop.f32.mrb[0].mxu0
      %v1722 = vadd.f32 0.0, %v1721
      %v1723 = vpop.f32.mrb[0].mxu0
      %v1724 = vpop.f32.mrb[0].mxu0
      %v1725 = vadd.f32 0.0, %v1724
      %v1726 = vpop.f32.mrb[0].mxu0
      %1727 = vmatprep.mubr.bf16.mxu0 0
      %1728 = vmatmul.mubr.bf16.gmra.mrb[0].mxu0 %v1367
      %v1729 = vpop.f32.mrb[0].mxu0
      %v1730 = vadd.f32 0.0, %v1729
      %v1731 = vpop.f32.mrb[0].mxu0
      %v1732 = vpop.f32.mrb[0].mxu0
      %v1733 = vadd.f32 0.0, %v1732
      %v1734 = vpop.f32.mrb[0].mxu0
      %1735 = vmatprep.mubr.bf16.mxu0 0
      %1736 = vmatmul.mubr.bf16.gmra.mrb[0].mxu0 %v1370
      %v1737 = vpop.f32.mrb[0].mxu0
      %v1738 = vadd.f32 0.0, %v1737
      %v1739 = vpop.f32.mrb[0].mxu0
      %v1740 = vpop.f32.mrb[0].mxu0
      %v1741 = vadd.f32 0.0, %v1740
      %v1742 = vpop.f32.mrb[0].mxu0
      %1743 = vmatprep.mubr.bf16.mxu0 0
      %1744 = vmatmul.mubr.bf16.gmra.mrb[0].mxu0 %v1373
      %v1745 = vpop.f32.mrb[0].mxu0
      %v1746 = vadd.f32 0.0, %v1745
      %v1747 = vpop.f32.mrb[0].mxu0
      %v1748 = vpop.f32.mrb[0].mxu0
      %v1749 = vadd.f32 0.0, %v1748
      %v1750 = vpop.f32.mrb[0].mxu0
      %1751 = vmatprep.mubr.bf16.mxu0 0
      %1752 = vmatmul.mubr.bf16.gmra.mrb[0].mxu0 %v1376
      %v1753 = vpop.f32.mrb[0].mxu0
      %v1754 = vadd.f32 0.0, %v1753
      %v1755 = vpop.f32.mrb[0].mxu0
      %v1756 = vpop.f32.mrb[0].mxu0
      %v1757 = vadd.f32 0.0, %v1756
      %v1758 = vpop.f32.mrb[0].mxu0
      %1759 = vmatprep.mubr.bf16.mxu0 0
      %1760 = vmatmul.mubr.bf16.gmra.mrb[0].mxu0 %v1379
      %v1761 = vpop.f32.mrb[0].mxu0
      %v1762 = vadd.f32 0.0, %v1761
      %v1763 = vpop.f32.mrb[0].mxu0
      %v1764 = vpop.f32.mrb[0].mxu0
      %v1765 = vadd.f32 0.0, %v1764
      %v1766 = vpop.f32.mrb[0].mxu0
      %1767 = vmatprep.mubr.bf16.mxu0 0
      %1768 = vmatmul.mubr.bf16.gmra.mrb[0].mxu0 %v1382
      %v1769 = vpop.f32.mrb[0].mxu0
      %v1770 = vadd.f32 0.0, %v1769
      %v1771 = vpop.f32.mrb[0].mxu0
      %v1772 = vpop.f32.mrb[0].mxu0
      %v1773 = vadd.f32 0.0, %v1772
      %v1774 = vpop.f32.mrb[0].mxu0
      %1775 = vmatprep.mubr.bf16.mxu0 0
      %1776 = vmatmul.mubr.bf16.gmra.mrb[0].mxu0 %v1385
      %v1777 = vpop.f32.mrb[0].mxu0
      %v1778 = vadd.f32 0.0, %v1777
      %v1779 = vpop.f32.mrb[0].mxu0
      %v1780 = vpop.f32.mrb[0].mxu0
      %v1781 = vadd.f32 0.0, %v1780
      %v1782 = vpop.f32.mrb[0].mxu0
      %1783 = vmatprep.mubr.bf16.mxu0 0
      %1784 = vmatmul.mubr.bf16.gmra.mrb[0].mxu0 %v1388
      %v1785 = vpop.f32.mrb[0].mxu0
      %v1786 = vadd.f32 0.0, %v1785
      %v1787 = vpop.f32.mrb[0].mxu0
      %v1788 = vpop.f32.mrb[0].mxu0
      %v1789 = vadd.f32 0.0, %v1788
      %v1790 = vpop.f32.mrb[0].mxu0
      %1791 = vmatprep.mubr.bf16.mxu0 0
      %1792 = vmatmul.mubr.bf16.gmra.mrb[0].mxu0 %v1391
      %v1793 = vpop.f32.mrb[0].mxu0
      %v1794 = vadd.f32 0.0, %v1793
      %v1795 = vpop.f32.mrb[0].mxu0
      %v1796 = vpop.f32.mrb[0].mxu0
      %v1797 = vadd.f32 0.0, %v1796
      %v1798 = vpop.f32.mrb[0].mxu0
      %1799 = vmatprep.mubr.bf16.mxu0 0
      %1800 = vmatmul.mubr.bf16.gmra.mrb[0].mxu0 %v1394
      %v1801 = vpop.f32.mrb[0].mxu0
      %v1802 = vadd.f32 0.0, %v1801
      %v1803 = vpop.f32.mrb[0].mxu0
      %v1804 = vpop.f32.mrb[0].mxu0
      %v1805 = vadd.f32 0.0, %v1804
      %v1806 = vpop.f32.mrb[0].mxu0
      %1807 = vmatprep.mubr.bf16.mxu0 0
      %1808 = vmatmul.mubr.bf16.gmra.mrb[0].mxu0 %v1397
      %v1809 = vpop.f32.mrb[0].mxu0
      %v1810 = vadd.f32 0.0, %v1809
      %v1811 = vpop.f32.mrb[0].mxu0
      %v1812 = vpop.f32.mrb[0].mxu0
      %v1813 = vadd.f32 0.0, %v1812
      %v1814 = vpop.f32.mrb[0].mxu0
      %1815 = vmatprep.mubr.bf16.mxu0 0
      %1816 = vmatmul.mubr.bf16.gmra.mrb[0].mxu0 %v1400
      %v1817 = vpop.f32.mrb[0].mxu0
      %v1818 = vadd.f32 0.0, %v1817
      %v1819 = vpop.f32.mrb[0].mxu0
      %v1820 = vpop.f32.mrb[0].mxu0
      %v1821 = vadd.f32 0.0, %v1820
      %v1822 = vpop.f32.mrb[0].mxu0
      %1823 = vmatprep.mubr.bf16.mxu0 0
      %1824 = vmatmul.mubr.bf16.gmra.mrb[0].mxu0 %v1403
      %v1825 = vpop.f32.mrb[0].mxu0
      %v1826 = vadd.f32 0.0, %v1825
      %v1827 = vpop.f32.mrb[0].mxu0
      %v1828 = vpop.f32.mrb[0].mxu0
      %v1829 = vadd.f32 0.0, %v1828
      %v1830 = vpop.f32.mrb[0].mxu0
      %1831 = vmatprep.mubr.bf16.mxu0 0
      %1832 = vmatmul.mubr.bf16.gmra.mrb[0].mxu0 %v1406
      %v1833 = vpop.f32.mrb[0].mxu0
      %v1834 = vadd.f32 0.0, %v1833
      %v1835 = vpop.f32.mrb[0].mxu0
      %v1836 = vpop.f32.mrb[0].mxu0
      %v1837 = vadd.f32 0.0, %v1836
      %v1838 = vpop.f32.mrb[0].mxu0
      %1839 = vmatprep.mubr.bf16.mxu0 0
      %1840 = vmatmul.mubr.bf16.gmra.mrb[0].mxu0 %v1409
      %v1841 = vpop.f32.mrb[0].mxu0
      %v1842 = vadd.f32 0.0, %v1841
      %v1843 = vpop.f32.mrb[0].mxu0
      %v1844 = vpop.f32.mrb[0].mxu0
      %v1845 = vadd.f32 0.0, %v1844
      %v1846 = vpop.f32.mrb[0].mxu0
      %1847 = vmatprep.mubr.bf16.mxu0 0
      %1848 = vmatmul.mubr.bf16.gmra.mrb[0].mxu0 %v1412
      %v1849 = vpop.f32.mrb[0].mxu0
      %v1850 = vadd.f32 0.0, %v1849
      %v1851 = vpop.f32.mrb[0].mxu0
      %v1852 = vpop.f32.mrb[0].mxu0
      %v1853 = vadd.f32 0.0, %v1852
      %v1854 = vpop.f32.mrb[0].mxu0
      %1855 = vmatprep.mubr.bf16.mxu0 0
      %1856 = vmatmul.mubr.bf16.gmra.mrb[0].mxu0 %v1415
      %v1857 = vpop.f32.mrb[0].mxu0
      %v1858 = vadd.f32 0.0, %v1857
      %v1859 = vpop.f32.mrb[0].mxu0
      %v1860 = vpop.f32.mrb[0].mxu0
      %v1861 = vadd.f32 0.0, %v1860
      %v1862 = vpop.f32.mrb[0].mxu0
      %1863 = vmatprep.mubr.bf16.mxu0 0
      %1864 = vmatmul.mubr.bf16.gmra.mrb[0].mxu0 %v1418
      %v1865 = vpop.f32.mrb[0].mxu0
      %v1866 = vadd.f32 0.0, %v1865
      %v1867 = vpop.f32.mrb[0].mxu0
      %v1868 = vpop.f32.mrb[0].mxu0
      %v1869 = vadd.f32 0.0, %v1868
      %v1870 = vpop.f32.mrb[0].mxu0
      %1871 = vmatprep.mubr.bf16.mxu0 0
      %1872 = vmatmul.mubr.bf16.gmra.mrb[0].mxu0 %v1421
      %v1873 = vpop.f32.mrb[0].mxu0
      %v1874 = vadd.f32 0.0, %v1873
      %v1875 = vpop.f32.mrb[0].mxu0
      %v1876 = vpop.f32.mrb[0].mxu0
      %v1877 = vadd.f32 0.0, %v1876
      %v1878 = vpop.f32.mrb[0].mxu0
      %1879 = vmatprep.mubr.bf16.mxu0 0
      %1880 = vmatmul.mubr.bf16.gmra.mrb[0].mxu0 %v1424
      %v1881 = vpop.f32.mrb[0].mxu0
      %v1882 = vadd.f32 0.0, %v1881
      %v1883 = vpop.f32.mrb[0].mxu0
      %v1884 = vpop.f32.mrb[0].mxu0
      %v1885 = vadd.f32 0.0, %v1884
      %v1886 = vpop.f32.mrb[0].mxu0
      %1887 = vmatprep.mubr.bf16.mxu0 0
      %1888 = vmatmul.mubr.bf16.gmra.mrb[0].mxu0 %v1427
      %v1889 = vpop.f32.mrb[0].mxu0
      %v1890 = vadd.f32 0.0, %v1889
      %v1891 = vpop.f32.mrb[0].mxu0
      %v1892 = vpop.f32.mrb[0].mxu0
      %v1893 = vadd.f32 0.0, %v1892
      %v1894 = vpop.f32.mrb[0].mxu0
      %1895 = vmatprep.mubr.bf16.mxu0 0
      %1896 = vmatmul.mubr.bf16.gmra.mrb[0].mxu0 %v1430
      %v1897 = vpop.f32.mrb[0].mxu0
      %v1898 = vadd.f32 0.0, %v1897
      %v1899 = vpop.f32.mrb[0].mxu0
      %v1900 = vpop.f32.mrb[0].mxu0
      %v1901 = vadd.f32 0.0, %v1900
      %v1902 = vpop.f32.mrb[0].mxu0
      %1903 = vmatprep.mubr.bf16.mxu0 0
      %1904 = vmatmul.mubr.bf16.gmra.mrb[0].mxu0 %v1433
      %v1905 = vpop.f32.mrb[0].mxu0
      %v1906 = vadd.f32 0.0, %v1905
      %v1907 = vpop.f32.mrb[0].mxu0
      %v1908 = vpop.f32.mrb[0].mxu0
      %v1909 = vadd.f32 0.0, %v1908
      %v1910 = vpop.f32.mrb[0].mxu0
      %1911 = vmatprep.mubr.bf16.mxu0 0
      %1912 = vmatmul.mubr.bf16.gmra.mrb[0].mxu0 %v1436
      %v1913 = vpop.f32.mrb[0].mxu0
      %v1914 = vadd.f32 0.0, %v1913
      %v1915 = vpop.f32.mrb[0].mxu0
      %v1916 = vpop.f32.mrb[0].mxu0
      %v1917 = vadd.f32 0.0, %v1916
      %v1918 = vpop.f32.mrb[0].mxu0
      %1919 = vmatprep.mubr.bf16.mxu0 0
      %1920 = vmatmul.mubr.bf16.gmra.mrb[0].mxu0 %v1439
      %v1921 = vpop.f32.mrb[0].mxu0
      %v1922 = vadd.f32 0.0, %v1921
      %v1923 = vpop.f32.mrb[0].mxu0
      %v1924 = vpop.f32.mrb[0].mxu0
      %v1925 = vadd.f32 0.0, %v1924
      %v1926 = vpop.f32.mrb[0].mxu0
      %1927 = vmatprep.mubr.bf16.mxu0 0
      %1928 = vmatmul.mubr.bf16.gmra.mrb[0].mxu0 %v1442
      %v1929 = vpop.f32.mrb[0].mxu0
      %v1930 = vadd.f32 0.0, %v1929
      %v1931 = vpop.f32.mrb[0].mxu0
      %v1932 = vpop.f32.mrb[0].mxu0
      %v1933 = vadd.f32 0.0, %v1932
      %v1934 = vpop.f32.mrb[0].mxu0
      %1935 = vmatprep.mubr.bf16.mxu0 0
      %1936 = vmatmul.mubr.bf16.gmra.mrb[0].mxu0 %v1445
      %v1937 = vpop.f32.mrb[0].mxu0
      %v1938 = vadd.f32 0.0, %v1937
      %v1939 = vpop.f32.mrb[0].mxu0
      %v1940 = vpop.f32.mrb[0].mxu0
      %v1941 = vadd.f32 0.0, %v1940
      %v1942 = vpop.f32.mrb[0].mxu0
      %1943 = vmatprep.mubr.bf16.mxu0 0
      %1944 = vmatmul.mubr.bf16.gmra.mrb[0].mxu0 %v1448
      %v1945 = vpop.f32.mrb[0].mxu0
      %v1946 = vadd.f32 0.0, %v1945
      %v1947 = vpop.f32.mrb[0].mxu0
      %v1948 = vpop.f32.mrb[0].mxu0
      %v1949 = vadd.f32 0.0, %v1948
      %v1950 = vpop.f32.mrb[0].mxu0
      %1951 = vmatprep.mubr.bf16.mxu0 0
      %1952 = vmatmul.mubr.bf16.gmra.mrb[0].mxu0 %v1451
      %v1953 = vpop.f32.mrb[0].mxu0
      %v1954 = vadd.f32 0.0, %v1953
      %v1955 = vpop.f32.mrb[0].mxu0
      %v1956 = vpop.f32.mrb[0].mxu0
      %v1957 = vadd.f32 0.0, %v1956
      %v1958 = vpop.f32.mrb[0].mxu0
      %1959 = vmatprep.mubr.bf16.mxu0 0
      %1960 = vmatmul.mubr.bf16.gmra.mrb[0].mxu0 %v1454
      %v1961 = vpop.f32.mrb[0].mxu0
      %v1962 = vadd.f32 0.0, %v1961
      %v1963 = vpop.f32.mrb[0].mxu0
      %v1964 = vpop.f32.mrb[0].mxu0
      %v1965 = vadd.f32 0.0, %v1964
      %v1966 = vpop.f32.mrb[0].mxu0
      %1967 = vmatprep.mubr.bf16.mxu0 0
      %1968 = vmatmul.mubr.bf16.gmra.mrb[0].mxu0 %v1457
      %v1969 = vpop.f32.mrb[0].mxu0
      %v1970 = vadd.f32 0.0, %v1969
      %v1971 = vpop.f32.mrb[0].mxu0
      %v1972 = vpop.f32.mrb[0].mxu0
      %v1973 = vadd.f32 0.0, %v1972
      %v1974 = vpop.f32.mrb[0].mxu0
      %1975 = vmatprep.mubr.bf16.mxu0 0
      %1976 = vmatmul.mubr.bf16.gmra.mrb[0].mxu0 %v1460
      %v1977 = vpop.f32.mrb[0].mxu0
      %v1978 = vadd.f32 0.0, %v1977
      %v1979 = vpop.f32.mrb[0].mxu0
      %v1980 = vpop.f32.mrb[0].mxu0
      %v1981 = vadd.f32 0.0, %v1980
      %v1982 = vpop.f32.mrb[0].mxu0
      %1983 = vmatprep.mubr.bf16.mxu0 0
      %1984 = vmatmul.mubr.bf16.gmra.mrb[0].mxu0 %v1463
      %v1985 = vpop.f32.mrb[0].mxu0
      %v1986 = vadd.f32 0.0, %v1985
      %v1987 = vpop.f32.mrb[0].mxu0
      %v1988 = vpop.f32.mrb[0].mxu0
      %v1989 = vadd.f32 0.0, %v1988
      %v1990 = vpop.f32.mrb[0].mxu0
      %1991 = vmatprep.mubr.bf16.mxu0 0
      %1992 = vmatmul.mubr.bf16.gmra.mrb[0].mxu0 %v1466
      %v1993 = vpop.f32.mrb[0].mxu0
      %v1994 = vadd.f32 0.0, %v1993
      %v1995 = vpop.f32.mrb[0].mxu0
      %v1996 = vpop.f32.mrb[0].mxu0
      %v1997 = vadd.f32 0.0, %v1996
      %v1998 = vpop.f32.mrb[0].mxu0
      %1999 = vmatprep.mubr.bf16.mxu0 0
      %2000 = vmatmul.mubr.bf16.gmra.mrb[0].mxu0 %v1469
      %v2001 = vpop.f32.mrb[0].mxu0
      %v2002 = vadd.f32 0.0, %v2001
      %v2003 = vpop.f32.mrb[0].mxu0
      %v2004 = vpop.f32.mrb[0].mxu0
      %v2005 = vadd.f32 0.0, %v2004
      %v2006 = vpop.f32.mrb[0].mxu0
      %2007 = vmatprep.mubr.bf16.mxu0 0
      %2008 = vmatmul.mubr.bf16.gmra.mrb[0].mxu0 %v1472
      %v2009 = vpop.f32.mrb[0].mxu0
      %v2010 = vadd.f32 0.0, %v2009
      %v2011 = vpop.f32.mrb[0].mxu0
      %v2012 = vpop.f32.mrb[0].mxu0
      %v2013 = vadd.f32 0.0, %v2012
      %v2014 = vpop.f32.mrb[0].mxu0
      %2015 = vmatprep.mubr.bf16.mxu0 0
      %2016 = vmatmul.mubr.bf16.gmra.mrb[0].mxu0 %v1475
      %v2017 = vpop.f32.mrb[0].mxu0
      %v2018 = vadd.f32 0.0, %v2017
      %v2019 = vpop.f32.mrb[0].mxu0
      %v2020 = vpop.f32.mrb[0].mxu0
      %v2021 = vadd.f32 0.0, %v2020
      %v2022 = vpop.f32.mrb[0].mxu0
      %2023 = vmatprep.mubr.bf16.mxu0 0
      %2024 = vmatmul.mubr.bf16.gmra.mrb[0].mxu0 %v1478
      %v2025 = vpop.f32.mrb[0].mxu0
      %v2026 = vadd.f32 0.0, %v2025
      %v2027 = vpop.f32.mrb[0].mxu0
      %v2028 = vpop.f32.mrb[0].mxu0
      %v2029 = vadd.f32 0.0, %v2028
      %v2030 = vpop.f32.mrb[0].mxu0
      %2031 = vdwg.mxu0
      %v2033 = vsel %vm1287, %v579, 0
      %v2036 = vsel %vm1287, %v580, 0
      %v2039 = vsel %vm1287, %v581, 0
      %v2042 = vsel %vm1287, %v582, 0
      %v2045 = vsel %vm1287, %v583, 0
      %v2048 = vsel %vm1287, %v584, 0
      %v2051 = vsel %vm1287, %v585, 0
      %v2054 = vsel %vm1287, %v586, 0
      %v2057 = vsel %vm1287, %v587, 0
      %v2060 = vsel %vm1287, %v588, 0
      %v2063 = vsel %vm1287, %v589, 0
      %v2066 = vsel %vm1287, %v590, 0
      %v2069 = vsel %vm1287, %v591, 0
      %v2072 = vsel %vm1287, %v592, 0
      %v2075 = vsel %vm1287, %v593, 0
      %v2078 = vsel %vm1287, %v594, 0
      %v2081 = vsel %vm1287, %v595, 0
      %v2084 = vsel %vm1287, %v596, 0
      %v2087 = vsel %vm1287, %v597, 0
      %v2090 = vsel %vm1287, %v598, 0
      %v2093 = vsel %vm1287, %v599, 0
      %v2096 = vsel %vm1287, %v600, 0
      %v2099 = vsel %vm1287, %v601, 0
      %v2102 = vsel %vm1287, %v602, 0
      %v2105 = vsel %vm1287, %v603, 0
      %v2108 = vsel %vm1287, %v604, 0
      %v2111 = vsel %vm1287, %v605, 0
      %v2114 = vsel %vm1287, %v606, 0
      %v2117 = vsel %vm1287, %v607, 0
      %v2120 = vsel %vm1287, %v608, 0
      %v2123 = vsel %vm1287, %v609, 0
      %v2126 = vsel %vm1287, %v610, 0
      %v2129 = vsel %vm1287, %v611, 0
      %v2132 = vsel %vm1287, %v612, 0
      %v2135 = vsel %vm1287, %v613, 0
      %v2138 = vsel %vm1287, %v614, 0
      %v2141 = vsel %vm1287, %v615, 0
      %v2144 = vsel %vm1287, %v616, 0
      %v2147 = vsel %vm1287, %v617, 0
      %v2150 = vsel %vm1287, %v618, 0
      %v2153 = vsel %vm1287, %v619, 0
      %v2156 = vsel %vm1287, %v620, 0
      %v2159 = vsel %vm1287, %v621, 0
      %v2162 = vsel %vm1287, %v622, 0
      %v2165 = vsel %vm1287, %v623, 0
      %v2168 = vsel %vm1287, %v624, 0
      %v2171 = vsel %vm1287, %v625, 0
      %v2174 = vsel %vm1287, %v626, 0
      %v2177 = vsel %vm1287, %v627, 0
      %v2180 = vsel %vm1287, %v628, 0
      %v2183 = vsel %vm1287, %v629, 0
      %v2186 = vsel %vm1287, %v630, 0
      %v2189 = vsel %vm1287, %v631, 0
      %v2192 = vsel %vm1287, %v632, 0
      %v2195 = vsel %vm1287, %v633, 0
      %v2198 = vsel %vm1287, %v634, 0
      %v2201 = vsel %vm1287, %v635, 0
      %v2204 = vsel %vm1287, %v636, 0
      %v2207 = vsel %vm1287, %v637, 0
      %v2210 = vsel %vm1287, %v638, 0
      %v2213 = vsel %vm1287, %v639, 0
      %v2216 = vsel %vm1287, %v640, 0
      %v2219 = vsel %vm1287, %v641, 0
      %v2222 = vsel %vm1287, %v642, 0
      %v2225 = vand.u32 %v643, %v1483
      %2227 = vmatprep.subr.bf16.mxu0 0
      %2228 = vmatpush1.bf16.msra.mxu0 %v2225
      %2229 = vmatprep.subr.bf16.mxu0 0
      %2230 = vmatpush1.bf16.msra.mxu0 0
      %2231 = vmatprep.subr.bf16.mxu0 0
      %2232 = vmatpush1.bf16.msra.mxu0 0
      %2233 = vmatprep.subr.bf16.mxu0 0
      %2234 = vmatpush1.bf16.msra.mxu0 0
      %2235 = vmatprep.subr.bf16.mxu0 0
      %2236 = vmatpush1.bf16.msra.mxu0 0
      %2237 = vmatprep.subr.bf16.mxu0 0
      %2238 = vmatpush1.bf16.msra.mxu0 0
      %2239 = vmatprep.subr.bf16.mxu0 0
      %2240 = vmatpush1.bf16.msra.mxu0 0
      %2241 = vmatprep.subr.bf16.mxu0 0
      %2242 = vmatpush1.bf16.msra.mxu0 0
      %2243 = vmatprep.subr.bf16.mxu0 0
      %2244 = vmatpush1.bf16.msra.mxu0 0
      %2245 = vmatprep.subr.bf16.mxu0 0
      %2246 = vmatpush1.bf16.msra.mxu0 0
      %2247 = vmatprep.subr.bf16.mxu0 0
      %2248 = vmatpush1.bf16.msra.mxu0 0
      %2249 = vmatprep.subr.bf16.mxu0 0
      %2250 = vmatpush1.bf16.msra.mxu0 0
      %2251 = vmatprep.subr.bf16.mxu0 0
      %2252 = vmatpush1.bf16.msra.mxu0 0
      %2253 = vmatprep.subr.bf16.mxu0 0
      %2254 = vmatpush1.bf16.msra.mxu0 0
      %2255 = vmatprep.subr.bf16.mxu0 0
      %2256 = vmatpush1.bf16.msra.mxu0 0
      %2257 = vmatprep.subr.bf16.mxu0 0
      %2258 = vmatpush1.bf16.msra.mxu0 0
      %2259 = vmatprep.mubr.bf16.mxu0 0
      %2260 = vmatmul.mubr.bf16.gmra.mrb[0].mxu0 %v2033
      %v2261 = vpop.f32.mrb[0].mxu0
      %v2262 = vadd.f32 %v1522, %v2261
      %v2263 = vpop.f32.mrb[0].mxu0
      %v2264 = vpop.f32.mrb[0].mxu0
      %v2265 = vadd.f32 %v1525, %v2264
      %v2266 = vpop.f32.mrb[0].mxu0
      %2267 = vmatprep.mubr.bf16.mxu0 0
      %2268 = vmatmul.mubr.bf16.gmra.mrb[0].mxu0 %v2036
      %v2269 = vpop.f32.mrb[0].mxu0
      %v2270 = vadd.f32 %v1530, %v2269
      %v2271 = vpop.f32.mrb[0].mxu0
      %v2272 = vpop.f32.mrb[0].mxu0
      %v2273 = vadd.f32 %v1533, %v2272
      %v2274 = vpop.f32.mrb[0].mxu0
      %2275 = vmatprep.mubr.bf16.mxu0 0
      %2276 = vmatmul.mubr.bf16.gmra.mrb[0].mxu0 %v2039
      %v2277 = vpop.f32.mrb[0].mxu0
      %v2278 = vadd.f32 %v1538, %v2277
      %v2279 = vpop.f32.mrb[0].mxu0
      %v2280 = vpop.f32.mrb[0].mxu0
      %v2281 = vadd.f32 %v1541, %v2280
      %v2282 = vpop.f32.mrb[0].mxu0
      %2283 = vmatprep.mubr.bf16.mxu0 0
      %2284 = vmatmul.mubr.bf16.gmra.mrb[0].mxu0 %v2042
      %v2285 = vpop.f32.mrb[0].mxu0
      %v2286 = vadd.f32 %v1546, %v2285
      %v2287 = vpop.f32.mrb[0].mxu0
      %v2288 = vpop.f32.mrb[0].mxu0
      %v2289 = vadd.f32 %v1549, %v2288
      %v2290 = vpop.f32.mrb[0].mxu0
      %2291 = vmatprep.mubr.bf16.mxu0 0
      %2292 = vmatmul.mubr.bf16.gmra.mrb[0].mxu0 %v2045
      %v2293 = vpop.f32.mrb[0].mxu0
      %v2294 = vadd.f32 %v1554, %v2293
      %v2295 = vpop.f32.mrb[0].mxu0
      %v2296 = vpop.f32.mrb[0].mxu0
      %v2297 = vadd.f32 %v1557, %v2296
      %v2298 = vpop.f32.mrb[0].mxu0
      %2299 = vmatprep.mubr.bf16.mxu0 0
      %2300 = vmatmul.mubr.bf16.gmra.mrb[0].mxu0 %v2048
      %v2301 = vpop.f32.mrb[0].mxu0
      %v2302 = vadd.f32 %v1562, %v2301
      %v2303 = vpop.f32.mrb[0].mxu0
      %v2304 = vpop.f32.mrb[0].mxu0
      %v2305 = vadd.f32 %v1565, %v2304
      %v2306 = vpop.f32.mrb[0].mxu0
      %2307 = vmatprep.mubr.bf16.mxu0 0
      %2308 = vmatmul.mubr.bf16.gmra.mrb[0].mxu0 %v2051
      %v2309 = vpop.f32.mrb[0].mxu0
      %v2310 = vadd.f32 %v1570, %v2309
      %v2311 = vpop.f32.mrb[0].mxu0
      %v2312 = vpop.f32.mrb[0].mxu0
      %v2313 = vadd.f32 %v1573, %v2312
      %v2314 = vpop.f32.mrb[0].mxu0
      %2315 = vmatprep.mubr.bf16.mxu0 0
      %2316 = vmatmul.mubr.bf16.gmra.mrb[0].mxu0 %v2054
      %v2317 = vpop.f32.mrb[0].mxu0
      %v2318 = vadd.f32 %v1578, %v2317
      %v2319 = vpop.f32.mrb[0].mxu0
      %v2320 = vpop.f32.mrb[0].mxu0
      %v2321 = vadd.f32 %v1581, %v2320
      %v2322 = vpop.f32.mrb[0].mxu0
      %2323 = vmatprep.mubr.bf16.mxu0 0
      %2324 = vmatmul.mubr.bf16.gmra.mrb[0].mxu0 %v2057
      %v2325 = vpop.f32.mrb[0].mxu0
      %v2326 = vadd.f32 %v1586, %v2325
      %v2327 = vpop.f32.mrb[0].mxu0
      %v2328 = vpop.f32.mrb[0].mxu0
      %v2329 = vadd.f32 %v1589, %v2328
      %v2330 = vpop.f32.mrb[0].mxu0
      %2331 = vmatprep.mubr.bf16.mxu0 0
      %2332 = vmatmul.mubr.bf16.gmra.mrb[0].mxu0 %v2060
      %v2333 = vpop.f32.mrb[0].mxu0
      %v2334 = vadd.f32 %v1594, %v2333
      %v2335 = vpop.f32.mrb[0].mxu0
      %v2336 = vpop.f32.mrb[0].mxu0
      %v2337 = vadd.f32 %v1597, %v2336
      %v2338 = vpop.f32.mrb[0].mxu0
      %2339 = vmatprep.mubr.bf16.mxu0 0
      %2340 = vmatmul.mubr.bf16.gmra.mrb[0].mxu0 %v2063
      %v2341 = vpop.f32.mrb[0].mxu0
      %v2342 = vadd.f32 %v1602, %v2341
      %v2343 = vpop.f32.mrb[0].mxu0
      %v2344 = vpop.f32.mrb[0].mxu0
      %v2345 = vadd.f32 %v1605, %v2344
      %v2346 = vpop.f32.mrb[0].mxu0
      %2347 = vmatprep.mubr.bf16.mxu0 0
      %2348 = vmatmul.mubr.bf16.gmra.mrb[0].mxu0 %v2066
      %v2349 = vpop.f32.mrb[0].mxu0
      %v2350 = vadd.f32 %v1610, %v2349
      %v2351 = vpop.f32.mrb[0].mxu0
      %v2352 = vpop.f32.mrb[0].mxu0
      %v2353 = vadd.f32 %v1613, %v2352
      %v2354 = vpop.f32.mrb[0].mxu0
      %2355 = vmatprep.mubr.bf16.mxu0 0
      %2356 = vmatmul.mubr.bf16.gmra.mrb[0].mxu0 %v2069
      %v2357 = vpop.f32.mrb[0].mxu0
      %v2358 = vadd.f32 %v1618, %v2357
      %v2359 = vpop.f32.mrb[0].mxu0
      %v2360 = vpop.f32.mrb[0].mxu0
      %v2361 = vadd.f32 %v1621, %v2360
      %v2362 = vpop.f32.mrb[0].mxu0
      %2363 = vmatprep.mubr.bf16.mxu0 0
      %2364 = vmatmul.mubr.bf16.gmra.mrb[0].mxu0 %v2072
      %v2365 = vpop.f32.mrb[0].mxu0
      %v2366 = vadd.f32 %v1626, %v2365
      %v2367 = vpop.f32.mrb[0].mxu0
      %v2368 = vpop.f32.mrb[0].mxu0
      %v2369 = vadd.f32 %v1629, %v2368
      %v2370 = vpop.f32.mrb[0].mxu0
      %2371 = vmatprep.mubr.bf16.mxu0 0
      %2372 = vmatmul.mubr.bf16.gmra.mrb[0].mxu0 %v2075
      %v2373 = vpop.f32.mrb[0].mxu0
      %v2374 = vadd.f32 %v1634, %v2373
      %v2375 = vpop.f32.mrb[0].mxu0
      %v2376 = vpop.f32.mrb[0].mxu0
      %v2377 = vadd.f32 %v1637, %v2376
      %v2378 = vpop.f32.mrb[0].mxu0
      %2379 = vmatprep.mubr.bf16.mxu0 0
      %2380 = vmatmul.mubr.bf16.gmra.mrb[0].mxu0 %v2078
      %v2381 = vpop.f32.mrb[0].mxu0
      %v2382 = vadd.f32 %v1642, %v2381
      %v2383 = vpop.f32.mrb[0].mxu0
      %v2384 = vpop.f32.mrb[0].mxu0
      %v2385 = vadd.f32 %v1645, %v2384
      %v2386 = vpop.f32.mrb[0].mxu0
      %2387 = vmatprep.mubr.bf16.mxu0 0
      %2388 = vmatmul.mubr.bf16.gmra.mrb[0].mxu0 %v2081
      %v2389 = vpop.f32.mrb[0].mxu0
      %v2390 = vadd.f32 %v1650, %v2389
      %v2391 = vpop.f32.mrb[0].mxu0
      %v2392 = vpop.f32.mrb[0].mxu0
      %v2393 = vadd.f32 %v1653, %v2392
      %v2394 = vpop.f32.mrb[0].mxu0
      %2395 = vmatprep.mubr.bf16.mxu0 0
      %2396 = vmatmul.mubr.bf16.gmra.mrb[0].mxu0 %v2084
      %v2397 = vpop.f32.mrb[0].mxu0
      %v2398 = vadd.f32 %v1658, %v2397
      %v2399 = vpop.f32.mrb[0].mxu0
      %v2400 = vpop.f32.mrb[0].mxu0
      %v2401 = vadd.f32 %v1661, %v2400
      %v2402 = vpop.f32.mrb[0].mxu0
      %2403 = vmatprep.mubr.bf16.mxu0 0
      %2404 = vmatmul.mubr.bf16.gmra.mrb[0].mxu0 %v2087
      %v2405 = vpop.f32.mrb[0].mxu0
      %v2406 = vadd.f32 %v1666, %v2405
      %v2407 = vpop.f32.mrb[0].mxu0
      %v2408 = vpop.f32.mrb[0].mxu0
      %v2409 = vadd.f32 %v1669, %v2408
      %v2410 = vpop.f32.mrb[0].mxu0
      %2411 = vmatprep.mubr.bf16.mxu0 0
      %2412 = vmatmul.mubr.bf16.gmra.mrb[0].mxu0 %v2090
      %v2413 = vpop.f32.mrb[0].mxu0
      %v2414 = vadd.f32 %v1674, %v2413
      %v2415 = vpop.f32.mrb[0].mxu0
      %v2416 = vpop.f32.mrb[0].mxu0
      %v2417 = vadd.f32 %v1677, %v2416
      %v2418 = vpop.f32.mrb[0].mxu0
      %2419 = vmatprep.mubr.bf16.mxu0 0
      %2420 = vmatmul.mubr.bf16.gmra.mrb[0].mxu0 %v2093
      %v2421 = vpop.f32.mrb[0].mxu0
      %v2422 = vadd.f32 %v1682, %v2421
      %v2423 = vpop.f32.mrb[0].mxu0
      %v2424 = vpop.f32.mrb[0].mxu0
      %v2425 = vadd.f32 %v1685, %v2424
      %v2426 = vpop.f32.mrb[0].mxu0
      %2427 = vmatprep.mubr.bf16.mxu0 0
      %2428 = vmatmul.mubr.bf16.gmra.mrb[0].mxu0 %v2096
      %v2429 = vpop.f32.mrb[0].mxu0
      %v2430 = vadd.f32 %v1690, %v2429
      %v2431 = vpop.f32.mrb[0].mxu0
      %v2432 = vpop.f32.mrb[0].mxu0
      %v2433 = vadd.f32 %v1693, %v2432
      %v2434 = vpop.f32.mrb[0].mxu0
      %2435 = vmatprep.mubr.bf16.mxu0 0
      %2436 = vmatmul.mubr.bf16.gmra.mrb[0].mxu0 %v2099
      %v2437 = vpop.f32.mrb[0].mxu0
      %v2438 = vadd.f32 %v1698, %v2437
      %v2439 = vpop.f32.mrb[0].mxu0
      %v2440 = vpop.f32.mrb[0].mxu0
      %v2441 = vadd.f32 %v1701, %v2440
      %v2442 = vpop.f32.mrb[0].mxu0
      %2443 = vmatprep.mubr.bf16.mxu0 0
      %2444 = vmatmul.mubr.bf16.gmra.mrb[0].mxu0 %v2102
      %v2445 = vpop.f32.mrb[0].mxu0
      %v2446 = vadd.f32 %v1706, %v2445
      %v2447 = vpop.f32.mrb[0].mxu0
      %v2448 = vpop.f32.mrb[0].mxu0
      %v2449 = vadd.f32 %v1709, %v2448
      %v2450 = vpop.f32.mrb[0].mxu0
      %2451 = vmatprep.mubr.bf16.mxu0 0
      %2452 = vmatmul.mubr.bf16.gmra.mrb[0].mxu0 %v2105
      %v2453 = vpop.f32.mrb[0].mxu0
      %v2454 = vadd.f32 %v1714, %v2453
      %v2455 = vpop.f32.mrb[0].mxu0
      %v2456 = vpop.f32.mrb[0].mxu0
      %v2457 = vadd.f32 %v1717, %v2456
      %v2458 = vpop.f32.mrb[0].mxu0
      %2459 = vmatprep.mubr.bf16.mxu0 0
      %2460 = vmatmul.mubr.bf16.gmra.mrb[0].mxu0 %v2108
      %v2461 = vpop.f32.mrb[0].mxu0
      %v2462 = vadd.f32 %v1722, %v2461
      %v2463 = vpop.f32.mrb[0].mxu0
      %v2464 = vpop.f32.mrb[0].mxu0
      %v2465 = vadd.f32 %v1725, %v2464
      %v2466 = vpop.f32.mrb[0].mxu0
      %2467 = vmatprep.mubr.bf16.mxu0 0
      %2468 = vmatmul.mubr.bf16.gmra.mrb[0].mxu0 %v2111
      %v2469 = vpop.f32.mrb[0].mxu0
      %v2470 = vadd.f32 %v1730, %v2469
      %v2471 = vpop.f32.mrb[0].mxu0
      %v2472 = vpop.f32.mrb[0].mxu0
      %v2473 = vadd.f32 %v1733, %v2472
      %v2474 = vpop.f32.mrb[0].mxu0
      %2475 = vmatprep.mubr.bf16.mxu0 0
      %2476 = vmatmul.mubr.bf16.gmra.mrb[0].mxu0 %v2114
      %v2477 = vpop.f32.mrb[0].mxu0
      %v2478 = vadd.f32 %v1738, %v2477
      %v2479 = vpop.f32.mrb[0].mxu0
      %v2480 = vpop.f32.mrb[0].mxu0
      %v2481 = vadd.f32 %v1741, %v2480
      %v2482 = vpop.f32.mrb[0].mxu0
      %2483 = vmatprep.mubr.bf16.mxu0 0
      %2484 = vmatmul.mubr.bf16.gmra.mrb[0].mxu0 %v2117
      %v2485 = vpop.f32.mrb[0].mxu0
      %v2486 = vadd.f32 %v1746, %v2485
      %v2487 = vpop.f32.mrb[0].mxu0
      %v2488 = vpop.f32.mrb[0].mxu0
      %v2489 = vadd.f32 %v1749, %v2488
      %v2490 = vpop.f32.mrb[0].mxu0
      %2491 = vmatprep.mubr.bf16.mxu0 0
      %2492 = vmatmul.mubr.bf16.gmra.mrb[0].mxu0 %v2120
      %v2493 = vpop.f32.mrb[0].mxu0
      %v2494 = vadd.f32 %v1754, %v2493
      %v2495 = vpop.f32.mrb[0].mxu0
      %v2496 = vpop.f32.mrb[0].mxu0
      %v2497 = vadd.f32 %v1757, %v2496
      %v2498 = vpop.f32.mrb[0].mxu0
      %2499 = vmatprep.mubr.bf16.mxu0 0
      %2500 = vmatmul.mubr.bf16.gmra.mrb[0].mxu0 %v2123
      %v2501 = vpop.f32.mrb[0].mxu0
      %v2502 = vadd.f32 %v1762, %v2501
      %v2503 = vpop.f32.mrb[0].mxu0
      %v2504 = vpop.f32.mrb[0].mxu0
      %v2505 = vadd.f32 %v1765, %v2504
      %v2506 = vpop.f32.mrb[0].mxu0
      %2507 = vmatprep.mubr.bf16.mxu0 0
      %2508 = vmatmul.mubr.bf16.gmra.mrb[0].mxu0 %v2126
      %v2509 = vpop.f32.mrb[0].mxu0
      %v2510 = vadd.f32 %v1770, %v2509
      %v2511 = vpop.f32.mrb[0].mxu0
      %v2512 = vpop.f32.mrb[0].mxu0
      %v2513 = vadd.f32 %v1773, %v2512
      %v2514 = vpop.f32.mrb[0].mxu0
      %2515 = vmatprep.mubr.bf16.mxu0 0
      %2516 = vmatmul.mubr.bf16.gmra.mrb[0].mxu0 %v2129
      %v2517 = vpop.f32.mrb[0].mxu0
      %v2518 = vadd.f32 %v1778, %v2517
      %v2519 = vpop.f32.mrb[0].mxu0
      %v2520 = vpop.f32.mrb[0].mxu0
      %v2521 = vadd.f32 %v1781, %v2520
      %v2522 = vpop.f32.mrb[0].mxu0
      %2523 = vmatprep.mubr.bf16.mxu0 0
      %2524 = vmatmul.mubr.bf16.gmra.mrb[0].mxu0 %v2132
      %v2525 = vpop.f32.mrb[0].mxu0
      %v2526 = vadd.f32 %v1786, %v2525
      %v2527 = vpop.f32.mrb[0].mxu0
      %v2528 = vpop.f32.mrb[0].mxu0
      %v2529 = vadd.f32 %v1789, %v2528
      %v2530 = vpop.f32.mrb[0].mxu0
      %2531 = vmatprep.mubr.bf16.mxu0 0
      %2532 = vmatmul.mubr.bf16.gmra.mrb[0].mxu0 %v2135
      %v2533 = vpop.f32.mrb[0].mxu0
      %v2534 = vadd.f32 %v1794, %v2533
      %v2535 = vpop.f32.mrb[0].mxu0
      %v2536 = vpop.f32.mrb[0].mxu0
      %v2537 = vadd.f32 %v1797, %v2536
      %v2538 = vpop.f32.mrb[0].mxu0
      %2539 = vmatprep.mubr.bf16.mxu0 0
      %2540 = vmatmul.mubr.bf16.gmra.mrb[0].mxu0 %v2138
      %v2541 = vpop.f32.mrb[0].mxu0
      %v2542 = vadd.f32 %v1802, %v2541
      %v2543 = vpop.f32.mrb[0].mxu0
      %v2544 = vpop.f32.mrb[0].mxu0
      %v2545 = vadd.f32 %v1805, %v2544
      %v2546 = vpop.f32.mrb[0].mxu0
      %2547 = vmatprep.mubr.bf16.mxu0 0
      %2548 = vmatmul.mubr.bf16.gmra.mrb[0].mxu0 %v2141
      %v2549 = vpop.f32.mrb[0].mxu0
      %v2550 = vadd.f32 %v1810, %v2549
      %v2551 = vpop.f32.mrb[0].mxu0
      %v2552 = vpop.f32.mrb[0].mxu0
      %v2553 = vadd.f32 %v1813, %v2552
      %v2554 = vpop.f32.mrb[0].mxu0
      %2555 = vmatprep.mubr.bf16.mxu0 0
      %2556 = vmatmul.mubr.bf16.gmra.mrb[0].mxu0 %v2144
      %v2557 = vpop.f32.mrb[0].mxu0
      %v2558 = vadd.f32 %v1818, %v2557
      %v2559 = vpop.f32.mrb[0].mxu0
      %v2560 = vpop.f32.mrb[0].mxu0
      %v2561 = vadd.f32 %v1821, %v2560
      %v2562 = vpop.f32.mrb[0].mxu0
      %2563 = vmatprep.mubr.bf16.mxu0 0
      %2564 = vmatmul.mubr.bf16.gmra.mrb[0].mxu0 %v2147
      %v2565 = vpop.f32.mrb[0].mxu0
      %v2566 = vadd.f32 %v1826, %v2565
      %v2567 = vpop.f32.mrb[0].mxu0
      %v2568 = vpop.f32.mrb[0].mxu0
      %v2569 = vadd.f32 %v1829, %v2568
      %v2570 = vpop.f32.mrb[0].mxu0
      %2571 = vmatprep.mubr.bf16.mxu0 0
      %2572 = vmatmul.mubr.bf16.gmra.mrb[0].mxu0 %v2150
      %v2573 = vpop.f32.mrb[0].mxu0
      %v2574 = vadd.f32 %v1834, %v2573
      %v2575 = vpop.f32.mrb[0].mxu0
      %v2576 = vpop.f32.mrb[0].mxu0
      %v2577 = vadd.f32 %v1837, %v2576
      %v2578 = vpop.f32.mrb[0].mxu0
      %2579 = vmatprep.mubr.bf16.mxu0 0
      %2580 = vmatmul.mubr.bf16.gmra.mrb[0].mxu0 %v2153
      %v2581 = vpop.f32.mrb[0].mxu0
      %v2582 = vadd.f32 %v1842, %v2581
      %v2583 = vpop.f32.mrb[0].mxu0
      %v2584 = vpop.f32.mrb[0].mxu0
      %v2585 = vadd.f32 %v1845, %v2584
      %v2586 = vpop.f32.mrb[0].mxu0
      %2587 = vmatprep.mubr.bf16.mxu0 0
      %2588 = vmatmul.mubr.bf16.gmra.mrb[0].mxu0 %v2156
      %v2589 = vpop.f32.mrb[0].mxu0
      %v2590 = vadd.f32 %v1850, %v2589
      %v2591 = vpop.f32.mrb[0].mxu0
      %v2592 = vpop.f32.mrb[0].mxu0
      %v2593 = vadd.f32 %v1853, %v2592
      %v2594 = vpop.f32.mrb[0].mxu0
      %2595 = vmatprep.mubr.bf16.mxu0 0
      %2596 = vmatmul.mubr.bf16.gmra.mrb[0].mxu0 %v2159
      %v2597 = vpop.f32.mrb[0].mxu0
      %v2598 = vadd.f32 %v1858, %v2597
      %v2599 = vpop.f32.mrb[0].mxu0
      %v2600 = vpop.f32.mrb[0].mxu0
      %v2601 = vadd.f32 %v1861, %v2600
      %v2602 = vpop.f32.mrb[0].mxu0
      %2603 = vmatprep.mubr.bf16.mxu0 0
      %2604 = vmatmul.mubr.bf16.gmra.mrb[0].mxu0 %v2162
      %v2605 = vpop.f32.mrb[0].mxu0
      %v2606 = vadd.f32 %v1866, %v2605
      %v2607 = vpop.f32.mrb[0].mxu0
      %v2608 = vpop.f32.mrb[0].mxu0
      %v2609 = vadd.f32 %v1869, %v2608
      %v2610 = vpop.f32.mrb[0].mxu0
      %2611 = vmatprep.mubr.bf16.mxu0 0
      %2612 = vmatmul.mubr.bf16.gmra.mrb[0].mxu0 %v2165
      %v2613 = vpop.f32.mrb[0].mxu0
      %v2614 = vadd.f32 %v1874, %v2613
      %v2615 = vpop.f32.mrb[0].mxu0
      %v2616 = vpop.f32.mrb[0].mxu0
      %v2617 = vadd.f32 %v1877, %v2616
      %v2618 = vpop.f32.mrb[0].mxu0
      %2619 = vmatprep.mubr.bf16.mxu0 0
      %2620 = vmatmul.mubr.bf16.gmra.mrb[0].mxu0 %v2168
      %v2621 = vpop.f32.mrb[0].mxu0
      %v2622 = vadd.f32 %v1882, %v2621
      %v2623 = vpop.f32.mrb[0].mxu0
      %v2624 = vpop.f32.mrb[0].mxu0
      %v2625 = vadd.f32 %v1885, %v2624
      %v2626 = vpop.f32.mrb[0].mxu0
      %2627 = vmatprep.mubr.bf16.mxu0 0
      %2628 = vmatmul.mubr.bf16.gmra.mrb[0].mxu0 %v2171
      %v2629 = vpop.f32.mrb[0].mxu0
      %v2630 = vadd.f32 %v1890, %v2629
      %v2631 = vpop.f32.mrb[0].mxu0
      %v2632 = vpop.f32.mrb[0].mxu0
      %v2633 = vadd.f32 %v1893, %v2632
      %v2634 = vpop.f32.mrb[0].mxu0
      %2635 = vmatprep.mubr.bf16.mxu0 0
      %2636 = vmatmul.mubr.bf16.gmra.mrb[0].mxu0 %v2174
      %v2637 = vpop.f32.mrb[0].mxu0
      %v2638 = vadd.f32 %v1898, %v2637
      %v2639 = vpop.f32.mrb[0].mxu0
      %v2640 = vpop.f32.mrb[0].mxu0
      %v2641 = vadd.f32 %v1901, %v2640
      %v2642 = vpop.f32.mrb[0].mxu0
      %2643 = vmatprep.mubr.bf16.mxu0 0
      %2644 = vmatmul.mubr.bf16.gmra.mrb[0].mxu0 %v2177
      %v2645 = vpop.f32.mrb[0].mxu0
      %v2646 = vadd.f32 %v1906, %v2645
      %v2647 = vpop.f32.mrb[0].mxu0
      %v2648 = vpop.f32.mrb[0].mxu0
      %v2649 = vadd.f32 %v1909, %v2648
      %v2650 = vpop.f32.mrb[0].mxu0
      %2651 = vmatprep.mubr.bf16.mxu0 0
      %2652 = vmatmul.mubr.bf16.gmra.mrb[0].mxu0 %v2180
      %v2653 = vpop.f32.mrb[0].mxu0
      %v2654 = vadd.f32 %v1914, %v2653
      %v2655 = vpop.f32.mrb[0].mxu0
      %v2656 = vpop.f32.mrb[0].mxu0
      %v2657 = vadd.f32 %v1917, %v2656
      %v2658 = vpop.f32.mrb[0].mxu0
      %2659 = vmatprep.mubr.bf16.mxu0 0
      %2660 = vmatmul.mubr.bf16.gmra.mrb[0].mxu0 %v2183
      %v2661 = vpop.f32.mrb[0].mxu0
      %v2662 = vadd.f32 %v1922, %v2661
      %v2663 = vpop.f32.mrb[0].mxu0
      %v2664 = vpop.f32.mrb[0].mxu0
      %v2665 = vadd.f32 %v1925, %v2664
      %v2666 = vpop.f32.mrb[0].mxu0
      %2667 = vmatprep.mubr.bf16.mxu0 0
      %2668 = vmatmul.mubr.bf16.gmra.mrb[0].mxu0 %v2186
      %v2669 = vpop.f32.mrb[0].mxu0
      %v2670 = vadd.f32 %v1930, %v2669
      %v2671 = vpop.f32.mrb[0].mxu0
      %v2672 = vpop.f32.mrb[0].mxu0
      %v2673 = vadd.f32 %v1933, %v2672
      %v2674 = vpop.f32.mrb[0].mxu0
      %2675 = vmatprep.mubr.bf16.mxu0 0
      %2676 = vmatmul.mubr.bf16.gmra.mrb[0].mxu0 %v2189
      %v2677 = vpop.f32.mrb[0].mxu0
      %v2678 = vadd.f32 %v1938, %v2677
      %v2679 = vpop.f32.mrb[0].mxu0
      %v2680 = vpop.f32.mrb[0].mxu0
      %v2681 = vadd.f32 %v1941, %v2680
      %v2682 = vpop.f32.mrb[0].mxu0
      %2683 = vmatprep.mubr.bf16.mxu0 0
      %2684 = vmatmul.mubr.bf16.gmra.mrb[0].mxu0 %v2192
      %v2685 = vpop.f32.mrb[0].mxu0
      %v2686 = vadd.f32 %v1946, %v2685
      %v2687 = vpop.f32.mrb[0].mxu0
      %v2688 = vpop.f32.mrb[0].mxu0
      %v2689 = vadd.f32 %v1949, %v2688
      %v2690 = vpop.f32.mrb[0].mxu0
      %2691 = vmatprep.mubr.bf16.mxu0 0
      %2692 = vmatmul.mubr.bf16.gmra.mrb[0].mxu0 %v2195
      %v2693 = vpop.f32.mrb[0].mxu0
      %v2694 = vadd.f32 %v1954, %v2693
      %v2695 = vpop.f32.mrb[0].mxu0
      %v2696 = vpop.f32.mrb[0].mxu0
      %v2697 = vadd.f32 %v1957, %v2696
      %v2698 = vpop.f32.mrb[0].mxu0
      %2699 = vmatprep.mubr.bf16.mxu0 0
      %2700 = vmatmul.mubr.bf16.gmra.mrb[0].mxu0 %v2198
      %v2701 = vpop.f32.mrb[0].mxu0
      %v2702 = vadd.f32 %v1962, %v2701
      %v2703 = vpop.f32.mrb[0].mxu0
      %v2704 = vpop.f32.mrb[0].mxu0
      %v2705 = vadd.f32 %v1965, %v2704
      %v2706 = vpop.f32.mrb[0].mxu0
      %2707 = vmatprep.mubr.bf16.mxu0 0
      %2708 = vmatmul.mubr.bf16.gmra.mrb[0].mxu0 %v2201
      %v2709 = vpop.f32.mrb[0].mxu0
      %v2710 = vadd.f32 %v1970, %v2709
      %v2711 = vpop.f32.mrb[0].mxu0
      %v2712 = vpop.f32.mrb[0].mxu0
      %v2713 = vadd.f32 %v1973, %v2712
      %v2714 = vpop.f32.mrb[0].mxu0
      %2715 = vmatprep.mubr.bf16.mxu0 0
      %2716 = vmatmul.mubr.bf16.gmra.mrb[0].mxu0 %v2204
      %v2717 = vpop.f32.mrb[0].mxu0
      %v2718 = vadd.f32 %v1978, %v2717
      %v2719 = vpop.f32.mrb[0].mxu0
      %v2720 = vpop.f32.mrb[0].mxu0
      %v2721 = vadd.f32 %v1981, %v2720
      %v2722 = vpop.f32.mrb[0].mxu0
      %2723 = vmatprep.mubr.bf16.mxu0 0
      %2724 = vmatmul.mubr.bf16.gmra.mrb[0].mxu0 %v2207
      %v2725 = vpop.f32.mrb[0].mxu0
      %v2726 = vadd.f32 %v1986, %v2725
      %v2727 = vpop.f32.mrb[0].mxu0
      %v2728 = vpop.f32.mrb[0].mxu0
      %v2729 = vadd.f32 %v1989, %v2728
      %v2730 = vpop.f32.mrb[0].mxu0
      %2731 = vmatprep.mubr.bf16.mxu0 0
      %2732 = vmatmul.mubr.bf16.gmra.mrb[0].mxu0 %v2210
      %v2733 = vpop.f32.mrb[0].mxu0
      %v2734 = vadd.f32 %v1994, %v2733
      %v2735 = vpop.f32.mrb[0].mxu0
      %v2736 = vpop.f32.mrb[0].mxu0
      %v2737 = vadd.f32 %v1997, %v2736
      %v2738 = vpop.f32.mrb[0].mxu0
      %2739 = vmatprep.mubr.bf16.mxu0 0
      %2740 = vmatmul.mubr.bf16.gmra.mrb[0].mxu0 %v2213
      %v2741 = vpop.f32.mrb[0].mxu0
      %v2742 = vadd.f32 %v2002, %v2741
      %v2743 = vpop.f32.mrb[0].mxu0
      %v2744 = vpop.f32.mrb[0].mxu0
      %v2745 = vadd.f32 %v2005, %v2744
      %v2746 = vpop.f32.mrb[0].mxu0
      %2747 = vmatprep.mubr.bf16.mxu0 0
      %2748 = vmatmul.mubr.bf16.gmra.mrb[0].mxu0 %v2216
      %v2749 = vpop.f32.mrb[0].mxu0
      %v2750 = vadd.f32 %v2010, %v2749
      %v2751 = vpop.f32.mrb[0].mxu0
      %v2752 = vpop.f32.mrb[0].mxu0
      %v2753 = vadd.f32 %v2013, %v2752
      %v2754 = vpop.f32.mrb[0].mxu0
      %2755 = vmatprep.mubr.bf16.mxu0 0
      %2756 = vmatmul.mubr.bf16.gmra.mrb[0].mxu0 %v2219
      %v2757 = vpop.f32.mrb[0].mxu0
      %v2758 = vadd.f32 %v2018, %v2757
      %v2759 = vpop.f32.mrb[0].mxu0
      %v2760 = vpop.f32.mrb[0].mxu0
      %v2761 = vadd.f32 %v2021, %v2760
      %v2762 = vpop.f32.mrb[0].mxu0
      %2763 = vmatprep.mubr.bf16.mxu0 0
      %2764 = vmatmul.mubr.bf16.gmra.mrb[0].mxu0 %v2222
      %v2765 = vpop.f32.mrb[0].mxu0
      %v2766 = vadd.f32 %v2026, %v2765
      %v2767 = vpop.f32.mrb[0].mxu0
      %v2768 = vpop.f32.mrb[0].mxu0
      %v2769 = vadd.f32 %v2029, %v2768
      %v2770 = vpop.f32.mrb[0].mxu0
      %2771 = vdwg.mxu0
      %vm2772 = vcmask 1045504
      %v2773 = vrot.slane %v409, 2
      %v2774 = vrot.slane %v410, 2
      %v2775 = vsel %vm2772, %v2773, %v2774
      %v2776 = vrot.slane %v411, 2
      %v2777 = vsel %vm2772, %v2774, %v2776
      %v2778 = vrot.slane %v412, 2
      %v2779 = vsel %vm2772, %v2776, %v2778
      %v2780 = vrot.slane %v413, 2
      %v2781 = vsel %vm2772, %v2778, %v2780
      %v2782 = vrot.slane %v414, 2
      %v2783 = vrot.slane %v415, 2
      %v2784 = vsel %vm2772, %v2782, %v2783
      %v2785 = vrot.slane %v416, 2
      %v2786 = vsel %vm2772, %v2783, %v2785
      %v2787 = vrot.slane %v417, 2
      %v2788 = vsel %vm2772, %v2785, %v2787
      %v2789 = vrot.slane %v418, 2
      %v2790 = vsel %vm2772, %v2787, %v2789
      %v2791 = vrot.slane %v419, 2
      %v2792 = vrot.slane %v420, 2
      %v2793 = vsel %vm2772, %v2791, %v2792
      %v2794 = vrot.slane %v421, 2
      %v2795 = vsel %vm2772, %v2792, %v2794
      %v2796 = vrot.slane %v422, 2
      %v2797 = vsel %vm2772, %v2794, %v2796
      %v2798 = vrot.slane %v423, 2
      %v2799 = vsel %vm2772, %v2796, %v2798
      %v2800 = vrot.slane %v424, 2
      %v2801 = vrot.slane %v425, 2
      %v2802 = vsel %vm2772, %v2800, %v2801
      %v2803 = vrot.slane %v426, 2
      %v2804 = vsel %vm2772, %v2801, %v2803
      %v2805 = vrot.slane %v427, 2
      %v2806 = vsel %vm2772, %v2803, %v2805
      %v2807 = vrot.slane %v428, 2
      %v2808 = vsel %vm2772, %v2805, %v2807
      %v2809 = vrot.slane %v429, 2
      %v2810 = vrot.slane %v430, 2
      %v2811 = vsel %vm2772, %v2809, %v2810
      %v2812 = vrot.slane %v431, 2
      %v2813 = vsel %vm2772, %v2810, %v2812
      %v2814 = vrot.slane %v432, 2
      %v2815 = vsel %vm2772, %v2812, %v2814
      %v2816 = vrot.slane %v433, 2
      %v2817 = vsel %vm2772, %v2814, %v2816
      %v2818 = vrot.slane %v434, 2
      %v2819 = vrot.slane %v435, 2
      %v2820 = vsel %vm2772, %v2818, %v2819
      %v2821 = vrot.slane %v436, 2
      %v2822 = vsel %vm2772, %v2819, %v2821
      %v2823 = vrot.slane %v437, 2
      %v2824 = vsel %vm2772, %v2821, %v2823
      %v2825 = vrot.slane %v438, 2
      %v2826 = vsel %vm2772, %v2823, %v2825
      %v2827 = vrot.slane %v439, 2
      %v2828 = vrot.slane %v440, 2
      %v2829 = vsel %vm2772, %v2827, %v2828
      %v2830 = vrot.slane %v441, 2
      %v2831 = vsel %vm2772, %v2828, %v2830
      %v2832 = vrot.slane %v442, 2
      %v2833 = vsel %vm2772, %v2830, %v2832
      %v2834 = vrot.slane %v443, 2
      %v2835 = vsel %vm2772, %v2832, %v2834
      %v2836 = vrot.slane %v444, 2
      %v2837 = vrot.slane %v445, 2
      %v2838 = vsel %vm2772, %v2836, %v2837
      %v2839 = vrot.slane %v446, 2
      %v2840 = vsel %vm2772, %v2837, %v2839
      %v2841 = vrot.slane %v447, 2
      %v2842 = vsel %vm2772, %v2839, %v2841
      %v2843 = vrot.slane %v448, 2
      %v2844 = vsel %vm2772, %v2841, %v2843
      %v2845 = vrot.slane %v449, 2
      %v2846 = vrot.slane %v450, 2
      %v2847 = vsel %vm2772, %v2845, %v2846
      %v2848 = vrot.slane %v451, 2
      %v2849 = vsel %vm2772, %v2846, %v2848
      %v2850 = vrot.slane %v452, 2
      %v2851 = vsel %vm2772, %v2848, %v2850
      %v2852 = vrot.slane %v453, 2
      %v2853 = vsel %vm2772, %v2850, %v2852
      %v2854 = vrot.slane %v454, 2
      %v2855 = vrot.slane %v455, 2
      %v2856 = vsel %vm2772, %v2854, %v2855
      %v2857 = vrot.slane %v456, 2
      %v2858 = vsel %vm2772, %v2855, %v2857
      %v2859 = vrot.slane %v457, 2
      %v2860 = vsel %vm2772, %v2857, %v2859
      %v2861 = vrot.slane %v458, 2
      %v2862 = vsel %vm2772, %v2859, %v2861
      %v2863 = vrot.slane %v459, 2
      %v2864 = vrot.slane %v460, 2
      %v2865 = vsel %vm2772, %v2863, %v2864
      %v2866 = vrot.slane %v461, 2
      %v2867 = vsel %vm2772, %v2864, %v2866
      %v2868 = vrot.slane %v462, 2
      %v2869 = vsel %vm2772, %v2866, %v2868
      %v2870 = vrot.slane %v463, 2
      %v2871 = vsel %vm2772, %v2868, %v2870
      %v2872 = vrot.slane %v464, 2
      %v2873 = vrot.slane %v465, 2
      %v2874 = vsel %vm2772, %v2872, %v2873
      %v2875 = vrot.slane %v466, 2
      %v2876 = vsel %vm2772, %v2873, %v2875
      %v2877 = vrot.slane %v467, 2
      %v2878 = vsel %vm2772, %v2875, %v2877
      %v2879 = vrot.slane %v468, 2
      %v2880 = vsel %vm2772, %v2877, %v2879
      %v2881 = vrot.slane %v469, 2
      %v2882 = vrot.slane %v470, 2
      %v2883 = vsel %vm2772, %v2881, %v2882
      %v2884 = vrot.slane %v471, 2
      %v2885 = vsel %vm2772, %v2882, %v2884
      %v2886 = vrot.slane %v472, 2
      %v2887 = vsel %vm2772, %v2884, %v2886
      %v2888 = vrot.slane %v473, 2
      %v2889 = vsel %vm2772, %v2886, %v2888
      %v2890 = vrot.slane %v474, 2
      %v2891 = vrot.slane %v475, 2
      %v2892 = vsel %vm2772, %v2890, %v2891
      %v2893 = vrot.slane %v476, 2
      %v2894 = vsel %vm2772, %v2891, %v2893
      %v2895 = vrot.slane %v477, 2
      %v2896 = vsel %vm2772, %v2893, %v2895
      %v2897 = vrot.slane %v478, 2
      %v2898 = vsel %vm2772, %v2895, %v2897
      %v2899 = vrot.slane %v479, 2
      %v2900 = vrot.slane %v480, 2
      %v2901 = vsel %vm2772, %v2899, %v2900
      %v2902 = vrot.slane %v481, 2
      %v2903 = vsel %vm2772, %v2900, %v2902
      %v2904 = vrot.slane %v482, 2
      %v2905 = vsel %vm2772, %v2902, %v2904
      %v2906 = vrot.slane %v483, 2
      %v2907 = vsel %vm2772, %v2904, %v2906
      %v2908 = vrot.slane %v484, 2
      %v2909 = vrot.slane %v485, 2
      %v2910 = vsel %vm2772, %v2908, %v2909
      %v2911 = vrot.slane %v486, 2
      %v2912 = vsel %vm2772, %v2909, %v2911
      %v2913 = vrot.slane %v487, 2
      %v2914 = vsel %vm2772, %v2911, %v2913
      %v2915 = vrot.slane %v488, 2
      %v2916 = vsel %vm2772, %v2913, %v2915
      %v2917 = vrot.slane %v489, 2
      %v2918 = vrot.slane %v490, 2
      %v2919 = vsel %vm2772, %v2917, %v2918
      %v2920 = vrot.slane %v491, 2
      %v2921 = vsel %vm2772, %v2918, %v2920
      %v2922 = vrot.slane %v492, 2
      %v2923 = vsel %vm2772, %v2920, %v2922
      %v2924 = vrot.slane %v493, 2
      %v2925 = vsel %vm2772, %v2922, %v2924
      %v2926 = vrot.slane %v494, 2
      %v2927 = vrot.slane %v495, 2
      %v2928 = vsel %vm2772, %v2926, %v2927
      %v2929 = vrot.slane %v496, 2
      %v2930 = vsel %vm2772, %v2927, %v2929
      %v2931 = vrot.slane %v497, 2
      %v2932 = vsel %vm2772, %v2929, %v2931
      %v2933 = vrot.slane %v498, 2
      %v2934 = vsel %vm2772, %v2931, %v2933
      %v2935 = vrot.slane %v499, 2
      %v2936 = vrot.slane %v500, 2
      %v2937 = vsel %vm2772, %v2935, %v2936
      %v2938 = vrot.slane %v501, 2
      %v2939 = vsel %vm2772, %v2936, %v2938
      %v2940 = vrot.slane %v502, 2
      %v2941 = vsel %vm2772, %v2938, %v2940
      %v2942 = vrot.slane %v503, 2
      %v2943 = vsel %vm2772, %v2940, %v2942
      %v2944 = vrot.slane %v504, 2
      %v2945 = vrot.slane %v505, 2
      %v2946 = vsel %vm2772, %v2944, %v2945
      %v2947 = vrot.slane %v506, 2
      %v2948 = vsel %vm2772, %v2945, %v2947
      %v2949 = vrot.slane %v507, 2
      %v2950 = vsel %vm2772, %v2947, %v2949
      %v2951 = vrot.slane %v508, 2
      %v2952 = vsel %vm2772, %v2949, %v2951
      %v2953 = vrot.slane %v509, 2
      %v2954 = vrot.slane %v510, 2
      %v2955 = vsel %vm2772, %v2953, %v2954
      %v2956 = vrot.slane %v511, 2
      %v2957 = vsel %vm2772, %v2954, %v2956
      %v2958 = vrot.slane %v512, 2
      %v2959 = vsel %vm2772, %v2956, %v2958
      %v2960 = vrot.slane %v513, 2
      %v2961 = vsel %vm2772, %v2958, %v2960
      %v2962 = vrot.slane %v514, 2
      %v2963 = vrot.slane %v515, 2
      %v2964 = vsel %vm2772, %v2962, %v2963
      %v2965 = vrot.slane %v516, 2
      %v2966 = vsel %vm2772, %v2963, %v2965
      %v2967 = vrot.slane %v517, 2
      %v2968 = vsel %vm2772, %v2965, %v2967
      %v2969 = vrot.slane %v518, 2
      %v2970 = vsel %vm2772, %v2967, %v2969
      %v2971 = vrot.slane %v519, 2
      %v2972 = vrot.slane %v520, 2
      %v2973 = vsel %vm2772, %v2971, %v2972
      %v2974 = vrot.slane %v521, 2
      %v2975 = vsel %vm2772, %v2972, %v2974
      %v2976 = vrot.slane %v522, 2
      %v2977 = vsel %vm2772, %v2974, %v2976
      %v2978 = vrot.slane %v523, 2
      %v2979 = vsel %vm2772, %v2976, %v2978
      %v2980 = vrot.slane %v524, 2
      %v2981 = vrot.slane %v525, 2
      %v2982 = vsel %vm2772, %v2980, %v2981
      %v2983 = vrot.slane %v526, 2
      %v2984 = vsel %vm2772, %v2981, %v2983
      %v2985 = vrot.slane %v527, 2
      %v2986 = vsel %vm2772, %v2983, %v2985
      %v2987 = vrot.slane %v528, 2
      %v2988 = vsel %vm2772, %v2985, %v2987
      %v2989 = vrot.slane %v529, 2
      %v2990 = vrot.slane %v530, 2
      %v2991 = vsel %vm2772, %v2989, %v2990
      %v2992 = vrot.slane %v531, 2
      %v2993 = vsel %vm2772, %v2990, %v2992
      %v2994 = vrot.slane %v532, 2
      %v2995 = vsel %vm2772, %v2992, %v2994
      %v2996 = vrot.slane %v533, 2
      %v2997 = vsel %vm2772, %v2994, %v2996
      %v2998 = vrot.slane %v534, 2
      %v2999 = vrot.slane %v535, 2
      %v3000 = vsel %vm2772, %v2998, %v2999
      %v3001 = vrot.slane %v536, 2
      %v3002 = vsel %vm2772, %v2999, %v3001
      %v3003 = vrot.slane %v537, 2
      %v3004 = vsel %vm2772, %v3001, %v3003
      %v3005 = vrot.slane %v538, 2
      %v3006 = vsel %vm2772, %v3003, %v3005
      %v3007 = vrot.slane %v539, 2
      %v3008 = vrot.slane %v540, 2
      %v3009 = vsel %vm2772, %v3007, %v3008
      %v3010 = vrot.slane %v541, 2
      %v3011 = vsel %vm2772, %v3008, %v3010
      %v3012 = vrot.slane %v542, 2
      %v3013 = vsel %vm2772, %v3010, %v3012
      %v3014 = vrot.slane %v543, 2
      %v3015 = vsel %vm2772, %v3012, %v3014
      %v3016 = vrot.slane %v544, 2
      %v3017 = vrot.slane %v545, 2
      %v3018 = vsel %vm2772, %v3016, %v3017
      %v3019 = vrot.slane %v546, 2
      %v3020 = vsel %vm2772, %v3017, %v3019
      %v3021 = vrot.slane %v547, 2
      %v3022 = vsel %vm2772, %v3019, %v3021
      %v3023 = vrot.slane %v548, 2
      %v3024 = vsel %vm2772, %v3021, %v3023
      %v3025 = vrot.slane %v549, 2
      %v3026 = vrot.slane %v550, 2
      %v3027 = vsel %vm2772, %v3025, %v3026
      %v3028 = vrot.slane %v551, 2
      %v3029 = vsel %vm2772, %v3026, %v3028
      %v3030 = vrot.slane %v552, 2
      %v3031 = vsel %vm2772, %v3028, %v3030
      %v3032 = vrot.slane %v553, 2
      %v3033 = vsel %vm2772, %v3030, %v3032
      %v3034 = vrot.slane %v554, 2
      %v3035 = vrot.slane %v555, 2
      %v3036 = vsel %vm2772, %v3034, %v3035
      %v3037 = vrot.slane %v556, 2
      %v3038 = vsel %vm2772, %v3035, %v3037
      %v3039 = vrot.slane %v557, 2
      %v3040 = vsel %vm2772, %v3037, %v3039
      %v3041 = vrot.slane %v558, 2
      %v3042 = vsel %vm2772, %v3039, %v3041
      %v3043 = vrot.slane %v559, 2
      %v3044 = vrot.slane %v560, 2
      %v3045 = vsel %vm2772, %v3043, %v3044
      %v3046 = vrot.slane %v561, 2
      %v3047 = vsel %vm2772, %v3044, %v3046
      %v3048 = vrot.slane %v562, 2
      %v3049 = vsel %vm2772, %v3046, %v3048
      %v3050 = vrot.slane %v563, 2
      %v3051 = vsel %vm2772, %v3048, %v3050
      %v3052 = vrot.slane %v564, 2
      %v3053 = vrot.slane %v565, 2
      %v3054 = vsel %vm2772, %v3052, %v3053
      %v3055 = vrot.slane %v566, 2
      %v3056 = vsel %vm2772, %v3053, %v3055
      %v3057 = vrot.slane %v567, 2
      %v3058 = vsel %vm2772, %v3055, %v3057
      %v3059 = vrot.slane %v568, 2
      %v3060 = vsel %vm2772, %v3057, %v3059
      %v3189 = vpack.c.bf16 %v2777, %v2775
      %v3190 = vpack.c.bf16 %v2781, %v2779
      %v3191 = vpack.c.bf16 %v2786, %v2784
      %v3192 = vpack.c.bf16 %v2790, %v2788
      %v3193 = vpack.c.bf16 %v2795, %v2793
      %v3194 = vpack.c.bf16 %v2799, %v2797
      %v3195 = vpack.c.bf16 %v2804, %v2802
      %v3196 = vpack.c.bf16 %v2808, %v2806
      %v3197 = vpack.c.bf16 %v2813, %v2811
      %v3198 = vpack.c.bf16 %v2817, %v2815
      %v3199 = vpack.c.bf16 %v2822, %v2820
      %v3200 = vpack.c.bf16 %v2826, %v2824
      %v3201 = vpack.c.bf16 %v2831, %v2829
      %v3202 = vpack.c.bf16 %v2835, %v2833
      %v3203 = vpack.c.bf16 %v2840, %v2838
      %v3204 = vpack.c.bf16 %v2844, %v2842
      %v3205 = vpack.c.bf16 %v2849, %v2847
      %v3206 = vpack.c.bf16 %v2853, %v2851
      %v3207 = vpack.c.bf16 %v2858, %v2856
      %v3208 = vpack.c.bf16 %v2862, %v2860
      %v3209 = vpack.c.bf16 %v2867, %v2865
      %v3210 = vpack.c.bf16 %v2871, %v2869
      %v3211 = vpack.c.bf16 %v2876, %v2874
      %v3212 = vpack.c.bf16 %v2880, %v2878
      %v3213 = vpack.c.bf16 %v2885, %v2883
      %v3214 = vpack.c.bf16 %v2889, %v2887
      %v3215 = vpack.c.bf16 %v2894, %v2892
      %v3216 = vpack.c.bf16 %v2898, %v2896
      %v3217 = vpack.c.bf16 %v2903, %v2901
      %v3218 = vpack.c.bf16 %v2907, %v2905
      %v3219 = vpack.c.bf16 %v2912, %v2910
      %v3220 = vpack.c.bf16 %v2916, %v2914
      %v3221 = vpack.c.bf16 %v2921, %v2919
      %v3222 = vpack.c.bf16 %v2925, %v2923
      %v3223 = vpack.c.bf16 %v2930, %v2928
      %v3224 = vpack.c.bf16 %v2934, %v2932
      %v3225 = vpack.c.bf16 %v2939, %v2937
      %v3226 = vpack.c.bf16 %v2943, %v2941
      %v3227 = vpack.c.bf16 %v2948, %v2946
      %v3228 = vpack.c.bf16 %v2952, %v2950
      %v3229 = vpack.c.bf16 %v2957, %v2955
      %v3230 = vpack.c.bf16 %v2961, %v2959
      %v3231 = vpack.c.bf16 %v2966, %v2964
      %v3232 = vpack.c.bf16 %v2970, %v2968
      %v3233 = vpack.c.bf16 %v2975, %v2973
      %v3234 = vpack.c.bf16 %v2979, %v2977
      %v3235 = vpack.c.bf16 %v2984, %v2982
      %v3236 = vpack.c.bf16 %v2988, %v2986
      %v3237 = vpack.c.bf16 %v2993, %v2991
      %v3238 = vpack.c.bf16 %v2997, %v2995
      %v3239 = vpack.c.bf16 %v3002, %v3000
      %v3240 = vpack.c.bf16 %v3006, %v3004
      %v3241 = vpack.c.bf16 %v3011, %v3009
      %v3242 = vpack.c.bf16 %v3015, %v3013
      %v3243 = vpack.c.bf16 %v3020, %v3018
      %v3244 = vpack.c.bf16 %v3024, %v3022
      %v3245 = vpack.c.bf16 %v3029, %v3027
      %v3246 = vpack.c.bf16 %v3033, %v3031
      %v3247 = vpack.c.bf16 %v3038, %v3036
      %v3248 = vpack.c.bf16 %v3042, %v3040
      %v3249 = vpack.c.bf16 %v3047, %v3045
      %v3250 = vpack.c.bf16 %v3051, %v3049
      %v3251 = vpack.c.bf16 %v3056, %v3054
      %v3252 = vpack.c.bf16 %v3060, %v3058
      %s3253 = scalar_lea.vmem %s1, 4
      %v3254 = vld [vmem:[%s3253] sm:$0x3]
      %v3256 = vsel %vm1287, %v3189, 0
      %v3259 = vsel %vm1287, %v3190, 0
      %v3262 = vsel %vm1287, %v3191, 0
      %v3265 = vsel %vm1287, %v3192, 0
      %v3268 = vsel %vm1287, %v3193, 0
      %v3271 = vsel %vm1287, %v3194, 0
      %v3274 = vsel %vm1287, %v3195, 0
      %v3277 = vsel %vm1287, %v3196, 0
      %v3280 = vsel %vm1287, %v3197, 0
      %v3283 = vsel %vm1287, %v3198, 0
      %v3286 = vsel %vm1287, %v3199, 0
      %v3289 = vsel %vm1287, %v3200, 0
      %v3292 = vsel %vm1287, %v3201, 0
      %v3295 = vsel %vm1287, %v3202, 0
      %v3298 = vsel %vm1287, %v3203, 0
      %v3301 = vsel %vm1287, %v3204, 0
      %v3304 = vsel %vm1287, %v3205, 0
      %v3307 = vsel %vm1287, %v3206, 0
      %v3310 = vsel %vm1287, %v3207, 0
      %v3313 = vsel %vm1287, %v3208, 0
      %v3316 = vsel %vm1287, %v3209, 0
      %v3319 = vsel %vm1287, %v3210, 0
      %v3322 = vsel %vm1287, %v3211, 0
      %v3325 = vsel %vm1287, %v3212, 0
      %v3328 = vsel %vm1287, %v3213, 0
      %v3331 = vsel %vm1287, %v3214, 0
      %v3334 = vsel %vm1287, %v3215, 0
      %v3337 = vsel %vm1287, %v3216, 0
      %v3340 = vsel %vm1287, %v3217, 0
      %v3343 = vsel %vm1287, %v3218, 0
      %v3346 = vsel %vm1287, %v3219, 0
      %v3349 = vsel %vm1287, %v3220, 0
      %v3352 = vsel %vm1287, %v3221, 0
      %v3355 = vsel %vm1287, %v3222, 0
      %v3358 = vsel %vm1287, %v3223, 0
      %v3361 = vsel %vm1287, %v3224, 0
      %v3364 = vsel %vm1287, %v3225, 0
      %v3367 = vsel %vm1287, %v3226, 0
      %v3370 = vsel %vm1287, %v3227, 0
      %v3373 = vsel %vm1287, %v3228, 0
      %v3376 = vsel %vm1287, %v3229, 0
      %v3379 = vsel %vm1287, %v3230, 0
      %v3382 = vsel %vm1287, %v3231, 0
      %v3385 = vsel %vm1287, %v3232, 0
      %v3388 = vsel %vm1287, %v3233, 0
      %v3391 = vsel %vm1287, %v3234, 0
      %v3394 = vsel %vm1287, %v3235, 0
      %v3397 = vsel %vm1287, %v3236, 0
      %v3400 = vsel %vm1287, %v3237, 0
      %v3403 = vsel %vm1287, %v3238, 0
      %v3406 = vsel %vm1287, %v3239, 0
      %v3409 = vsel %vm1287, %v3240, 0
      %v3412 = vsel %vm1287, %v3241, 0
      %v3415 = vsel %vm1287, %v3242, 0
      %v3418 = vsel %vm1287, %v3243, 0
      %v3421 = vsel %vm1287, %v3244, 0
      %v3424 = vsel %vm1287, %v3245, 0
      %v3427 = vsel %vm1287, %v3246, 0
      %v3430 = vsel %vm1287, %v3247, 0
      %v3433 = vsel %vm1287, %v3248, 0
      %v3436 = vsel %vm1287, %v3249, 0
      %v3439 = vsel %vm1287, %v3250, 0
      %v3442 = vsel %vm1287, %v3251, 0
      %v3445 = vsel %vm1287, %v3252, 0
      %v3448 = vand.u32 %v3254, %v1483
      %3450 = vmatprep.subr.bf16.mxu0 0
      %3451 = vmatpush1.bf16.msra.mxu0 %v3448
      %3452 = vmatprep.subr.bf16.mxu0 0
      %3453 = vmatpush1.bf16.msra.mxu0 0
      %3454 = vmatprep.subr.bf16.mxu0 0
      %3455 = vmatpush1.bf16.msra.mxu0 0
      %3456 = vmatprep.subr.bf16.mxu0 0
      %3457 = vmatpush1.bf16.msra.mxu0 0
      %3458 = vmatprep.subr.bf16.mxu0 0
      %3459 = vmatpush1.bf16.msra.mxu0 0
      %3460 = vmatprep.subr.bf16.mxu0 0
      %3461 = vmatpush1.bf16.msra.mxu0 0
      %3462 = vmatprep.subr.bf16.mxu0 0
      %3463 = vmatpush1.bf16.msra.mxu0 0
      %3464 = vmatprep.subr.bf16.mxu0 0
      %3465 = vmatpush1.bf16.msra.mxu0 0
      %3466 = vmatprep.subr.bf16.mxu0 0
      %3467 = vmatpush1.bf16.msra.mxu0 0
      %3468 = vmatprep.subr.bf16.mxu0 0
      %3469 = vmatpush1.bf16.msra.mxu0 0
      %3470 = vmatprep.subr.bf16.mxu0 0
      %3471 = vmatpush1.bf16.msra.mxu0 0
      %3472 = vmatprep.subr.bf16.mxu0 0
      %3473 = vmatpush1.bf16.msra.mxu0 0
      %3474 = vmatprep.subr.bf16.mxu0 0
      %3475 = vmatpush1.bf16.msra.mxu0 0
      %3476 = vmatprep.subr.bf16.mxu0 0
      %3477 = vmatpush1.bf16.msra.mxu0 0
      %3478 = vmatprep.subr.bf16.mxu0 0
      %3479 = vmatpush1.bf16.msra.mxu0 0
      %3480 = vmatprep.subr.bf16.mxu0 0
      %3481 = vmatpush1.bf16.msra.mxu0 0
      %3482 = vmatprep.mubr.bf16.mxu0 0
      %3483 = vmatmul.mubr.bf16.gmra.mrb[0].mxu0 %v3256
      %v3484 = vpop.f32.mrb[0].mxu0
      %v3485 = vadd.f32 0.0, %v3484
      %v3486 = vpop.f32.mrb[0].mxu0
      %v3487 = vpop.f32.mrb[0].mxu0
      %v3488 = vadd.f32 0.0, %v3487
      %v3489 = vpop.f32.mrb[0].mxu0
      %3490 = vmatprep.mubr.bf16.mxu0 0
      %3491 = vmatmul.mubr.bf16.gmra.mrb[0].mxu0 %v3259
      %v3492 = vpop.f32.mrb[0].mxu0
      %v3493 = vadd.f32 0.0, %v3492
      %v3494 = vpop.f32.mrb[0].mxu0
      %v3495 = vpop.f32.mrb[0].mxu0
      %v3496 = vadd.f32 0.0, %v3495
      %v3497 = vpop.f32.mrb[0].mxu0
      %3498 = vmatprep.mubr.bf16.mxu0 0
      %3499 = vmatmul.mubr.bf16.gmra.mrb[0].mxu0 %v3262
      %v3500 = vpop.f32.mrb[0].mxu0
      %v3501 = vadd.f32 0.0, %v3500
      %v3502 = vpop.f32.mrb[0].mxu0
      %v3503 = vpop.f32.mrb[0].mxu0
      %v3504 = vadd.f32 0.0, %v3503
      %v3505 = vpop.f32.mrb[0].mxu0
      %3506 = vmatprep.mubr.bf16.mxu0 0
      %3507 = vmatmul.mubr.bf16.gmra.mrb[0].mxu0 %v3265
      %v3508 = vpop.f32.mrb[0].mxu0
      %v3509 = vadd.f32 0.0, %v3508
      %v3510 = vpop.f32.mrb[0].mxu0
      %v3511 = vpop.f32.mrb[0].mxu0
      %v3512 = vadd.f32 0.0, %v3511
      %v3513 = vpop.f32.mrb[0].mxu0
      %3514 = vmatprep.mubr.bf16.mxu0 0
      %3515 = vmatmul.mubr.bf16.gmra.mrb[0].mxu0 %v3268
      %v3516 = vpop.f32.mrb[0].mxu0
      %v3517 = vadd.f32 0.0, %v3516
      %v3518 = vpop.f32.mrb[0].mxu0
      %v3519 = vpop.f32.mrb[0].mxu0
      %v3520 = vadd.f32 0.0, %v3519
      %v3521 = vpop.f32.mrb[0].mxu0
      %3522 = vmatprep.mubr.bf16.mxu0 0
      %3523 = vmatmul.mubr.bf16.gmra.mrb[0].mxu0 %v3271
      %v3524 = vpop.f32.mrb[0].mxu0
      %v3525 = vadd.f32 0.0, %v3524
      %v3526 = vpop.f32.mrb[0].mxu0
      %v3527 = vpop.f32.mrb[0].mxu0
      %v3528 = vadd.f32 0.0, %v3527
      %v3529 = vpop.f32.mrb[0].mxu0
      %3530 = vmatprep.mubr.bf16.mxu0 0
      %3531 = vmatmul.mubr.bf16.gmra.mrb[0].mxu0 %v3274
      %v3532 = vpop.f32.mrb[0].mxu0
      %v3533 = vadd.f32 0.0, %v3532
      %v3534 = vpop.f32.mrb[0].mxu0
      %v3535 = vpop.f32.mrb[0].mxu0
      %v3536 = vadd.f32 0.0, %v3535
      %v3537 = vpop.f32.mrb[0].mxu0
      %3538 = vmatprep.mubr.bf16.mxu0 0
      %3539 = vmatmul.mubr.bf16.gmra.mrb[0].mxu0 %v3277
      %v3540 = vpop.f32.mrb[0].mxu0
      %v3541 = vadd.f32 0.0, %v3540
      %v3542 = vpop.f32.mrb[0].mxu0
      %v3543 = vpop.f32.mrb[0].mxu0
      %v3544 = vadd.f32 0.0, %v3543
      %v3545 = vpop.f32.mrb[0].mxu0
      %3546 = vmatprep.mubr.bf16.mxu0 0
      %3547 = vmatmul.mubr.bf16.gmra.mrb[0].mxu0 %v3280
      %v3548 = vpop.f32.mrb[0].mxu0
      %v3549 = vadd.f32 0.0, %v3548
      %v3550 = vpop.f32.mrb[0].mxu0
      %v3551 = vpop.f32.mrb[0].mxu0
      %v3552 = vadd.f32 0.0, %v3551
      %v3553 = vpop.f32.mrb[0].mxu0
      %3554 = vmatprep.mubr.bf16.mxu0 0
      %3555 = vmatmul.mubr.bf16.gmra.mrb[0].mxu0 %v3283
      %v3556 = vpop.f32.mrb[0].mxu0
      %v3557 = vadd.f32 0.0, %v3556
      %v3558 = vpop.f32.mrb[0].mxu0
      %v3559 = vpop.f32.mrb[0].mxu0
      %v3560 = vadd.f32 0.0, %v3559
      %v3561 = vpop.f32.mrb[0].mxu0
      %3562 = vmatprep.mubr.bf16.mxu0 0
      %3563 = vmatmul.mubr.bf16.gmra.mrb[0].mxu0 %v3286
      %v3564 = vpop.f32.mrb[0].mxu0
      %v3565 = vadd.f32 0.0, %v3564
      %v3566 = vpop.f32.mrb[0].mxu0
      %v3567 = vpop.f32.mrb[0].mxu0
      %v3568 = vadd.f32 0.0, %v3567
      %v3569 = vpop.f32.mrb[0].mxu0
      %3570 = vmatprep.mubr.bf16.mxu0 0
      %3571 = vmatmul.mubr.bf16.gmra.mrb[0].mxu0 %v3289
      %v3572 = vpop.f32.mrb[0].mxu0
      %v3573 = vadd.f32 0.0, %v3572
      %v3574 = vpop.f32.mrb[0].mxu0
      %v3575 = vpop.f32.mrb[0].mxu0
      %v3576 = vadd.f32 0.0, %v3575
      %v3577 = vpop.f32.mrb[0].mxu0
      %3578 = vmatprep.mubr.bf16.mxu0 0
      %3579 = vmatmul.mubr.bf16.gmra.mrb[0].mxu0 %v3292
      %v3580 = vpop.f32.mrb[0].mxu0
      %v3581 = vadd.f32 0.0, %v3580
      %v3582 = vpop.f32.mrb[0].mxu0
      %v3583 = vpop.f32.mrb[0].mxu0
      %v3584 = vadd.f32 0.0, %v3583
      %v3585 = vpop.f32.mrb[0].mxu0
      %3586 = vmatprep.mubr.bf16.mxu0 0
      %3587 = vmatmul.mubr.bf16.gmra.mrb[0].mxu0 %v3295
      %v3588 = vpop.f32.mrb[0].mxu0
      %v3589 = vadd.f32 0.0, %v3588
      %v3590 = vpop.f32.mrb[0].mxu0
      %v3591 = vpop.f32.mrb[0].mxu0
      %v3592 = vadd.f32 0.0, %v3591
      %v3593 = vpop.f32.mrb[0].mxu0
      %3594 = vmatprep.mubr.bf16.mxu0 0
      %3595 = vmatmul.mubr.bf16.gmra.mrb[0].mxu0 %v3298
      %v3596 = vpop.f32.mrb[0].mxu0
      %v3597 = vadd.f32 0.0, %v3596
      %v3598 = vpop.f32.mrb[0].mxu0
      %v3599 = vpop.f32.mrb[0].mxu0
      %v3600 = vadd.f32 0.0, %v3599
      %v3601 = vpop.f32.mrb[0].mxu0
      %3602 = vmatprep.mubr.bf16.mxu0 0
      %3603 = vmatmul.mubr.bf16.gmra.mrb[0].mxu0 %v3301
      %v3604 = vpop.f32.mrb[0].mxu0
      %v3605 = vadd.f32 0.0, %v3604
      %v3606 = vpop.f32.mrb[0].mxu0
      %v3607 = vpop.f32.mrb[0].mxu0
      %v3608 = vadd.f32 0.0, %v3607
      %v3609 = vpop.f32.mrb[0].mxu0
      %3610 = vmatprep.mubr.bf16.mxu0 0
      %3611 = vmatmul.mubr.bf16.gmra.mrb[0].mxu0 %v3304
      %v3612 = vpop.f32.mrb[0].mxu0
      %v3613 = vadd.f32 0.0, %v3612
      %v3614 = vpop.f32.mrb[0].mxu0
      %v3615 = vpop.f32.mrb[0].mxu0
      %v3616 = vadd.f32 0.0, %v3615
      %v3617 = vpop.f32.mrb[0].mxu0
      %3618 = vmatprep.mubr.bf16.mxu0 0
      %3619 = vmatmul.mubr.bf16.gmra.mrb[0].mxu0 %v3307
      %v3620 = vpop.f32.mrb[0].mxu0
      %v3621 = vadd.f32 0.0, %v3620
      %v3622 = vpop.f32.mrb[0].mxu0
      %v3623 = vpop.f32.mrb[0].mxu0
      %v3624 = vadd.f32 0.0, %v3623
      %v3625 = vpop.f32.mrb[0].mxu0
      %3626 = vmatprep.mubr.bf16.mxu0 0
      %3627 = vmatmul.mubr.bf16.gmra.mrb[0].mxu0 %v3310
      %v3628 = vpop.f32.mrb[0].mxu0
      %v3629 = vadd.f32 0.0, %v3628
      %v3630 = vpop.f32.mrb[0].mxu0
      %v3631 = vpop.f32.mrb[0].mxu0
      %v3632 = vadd.f32 0.0, %v3631
      %v3633 = vpop.f32.mrb[0].mxu0
      %3634 = vmatprep.mubr.bf16.mxu0 0
      %3635 = vmatmul.mubr.bf16.gmra.mrb[0].mxu0 %v3313
      %v3636 = vpop.f32.mrb[0].mxu0
      %v3637 = vadd.f32 0.0, %v3636
      %v3638 = vpop.f32.mrb[0].mxu0
      %v3639 = vpop.f32.mrb[0].mxu0
      %v3640 = vadd.f32 0.0, %v3639
      %v3641 = vpop.f32.mrb[0].mxu0
      %3642 = vmatprep.mubr.bf16.mxu0 0
      %3643 = vmatmul.mubr.bf16.gmra.mrb[0].mxu0 %v3316
      %v3644 = vpop.f32.mrb[0].mxu0
      %v3645 = vadd.f32 0.0, %v3644
      %v3646 = vpop.f32.mrb[0].mxu0
      %v3647 = vpop.f32.mrb[0].mxu0
      %v3648 = vadd.f32 0.0, %v3647
      %v3649 = vpop.f32.mrb[0].mxu0
      %3650 = vmatprep.mubr.bf16.mxu0 0
      %3651 = vmatmul.mubr.bf16.gmra.mrb[0].mxu0 %v3319
      %v3652 = vpop.f32.mrb[0].mxu0
      %v3653 = vadd.f32 0.0, %v3652
      %v3654 = vpop.f32.mrb[0].mxu0
      %v3655 = vpop.f32.mrb[0].mxu0
      %v3656 = vadd.f32 0.0, %v3655
      %v3657 = vpop.f32.mrb[0].mxu0
      %3658 = vmatprep.mubr.bf16.mxu0 0
      %3659 = vmatmul.mubr.bf16.gmra.mrb[0].mxu0 %v3322
      %v3660 = vpop.f32.mrb[0].mxu0
      %v3661 = vadd.f32 0.0, %v3660
      %v3662 = vpop.f32.mrb[0].mxu0
      %v3663 = vpop.f32.mrb[0].mxu0
      %v3664 = vadd.f32 0.0, %v3663
      %v3665 = vpop.f32.mrb[0].mxu0
      %3666 = vmatprep.mubr.bf16.mxu0 0
      %3667 = vmatmul.mubr.bf16.gmra.mrb[0].mxu0 %v3325
      %v3668 = vpop.f32.mrb[0].mxu0
      %v3669 = vadd.f32 0.0, %v3668
      %v3670 = vpop.f32.mrb[0].mxu0
      %v3671 = vpop.f32.mrb[0].mxu0
      %v3672 = vadd.f32 0.0, %v3671
      %v3673 = vpop.f32.mrb[0].mxu0
      %3674 = vmatprep.mubr.bf16.mxu0 0
      %3675 = vmatmul.mubr.bf16.gmra.mrb[0].mxu0 %v3328
      %v3676 = vpop.f32.mrb[0].mxu0
      %v3677 = vadd.f32 0.0, %v3676
      %v3678 = vpop.f32.mrb[0].mxu0
      %v3679 = vpop.f32.mrb[0].mxu0
      %v3680 = vadd.f32 0.0, %v3679
      %v3681 = vpop.f32.mrb[0].mxu0
      %3682 = vmatprep.mubr.bf16.mxu0 0
      %3683 = vmatmul.mubr.bf16.gmra.mrb[0].mxu0 %v3331
      %v3684 = vpop.f32.mrb[0].mxu0
      %v3685 = vadd.f32 0.0, %v3684
      %v3686 = vpop.f32.mrb[0].mxu0
      %v3687 = vpop.f32.mrb[0].mxu0
      %v3688 = vadd.f32 0.0, %v3687
      %v3689 = vpop.f32.mrb[0].mxu0
      %3690 = vmatprep.mubr.bf16.mxu0 0
      %3691 = vmatmul.mubr.bf16.gmra.mrb[0].mxu0 %v3334
      %v3692 = vpop.f32.mrb[0].mxu0
      %v3693 = vadd.f32 0.0, %v3692
      %v3694 = vpop.f32.mrb[0].mxu0
      %v3695 = vpop.f32.mrb[0].mxu0
      %v3696 = vadd.f32 0.0, %v3695
      %v3697 = vpop.f32.mrb[0].mxu0
      %3698 = vmatprep.mubr.bf16.mxu0 0
      %3699 = vmatmul.mubr.bf16.gmra.mrb[0].mxu0 %v3337
      %v3700 = vpop.f32.mrb[0].mxu0
      %v3701 = vadd.f32 0.0, %v3700
      %v3702 = vpop.f32.mrb[0].mxu0
      %v3703 = vpop.f32.mrb[0].mxu0
      %v3704 = vadd.f32 0.0, %v3703
      %v3705 = vpop.f32.mrb[0].mxu0
      %3706 = vmatprep.mubr.bf16.mxu0 0
      %3707 = vmatmul.mubr.bf16.gmra.mrb[0].mxu0 %v3340
      %v3708 = vpop.f32.mrb[0].mxu0
      %v3709 = vadd.f32 0.0, %v3708
      %v3710 = vpop.f32.mrb[0].mxu0
      %v3711 = vpop.f32.mrb[0].mxu0
      %v3712 = vadd.f32 0.0, %v3711
      %v3713 = vpop.f32.mrb[0].mxu0
      %3714 = vmatprep.mubr.bf16.mxu0 0
      %3715 = vmatmul.mubr.bf16.gmra.mrb[0].mxu0 %v3343
      %v3716 = vpop.f32.mrb[0].mxu0
      %v3717 = vadd.f32 0.0, %v3716
      %v3718 = vpop.f32.mrb[0].mxu0
      %v3719 = vpop.f32.mrb[0].mxu0
      %v3720 = vadd.f32 0.0, %v3719
      %v3721 = vpop.f32.mrb[0].mxu0
      %3722 = vmatprep.mubr.bf16.mxu0 0
      %3723 = vmatmul.mubr.bf16.gmra.mrb[0].mxu0 %v3346
      %v3724 = vpop.f32.mrb[0].mxu0
      %v3725 = vadd.f32 0.0, %v3724
      %v3726 = vpop.f32.mrb[0].mxu0
      %v3727 = vpop.f32.mrb[0].mxu0
      %v3728 = vadd.f32 0.0, %v3727
      %v3729 = vpop.f32.mrb[0].mxu0
      %3730 = vmatprep.mubr.bf16.mxu0 0
      %3731 = vmatmul.mubr.bf16.gmra.mrb[0].mxu0 %v3349
      %v3732 = vpop.f32.mrb[0].mxu0
      %v3733 = vadd.f32 0.0, %v3732
      %v3734 = vpop.f32.mrb[0].mxu0
      %v3735 = vpop.f32.mrb[0].mxu0
      %v3736 = vadd.f32 0.0, %v3735
      %v3737 = vpop.f32.mrb[0].mxu0
      %3738 = vmatprep.mubr.bf16.mxu0 0
      %3739 = vmatmul.mubr.bf16.gmra.mrb[0].mxu0 %v3352
      %v3740 = vpop.f32.mrb[0].mxu0
      %v3741 = vadd.f32 0.0, %v3740
      %v3742 = vpop.f32.mrb[0].mxu0
      %v3743 = vpop.f32.mrb[0].mxu0
      %v3744 = vadd.f32 0.0, %v3743
      %v3745 = vpop.f32.mrb[0].mxu0
      %3746 = vmatprep.mubr.bf16.mxu0 0
      %3747 = vmatmul.mubr.bf16.gmra.mrb[0].mxu0 %v3355
      %v3748 = vpop.f32.mrb[0].mxu0
      %v3749 = vadd.f32 0.0, %v3748
      %v3750 = vpop.f32.mrb[0].mxu0
      %v3751 = vpop.f32.mrb[0].mxu0
      %v3752 = vadd.f32 0.0, %v3751
      %v3753 = vpop.f32.mrb[0].mxu0
      %3754 = vmatprep.mubr.bf16.mxu0 0
      %3755 = vmatmul.mubr.bf16.gmra.mrb[0].mxu0 %v3358
      %v3756 = vpop.f32.mrb[0].mxu0
      %v3757 = vadd.f32 0.0, %v3756
      %v3758 = vpop.f32.mrb[0].mxu0
      %v3759 = vpop.f32.mrb[0].mxu0
      %v3760 = vadd.f32 0.0, %v3759
      %v3761 = vpop.f32.mrb[0].mxu0
      %3762 = vmatprep.mubr.bf16.mxu0 0
      %3763 = vmatmul.mubr.bf16.gmra.mrb[0].mxu0 %v3361
      %v3764 = vpop.f32.mrb[0].mxu0
      %v3765 = vadd.f32 0.0, %v3764
      %v3766 = vpop.f32.mrb[0].mxu0
      %v3767 = vpop.f32.mrb[0].mxu0
      %v3768 = vadd.f32 0.0, %v3767
      %v3769 = vpop.f32.mrb[0].mxu0
      %3770 = vmatprep.mubr.bf16.mxu0 0
      %3771 = vmatmul.mubr.bf16.gmra.mrb[0].mxu0 %v3364
      %v3772 = vpop.f32.mrb[0].mxu0
      %v3773 = vadd.f32 0.0, %v3772
      %v3774 = vpop.f32.mrb[0].mxu0
      %v3775 = vpop.f32.mrb[0].mxu0
      %v3776 = vadd.f32 0.0, %v3775
      %v3777 = vpop.f32.mrb[0].mxu0
      %3778 = vmatprep.mubr.bf16.mxu0 0
      %3779 = vmatmul.mubr.bf16.gmra.mrb[0].mxu0 %v3367
      %v3780 = vpop.f32.mrb[0].mxu0
      %v3781 = vadd.f32 0.0, %v3780
      %v3782 = vpop.f32.mrb[0].mxu0
      %v3783 = vpop.f32.mrb[0].mxu0
      %v3784 = vadd.f32 0.0, %v3783
      %v3785 = vpop.f32.mrb[0].mxu0
      %3786 = vmatprep.mubr.bf16.mxu0 0
      %3787 = vmatmul.mubr.bf16.gmra.mrb[0].mxu0 %v3370
      %v3788 = vpop.f32.mrb[0].mxu0
      %v3789 = vadd.f32 0.0, %v3788
      %v3790 = vpop.f32.mrb[0].mxu0
      %v3791 = vpop.f32.mrb[0].mxu0
      %v3792 = vadd.f32 0.0, %v3791
      %v3793 = vpop.f32.mrb[0].mxu0
      %3794 = vmatprep.mubr.bf16.mxu0 0
      %3795 = vmatmul.mubr.bf16.gmra.mrb[0].mxu0 %v3373
      %v3796 = vpop.f32.mrb[0].mxu0
      %v3797 = vadd.f32 0.0, %v3796
      %v3798 = vpop.f32.mrb[0].mxu0
      %v3799 = vpop.f32.mrb[0].mxu0
      %v3800 = vadd.f32 0.0, %v3799
      %v3801 = vpop.f32.mrb[0].mxu0
      %3802 = vmatprep.mubr.bf16.mxu0 0
      %3803 = vmatmul.mubr.bf16.gmra.mrb[0].mxu0 %v3376
      %v3804 = vpop.f32.mrb[0].mxu0
      %v3805 = vadd.f32 0.0, %v3804
      %v3806 = vpop.f32.mrb[0].mxu0
      %v3807 = vpop.f32.mrb[0].mxu0
      %v3808 = vadd.f32 0.0, %v3807
      %v3809 = vpop.f32.mrb[0].mxu0
      %3810 = vmatprep.mubr.bf16.mxu0 0
      %3811 = vmatmul.mubr.bf16.gmra.mrb[0].mxu0 %v3379
      %v3812 = vpop.f32.mrb[0].mxu0
      %v3813 = vadd.f32 0.0, %v3812
      %v3814 = vpop.f32.mrb[0].mxu0
      %v3815 = vpop.f32.mrb[0].mxu0
      %v3816 = vadd.f32 0.0, %v3815
      %v3817 = vpop.f32.mrb[0].mxu0
      %3818 = vmatprep.mubr.bf16.mxu0 0
      %3819 = vmatmul.mubr.bf16.gmra.mrb[0].mxu0 %v3382
      %v3820 = vpop.f32.mrb[0].mxu0
      %v3821 = vadd.f32 0.0, %v3820
      %v3822 = vpop.f32.mrb[0].mxu0
      %v3823 = vpop.f32.mrb[0].mxu0
      %v3824 = vadd.f32 0.0, %v3823
      %v3825 = vpop.f32.mrb[0].mxu0
      %3826 = vmatprep.mubr.bf16.mxu0 0
      %3827 = vmatmul.mubr.bf16.gmra.mrb[0].mxu0 %v3385
      %v3828 = vpop.f32.mrb[0].mxu0
      %v3829 = vadd.f32 0.0, %v3828
      %v3830 = vpop.f32.mrb[0].mxu0
      %v3831 = vpop.f32.mrb[0].mxu0
      %v3832 = vadd.f32 0.0, %v3831
      %v3833 = vpop.f32.mrb[0].mxu0
      %3834 = vmatprep.mubr.bf16.mxu0 0
      %3835 = vmatmul.mubr.bf16.gmra.mrb[0].mxu0 %v3388
      %v3836 = vpop.f32.mrb[0].mxu0
      %v3837 = vadd.f32 0.0, %v3836
      %v3838 = vpop.f32.mrb[0].mxu0
      %v3839 = vpop.f32.mrb[0].mxu0
      %v3840 = vadd.f32 0.0, %v3839
      %v3841 = vpop.f32.mrb[0].mxu0
      %3842 = vmatprep.mubr.bf16.mxu0 0
      %3843 = vmatmul.mubr.bf16.gmra.mrb[0].mxu0 %v3391
      %v3844 = vpop.f32.mrb[0].mxu0
      %v3845 = vadd.f32 0.0, %v3844
      %v3846 = vpop.f32.mrb[0].mxu0
      %v3847 = vpop.f32.mrb[0].mxu0
      %v3848 = vadd.f32 0.0, %v3847
      %v3849 = vpop.f32.mrb[0].mxu0
      %3850 = vmatprep.mubr.bf16.mxu0 0
      %3851 = vmatmul.mubr.bf16.gmra.mrb[0].mxu0 %v3394
      %v3852 = vpop.f32.mrb[0].mxu0
      %v3853 = vadd.f32 0.0, %v3852
      %v3854 = vpop.f32.mrb[0].mxu0
      %v3855 = vpop.f32.mrb[0].mxu0
      %v3856 = vadd.f32 0.0, %v3855
      %v3857 = vpop.f32.mrb[0].mxu0
      %3858 = vmatprep.mubr.bf16.mxu0 0
      %3859 = vmatmul.mubr.bf16.gmra.mrb[0].mxu0 %v3397
      %v3860 = vpop.f32.mrb[0].mxu0
      %v3861 = vadd.f32 0.0, %v3860
      %v3862 = vpop.f32.mrb[0].mxu0
      %v3863 = vpop.f32.mrb[0].mxu0
      %v3864 = vadd.f32 0.0, %v3863
      %v3865 = vpop.f32.mrb[0].mxu0
      %3866 = vmatprep.mubr.bf16.mxu0 0
      %3867 = vmatmul.mubr.bf16.gmra.mrb[0].mxu0 %v3400
      %v3868 = vpop.f32.mrb[0].mxu0
      %v3869 = vadd.f32 0.0, %v3868
      %v3870 = vpop.f32.mrb[0].mxu0
      %v3871 = vpop.f32.mrb[0].mxu0
      %v3872 = vadd.f32 0.0, %v3871
      %v3873 = vpop.f32.mrb[0].mxu0
      %3874 = vmatprep.mubr.bf16.mxu0 0
      %3875 = vmatmul.mubr.bf16.gmra.mrb[0].mxu0 %v3403
      %v3876 = vpop.f32.mrb[0].mxu0
      %v3877 = vadd.f32 0.0, %v3876
      %v3878 = vpop.f32.mrb[0].mxu0
      %v3879 = vpop.f32.mrb[0].mxu0
      %v3880 = vadd.f32 0.0, %v3879
      %v3881 = vpop.f32.mrb[0].mxu0
      %3882 = vmatprep.mubr.bf16.mxu0 0
      %3883 = vmatmul.mubr.bf16.gmra.mrb[0].mxu0 %v3406
      %v3884 = vpop.f32.mrb[0].mxu0
      %v3885 = vadd.f32 0.0, %v3884
      %v3886 = vpop.f32.mrb[0].mxu0
      %v3887 = vpop.f32.mrb[0].mxu0
      %v3888 = vadd.f32 0.0, %v3887
      %v3889 = vpop.f32.mrb[0].mxu0
      %3890 = vmatprep.mubr.bf16.mxu0 0
      %3891 = vmatmul.mubr.bf16.gmra.mrb[0].mxu0 %v3409
      %v3892 = vpop.f32.mrb[0].mxu0
      %v3893 = vadd.f32 0.0, %v3892
      %v3894 = vpop.f32.mrb[0].mxu0
      %v3895 = vpop.f32.mrb[0].mxu0
      %v3896 = vadd.f32 0.0, %v3895
      %v3897 = vpop.f32.mrb[0].mxu0
      %3898 = vmatprep.mubr.bf16.mxu0 0
      %3899 = vmatmul.mubr.bf16.gmra.mrb[0].mxu0 %v3412
      %v3900 = vpop.f32.mrb[0].mxu0
      %v3901 = vadd.f32 0.0, %v3900
      %v3902 = vpop.f32.mrb[0].mxu0
      %v3903 = vpop.f32.mrb[0].mxu0
      %v3904 = vadd.f32 0.0, %v3903
      %v3905 = vpop.f32.mrb[0].mxu0
      %3906 = vmatprep.mubr.bf16.mxu0 0
      %3907 = vmatmul.mubr.bf16.gmra.mrb[0].mxu0 %v3415
      %v3908 = vpop.f32.mrb[0].mxu0
      %v3909 = vadd.f32 0.0, %v3908
      %v3910 = vpop.f32.mrb[0].mxu0
      %v3911 = vpop.f32.mrb[0].mxu0
      %v3912 = vadd.f32 0.0, %v3911
      %v3913 = vpop.f32.mrb[0].mxu0
      %3914 = vmatprep.mubr.bf16.mxu0 0
      %3915 = vmatmul.mubr.bf16.gmra.mrb[0].mxu0 %v3418
      %v3916 = vpop.f32.mrb[0].mxu0
      %v3917 = vadd.f32 0.0, %v3916
      %v3918 = vpop.f32.mrb[0].mxu0
      %v3919 = vpop.f32.mrb[0].mxu0
      %v3920 = vadd.f32 0.0, %v3919
      %v3921 = vpop.f32.mrb[0].mxu0
      %3922 = vmatprep.mubr.bf16.mxu0 0
      %3923 = vmatmul.mubr.bf16.gmra.mrb[0].mxu0 %v3421
      %v3924 = vpop.f32.mrb[0].mxu0
      %v3925 = vadd.f32 0.0, %v3924
      %v3926 = vpop.f32.mrb[0].mxu0
      %v3927 = vpop.f32.mrb[0].mxu0
      %v3928 = vadd.f32 0.0, %v3927
      %v3929 = vpop.f32.mrb[0].mxu0
      %3930 = vmatprep.mubr.bf16.mxu0 0
      %3931 = vmatmul.mubr.bf16.gmra.mrb[0].mxu0 %v3424
      %v3932 = vpop.f32.mrb[0].mxu0
      %v3933 = vadd.f32 0.0, %v3932
      %v3934 = vpop.f32.mrb[0].mxu0
      %v3935 = vpop.f32.mrb[0].mxu0
      %v3936 = vadd.f32 0.0, %v3935
      %v3937 = vpop.f32.mrb[0].mxu0
      %3938 = vmatprep.mubr.bf16.mxu0 0
      %3939 = vmatmul.mubr.bf16.gmra.mrb[0].mxu0 %v3427
      %v3940 = vpop.f32.mrb[0].mxu0
      %v3941 = vadd.f32 0.0, %v3940
      %v3942 = vpop.f32.mrb[0].mxu0
      %v3943 = vpop.f32.mrb[0].mxu0
      %v3944 = vadd.f32 0.0, %v3943
      %v3945 = vpop.f32.mrb[0].mxu0
      %3946 = vmatprep.mubr.bf16.mxu0 0
      %3947 = vmatmul.mubr.bf16.gmra.mrb[0].mxu0 %v3430
      %v3948 = vpop.f32.mrb[0].mxu0
      %v3949 = vadd.f32 0.0, %v3948
      %v3950 = vpop.f32.mrb[0].mxu0
      %v3951 = vpop.f32.mrb[0].mxu0
      %v3952 = vadd.f32 0.0, %v3951
      %v3953 = vpop.f32.mrb[0].mxu0
      %3954 = vmatprep.mubr.bf16.mxu0 0
      %3955 = vmatmul.mubr.bf16.gmra.mrb[0].mxu0 %v3433
      %v3956 = vpop.f32.mrb[0].mxu0
      %v3957 = vadd.f32 0.0, %v3956
      %v3958 = vpop.f32.mrb[0].mxu0
      %v3959 = vpop.f32.mrb[0].mxu0
      %v3960 = vadd.f32 0.0, %v3959
      %v3961 = vpop.f32.mrb[0].mxu0
      %3962 = vmatprep.mubr.bf16.mxu0 0
      %3963 = vmatmul.mubr.bf16.gmra.mrb[0].mxu0 %v3436
      %v3964 = vpop.f32.mrb[0].mxu0
      %v3965 = vadd.f32 0.0, %v3964
      %v3966 = vpop.f32.mrb[0].mxu0
      %v3967 = vpop.f32.mrb[0].mxu0
      %v3968 = vadd.f32 0.0, %v3967
      %v3969 = vpop.f32.mrb[0].mxu0
      %3970 = vmatprep.mubr.bf16.mxu0 0
      %3971 = vmatmul.mubr.bf16.gmra.mrb[0].mxu0 %v3439
      %v3972 = vpop.f32.mrb[0].mxu0
      %v3973 = vadd.f32 0.0, %v3972
      %v3974 = vpop.f32.mrb[0].mxu0
      %v3975 = vpop.f32.mrb[0].mxu0
      %v3976 = vadd.f32 0.0, %v3975
      %v3977 = vpop.f32.mrb[0].mxu0
      %3978 = vmatprep.mubr.bf16.mxu0 0
      %3979 = vmatmul.mubr.bf16.gmra.mrb[0].mxu0 %v3442
      %v3980 = vpop.f32.mrb[0].mxu0
      %v3981 = vadd.f32 0.0, %v3980
      %v3982 = vpop.f32.mrb[0].mxu0
      %v3983 = vpop.f32.mrb[0].mxu0
      %v3984 = vadd.f32 0.0, %v3983
      %v3985 = vpop.f32.mrb[0].mxu0
      %3986 = vmatprep.mubr.bf16.mxu0 0
      %3987 = vmatmul.mubr.bf16.gmra.mrb[0].mxu0 %v3445
      %v3988 = vpop.f32.mrb[0].mxu0
      %v3989 = vadd.f32 0.0, %v3988
      %v3990 = vpop.f32.mrb[0].mxu0
      %v3991 = vpop.f32.mrb[0].mxu0
      %v3992 = vadd.f32 0.0, %v3991
      %v3993 = vpop.f32.mrb[0].mxu0
      %3994 = vdwg.mxu0
      %v3995 = vadd.f32 %v2262, %v3485
      %v3996 = vadd.f32 %v2265, %v3488
      %v3997 = vadd.f32 %v2270, %v3493
      %v3998 = vadd.f32 %v2273, %v3496
      %v3999 = vadd.f32 %v2278, %v3501
      %v4000 = vadd.f32 %v2281, %v3504
      %v4001 = vadd.f32 %v2286, %v3509
      %v4002 = vadd.f32 %v2289, %v3512
      %v4003 = vadd.f32 %v2294, %v3517
      %v4004 = vadd.f32 %v2297, %v3520
      %v4005 = vadd.f32 %v2302, %v3525
      %v4006 = vadd.f32 %v2305, %v3528
      %v4007 = vadd.f32 %v2310, %v3533
      %v4008 = vadd.f32 %v2313, %v3536
      %v4009 = vadd.f32 %v2318, %v3541
      %v4010 = vadd.f32 %v2321, %v3544
      %v4011 = vadd.f32 %v2326, %v3549
      %v4012 = vadd.f32 %v2329, %v3552
      %v4013 = vadd.f32 %v2334, %v3557
      %v4014 = vadd.f32 %v2337, %v3560
      %v4015 = vadd.f32 %v2342, %v3565
      %v4016 = vadd.f32 %v2345, %v3568
      %v4017 = vadd.f32 %v2350, %v3573
      %v4018 = vadd.f32 %v2353, %v3576
      %v4019 = vadd.f32 %v2358, %v3581
      %v4020 = vadd.f32 %v2361, %v3584
      %v4021 = vadd.f32 %v2366, %v3589
      %v4022 = vadd.f32 %v2369, %v3592
      %v4023 = vadd.f32 %v2374, %v3597
      %v4024 = vadd.f32 %v2377, %v3600
      %v4025 = vadd.f32 %v2382, %v3605
      %v4026 = vadd.f32 %v2385, %v3608
      %v4027 = vadd.f32 %v2390, %v3613
      %v4028 = vadd.f32 %v2393, %v3616
      %v4029 = vadd.f32 %v2398, %v3621
      %v4030 = vadd.f32 %v2401, %v3624
      %v4031 = vadd.f32 %v2406, %v3629
      %v4032 = vadd.f32 %v2409, %v3632
      %v4033 = vadd.f32 %v2414, %v3637
      %v4034 = vadd.f32 %v2417, %v3640
      %v4035 = vadd.f32 %v2422, %v3645
      %v4036 = vadd.f32 %v2425, %v3648
      %v4037 = vadd.f32 %v2430, %v3653
      %v4038 = vadd.f32 %v2433, %v3656
      %v4039 = vadd.f32 %v2438, %v3661
      %v4040 = vadd.f32 %v2441, %v3664
      %v4041 = vadd.f32 %v2446, %v3669
      %v4042 = vadd.f32 %v2449, %v3672
      %v4043 = vadd.f32 %v2454, %v3677
      %v4044 = vadd.f32 %v2457, %v3680
      %v4045 = vadd.f32 %v2462, %v3685
      %v4046 = vadd.f32 %v2465, %v3688
      %v4047 = vadd.f32 %v2470, %v3693
      %v4048 = vadd.f32 %v2473, %v3696
      %v4049 = vadd.f32 %v2478, %v3701
      %v4050 = vadd.f32 %v2481, %v3704
      %v4051 = vadd.f32 %v2486, %v3709
      %v4052 = vadd.f32 %v2489, %v3712
      %v4053 = vadd.f32 %v2494, %v3717
      %v4054 = vadd.f32 %v2497, %v3720
      %v4055 = vadd.f32 %v2502, %v3725
      %v4056 = vadd.f32 %v2505, %v3728
      %v4057 = vadd.f32 %v2510, %v3733
      %v4058 = vadd.f32 %v2513, %v3736
      %v4059 = vadd.f32 %v2518, %v3741
      %v4060 = vadd.f32 %v2521, %v3744
      %v4061 = vadd.f32 %v2526, %v3749
      %v4062 = vadd.f32 %v2529, %v3752
      %v4063 = vadd.f32 %v2534, %v3757
      %v4064 = vadd.f32 %v2537, %v3760
      %v4065 = vadd.f32 %v2542, %v3765
      %v4066 = vadd.f32 %v2545, %v3768
      %v4067 = vadd.f32 %v2550, %v3773
      %v4068 = vadd.f32 %v2553, %v3776
      %v4069 = vadd.f32 %v2558, %v3781
      %v4070 = vadd.f32 %v2561, %v3784
      %v4071 = vadd.f32 %v2566, %v3789
      %v4072 = vadd.f32 %v2569, %v3792
      %v4073 = vadd.f32 %v2574, %v3797
      %v4074 = vadd.f32 %v2577, %v3800
      %v4075 = vadd.f32 %v2582, %v3805
      %v4076 = vadd.f32 %v2585, %v3808
      %v4077 = vadd.f32 %v2590, %v3813
      %v4078 = vadd.f32 %v2593, %v3816
      %v4079 = vadd.f32 %v2598, %v3821
      %v4080 = vadd.f32 %v2601, %v3824
      %v4081 = vadd.f32 %v2606, %v3829
      %v4082 = vadd.f32 %v2609, %v3832
      %v4083 = vadd.f32 %v2614, %v3837
      %v4084 = vadd.f32 %v2617, %v3840
      %v4085 = vadd.f32 %v2622, %v3845
      %v4086 = vadd.f32 %v2625, %v3848
      %v4087 = vadd.f32 %v2630, %v3853
      %v4088 = vadd.f32 %v2633, %v3856
      %v4089 = vadd.f32 %v2638, %v3861
      %v4090 = vadd.f32 %v2641, %v3864
      %v4091 = vadd.f32 %v2646, %v3869
      %v4092 = vadd.f32 %v2649, %v3872
      %v4093 = vadd.f32 %v2654, %v3877
      %v4094 = vadd.f32 %v2657, %v3880
      %v4095 = vadd.f32 %v2662, %v3885
      %v4096 = vadd.f32 %v2665, %v3888
      %v4097 = vadd.f32 %v2670, %v3893
      %v4098 = vadd.f32 %v2673, %v3896
      %v4099 = vadd.f32 %v2678, %v3901
      %v4100 = vadd.f32 %v2681, %v3904
      %v4101 = vadd.f32 %v2686, %v3909
      %v4102 = vadd.f32 %v2689, %v3912
      %v4103 = vadd.f32 %v2694, %v3917
      %v4104 = vadd.f32 %v2697, %v3920
      %v4105 = vadd.f32 %v2702, %v3925
      %v4106 = vadd.f32 %v2705, %v3928
      %v4107 = vadd.f32 %v2710, %v3933
      %v4108 = vadd.f32 %v2713, %v3936
      %v4109 = vadd.f32 %v2718, %v3941
      %v4110 = vadd.f32 %v2721, %v3944
      %v4111 = vadd.f32 %v2726, %v3949
      %v4112 = vadd.f32 %v2729, %v3952
      %v4113 = vadd.f32 %v2734, %v3957
      %v4114 = vadd.f32 %v2737, %v3960
      %v4115 = vadd.f32 %v2742, %v3965
      %v4116 = vadd.f32 %v2745, %v3968
      %v4117 = vadd.f32 %v2750, %v3973
      %v4118 = vadd.f32 %v2753, %v3976
      %v4119 = vadd.f32 %v2758, %v3981
      %v4120 = vadd.f32 %v2761, %v3984
      %v4121 = vadd.f32 %v2766, %v3989
      %v4122 = vadd.f32 %v2769, %v3992
      %v4123 = vpack.c.bf16 %v570, %v569
      %v4124 = vpack.c.bf16 %v572, %v571
      %s4125 = scalar_lea.vmem %s1, 6
      %v4126 = vld [vmem:[%s4125] sm:$0x3]
      %v4128 = vsel %vm1287, %v4123, 0
      %v4131 = vsel %vm1287, %v4124, 0
      %v4134 = vand.u32 %v4126, %v1483
      %4136 = vmatprep.subr.bf16.mxu0 0
      %4137 = vmatpush1.bf16.msra.mxu0 %v4134
      %4138 = vmatprep.subr.bf16.mxu0 0
      %4139 = vmatpush1.bf16.msra.mxu0 0
      %4140 = vmatprep.subr.bf16.mxu0 0
      %4141 = vmatpush1.bf16.msra.mxu0 0
      %4142 = vmatprep.subr.bf16.mxu0 0
      %4143 = vmatpush1.bf16.msra.mxu0 0
      %4144 = vmatprep.subr.bf16.mxu0 0
      %4145 = vmatpush1.bf16.msra.mxu0 0
      %4146 = vmatprep.subr.bf16.mxu0 0
      %4147 = vmatpush1.bf16.msra.mxu0 0
      %4148 = vmatprep.subr.bf16.mxu0 0
      %4149 = vmatpush1.bf16.msra.mxu0 0
      %4150 = vmatprep.subr.bf16.mxu0 0
      %4151 = vmatpush1.bf16.msra.mxu0 0
      %4152 = vmatprep.subr.bf16.mxu0 0
      %4153 = vmatpush1.bf16.msra.mxu0 0
      %4154 = vmatprep.subr.bf16.mxu0 0
      %4155 = vmatpush1.bf16.msra.mxu0 0
      %4156 = vmatprep.subr.bf16.mxu0 0
      %4157 = vmatpush1.bf16.msra.mxu0 0
      %4158 = vmatprep.subr.bf16.mxu0 0
      %4159 = vmatpush1.bf16.msra.mxu0 0
      %4160 = vmatprep.subr.bf16.mxu0 0
      %4161 = vmatpush1.bf16.msra.mxu0 0
      %4162 = vmatprep.subr.bf16.mxu0 0
      %4163 = vmatpush1.bf16.msra.mxu0 0
      %4164 = vmatprep.subr.bf16.mxu0 0
      %4165 = vmatpush1.bf16.msra.mxu0 0
      %4166 = vmatprep.subr.bf16.mxu0 0
      %4167 = vmatpush1.bf16.msra.mxu0 0
      %4168 = vmatprep.mubr.bf16.mxu0 0
      %4169 = vmatmul.mubr.bf16.gmra.mrb[0].mxu0 %v2039
      %v4170 = vpop.f32.mrb[0].mxu0
      %v4171 = vadd.f32 0.0, %v4170
      %v4172 = vpop.f32.mrb[0].mxu0
      %v4173 = vpop.f32.mrb[0].mxu0
      %v4174 = vadd.f32 0.0, %v4173
      %v4175 = vpop.f32.mrb[0].mxu0
      %4176 = vmatprep.mubr.bf16.mxu0 0
      %4177 = vmatmul.mubr.bf16.gmra.mrb[0].mxu0 %v2042
      %v4178 = vpop.f32.mrb[0].mxu0
      %v4179 = vadd.f32 0.0, %v4178
      %v4180 = vpop.f32.mrb[0].mxu0
      %v4181 = vpop.f32.mrb[0].mxu0
      %v4182 = vadd.f32 0.0, %v4181
      %v4183 = vpop.f32.mrb[0].mxu0
      %4184 = vmatprep.mubr.bf16.mxu0 0
      %4185 = vmatmul.mubr.bf16.gmra.mrb[0].mxu0 %v2045
      %v4186 = vpop.f32.mrb[0].mxu0
      %v4187 = vadd.f32 0.0, %v4186
      %v4188 = vpop.f32.mrb[0].mxu0
      %v4189 = vpop.f32.mrb[0].mxu0
      %v4190 = vadd.f32 0.0, %v4189
      %v4191 = vpop.f32.mrb[0].mxu0
      %4192 = vmatprep.mubr.bf16.mxu0 0
      %4193 = vmatmul.mubr.bf16.gmra.mrb[0].mxu0 %v2048
      %v4194 = vpop.f32.mrb[0].mxu0
      %v4195 = vadd.f32 0.0, %v4194
      %v4196 = vpop.f32.mrb[0].mxu0
      %v4197 = vpop.f32.mrb[0].mxu0
      %v4198 = vadd.f32 0.0, %v4197
      %v4199 = vpop.f32.mrb[0].mxu0
      %4200 = vmatprep.mubr.bf16.mxu0 0
      %4201 = vmatmul.mubr.bf16.gmra.mrb[0].mxu0 %v2051
      %v4202 = vpop.f32.mrb[0].mxu0
      %v4203 = vadd.f32 0.0, %v4202
      %v4204 = vpop.f32.mrb[0].mxu0
      %v4205 = vpop.f32.mrb[0].mxu0
      %v4206 = vadd.f32 0.0, %v4205
      %v4207 = vpop.f32.mrb[0].mxu0
      %4208 = vmatprep.mubr.bf16.mxu0 0
      %4209 = vmatmul.mubr.bf16.gmra.mrb[0].mxu0 %v2054
      %v4210 = vpop.f32.mrb[0].mxu0
      %v4211 = vadd.f32 0.0, %v4210
      %v4212 = vpop.f32.mrb[0].mxu0
      %v4213 = vpop.f32.mrb[0].mxu0
      %v4214 = vadd.f32 0.0, %v4213
      %v4215 = vpop.f32.mrb[0].mxu0
      %4216 = vmatprep.mubr.bf16.mxu0 0
      %4217 = vmatmul.mubr.bf16.gmra.mrb[0].mxu0 %v2057
      %v4218 = vpop.f32.mrb[0].mxu0
      %v4219 = vadd.f32 0.0, %v4218
      %v4220 = vpop.f32.mrb[0].mxu0
      %v4221 = vpop.f32.mrb[0].mxu0
      %v4222 = vadd.f32 0.0, %v4221
      %v4223 = vpop.f32.mrb[0].mxu0
      %4224 = vmatprep.mubr.bf16.mxu0 0
      %4225 = vmatmul.mubr.bf16.gmra.mrb[0].mxu0 %v2060
      %v4226 = vpop.f32.mrb[0].mxu0
      %v4227 = vadd.f32 0.0, %v4226
      %v4228 = vpop.f32.mrb[0].mxu0
      %v4229 = vpop.f32.mrb[0].mxu0
      %v4230 = vadd.f32 0.0, %v4229
      %v4231 = vpop.f32.mrb[0].mxu0
      %4232 = vmatprep.mubr.bf16.mxu0 0
      %4233 = vmatmul.mubr.bf16.gmra.mrb[0].mxu0 %v2063
      %v4234 = vpop.f32.mrb[0].mxu0
      %v4235 = vadd.f32 0.0, %v4234
      %v4236 = vpop.f32.mrb[0].mxu0
      %v4237 = vpop.f32.mrb[0].mxu0
      %v4238 = vadd.f32 0.0, %v4237
      %v4239 = vpop.f32.mrb[0].mxu0
      %4240 = vmatprep.mubr.bf16.mxu0 0
      %4241 = vmatmul.mubr.bf16.gmra.mrb[0].mxu0 %v2066
      %v4242 = vpop.f32.mrb[0].mxu0
      %v4243 = vadd.f32 0.0, %v4242
      %v4244 = vpop.f32.mrb[0].mxu0
      %v4245 = vpop.f32.mrb[0].mxu0
      %v4246 = vadd.f32 0.0, %v4245
      %v4247 = vpop.f32.mrb[0].mxu0
      %4248 = vmatprep.mubr.bf16.mxu0 0
      %4249 = vmatmul.mubr.bf16.gmra.mrb[0].mxu0 %v2069
      %v4250 = vpop.f32.mrb[0].mxu0
      %v4251 = vadd.f32 0.0, %v4250
      %v4252 = vpop.f32.mrb[0].mxu0
      %v4253 = vpop.f32.mrb[0].mxu0
      %v4254 = vadd.f32 0.0, %v4253
      %v4255 = vpop.f32.mrb[0].mxu0
      %4256 = vmatprep.mubr.bf16.mxu0 0
      %4257 = vmatmul.mubr.bf16.gmra.mrb[0].mxu0 %v2072
      %v4258 = vpop.f32.mrb[0].mxu0
      %v4259 = vadd.f32 0.0, %v4258
      %v4260 = vpop.f32.mrb[0].mxu0
      %v4261 = vpop.f32.mrb[0].mxu0
      %v4262 = vadd.f32 0.0, %v4261
      %v4263 = vpop.f32.mrb[0].mxu0
      %4264 = vmatprep.mubr.bf16.mxu0 0
      %4265 = vmatmul.mubr.bf16.gmra.mrb[0].mxu0 %v2075
      %v4266 = vpop.f32.mrb[0].mxu0
      %v4267 = vadd.f32 0.0, %v4266
      %v4268 = vpop.f32.mrb[0].mxu0
      %v4269 = vpop.f32.mrb[0].mxu0
      %v4270 = vadd.f32 0.0, %v4269
      %v4271 = vpop.f32.mrb[0].mxu0
      %4272 = vmatprep.mubr.bf16.mxu0 0
      %4273 = vmatmul.mubr.bf16.gmra.mrb[0].mxu0 %v2078
      %v4274 = vpop.f32.mrb[0].mxu0
      %v4275 = vadd.f32 0.0, %v4274
      %v4276 = vpop.f32.mrb[0].mxu0
      %v4277 = vpop.f32.mrb[0].mxu0
      %v4278 = vadd.f32 0.0, %v4277
      %v4279 = vpop.f32.mrb[0].mxu0
      %4280 = vmatprep.mubr.bf16.mxu0 0
      %4281 = vmatmul.mubr.bf16.gmra.mrb[0].mxu0 %v2081
      %v4282 = vpop.f32.mrb[0].mxu0
      %v4283 = vadd.f32 0.0, %v4282
      %v4284 = vpop.f32.mrb[0].mxu0
      %v4285 = vpop.f32.mrb[0].mxu0
      %v4286 = vadd.f32 0.0, %v4285
      %v4287 = vpop.f32.mrb[0].mxu0
      %4288 = vmatprep.mubr.bf16.mxu0 0
      %4289 = vmatmul.mubr.bf16.gmra.mrb[0].mxu0 %v2084
      %v4290 = vpop.f32.mrb[0].mxu0
      %v4291 = vadd.f32 0.0, %v4290
      %v4292 = vpop.f32.mrb[0].mxu0
      %v4293 = vpop.f32.mrb[0].mxu0
      %v4294 = vadd.f32 0.0, %v4293
      %v4295 = vpop.f32.mrb[0].mxu0
      %4296 = vmatprep.mubr.bf16.mxu0 0
      %4297 = vmatmul.mubr.bf16.gmra.mrb[0].mxu0 %v2087
      %v4298 = vpop.f32.mrb[0].mxu0
      %v4299 = vadd.f32 0.0, %v4298
      %v4300 = vpop.f32.mrb[0].mxu0
      %v4301 = vpop.f32.mrb[0].mxu0
      %v4302 = vadd.f32 0.0, %v4301
      %v4303 = vpop.f32.mrb[0].mxu0
      %4304 = vmatprep.mubr.bf16.mxu0 0
      %4305 = vmatmul.mubr.bf16.gmra.mrb[0].mxu0 %v2090
      %v4306 = vpop.f32.mrb[0].mxu0
      %v4307 = vadd.f32 0.0, %v4306
      %v4308 = vpop.f32.mrb[0].mxu0
      %v4309 = vpop.f32.mrb[0].mxu0
      %v4310 = vadd.f32 0.0, %v4309
      %v4311 = vpop.f32.mrb[0].mxu0
      %4312 = vmatprep.mubr.bf16.mxu0 0
      %4313 = vmatmul.mubr.bf16.gmra.mrb[0].mxu0 %v2093
      %v4314 = vpop.f32.mrb[0].mxu0
      %v4315 = vadd.f32 0.0, %v4314
      %v4316 = vpop.f32.mrb[0].mxu0
      %v4317 = vpop.f32.mrb[0].mxu0
      %v4318 = vadd.f32 0.0, %v4317
      %v4319 = vpop.f32.mrb[0].mxu0
      %4320 = vmatprep.mubr.bf16.mxu0 0
      %4321 = vmatmul.mubr.bf16.gmra.mrb[0].mxu0 %v2096
      %v4322 = vpop.f32.mrb[0].mxu0
      %v4323 = vadd.f32 0.0, %v4322
      %v4324 = vpop.f32.mrb[0].mxu0
      %v4325 = vpop.f32.mrb[0].mxu0
      %v4326 = vadd.f32 0.0, %v4325
      %v4327 = vpop.f32.mrb[0].mxu0
      %4328 = vmatprep.mubr.bf16.mxu0 0
      %4329 = vmatmul.mubr.bf16.gmra.mrb[0].mxu0 %v2099
      %v4330 = vpop.f32.mrb[0].mxu0
      %v4331 = vadd.f32 0.0, %v4330
      %v4332 = vpop.f32.mrb[0].mxu0
      %v4333 = vpop.f32.mrb[0].mxu0
      %v4334 = vadd.f32 0.0, %v4333
      %v4335 = vpop.f32.mrb[0].mxu0
      %4336 = vmatprep.mubr.bf16.mxu0 0
      %4337 = vmatmul.mubr.bf16.gmra.mrb[0].mxu0 %v2102
      %v4338 = vpop.f32.mrb[0].mxu0
      %v4339 = vadd.f32 0.0, %v4338
      %v4340 = vpop.f32.mrb[0].mxu0
      %v4341 = vpop.f32.mrb[0].mxu0
      %v4342 = vadd.f32 0.0, %v4341
      %v4343 = vpop.f32.mrb[0].mxu0
      %4344 = vmatprep.mubr.bf16.mxu0 0
      %4345 = vmatmul.mubr.bf16.gmra.mrb[0].mxu0 %v2105
      %v4346 = vpop.f32.mrb[0].mxu0
      %v4347 = vadd.f32 0.0, %v4346
      %v4348 = vpop.f32.mrb[0].mxu0
      %v4349 = vpop.f32.mrb[0].mxu0
      %v4350 = vadd.f32 0.0, %v4349
      %v4351 = vpop.f32.mrb[0].mxu0
      %4352 = vmatprep.mubr.bf16.mxu0 0
      %4353 = vmatmul.mubr.bf16.gmra.mrb[0].mxu0 %v2108
      %v4354 = vpop.f32.mrb[0].mxu0
      %v4355 = vadd.f32 0.0, %v4354
      %v4356 = vpop.f32.mrb[0].mxu0
      %v4357 = vpop.f32.mrb[0].mxu0
      %v4358 = vadd.f32 0.0, %v4357
      %v4359 = vpop.f32.mrb[0].mxu0
      %4360 = vmatprep.mubr.bf16.mxu0 0
      %4361 = vmatmul.mubr.bf16.gmra.mrb[0].mxu0 %v2111
      %v4362 = vpop.f32.mrb[0].mxu0
      %v4363 = vadd.f32 0.0, %v4362
      %v4364 = vpop.f32.mrb[0].mxu0
      %v4365 = vpop.f32.mrb[0].mxu0
      %v4366 = vadd.f32 0.0, %v4365
      %v4367 = vpop.f32.mrb[0].mxu0
      %4368 = vmatprep.mubr.bf16.mxu0 0
      %4369 = vmatmul.mubr.bf16.gmra.mrb[0].mxu0 %v2114
      %v4370 = vpop.f32.mrb[0].mxu0
      %v4371 = vadd.f32 0.0, %v4370
      %v4372 = vpop.f32.mrb[0].mxu0
      %v4373 = vpop.f32.mrb[0].mxu0
      %v4374 = vadd.f32 0.0, %v4373
      %v4375 = vpop.f32.mrb[0].mxu0
      %4376 = vmatprep.mubr.bf16.mxu0 0
      %4377 = vmatmul.mubr.bf16.gmra.mrb[0].mxu0 %v2117
      %v4378 = vpop.f32.mrb[0].mxu0
      %v4379 = vadd.f32 0.0, %v4378
      %v4380 = vpop.f32.mrb[0].mxu0
      %v4381 = vpop.f32.mrb[0].mxu0
      %v4382 = vadd.f32 0.0, %v4381
      %v4383 = vpop.f32.mrb[0].mxu0
      %4384 = vmatprep.mubr.bf16.mxu0 0
      %4385 = vmatmul.mubr.bf16.gmra.mrb[0].mxu0 %v2120
      %v4386 = vpop.f32.mrb[0].mxu0
      %v4387 = vadd.f32 0.0, %v4386
      %v4388 = vpop.f32.mrb[0].mxu0
      %v4389 = vpop.f32.mrb[0].mxu0
      %v4390 = vadd.f32 0.0, %v4389
      %v4391 = vpop.f32.mrb[0].mxu0
      %4392 = vmatprep.mubr.bf16.mxu0 0
      %4393 = vmatmul.mubr.bf16.gmra.mrb[0].mxu0 %v2123
      %v4394 = vpop.f32.mrb[0].mxu0
      %v4395 = vadd.f32 0.0, %v4394
      %v4396 = vpop.f32.mrb[0].mxu0
      %v4397 = vpop.f32.mrb[0].mxu0
      %v4398 = vadd.f32 0.0, %v4397
      %v4399 = vpop.f32.mrb[0].mxu0
      %4400 = vmatprep.mubr.bf16.mxu0 0
      %4401 = vmatmul.mubr.bf16.gmra.mrb[0].mxu0 %v2126
      %v4402 = vpop.f32.mrb[0].mxu0
      %v4403 = vadd.f32 0.0, %v4402
      %v4404 = vpop.f32.mrb[0].mxu0
      %v4405 = vpop.f32.mrb[0].mxu0
      %v4406 = vadd.f32 0.0, %v4405
      %v4407 = vpop.f32.mrb[0].mxu0
      %4408 = vmatprep.mubr.bf16.mxu0 0
      %4409 = vmatmul.mubr.bf16.gmra.mrb[0].mxu0 %v2129
      %v4410 = vpop.f32.mrb[0].mxu0
      %v4411 = vadd.f32 0.0, %v4410
      %v4412 = vpop.f32.mrb[0].mxu0
      %v4413 = vpop.f32.mrb[0].mxu0
      %v4414 = vadd.f32 0.0, %v4413
      %v4415 = vpop.f32.mrb[0].mxu0
      %4416 = vmatprep.mubr.bf16.mxu0 0
      %4417 = vmatmul.mubr.bf16.gmra.mrb[0].mxu0 %v2132
      %v4418 = vpop.f32.mrb[0].mxu0
      %v4419 = vadd.f32 0.0, %v4418
      %v4420 = vpop.f32.mrb[0].mxu0
      %v4421 = vpop.f32.mrb[0].mxu0
      %v4422 = vadd.f32 0.0, %v4421
      %v4423 = vpop.f32.mrb[0].mxu0
      %4424 = vmatprep.mubr.bf16.mxu0 0
      %4425 = vmatmul.mubr.bf16.gmra.mrb[0].mxu0 %v2135
      %v4426 = vpop.f32.mrb[0].mxu0
      %v4427 = vadd.f32 0.0, %v4426
      %v4428 = vpop.f32.mrb[0].mxu0
      %v4429 = vpop.f32.mrb[0].mxu0
      %v4430 = vadd.f32 0.0, %v4429
      %v4431 = vpop.f32.mrb[0].mxu0
      %4432 = vmatprep.mubr.bf16.mxu0 0
      %4433 = vmatmul.mubr.bf16.gmra.mrb[0].mxu0 %v2138
      %v4434 = vpop.f32.mrb[0].mxu0
      %v4435 = vadd.f32 0.0, %v4434
      %v4436 = vpop.f32.mrb[0].mxu0
      %v4437 = vpop.f32.mrb[0].mxu0
      %v4438 = vadd.f32 0.0, %v4437
      %v4439 = vpop.f32.mrb[0].mxu0
      %4440 = vmatprep.mubr.bf16.mxu0 0
      %4441 = vmatmul.mubr.bf16.gmra.mrb[0].mxu0 %v2141
      %v4442 = vpop.f32.mrb[0].mxu0
      %v4443 = vadd.f32 0.0, %v4442
      %v4444 = vpop.f32.mrb[0].mxu0
      %v4445 = vpop.f32.mrb[0].mxu0
      %v4446 = vadd.f32 0.0, %v4445
      %v4447 = vpop.f32.mrb[0].mxu0
      %4448 = vmatprep.mubr.bf16.mxu0 0
      %4449 = vmatmul.mubr.bf16.gmra.mrb[0].mxu0 %v2144
      %v4450 = vpop.f32.mrb[0].mxu0
      %v4451 = vadd.f32 0.0, %v4450
      %v4452 = vpop.f32.mrb[0].mxu0
      %v4453 = vpop.f32.mrb[0].mxu0
      %v4454 = vadd.f32 0.0, %v4453
      %v4455 = vpop.f32.mrb[0].mxu0
      %4456 = vmatprep.mubr.bf16.mxu0 0
      %4457 = vmatmul.mubr.bf16.gmra.mrb[0].mxu0 %v2147
      %v4458 = vpop.f32.mrb[0].mxu0
      %v4459 = vadd.f32 0.0, %v4458
      %v4460 = vpop.f32.mrb[0].mxu0
      %v4461 = vpop.f32.mrb[0].mxu0
      %v4462 = vadd.f32 0.0, %v4461
      %v4463 = vpop.f32.mrb[0].mxu0
      %4464 = vmatprep.mubr.bf16.mxu0 0
      %4465 = vmatmul.mubr.bf16.gmra.mrb[0].mxu0 %v2150
      %v4466 = vpop.f32.mrb[0].mxu0
      %v4467 = vadd.f32 0.0, %v4466
      %v4468 = vpop.f32.mrb[0].mxu0
      %v4469 = vpop.f32.mrb[0].mxu0
      %v4470 = vadd.f32 0.0, %v4469
      %v4471 = vpop.f32.mrb[0].mxu0
      %4472 = vmatprep.mubr.bf16.mxu0 0
      %4473 = vmatmul.mubr.bf16.gmra.mrb[0].mxu0 %v2153
      %v4474 = vpop.f32.mrb[0].mxu0
      %v4475 = vadd.f32 0.0, %v4474
      %v4476 = vpop.f32.mrb[0].mxu0
      %v4477 = vpop.f32.mrb[0].mxu0
      %v4478 = vadd.f32 0.0, %v4477
      %v4479 = vpop.f32.mrb[0].mxu0
      %4480 = vmatprep.mubr.bf16.mxu0 0
      %4481 = vmatmul.mubr.bf16.gmra.mrb[0].mxu0 %v2156
      %v4482 = vpop.f32.mrb[0].mxu0
      %v4483 = vadd.f32 0.0, %v4482
      %v4484 = vpop.f32.mrb[0].mxu0
      %v4485 = vpop.f32.mrb[0].mxu0
      %v4486 = vadd.f32 0.0, %v4485
      %v4487 = vpop.f32.mrb[0].mxu0
      %4488 = vmatprep.mubr.bf16.mxu0 0
      %4489 = vmatmul.mubr.bf16.gmra.mrb[0].mxu0 %v2159
      %v4490 = vpop.f32.mrb[0].mxu0
      %v4491 = vadd.f32 0.0, %v4490
      %v4492 = vpop.f32.mrb[0].mxu0
      %v4493 = vpop.f32.mrb[0].mxu0
      %v4494 = vadd.f32 0.0, %v4493
      %v4495 = vpop.f32.mrb[0].mxu0
      %4496 = vmatprep.mubr.bf16.mxu0 0
      %4497 = vmatmul.mubr.bf16.gmra.mrb[0].mxu0 %v2162
      %v4498 = vpop.f32.mrb[0].mxu0
      %v4499 = vadd.f32 0.0, %v4498
      %v4500 = vpop.f32.mrb[0].mxu0
      %v4501 = vpop.f32.mrb[0].mxu0
      %v4502 = vadd.f32 0.0, %v4501
      %v4503 = vpop.f32.mrb[0].mxu0
      %4504 = vmatprep.mubr.bf16.mxu0 0
      %4505 = vmatmul.mubr.bf16.gmra.mrb[0].mxu0 %v2165
      %v4506 = vpop.f32.mrb[0].mxu0
      %v4507 = vadd.f32 0.0, %v4506
      %v4508 = vpop.f32.mrb[0].mxu0
      %v4509 = vpop.f32.mrb[0].mxu0
      %v4510 = vadd.f32 0.0, %v4509
      %v4511 = vpop.f32.mrb[0].mxu0
      %4512 = vmatprep.mubr.bf16.mxu0 0
      %4513 = vmatmul.mubr.bf16.gmra.mrb[0].mxu0 %v2168
      %v4514 = vpop.f32.mrb[0].mxu0
      %v4515 = vadd.f32 0.0, %v4514
      %v4516 = vpop.f32.mrb[0].mxu0
      %v4517 = vpop.f32.mrb[0].mxu0
      %v4518 = vadd.f32 0.0, %v4517
      %v4519 = vpop.f32.mrb[0].mxu0
      %4520 = vmatprep.mubr.bf16.mxu0 0
      %4521 = vmatmul.mubr.bf16.gmra.mrb[0].mxu0 %v2171
      %v4522 = vpop.f32.mrb[0].mxu0
      %v4523 = vadd.f32 0.0, %v4522
      %v4524 = vpop.f32.mrb[0].mxu0
      %v4525 = vpop.f32.mrb[0].mxu0
      %v4526 = vadd.f32 0.0, %v4525
      %v4527 = vpop.f32.mrb[0].mxu0
      %4528 = vmatprep.mubr.bf16.mxu0 0
      %4529 = vmatmul.mubr.bf16.gmra.mrb[0].mxu0 %v2174
      %v4530 = vpop.f32.mrb[0].mxu0
      %v4531 = vadd.f32 0.0, %v4530
      %v4532 = vpop.f32.mrb[0].mxu0
      %v4533 = vpop.f32.mrb[0].mxu0
      %v4534 = vadd.f32 0.0, %v4533
      %v4535 = vpop.f32.mrb[0].mxu0
      %4536 = vmatprep.mubr.bf16.mxu0 0
      %4537 = vmatmul.mubr.bf16.gmra.mrb[0].mxu0 %v2177
      %v4538 = vpop.f32.mrb[0].mxu0
      %v4539 = vadd.f32 0.0, %v4538
      %v4540 = vpop.f32.mrb[0].mxu0
      %v4541 = vpop.f32.mrb[0].mxu0
      %v4542 = vadd.f32 0.0, %v4541
      %v4543 = vpop.f32.mrb[0].mxu0
      %4544 = vmatprep.mubr.bf16.mxu0 0
      %4545 = vmatmul.mubr.bf16.gmra.mrb[0].mxu0 %v2180
      %v4546 = vpop.f32.mrb[0].mxu0
      %v4547 = vadd.f32 0.0, %v4546
      %v4548 = vpop.f32.mrb[0].mxu0
      %v4549 = vpop.f32.mrb[0].mxu0
      %v4550 = vadd.f32 0.0, %v4549
      %v4551 = vpop.f32.mrb[0].mxu0
      %4552 = vmatprep.mubr.bf16.mxu0 0
      %4553 = vmatmul.mubr.bf16.gmra.mrb[0].mxu0 %v2183
      %v4554 = vpop.f32.mrb[0].mxu0
      %v4555 = vadd.f32 0.0, %v4554
      %v4556 = vpop.f32.mrb[0].mxu0
      %v4557 = vpop.f32.mrb[0].mxu0
      %v4558 = vadd.f32 0.0, %v4557
      %v4559 = vpop.f32.mrb[0].mxu0
      %4560 = vmatprep.mubr.bf16.mxu0 0
      %4561 = vmatmul.mubr.bf16.gmra.mrb[0].mxu0 %v2186
      %v4562 = vpop.f32.mrb[0].mxu0
      %v4563 = vadd.f32 0.0, %v4562
      %v4564 = vpop.f32.mrb[0].mxu0
      %v4565 = vpop.f32.mrb[0].mxu0
      %v4566 = vadd.f32 0.0, %v4565
      %v4567 = vpop.f32.mrb[0].mxu0
      %4568 = vmatprep.mubr.bf16.mxu0 0
      %4569 = vmatmul.mubr.bf16.gmra.mrb[0].mxu0 %v2189
      %v4570 = vpop.f32.mrb[0].mxu0
      %v4571 = vadd.f32 0.0, %v4570
      %v4572 = vpop.f32.mrb[0].mxu0
      %v4573 = vpop.f32.mrb[0].mxu0
      %v4574 = vadd.f32 0.0, %v4573
      %v4575 = vpop.f32.mrb[0].mxu0
      %4576 = vmatprep.mubr.bf16.mxu0 0
      %4577 = vmatmul.mubr.bf16.gmra.mrb[0].mxu0 %v2192
      %v4578 = vpop.f32.mrb[0].mxu0
      %v4579 = vadd.f32 0.0, %v4578
      %v4580 = vpop.f32.mrb[0].mxu0
      %v4581 = vpop.f32.mrb[0].mxu0
      %v4582 = vadd.f32 0.0, %v4581
      %v4583 = vpop.f32.mrb[0].mxu0
      %4584 = vmatprep.mubr.bf16.mxu0 0
      %4585 = vmatmul.mubr.bf16.gmra.mrb[0].mxu0 %v2195
      %v4586 = vpop.f32.mrb[0].mxu0
      %v4587 = vadd.f32 0.0, %v4586
      %v4588 = vpop.f32.mrb[0].mxu0
      %v4589 = vpop.f32.mrb[0].mxu0
      %v4590 = vadd.f32 0.0, %v4589
      %v4591 = vpop.f32.mrb[0].mxu0
      %4592 = vmatprep.mubr.bf16.mxu0 0
      %4593 = vmatmul.mubr.bf16.gmra.mrb[0].mxu0 %v2198
      %v4594 = vpop.f32.mrb[0].mxu0
      %v4595 = vadd.f32 0.0, %v4594
      %v4596 = vpop.f32.mrb[0].mxu0
      %v4597 = vpop.f32.mrb[0].mxu0
      %v4598 = vadd.f32 0.0, %v4597
      %v4599 = vpop.f32.mrb[0].mxu0
      %4600 = vmatprep.mubr.bf16.mxu0 0
      %4601 = vmatmul.mubr.bf16.gmra.mrb[0].mxu0 %v2201
      %v4602 = vpop.f32.mrb[0].mxu0
      %v4603 = vadd.f32 0.0, %v4602
      %v4604 = vpop.f32.mrb[0].mxu0
      %v4605 = vpop.f32.mrb[0].mxu0
      %v4606 = vadd.f32 0.0, %v4605
      %v4607 = vpop.f32.mrb[0].mxu0
      %4608 = vmatprep.mubr.bf16.mxu0 0
      %4609 = vmatmul.mubr.bf16.gmra.mrb[0].mxu0 %v2204
      %v4610 = vpop.f32.mrb[0].mxu0
      %v4611 = vadd.f32 0.0, %v4610
      %v4612 = vpop.f32.mrb[0].mxu0
      %v4613 = vpop.f32.mrb[0].mxu0
      %v4614 = vadd.f32 0.0, %v4613
      %v4615 = vpop.f32.mrb[0].mxu0
      %4616 = vmatprep.mubr.bf16.mxu0 0
      %4617 = vmatmul.mubr.bf16.gmra.mrb[0].mxu0 %v2207
      %v4618 = vpop.f32.mrb[0].mxu0
      %v4619 = vadd.f32 0.0, %v4618
      %v4620 = vpop.f32.mrb[0].mxu0
      %v4621 = vpop.f32.mrb[0].mxu0
      %v4622 = vadd.f32 0.0, %v4621
      %v4623 = vpop.f32.mrb[0].mxu0
      %4624 = vmatprep.mubr.bf16.mxu0 0
      %4625 = vmatmul.mubr.bf16.gmra.mrb[0].mxu0 %v2210
      %v4626 = vpop.f32.mrb[0].mxu0
      %v4627 = vadd.f32 0.0, %v4626
      %v4628 = vpop.f32.mrb[0].mxu0
      %v4629 = vpop.f32.mrb[0].mxu0
      %v4630 = vadd.f32 0.0, %v4629
      %v4631 = vpop.f32.mrb[0].mxu0
      %4632 = vmatprep.mubr.bf16.mxu0 0
      %4633 = vmatmul.mubr.bf16.gmra.mrb[0].mxu0 %v2213
      %v4634 = vpop.f32.mrb[0].mxu0
      %v4635 = vadd.f32 0.0, %v4634
      %v4636 = vpop.f32.mrb[0].mxu0
      %v4637 = vpop.f32.mrb[0].mxu0
      %v4638 = vadd.f32 0.0, %v4637
      %v4639 = vpop.f32.mrb[0].mxu0
      %4640 = vmatprep.mubr.bf16.mxu0 0
      %4641 = vmatmul.mubr.bf16.gmra.mrb[0].mxu0 %v2216
      %v4642 = vpop.f32.mrb[0].mxu0
      %v4643 = vadd.f32 0.0, %v4642
      %v4644 = vpop.f32.mrb[0].mxu0
      %v4645 = vpop.f32.mrb[0].mxu0
      %v4646 = vadd.f32 0.0, %v4645
      %v4647 = vpop.f32.mrb[0].mxu0
      %4648 = vmatprep.mubr.bf16.mxu0 0
      %4649 = vmatmul.mubr.bf16.gmra.mrb[0].mxu0 %v2219
      %v4650 = vpop.f32.mrb[0].mxu0
      %v4651 = vadd.f32 0.0, %v4650
      %v4652 = vpop.f32.mrb[0].mxu0
      %v4653 = vpop.f32.mrb[0].mxu0
      %v4654 = vadd.f32 0.0, %v4653
      %v4655 = vpop.f32.mrb[0].mxu0
      %4656 = vmatprep.mubr.bf16.mxu0 0
      %4657 = vmatmul.mubr.bf16.gmra.mrb[0].mxu0 %v2222
      %v4658 = vpop.f32.mrb[0].mxu0
      %v4659 = vadd.f32 0.0, %v4658
      %v4660 = vpop.f32.mrb[0].mxu0
      %v4661 = vpop.f32.mrb[0].mxu0
      %v4662 = vadd.f32 0.0, %v4661
      %v4663 = vpop.f32.mrb[0].mxu0
      %4664 = vmatprep.mubr.bf16.mxu0 0
      %4665 = vmatmul.mubr.bf16.gmra.mrb[0].mxu0 %v4128
      %v4666 = vpop.f32.mrb[0].mxu0
      %v4667 = vadd.f32 0.0, %v4666
      %v4668 = vpop.f32.mrb[0].mxu0
      %v4669 = vpop.f32.mrb[0].mxu0
      %v4670 = vadd.f32 0.0, %v4669
      %v4671 = vpop.f32.mrb[0].mxu0
      %4672 = vmatprep.mubr.bf16.mxu0 0
      %4673 = vmatmul.mubr.bf16.gmra.mrb[0].mxu0 %v4131
      %v4674 = vpop.f32.mrb[0].mxu0
      %v4675 = vadd.f32 0.0, %v4674
      %v4676 = vpop.f32.mrb[0].mxu0
      %v4677 = vpop.f32.mrb[0].mxu0
      %v4678 = vadd.f32 0.0, %v4677
      %v4679 = vpop.f32.mrb[0].mxu0
      %4680 = vdwg.mxu0
      %v4681 = vadd.f32 %v3995, %v4171
      %v4682 = vadd.f32 %v3996, %v4174
      %v4683 = vadd.f32 %v3997, %v4179
      %v4684 = vadd.f32 %v3998, %v4182
      %v4685 = vadd.f32 %v3999, %v4187
      %v4686 = vadd.f32 %v4000, %v4190
      %v4687 = vadd.f32 %v4001, %v4195
      %v4688 = vadd.f32 %v4002, %v4198
      %v4689 = vadd.f32 %v4003, %v4203
      %v4690 = vadd.f32 %v4004, %v4206
      %v4691 = vadd.f32 %v4005, %v4211
      %v4692 = vadd.f32 %v4006, %v4214
      %v4693 = vadd.f32 %v4007, %v4219
      %v4694 = vadd.f32 %v4008, %v4222
      %v4695 = vadd.f32 %v4009, %v4227
      %v4696 = vadd.f32 %v4010, %v4230
      %v4697 = vadd.f32 %v4011, %v4235
      %v4698 = vadd.f32 %v4012, %v4238
      %v4699 = vadd.f32 %v4013, %v4243
      %v4700 = vadd.f32 %v4014, %v4246
      %v4701 = vadd.f32 %v4015, %v4251
      %v4702 = vadd.f32 %v4016, %v4254
      %v4703 = vadd.f32 %v4017, %v4259
      %v4704 = vadd.f32 %v4018, %v4262
      %v4705 = vadd.f32 %v4019, %v4267
      %v4706 = vadd.f32 %v4020, %v4270
      %v4707 = vadd.f32 %v4021, %v4275
      %v4708 = vadd.f32 %v4022, %v4278
      %v4709 = vadd.f32 %v4023, %v4283
      %v4710 = vadd.f32 %v4024, %v4286
      %v4711 = vadd.f32 %v4025, %v4291
      %v4712 = vadd.f32 %v4026, %v4294
      %v4713 = vadd.f32 %v4027, %v4299
      %v4714 = vadd.f32 %v4028, %v4302
      %v4715 = vadd.f32 %v4029, %v4307
      %v4716 = vadd.f32 %v4030, %v4310
      %v4717 = vadd.f32 %v4031, %v4315
      %v4718 = vadd.f32 %v4032, %v4318
      %v4719 = vadd.f32 %v4033, %v4323
      %v4720 = vadd.f32 %v4034, %v4326
      %v4721 = vadd.f32 %v4035, %v4331
      %v4722 = vadd.f32 %v4036, %v4334
      %v4723 = vadd.f32 %v4037, %v4339
      %v4724 = vadd.f32 %v4038, %v4342
      %v4725 = vadd.f32 %v4039, %v4347
      %v4726 = vadd.f32 %v4040, %v4350
      %v4727 = vadd.f32 %v4041, %v4355
      %v4728 = vadd.f32 %v4042, %v4358
      %v4729 = vadd.f32 %v4043, %v4363
      %v4730 = vadd.f32 %v4044, %v4366
      %v4731 = vadd.f32 %v4045, %v4371
      %v4732 = vadd.f32 %v4046, %v4374
      %v4733 = vadd.f32 %v4047, %v4379
      %v4734 = vadd.f32 %v4048, %v4382
      %v4735 = vadd.f32 %v4049, %v4387
      %v4736 = vadd.f32 %v4050, %v4390
      %v4737 = vadd.f32 %v4051, %v4395
      %v4738 = vadd.f32 %v4052, %v4398
      %v4739 = vadd.f32 %v4053, %v4403
      %v4740 = vadd.f32 %v4054, %v4406
      %v4741 = vadd.f32 %v4055, %v4411
      %v4742 = vadd.f32 %v4056, %v4414
      %v4743 = vadd.f32 %v4057, %v4419
      %v4744 = vadd.f32 %v4058, %v4422
      %v4745 = vadd.f32 %v4059, %v4427
      %v4746 = vadd.f32 %v4060, %v4430
      %v4747 = vadd.f32 %v4061, %v4435
      %v4748 = vadd.f32 %v4062, %v4438
      %v4749 = vadd.f32 %v4063, %v4443
      %v4750 = vadd.f32 %v4064, %v4446
      %v4751 = vadd.f32 %v4065, %v4451
      %v4752 = vadd.f32 %v4066, %v4454
      %v4753 = vadd.f32 %v4067, %v4459
      %v4754 = vadd.f32 %v4068, %v4462
      %v4755 = vadd.f32 %v4069, %v4467
      %v4756 = vadd.f32 %v4070, %v4470
      %v4757 = vadd.f32 %v4071, %v4475
      %v4758 = vadd.f32 %v4072, %v4478
      %v4759 = vadd.f32 %v4073, %v4483
      %v4760 = vadd.f32 %v4074, %v4486
      %v4761 = vadd.f32 %v4075, %v4491
      %v4762 = vadd.f32 %v4076, %v4494
      %v4763 = vadd.f32 %v4077, %v4499
      %v4764 = vadd.f32 %v4078, %v4502
      %v4765 = vadd.f32 %v4079, %v4507
      %v4766 = vadd.f32 %v4080, %v4510
      %v4767 = vadd.f32 %v4081, %v4515
      %v4768 = vadd.f32 %v4082, %v4518
      %v4769 = vadd.f32 %v4083, %v4523
      %v4770 = vadd.f32 %v4084, %v4526
      %v4771 = vadd.f32 %v4085, %v4531
      %v4772 = vadd.f32 %v4086, %v4534
      %v4773 = vadd.f32 %v4087, %v4539
      %v4774 = vadd.f32 %v4088, %v4542
      %v4775 = vadd.f32 %v4089, %v4547
      %v4776 = vadd.f32 %v4090, %v4550
      %v4777 = vadd.f32 %v4091, %v4555
      %v4778 = vadd.f32 %v4092, %v4558
      %v4779 = vadd.f32 %v4093, %v4563
      %v4780 = vadd.f32 %v4094, %v4566
      %v4781 = vadd.f32 %v4095, %v4571
      %v4782 = vadd.f32 %v4096, %v4574
      %v4783 = vadd.f32 %v4097, %v4579
      %v4784 = vadd.f32 %v4098, %v4582
      %v4785 = vadd.f32 %v4099, %v4587
      %v4786 = vadd.f32 %v4100, %v4590
      %v4787 = vadd.f32 %v4101, %v4595
      %v4788 = vadd.f32 %v4102, %v4598
      %v4789 = vadd.f32 %v4103, %v4603
      %v4790 = vadd.f32 %v4104, %v4606
      %v4791 = vadd.f32 %v4105, %v4611
      %v4792 = vadd.f32 %v4106, %v4614
      %v4793 = vadd.f32 %v4107, %v4619
      %v4794 = vadd.f32 %v4108, %v4622
      %v4795 = vadd.f32 %v4109, %v4627
      %v4796 = vadd.f32 %v4110, %v4630
      %v4797 = vadd.f32 %v4111, %v4635
      %v4798 = vadd.f32 %v4112, %v4638
      %v4799 = vadd.f32 %v4113, %v4643
      %v4800 = vadd.f32 %v4114, %v4646
      %v4801 = vadd.f32 %v4115, %v4651
      %v4802 = vadd.f32 %v4116, %v4654
      %v4803 = vadd.f32 %v4117, %v4659
      %v4804 = vadd.f32 %v4118, %v4662
      %v4805 = vadd.f32 %v4119, %v4667
      %v4806 = vadd.f32 %v4120, %v4670
      %v4807 = vadd.f32 %v4121, %v4675
      %v4808 = vadd.f32 %v4122, %v4678
      %v4814 = vrot.slane %v569, 1
      %v4815 = vrot.slane %v570, 1
      %v4816 = vsel %vm804, %v4814, %v4815
      %v4817 = vrot.slane %v571, 1
      %v4818 = vsel %vm804, %v4815, %v4817
      %v4819 = vrot.slane %v572, 1
      %v4820 = vsel %vm804, %v4817, %v4819
      %v4821 = vrot.slane %v573, 1
      %v4822 = vsel %vm804, %v4819, %v4821
      %v4827 = vpack.c.bf16 %v4818, %v4816
      %v4828 = vpack.c.bf16 %v4822, %v4820
      %s4829 = scalar_lea.vmem %s1, 8
      %v4830 = vld [vmem:[%s4829] sm:$0x3]
      %v4832 = vsel %vm1287, %v4827, 0
      %v4835 = vsel %vm1287, %v4828, 0
      %v4838 = vand.u32 %v4830, %v1483
      %4840 = vmatprep.subr.bf16.mxu0 0
      %4841 = vmatpush1.bf16.msra.mxu0 %v4838
      %4842 = vmatprep.subr.bf16.mxu0 0
      %4843 = vmatpush1.bf16.msra.mxu0 0
      %4844 = vmatprep.subr.bf16.mxu0 0
      %4845 = vmatpush1.bf16.msra.mxu0 0
      %4846 = vmatprep.subr.bf16.mxu0 0
      %4847 = vmatpush1.bf16.msra.mxu0 0
      %4848 = vmatprep.subr.bf16.mxu0 0
      %4849 = vmatpush1.bf16.msra.mxu0 0
      %4850 = vmatprep.subr.bf16.mxu0 0
      %4851 = vmatpush1.bf16.msra.mxu0 0
      %4852 = vmatprep.subr.bf16.mxu0 0
      %4853 = vmatpush1.bf16.msra.mxu0 0
      %4854 = vmatprep.subr.bf16.mxu0 0
      %4855 = vmatpush1.bf16.msra.mxu0 0
      %4856 = vmatprep.subr.bf16.mxu0 0
      %4857 = vmatpush1.bf16.msra.mxu0 0
      %4858 = vmatprep.subr.bf16.mxu0 0
      %4859 = vmatpush1.bf16.msra.mxu0 0
      %4860 = vmatprep.subr.bf16.mxu0 0
      %4861 = vmatpush1.bf16.msra.mxu0 0
      %4862 = vmatprep.subr.bf16.mxu0 0
      %4863 = vmatpush1.bf16.msra.mxu0 0
      %4864 = vmatprep.subr.bf16.mxu0 0
      %4865 = vmatpush1.bf16.msra.mxu0 0
      %4866 = vmatprep.subr.bf16.mxu0 0
      %4867 = vmatpush1.bf16.msra.mxu0 0
      %4868 = vmatprep.subr.bf16.mxu0 0
      %4869 = vmatpush1.bf16.msra.mxu0 0
      %4870 = vmatprep.subr.bf16.mxu0 0
      %4871 = vmatpush1.bf16.msra.mxu0 0
      %4872 = vmatprep.mubr.bf16.mxu0 0
      %4873 = vmatmul.mubr.bf16.gmra.mrb[0].mxu0 %v1295
      %v4874 = vpop.f32.mrb[0].mxu0
      %v4875 = vadd.f32 0.0, %v4874
      %v4876 = vpop.f32.mrb[0].mxu0
      %v4877 = vpop.f32.mrb[0].mxu0
      %v4878 = vadd.f32 0.0, %v4877
      %v4879 = vpop.f32.mrb[0].mxu0
      %4880 = vmatprep.mubr.bf16.mxu0 0
      %4881 = vmatmul.mubr.bf16.gmra.mrb[0].mxu0 %v1298
      %v4882 = vpop.f32.mrb[0].mxu0
      %v4883 = vadd.f32 0.0, %v4882
      %v4884 = vpop.f32.mrb[0].mxu0
      %v4885 = vpop.f32.mrb[0].mxu0
      %v4886 = vadd.f32 0.0, %v4885
      %v4887 = vpop.f32.mrb[0].mxu0
      %4888 = vmatprep.mubr.bf16.mxu0 0
      %4889 = vmatmul.mubr.bf16.gmra.mrb[0].mxu0 %v1301
      %v4890 = vpop.f32.mrb[0].mxu0
      %v4891 = vadd.f32 0.0, %v4890
      %v4892 = vpop.f32.mrb[0].mxu0
      %v4893 = vpop.f32.mrb[0].mxu0
      %v4894 = vadd.f32 0.0, %v4893
      %v4895 = vpop.f32.mrb[0].mxu0
      %4896 = vmatprep.mubr.bf16.mxu0 0
      %4897 = vmatmul.mubr.bf16.gmra.mrb[0].mxu0 %v1304
      %v4898 = vpop.f32.mrb[0].mxu0
      %v4899 = vadd.f32 0.0, %v4898
      %v4900 = vpop.f32.mrb[0].mxu0
      %v4901 = vpop.f32.mrb[0].mxu0
      %v4902 = vadd.f32 0.0, %v4901
      %v4903 = vpop.f32.mrb[0].mxu0
      %4904 = vmatprep.mubr.bf16.mxu0 0
      %4905 = vmatmul.mubr.bf16.gmra.mrb[0].mxu0 %v1307
      %v4906 = vpop.f32.mrb[0].mxu0
      %v4907 = vadd.f32 0.0, %v4906
      %v4908 = vpop.f32.mrb[0].mxu0
      %v4909 = vpop.f32.mrb[0].mxu0
      %v4910 = vadd.f32 0.0, %v4909
      %v4911 = vpop.f32.mrb[0].mxu0
      %4912 = vmatprep.mubr.bf16.mxu0 0
      %4913 = vmatmul.mubr.bf16.gmra.mrb[0].mxu0 %v1310
      %v4914 = vpop.f32.mrb[0].mxu0
      %v4915 = vadd.f32 0.0, %v4914
      %v4916 = vpop.f32.mrb[0].mxu0
      %v4917 = vpop.f32.mrb[0].mxu0
      %v4918 = vadd.f32 0.0, %v4917
      %v4919 = vpop.f32.mrb[0].mxu0
      %4920 = vmatprep.mubr.bf16.mxu0 0
      %4921 = vmatmul.mubr.bf16.gmra.mrb[0].mxu0 %v1313
      %v4922 = vpop.f32.mrb[0].mxu0
      %v4923 = vadd.f32 0.0, %v4922
      %v4924 = vpop.f32.mrb[0].mxu0
      %v4925 = vpop.f32.mrb[0].mxu0
      %v4926 = vadd.f32 0.0, %v4925
      %v4927 = vpop.f32.mrb[0].mxu0
      %4928 = vmatprep.mubr.bf16.mxu0 0
      %4929 = vmatmul.mubr.bf16.gmra.mrb[0].mxu0 %v1316
      %v4930 = vpop.f32.mrb[0].mxu0
      %v4931 = vadd.f32 0.0, %v4930
      %v4932 = vpop.f32.mrb[0].mxu0
      %v4933 = vpop.f32.mrb[0].mxu0
      %v4934 = vadd.f32 0.0, %v4933
      %v4935 = vpop.f32.mrb[0].mxu0
      %4936 = vmatprep.mubr.bf16.mxu0 0
      %4937 = vmatmul.mubr.bf16.gmra.mrb[0].mxu0 %v1319
      %v4938 = vpop.f32.mrb[0].mxu0
      %v4939 = vadd.f32 0.0, %v4938
      %v4940 = vpop.f32.mrb[0].mxu0
      %v4941 = vpop.f32.mrb[0].mxu0
      %v4942 = vadd.f32 0.0, %v4941
      %v4943 = vpop.f32.mrb[0].mxu0
      %4944 = vmatprep.mubr.bf16.mxu0 0
      %4945 = vmatmul.mubr.bf16.gmra.mrb[0].mxu0 %v1322
      %v4946 = vpop.f32.mrb[0].mxu0
      %v4947 = vadd.f32 0.0, %v4946
      %v4948 = vpop.f32.mrb[0].mxu0
      %v4949 = vpop.f32.mrb[0].mxu0
      %v4950 = vadd.f32 0.0, %v4949
      %v4951 = vpop.f32.mrb[0].mxu0
      %4952 = vmatprep.mubr.bf16.mxu0 0
      %4953 = vmatmul.mubr.bf16.gmra.mrb[0].mxu0 %v1325
      %v4954 = vpop.f32.mrb[0].mxu0
      %v4955 = vadd.f32 0.0, %v4954
      %v4956 = vpop.f32.mrb[0].mxu0
      %v4957 = vpop.f32.mrb[0].mxu0
      %v4958 = vadd.f32 0.0, %v4957
      %v4959 = vpop.f32.mrb[0].mxu0
      %4960 = vmatprep.mubr.bf16.mxu0 0
      %4961 = vmatmul.mubr.bf16.gmra.mrb[0].mxu0 %v1328
      %v4962 = vpop.f32.mrb[0].mxu0
      %v4963 = vadd.f32 0.0, %v4962
      %v4964 = vpop.f32.mrb[0].mxu0
      %v4965 = vpop.f32.mrb[0].mxu0
      %v4966 = vadd.f32 0.0, %v4965
      %v4967 = vpop.f32.mrb[0].mxu0
      %4968 = vmatprep.mubr.bf16.mxu0 0
      %4969 = vmatmul.mubr.bf16.gmra.mrb[0].mxu0 %v1331
      %v4970 = vpop.f32.mrb[0].mxu0
      %v4971 = vadd.f32 0.0, %v4970
      %v4972 = vpop.f32.mrb[0].mxu0
      %v4973 = vpop.f32.mrb[0].mxu0
      %v4974 = vadd.f32 0.0, %v4973
      %v4975 = vpop.f32.mrb[0].mxu0
      %4976 = vmatprep.mubr.bf16.mxu0 0
      %4977 = vmatmul.mubr.bf16.gmra.mrb[0].mxu0 %v1334
      %v4978 = vpop.f32.mrb[0].mxu0
      %v4979 = vadd.f32 0.0, %v4978
      %v4980 = vpop.f32.mrb[0].mxu0
      %v4981 = vpop.f32.mrb[0].mxu0
      %v4982 = vadd.f32 0.0, %v4981
      %v4983 = vpop.f32.mrb[0].mxu0
      %4984 = vmatprep.mubr.bf16.mxu0 0
      %4985 = vmatmul.mubr.bf16.gmra.mrb[0].mxu0 %v1337
      %v4986 = vpop.f32.mrb[0].mxu0
      %v4987 = vadd.f32 0.0, %v4986
      %v4988 = vpop.f32.mrb[0].mxu0
      %v4989 = vpop.f32.mrb[0].mxu0
      %v4990 = vadd.f32 0.0, %v4989
      %v4991 = vpop.f32.mrb[0].mxu0
      %4992 = vmatprep.mubr.bf16.mxu0 0
      %4993 = vmatmul.mubr.bf16.gmra.mrb[0].mxu0 %v1340
      %v4994 = vpop.f32.mrb[0].mxu0
      %v4995 = vadd.f32 0.0, %v4994
      %v4996 = vpop.f32.mrb[0].mxu0
      %v4997 = vpop.f32.mrb[0].mxu0
      %v4998 = vadd.f32 0.0, %v4997
      %v4999 = vpop.f32.mrb[0].mxu0
      %5000 = vmatprep.mubr.bf16.mxu0 0
      %5001 = vmatmul.mubr.bf16.gmra.mrb[0].mxu0 %v1343
      %v5002 = vpop.f32.mrb[0].mxu0
      %v5003 = vadd.f32 0.0, %v5002
      %v5004 = vpop.f32.mrb[0].mxu0
      %v5005 = vpop.f32.mrb[0].mxu0
      %v5006 = vadd.f32 0.0, %v5005
      %v5007 = vpop.f32.mrb[0].mxu0
      %5008 = vmatprep.mubr.bf16.mxu0 0
      %5009 = vmatmul.mubr.bf16.gmra.mrb[0].mxu0 %v1346
      %v5010 = vpop.f32.mrb[0].mxu0
      %v5011 = vadd.f32 0.0, %v5010
      %v5012 = vpop.f32.mrb[0].mxu0
      %v5013 = vpop.f32.mrb[0].mxu0
      %v5014 = vadd.f32 0.0, %v5013
      %v5015 = vpop.f32.mrb[0].mxu0
      %5016 = vmatprep.mubr.bf16.mxu0 0
      %5017 = vmatmul.mubr.bf16.gmra.mrb[0].mxu0 %v1349
      %v5018 = vpop.f32.mrb[0].mxu0
      %v5019 = vadd.f32 0.0, %v5018
      %v5020 = vpop.f32.mrb[0].mxu0
      %v5021 = vpop.f32.mrb[0].mxu0
      %v5022 = vadd.f32 0.0, %v5021
      %v5023 = vpop.f32.mrb[0].mxu0
      %5024 = vmatprep.mubr.bf16.mxu0 0
      %5025 = vmatmul.mubr.bf16.gmra.mrb[0].mxu0 %v1352
      %v5026 = vpop.f32.mrb[0].mxu0
      %v5027 = vadd.f32 0.0, %v5026
      %v5028 = vpop.f32.mrb[0].mxu0
      %v5029 = vpop.f32.mrb[0].mxu0
      %v5030 = vadd.f32 0.0, %v5029
      %v5031 = vpop.f32.mrb[0].mxu0
      %5032 = vmatprep.mubr.bf16.mxu0 0
      %5033 = vmatmul.mubr.bf16.gmra.mrb[0].mxu0 %v1355
      %v5034 = vpop.f32.mrb[0].mxu0
      %v5035 = vadd.f32 0.0, %v5034
      %v5036 = vpop.f32.mrb[0].mxu0
      %v5037 = vpop.f32.mrb[0].mxu0
      %v5038 = vadd.f32 0.0, %v5037
      %v5039 = vpop.f32.mrb[0].mxu0
      %5040 = vmatprep.mubr.bf16.mxu0 0
      %5041 = vmatmul.mubr.bf16.gmra.mrb[0].mxu0 %v1358
      %v5042 = vpop.f32.mrb[0].mxu0
      %v5043 = vadd.f32 0.0, %v5042
      %v5044 = vpop.f32.mrb[0].mxu0
      %v5045 = vpop.f32.mrb[0].mxu0
      %v5046 = vadd.f32 0.0, %v5045
      %v5047 = vpop.f32.mrb[0].mxu0
      %5048 = vmatprep.mubr.bf16.mxu0 0
      %5049 = vmatmul.mubr.bf16.gmra.mrb[0].mxu0 %v1361
      %v5050 = vpop.f32.mrb[0].mxu0
      %v5051 = vadd.f32 0.0, %v5050
      %v5052 = vpop.f32.mrb[0].mxu0
      %v5053 = vpop.f32.mrb[0].mxu0
      %v5054 = vadd.f32 0.0, %v5053
      %v5055 = vpop.f32.mrb[0].mxu0
      %5056 = vmatprep.mubr.bf16.mxu0 0
      %5057 = vmatmul.mubr.bf16.gmra.mrb[0].mxu0 %v1364
      %v5058 = vpop.f32.mrb[0].mxu0
      %v5059 = vadd.f32 0.0, %v5058
      %v5060 = vpop.f32.mrb[0].mxu0
      %v5061 = vpop.f32.mrb[0].mxu0
      %v5062 = vadd.f32 0.0, %v5061
      %v5063 = vpop.f32.mrb[0].mxu0
      %5064 = vmatprep.mubr.bf16.mxu0 0
      %5065 = vmatmul.mubr.bf16.gmra.mrb[0].mxu0 %v1367
      %v5066 = vpop.f32.mrb[0].mxu0
      %v5067 = vadd.f32 0.0, %v5066
      %v5068 = vpop.f32.mrb[0].mxu0
      %v5069 = vpop.f32.mrb[0].mxu0
      %v5070 = vadd.f32 0.0, %v5069
      %v5071 = vpop.f32.mrb[0].mxu0
      %5072 = vmatprep.mubr.bf16.mxu0 0
      %5073 = vmatmul.mubr.bf16.gmra.mrb[0].mxu0 %v1370
      %v5074 = vpop.f32.mrb[0].mxu0
      %v5075 = vadd.f32 0.0, %v5074
      %v5076 = vpop.f32.mrb[0].mxu0
      %v5077 = vpop.f32.mrb[0].mxu0
      %v5078 = vadd.f32 0.0, %v5077
      %v5079 = vpop.f32.mrb[0].mxu0
      %5080 = vmatprep.mubr.bf16.mxu0 0
      %5081 = vmatmul.mubr.bf16.gmra.mrb[0].mxu0 %v1373
      %v5082 = vpop.f32.mrb[0].mxu0
      %v5083 = vadd.f32 0.0, %v5082
      %v5084 = vpop.f32.mrb[0].mxu0
      %v5085 = vpop.f32.mrb[0].mxu0
      %v5086 = vadd.f32 0.0, %v5085
      %v5087 = vpop.f32.mrb[0].mxu0
      %5088 = vmatprep.mubr.bf16.mxu0 0
      %5089 = vmatmul.mubr.bf16.gmra.mrb[0].mxu0 %v1376
      %v5090 = vpop.f32.mrb[0].mxu0
      %v5091 = vadd.f32 0.0, %v5090
      %v5092 = vpop.f32.mrb[0].mxu0
      %v5093 = vpop.f32.mrb[0].mxu0
      %v5094 = vadd.f32 0.0, %v5093
      %v5095 = vpop.f32.mrb[0].mxu0
      %5096 = vmatprep.mubr.bf16.mxu0 0
      %5097 = vmatmul.mubr.bf16.gmra.mrb[0].mxu0 %v1379
      %v5098 = vpop.f32.mrb[0].mxu0
      %v5099 = vadd.f32 0.0, %v5098
      %v5100 = vpop.f32.mrb[0].mxu0
      %v5101 = vpop.f32.mrb[0].mxu0
      %v5102 = vadd.f32 0.0, %v5101
      %v5103 = vpop.f32.mrb[0].mxu0
      %5104 = vmatprep.mubr.bf16.mxu0 0
      %5105 = vmatmul.mubr.bf16.gmra.mrb[0].mxu0 %v1382
      %v5106 = vpop.f32.mrb[0].mxu0
      %v5107 = vadd.f32 0.0, %v5106
      %v5108 = vpop.f32.mrb[0].mxu0
      %v5109 = vpop.f32.mrb[0].mxu0
      %v5110 = vadd.f32 0.0, %v5109
      %v5111 = vpop.f32.mrb[0].mxu0
      %5112 = vmatprep.mubr.bf16.mxu0 0
      %5113 = vmatmul.mubr.bf16.gmra.mrb[0].mxu0 %v1385
      %v5114 = vpop.f32.mrb[0].mxu0
      %v5115 = vadd.f32 0.0, %v5114
      %v5116 = vpop.f32.mrb[0].mxu0
      %v5117 = vpop.f32.mrb[0].mxu0
      %v5118 = vadd.f32 0.0, %v5117
      %v5119 = vpop.f32.mrb[0].mxu0
      %5120 = vmatprep.mubr.bf16.mxu0 0
      %5121 = vmatmul.mubr.bf16.gmra.mrb[0].mxu0 %v1388
      %v5122 = vpop.f32.mrb[0].mxu0
      %v5123 = vadd.f32 0.0, %v5122
      %v5124 = vpop.f32.mrb[0].mxu0
      %v5125 = vpop.f32.mrb[0].mxu0
      %v5126 = vadd.f32 0.0, %v5125
      %v5127 = vpop.f32.mrb[0].mxu0
      %5128 = vmatprep.mubr.bf16.mxu0 0
      %5129 = vmatmul.mubr.bf16.gmra.mrb[0].mxu0 %v1391
      %v5130 = vpop.f32.mrb[0].mxu0
      %v5131 = vadd.f32 0.0, %v5130
      %v5132 = vpop.f32.mrb[0].mxu0
      %v5133 = vpop.f32.mrb[0].mxu0
      %v5134 = vadd.f32 0.0, %v5133
      %v5135 = vpop.f32.mrb[0].mxu0
      %5136 = vmatprep.mubr.bf16.mxu0 0
      %5137 = vmatmul.mubr.bf16.gmra.mrb[0].mxu0 %v1394
      %v5138 = vpop.f32.mrb[0].mxu0
      %v5139 = vadd.f32 0.0, %v5138
      %v5140 = vpop.f32.mrb[0].mxu0
      %v5141 = vpop.f32.mrb[0].mxu0
      %v5142 = vadd.f32 0.0, %v5141
      %v5143 = vpop.f32.mrb[0].mxu0
      %5144 = vmatprep.mubr.bf16.mxu0 0
      %5145 = vmatmul.mubr.bf16.gmra.mrb[0].mxu0 %v1397
      %v5146 = vpop.f32.mrb[0].mxu0
      %v5147 = vadd.f32 0.0, %v5146
      %v5148 = vpop.f32.mrb[0].mxu0
      %v5149 = vpop.f32.mrb[0].mxu0
      %v5150 = vadd.f32 0.0, %v5149
      %v5151 = vpop.f32.mrb[0].mxu0
      %5152 = vmatprep.mubr.bf16.mxu0 0
      %5153 = vmatmul.mubr.bf16.gmra.mrb[0].mxu0 %v1400
      %v5154 = vpop.f32.mrb[0].mxu0
      %v5155 = vadd.f32 0.0, %v5154
      %v5156 = vpop.f32.mrb[0].mxu0
      %v5157 = vpop.f32.mrb[0].mxu0
      %v5158 = vadd.f32 0.0, %v5157
      %v5159 = vpop.f32.mrb[0].mxu0
      %5160 = vmatprep.mubr.bf16.mxu0 0
      %5161 = vmatmul.mubr.bf16.gmra.mrb[0].mxu0 %v1403
      %v5162 = vpop.f32.mrb[0].mxu0
      %v5163 = vadd.f32 0.0, %v5162
      %v5164 = vpop.f32.mrb[0].mxu0
      %v5165 = vpop.f32.mrb[0].mxu0
      %v5166 = vadd.f32 0.0, %v5165
      %v5167 = vpop.f32.mrb[0].mxu0
      %5168 = vmatprep.mubr.bf16.mxu0 0
      %5169 = vmatmul.mubr.bf16.gmra.mrb[0].mxu0 %v1406
      %v5170 = vpop.f32.mrb[0].mxu0
      %v5171 = vadd.f32 0.0, %v5170
      %v5172 = vpop.f32.mrb[0].mxu0
      %v5173 = vpop.f32.mrb[0].mxu0
      %v5174 = vadd.f32 0.0, %v5173
      %v5175 = vpop.f32.mrb[0].mxu0
      %5176 = vmatprep.mubr.bf16.mxu0 0
      %5177 = vmatmul.mubr.bf16.gmra.mrb[0].mxu0 %v1409
      %v5178 = vpop.f32.mrb[0].mxu0
      %v5179 = vadd.f32 0.0, %v5178
      %v5180 = vpop.f32.mrb[0].mxu0
      %v5181 = vpop.f32.mrb[0].mxu0
      %v5182 = vadd.f32 0.0, %v5181
      %v5183 = vpop.f32.mrb[0].mxu0
      %5184 = vmatprep.mubr.bf16.mxu0 0
      %5185 = vmatmul.mubr.bf16.gmra.mrb[0].mxu0 %v1412
      %v5186 = vpop.f32.mrb[0].mxu0
      %v5187 = vadd.f32 0.0, %v5186
      %v5188 = vpop.f32.mrb[0].mxu0
      %v5189 = vpop.f32.mrb[0].mxu0
      %v5190 = vadd.f32 0.0, %v5189
      %v5191 = vpop.f32.mrb[0].mxu0
      %5192 = vmatprep.mubr.bf16.mxu0 0
      %5193 = vmatmul.mubr.bf16.gmra.mrb[0].mxu0 %v1415
      %v5194 = vpop.f32.mrb[0].mxu0
      %v5195 = vadd.f32 0.0, %v5194
      %v5196 = vpop.f32.mrb[0].mxu0
      %v5197 = vpop.f32.mrb[0].mxu0
      %v5198 = vadd.f32 0.0, %v5197
      %v5199 = vpop.f32.mrb[0].mxu0
      %5200 = vmatprep.mubr.bf16.mxu0 0
      %5201 = vmatmul.mubr.bf16.gmra.mrb[0].mxu0 %v1418
      %v5202 = vpop.f32.mrb[0].mxu0
      %v5203 = vadd.f32 0.0, %v5202
      %v5204 = vpop.f32.mrb[0].mxu0
      %v5205 = vpop.f32.mrb[0].mxu0
      %v5206 = vadd.f32 0.0, %v5205
      %v5207 = vpop.f32.mrb[0].mxu0
      %5208 = vmatprep.mubr.bf16.mxu0 0
      %5209 = vmatmul.mubr.bf16.gmra.mrb[0].mxu0 %v1421
      %v5210 = vpop.f32.mrb[0].mxu0
      %v5211 = vadd.f32 0.0, %v5210
      %v5212 = vpop.f32.mrb[0].mxu0
      %v5213 = vpop.f32.mrb[0].mxu0
      %v5214 = vadd.f32 0.0, %v5213
      %v5215 = vpop.f32.mrb[0].mxu0
      %5216 = vmatprep.mubr.bf16.mxu0 0
      %5217 = vmatmul.mubr.bf16.gmra.mrb[0].mxu0 %v1424
      %v5218 = vpop.f32.mrb[0].mxu0
      %v5219 = vadd.f32 0.0, %v5218
      %v5220 = vpop.f32.mrb[0].mxu0
      %v5221 = vpop.f32.mrb[0].mxu0
      %v5222 = vadd.f32 0.0, %v5221
      %v5223 = vpop.f32.mrb[0].mxu0
      %5224 = vmatprep.mubr.bf16.mxu0 0
      %5225 = vmatmul.mubr.bf16.gmra.mrb[0].mxu0 %v1427
      %v5226 = vpop.f32.mrb[0].mxu0
      %v5227 = vadd.f32 0.0, %v5226
      %v5228 = vpop.f32.mrb[0].mxu0
      %v5229 = vpop.f32.mrb[0].mxu0
      %v5230 = vadd.f32 0.0, %v5229
      %v5231 = vpop.f32.mrb[0].mxu0
      %5232 = vmatprep.mubr.bf16.mxu0 0
      %5233 = vmatmul.mubr.bf16.gmra.mrb[0].mxu0 %v1430
      %v5234 = vpop.f32.mrb[0].mxu0
      %v5235 = vadd.f32 0.0, %v5234
      %v5236 = vpop.f32.mrb[0].mxu0
      %v5237 = vpop.f32.mrb[0].mxu0
      %v5238 = vadd.f32 0.0, %v5237
      %v5239 = vpop.f32.mrb[0].mxu0
      %5240 = vmatprep.mubr.bf16.mxu0 0
      %5241 = vmatmul.mubr.bf16.gmra.mrb[0].mxu0 %v1433
      %v5242 = vpop.f32.mrb[0].mxu0
      %v5243 = vadd.f32 0.0, %v5242
      %v5244 = vpop.f32.mrb[0].mxu0
      %v5245 = vpop.f32.mrb[0].mxu0
      %v5246 = vadd.f32 0.0, %v5245
      %v5247 = vpop.f32.mrb[0].mxu0
      %5248 = vmatprep.mubr.bf16.mxu0 0
      %5249 = vmatmul.mubr.bf16.gmra.mrb[0].mxu0 %v1436
      %v5250 = vpop.f32.mrb[0].mxu0
      %v5251 = vadd.f32 0.0, %v5250
      %v5252 = vpop.f32.mrb[0].mxu0
      %v5253 = vpop.f32.mrb[0].mxu0
      %v5254 = vadd.f32 0.0, %v5253
      %v5255 = vpop.f32.mrb[0].mxu0
      %5256 = vmatprep.mubr.bf16.mxu0 0
      %5257 = vmatmul.mubr.bf16.gmra.mrb[0].mxu0 %v1439
      %v5258 = vpop.f32.mrb[0].mxu0
      %v5259 = vadd.f32 0.0, %v5258
      %v5260 = vpop.f32.mrb[0].mxu0
      %v5261 = vpop.f32.mrb[0].mxu0
      %v5262 = vadd.f32 0.0, %v5261
      %v5263 = vpop.f32.mrb[0].mxu0
      %5264 = vmatprep.mubr.bf16.mxu0 0
      %5265 = vmatmul.mubr.bf16.gmra.mrb[0].mxu0 %v1442
      %v5266 = vpop.f32.mrb[0].mxu0
      %v5267 = vadd.f32 0.0, %v5266
      %v5268 = vpop.f32.mrb[0].mxu0
      %v5269 = vpop.f32.mrb[0].mxu0
      %v5270 = vadd.f32 0.0, %v5269
      %v5271 = vpop.f32.mrb[0].mxu0
      %5272 = vmatprep.mubr.bf16.mxu0 0
      %5273 = vmatmul.mubr.bf16.gmra.mrb[0].mxu0 %v1445
      %v5274 = vpop.f32.mrb[0].mxu0
      %v5275 = vadd.f32 0.0, %v5274
      %v5276 = vpop.f32.mrb[0].mxu0
      %v5277 = vpop.f32.mrb[0].mxu0
      %v5278 = vadd.f32 0.0, %v5277
      %v5279 = vpop.f32.mrb[0].mxu0
      %5280 = vmatprep.mubr.bf16.mxu0 0
      %5281 = vmatmul.mubr.bf16.gmra.mrb[0].mxu0 %v1448
      %v5282 = vpop.f32.mrb[0].mxu0
      %v5283 = vadd.f32 0.0, %v5282
      %v5284 = vpop.f32.mrb[0].mxu0
      %v5285 = vpop.f32.mrb[0].mxu0
      %v5286 = vadd.f32 0.0, %v5285
      %v5287 = vpop.f32.mrb[0].mxu0
      %5288 = vmatprep.mubr.bf16.mxu0 0
      %5289 = vmatmul.mubr.bf16.gmra.mrb[0].mxu0 %v1451
      %v5290 = vpop.f32.mrb[0].mxu0
      %v5291 = vadd.f32 0.0, %v5290
      %v5292 = vpop.f32.mrb[0].mxu0
      %v5293 = vpop.f32.mrb[0].mxu0
      %v5294 = vadd.f32 0.0, %v5293
      %v5295 = vpop.f32.mrb[0].mxu0
      %5296 = vmatprep.mubr.bf16.mxu0 0
      %5297 = vmatmul.mubr.bf16.gmra.mrb[0].mxu0 %v1454
      %v5298 = vpop.f32.mrb[0].mxu0
      %v5299 = vadd.f32 0.0, %v5298
      %v5300 = vpop.f32.mrb[0].mxu0
      %v5301 = vpop.f32.mrb[0].mxu0
      %v5302 = vadd.f32 0.0, %v5301
      %v5303 = vpop.f32.mrb[0].mxu0
      %5304 = vmatprep.mubr.bf16.mxu0 0
      %5305 = vmatmul.mubr.bf16.gmra.mrb[0].mxu0 %v1457
      %v5306 = vpop.f32.mrb[0].mxu0
      %v5307 = vadd.f32 0.0, %v5306
      %v5308 = vpop.f32.mrb[0].mxu0
      %v5309 = vpop.f32.mrb[0].mxu0
      %v5310 = vadd.f32 0.0, %v5309
      %v5311 = vpop.f32.mrb[0].mxu0
      %5312 = vmatprep.mubr.bf16.mxu0 0
      %5313 = vmatmul.mubr.bf16.gmra.mrb[0].mxu0 %v1460
      %v5314 = vpop.f32.mrb[0].mxu0
      %v5315 = vadd.f32 0.0, %v5314
      %v5316 = vpop.f32.mrb[0].mxu0
      %v5317 = vpop.f32.mrb[0].mxu0
      %v5318 = vadd.f32 0.0, %v5317
      %v5319 = vpop.f32.mrb[0].mxu0
      %5320 = vmatprep.mubr.bf16.mxu0 0
      %5321 = vmatmul.mubr.bf16.gmra.mrb[0].mxu0 %v1463
      %v5322 = vpop.f32.mrb[0].mxu0
      %v5323 = vadd.f32 0.0, %v5322
      %v5324 = vpop.f32.mrb[0].mxu0
      %v5325 = vpop.f32.mrb[0].mxu0
      %v5326 = vadd.f32 0.0, %v5325
      %v5327 = vpop.f32.mrb[0].mxu0
      %5328 = vmatprep.mubr.bf16.mxu0 0
      %5329 = vmatmul.mubr.bf16.gmra.mrb[0].mxu0 %v1466
      %v5330 = vpop.f32.mrb[0].mxu0
      %v5331 = vadd.f32 0.0, %v5330
      %v5332 = vpop.f32.mrb[0].mxu0
      %v5333 = vpop.f32.mrb[0].mxu0
      %v5334 = vadd.f32 0.0, %v5333
      %v5335 = vpop.f32.mrb[0].mxu0
      %5336 = vmatprep.mubr.bf16.mxu0 0
      %5337 = vmatmul.mubr.bf16.gmra.mrb[0].mxu0 %v1469
      %v5338 = vpop.f32.mrb[0].mxu0
      %v5339 = vadd.f32 0.0, %v5338
      %v5340 = vpop.f32.mrb[0].mxu0
      %v5341 = vpop.f32.mrb[0].mxu0
      %v5342 = vadd.f32 0.0, %v5341
      %v5343 = vpop.f32.mrb[0].mxu0
      %5344 = vmatprep.mubr.bf16.mxu0 0
      %5345 = vmatmul.mubr.bf16.gmra.mrb[0].mxu0 %v1472
      %v5346 = vpop.f32.mrb[0].mxu0
      %v5347 = vadd.f32 0.0, %v5346
      %v5348 = vpop.f32.mrb[0].mxu0
      %v5349 = vpop.f32.mrb[0].mxu0
      %v5350 = vadd.f32 0.0, %v5349
      %v5351 = vpop.f32.mrb[0].mxu0
      %5352 = vmatprep.mubr.bf16.mxu0 0
      %5353 = vmatmul.mubr.bf16.gmra.mrb[0].mxu0 %v1475
      %v5354 = vpop.f32.mrb[0].mxu0
      %v5355 = vadd.f32 0.0, %v5354
      %v5356 = vpop.f32.mrb[0].mxu0
      %v5357 = vpop.f32.mrb[0].mxu0
      %v5358 = vadd.f32 0.0, %v5357
      %v5359 = vpop.f32.mrb[0].mxu0
      %5360 = vmatprep.mubr.bf16.mxu0 0
      %5361 = vmatmul.mubr.bf16.gmra.mrb[0].mxu0 %v1478
      %v5362 = vpop.f32.mrb[0].mxu0
      %v5363 = vadd.f32 0.0, %v5362
      %v5364 = vpop.f32.mrb[0].mxu0
      %v5365 = vpop.f32.mrb[0].mxu0
      %v5366 = vadd.f32 0.0, %v5365
      %v5367 = vpop.f32.mrb[0].mxu0
      %5368 = vmatprep.mubr.bf16.mxu0 0
      %5369 = vmatmul.mubr.bf16.gmra.mrb[0].mxu0 %v4832
      %v5370 = vpop.f32.mrb[0].mxu0
      %v5371 = vadd.f32 0.0, %v5370
      %v5372 = vpop.f32.mrb[0].mxu0
      %v5373 = vpop.f32.mrb[0].mxu0
      %v5374 = vadd.f32 0.0, %v5373
      %v5375 = vpop.f32.mrb[0].mxu0
      %5376 = vmatprep.mubr.bf16.mxu0 0
      %5377 = vmatmul.mubr.bf16.gmra.mrb[0].mxu0 %v4835
      %v5378 = vpop.f32.mrb[0].mxu0
      %v5379 = vadd.f32 0.0, %v5378
      %v5380 = vpop.f32.mrb[0].mxu0
      %v5381 = vpop.f32.mrb[0].mxu0
      %v5382 = vadd.f32 0.0, %v5381
      %v5383 = vpop.f32.mrb[0].mxu0
      %5384 = vdwg.mxu0
      %v5385 = vadd.f32 %v4681, %v4875
      %v5386 = vadd.f32 %v4682, %v4878
      %v5387 = vadd.f32 %v4683, %v4883
      %v5388 = vadd.f32 %v4684, %v4886
      %v5389 = vadd.f32 %v4685, %v4891
      %v5390 = vadd.f32 %v4686, %v4894
      %v5391 = vadd.f32 %v4687, %v4899
      %v5392 = vadd.f32 %v4688, %v4902
      %v5393 = vadd.f32 %v4689, %v4907
      %v5394 = vadd.f32 %v4690, %v4910
      %v5395 = vadd.f32 %v4691, %v4915
      %v5396 = vadd.f32 %v4692, %v4918
      %v5397 = vadd.f32 %v4693, %v4923
      %v5398 = vadd.f32 %v4694, %v4926
      %v5399 = vadd.f32 %v4695, %v4931
      %v5400 = vadd.f32 %v4696, %v4934
      %v5401 = vadd.f32 %v4697, %v4939
      %v5402 = vadd.f32 %v4698, %v4942
      %v5403 = vadd.f32 %v4699, %v4947
      %v5404 = vadd.f32 %v4700, %v4950
      %v5405 = vadd.f32 %v4701, %v4955
      %v5406 = vadd.f32 %v4702, %v4958
      %v5407 = vadd.f32 %v4703, %v4963
      %v5408 = vadd.f32 %v4704, %v4966
      %v5409 = vadd.f32 %v4705, %v4971
      %v5410 = vadd.f32 %v4706, %v4974
      %v5411 = vadd.f32 %v4707, %v4979
      %v5412 = vadd.f32 %v4708, %v4982
      %v5413 = vadd.f32 %v4709, %v4987
      %v5414 = vadd.f32 %v4710, %v4990
      %v5415 = vadd.f32 %v4711, %v4995
      %v5416 = vadd.f32 %v4712, %v4998
      %v5417 = vadd.f32 %v4713, %v5003
      %v5418 = vadd.f32 %v4714, %v5006
      %v5419 = vadd.f32 %v4715, %v5011
      %v5420 = vadd.f32 %v4716, %v5014
      %v5421 = vadd.f32 %v4717, %v5019
      %v5422 = vadd.f32 %v4718, %v5022
      %v5423 = vadd.f32 %v4719, %v5027
      %v5424 = vadd.f32 %v4720, %v5030
      %v5425 = vadd.f32 %v4721, %v5035
      %v5426 = vadd.f32 %v4722, %v5038
      %v5427 = vadd.f32 %v4723, %v5043
      %v5428 = vadd.f32 %v4724, %v5046
      %v5429 = vadd.f32 %v4725, %v5051
      %v5430 = vadd.f32 %v4726, %v5054
      %v5431 = vadd.f32 %v4727, %v5059
      %v5432 = vadd.f32 %v4728, %v5062
      %v5433 = vadd.f32 %v4729, %v5067
      %v5434 = vadd.f32 %v4730, %v5070
      %v5435 = vadd.f32 %v4731, %v5075
      %v5436 = vadd.f32 %v4732, %v5078
      %v5437 = vadd.f32 %v4733, %v5083
      %v5438 = vadd.f32 %v4734, %v5086
      %v5439 = vadd.f32 %v4735, %v5091
      %v5440 = vadd.f32 %v4736, %v5094
      %v5441 = vadd.f32 %v4737, %v5099
      %v5442 = vadd.f32 %v4738, %v5102
      %v5443 = vadd.f32 %v4739, %v5107
      %v5444 = vadd.f32 %v4740, %v5110
      %v5445 = vadd.f32 %v4741, %v5115
      %v5446 = vadd.f32 %v4742, %v5118
      %v5447 = vadd.f32 %v4743, %v5123
      %v5448 = vadd.f32 %v4744, %v5126
      %v5449 = vadd.f32 %v4745, %v5131
      %v5450 = vadd.f32 %v4746, %v5134
      %v5451 = vadd.f32 %v4747, %v5139
      %v5452 = vadd.f32 %v4748, %v5142
      %v5453 = vadd.f32 %v4749, %v5147
      %v5454 = vadd.f32 %v4750, %v5150
      %v5455 = vadd.f32 %v4751, %v5155
      %v5456 = vadd.f32 %v4752, %v5158
      %v5457 = vadd.f32 %v4753, %v5163
      %v5458 = vadd.f32 %v4754, %v5166
      %v5459 = vadd.f32 %v4755, %v5171
      %v5460 = vadd.f32 %v4756, %v5174
      %v5461 = vadd.f32 %v4757, %v5179
      %v5462 = vadd.f32 %v4758, %v5182
      %v5463 = vadd.f32 %v4759, %v5187
      %v5464 = vadd.f32 %v4760, %v5190
      %v5465 = vadd.f32 %v4761, %v5195
      %v5466 = vadd.f32 %v4762, %v5198
      %v5467 = vadd.f32 %v4763, %v5203
      %v5468 = vadd.f32 %v4764, %v5206
      %v5469 = vadd.f32 %v4765, %v5211
      %v5470 = vadd.f32 %v4766, %v5214
      %v5471 = vadd.f32 %v4767, %v5219
      %v5472 = vadd.f32 %v4768, %v5222
      %v5473 = vadd.f32 %v4769, %v5227
      %v5474 = vadd.f32 %v4770, %v5230
      %v5475 = vadd.f32 %v4771, %v5235
      %v5476 = vadd.f32 %v4772, %v5238
      %v5477 = vadd.f32 %v4773, %v5243
      %v5478 = vadd.f32 %v4774, %v5246
      %v5479 = vadd.f32 %v4775, %v5251
      %v5480 = vadd.f32 %v4776, %v5254
      %v5481 = vadd.f32 %v4777, %v5259
      %v5482 = vadd.f32 %v4778, %v5262
      %v5483 = vadd.f32 %v4779, %v5267
      %v5484 = vadd.f32 %v4780, %v5270
      %v5485 = vadd.f32 %v4781, %v5275
      %v5486 = vadd.f32 %v4782, %v5278
      %v5487 = vadd.f32 %v4783, %v5283
      %v5488 = vadd.f32 %v4784, %v5286
      %v5489 = vadd.f32 %v4785, %v5291
      %v5490 = vadd.f32 %v4786, %v5294
      %v5491 = vadd.f32 %v4787, %v5299
      %v5492 = vadd.f32 %v4788, %v5302
      %v5493 = vadd.f32 %v4789, %v5307
      %v5494 = vadd.f32 %v4790, %v5310
      %v5495 = vadd.f32 %v4791, %v5315
      %v5496 = vadd.f32 %v4792, %v5318
      %v5497 = vadd.f32 %v4793, %v5323
      %v5498 = vadd.f32 %v4794, %v5326
      %v5499 = vadd.f32 %v4795, %v5331
      %v5500 = vadd.f32 %v4796, %v5334
      %v5501 = vadd.f32 %v4797, %v5339
      %v5502 = vadd.f32 %v4798, %v5342
      %v5503 = vadd.f32 %v4799, %v5347
      %v5504 = vadd.f32 %v4800, %v5350
      %v5505 = vadd.f32 %v4801, %v5355
      %v5506 = vadd.f32 %v4802, %v5358
      %v5507 = vadd.f32 %v4803, %v5363
      %v5508 = vadd.f32 %v4804, %v5366
      %v5509 = vadd.f32 %v4805, %v5371
      %v5510 = vadd.f32 %v4806, %v5374
      %v5511 = vadd.f32 %v4807, %v5379
      %v5512 = vadd.f32 %v4808, %v5382
      %v5513 = vrot.slane %v569, 2
      %v5514 = vrot.slane %v570, 2
      %v5515 = vsel %vm2772, %v5513, %v5514
      %v5516 = vrot.slane %v571, 2
      %v5517 = vsel %vm2772, %v5514, %v5516
      %v5518 = vrot.slane %v572, 2
      %v5519 = vsel %vm2772, %v5516, %v5518
      %v5520 = vrot.slane %v573, 2
      %v5521 = vsel %vm2772, %v5518, %v5520
      %v5526 = vpack.c.bf16 %v5517, %v5515
      %v5527 = vpack.c.bf16 %v5521, %v5519
      %s5528 = scalar_lea.vmem %s1, 10
      %v5529 = vld [vmem:[%s5528] sm:$0x3]
      %v5531 = vsel %vm1287, %v5526, 0
      %v5534 = vsel %vm1287, %v5527, 0
      %v5537 = vand.u32 %v5529, %v1483
      %5539 = vmatprep.subr.bf16.mxu0 0
      %5540 = vmatpush1.bf16.msra.mxu0 %v5537
      %5541 = vmatprep.subr.bf16.mxu0 0
      %5542 = vmatpush1.bf16.msra.mxu0 0
      %5543 = vmatprep.subr.bf16.mxu0 0
      %5544 = vmatpush1.bf16.msra.mxu0 0
      %5545 = vmatprep.subr.bf16.mxu0 0
      %5546 = vmatpush1.bf16.msra.mxu0 0
      %5547 = vmatprep.subr.bf16.mxu0 0
      %5548 = vmatpush1.bf16.msra.mxu0 0
      %5549 = vmatprep.subr.bf16.mxu0 0
      %5550 = vmatpush1.bf16.msra.mxu0 0
      %5551 = vmatprep.subr.bf16.mxu0 0
      %5552 = vmatpush1.bf16.msra.mxu0 0
      %5553 = vmatprep.subr.bf16.mxu0 0
      %5554 = vmatpush1.bf16.msra.mxu0 0
      %5555 = vmatprep.subr.bf16.mxu0 0
      %5556 = vmatpush1.bf16.msra.mxu0 0
      %5557 = vmatprep.subr.bf16.mxu0 0
      %5558 = vmatpush1.bf16.msra.mxu0 0
      %5559 = vmatprep.subr.bf16.mxu0 0
      %5560 = vmatpush1.bf16.msra.mxu0 0
      %5561 = vmatprep.subr.bf16.mxu0 0
      %5562 = vmatpush1.bf16.msra.mxu0 0
      %5563 = vmatprep.subr.bf16.mxu0 0
      %5564 = vmatpush1.bf16.msra.mxu0 0
      %5565 = vmatprep.subr.bf16.mxu0 0
      %5566 = vmatpush1.bf16.msra.mxu0 0
      %5567 = vmatprep.subr.bf16.mxu0 0
      %5568 = vmatpush1.bf16.msra.mxu0 0
      %5569 = vmatprep.subr.bf16.mxu0 0
      %5570 = vmatpush1.bf16.msra.mxu0 0
      %5571 = vmatprep.mubr.bf16.mxu0 0
      %5572 = vmatmul.mubr.bf16.gmra.mrb[0].mxu0 %v3262
      %v5573 = vpop.f32.mrb[0].mxu0
      %v5574 = vadd.f32 0.0, %v5573
      %v5575 = vpop.f32.mrb[0].mxu0
      %v5576 = vpop.f32.mrb[0].mxu0
      %v5577 = vadd.f32 0.0, %v5576
      %v5578 = vpop.f32.mrb[0].mxu0
      %5579 = vmatprep.mubr.bf16.mxu0 0
      %5580 = vmatmul.mubr.bf16.gmra.mrb[0].mxu0 %v3265
      %v5581 = vpop.f32.mrb[0].mxu0
      %v5582 = vadd.f32 0.0, %v5581
      %v5583 = vpop.f32.mrb[0].mxu0
      %v5584 = vpop.f32.mrb[0].mxu0
      %v5585 = vadd.f32 0.0, %v5584
      %v5586 = vpop.f32.mrb[0].mxu0
      %5587 = vmatprep.mubr.bf16.mxu0 0
      %5588 = vmatmul.mubr.bf16.gmra.mrb[0].mxu0 %v3268
      %v5589 = vpop.f32.mrb[0].mxu0
      %v5590 = vadd.f32 0.0, %v5589
      %v5591 = vpop.f32.mrb[0].mxu0
      %v5592 = vpop.f32.mrb[0].mxu0
      %v5593 = vadd.f32 0.0, %v5592
      %v5594 = vpop.f32.mrb[0].mxu0
      %5595 = vmatprep.mubr.bf16.mxu0 0
      %5596 = vmatmul.mubr.bf16.gmra.mrb[0].mxu0 %v3271
      %v5597 = vpop.f32.mrb[0].mxu0
      %v5598 = vadd.f32 0.0, %v5597
      %v5599 = vpop.f32.mrb[0].mxu0
      %v5600 = vpop.f32.mrb[0].mxu0
      %v5601 = vadd.f32 0.0, %v5600
      %v5602 = vpop.f32.mrb[0].mxu0
      %5603 = vmatprep.mubr.bf16.mxu0 0
      %5604 = vmatmul.mubr.bf16.gmra.mrb[0].mxu0 %v3274
      %v5605 = vpop.f32.mrb[0].mxu0
      %v5606 = vadd.f32 0.0, %v5605
      %v5607 = vpop.f32.mrb[0].mxu0
      %v5608 = vpop.f32.mrb[0].mxu0
      %v5609 = vadd.f32 0.0, %v5608
      %v5610 = vpop.f32.mrb[0].mxu0
      %5611 = vmatprep.mubr.bf16.mxu0 0
      %5612 = vmatmul.mubr.bf16.gmra.mrb[0].mxu0 %v3277
      %v5613 = vpop.f32.mrb[0].mxu0
      %v5614 = vadd.f32 0.0, %v5613
      %v5615 = vpop.f32.mrb[0].mxu0
      %v5616 = vpop.f32.mrb[0].mxu0
      %v5617 = vadd.f32 0.0, %v5616
      %v5618 = vpop.f32.mrb[0].mxu0
      %5619 = vmatprep.mubr.bf16.mxu0 0
      %5620 = vmatmul.mubr.bf16.gmra.mrb[0].mxu0 %v3280
      %v5621 = vpop.f32.mrb[0].mxu0
      %v5622 = vadd.f32 0.0, %v5621
      %v5623 = vpop.f32.mrb[0].mxu0
      %v5624 = vpop.f32.mrb[0].mxu0
      %v5625 = vadd.f32 0.0, %v5624
      %v5626 = vpop.f32.mrb[0].mxu0
      %5627 = vmatprep.mubr.bf16.mxu0 0
      %5628 = vmatmul.mubr.bf16.gmra.mrb[0].mxu0 %v3283
      %v5629 = vpop.f32.mrb[0].mxu0
      %v5630 = vadd.f32 0.0, %v5629
      %v5631 = vpop.f32.mrb[0].mxu0
      %v5632 = vpop.f32.mrb[0].mxu0
      %v5633 = vadd.f32 0.0, %v5632
      %v5634 = vpop.f32.mrb[0].mxu0
      %5635 = vmatprep.mubr.bf16.mxu0 0
      %5636 = vmatmul.mubr.bf16.gmra.mrb[0].mxu0 %v3286
      %v5637 = vpop.f32.mrb[0].mxu0
      %v5638 = vadd.f32 0.0, %v5637
      %v5639 = vpop.f32.mrb[0].mxu0
      %v5640 = vpop.f32.mrb[0].mxu0
      %v5641 = vadd.f32 0.0, %v5640
      %v5642 = vpop.f32.mrb[0].mxu0
      %5643 = vmatprep.mubr.bf16.mxu0 0
      %5644 = vmatmul.mubr.bf16.gmra.mrb[0].mxu0 %v3289
      %v5645 = vpop.f32.mrb[0].mxu0
      %v5646 = vadd.f32 0.0, %v5645
      %v5647 = vpop.f32.mrb[0].mxu0
      %v5648 = vpop.f32.mrb[0].mxu0
      %v5649 = vadd.f32 0.0, %v5648
      %v5650 = vpop.f32.mrb[0].mxu0
      %5651 = vmatprep.mubr.bf16.mxu0 0
      %5652 = vmatmul.mubr.bf16.gmra.mrb[0].mxu0 %v3292
      %v5653 = vpop.f32.mrb[0].mxu0
      %v5654 = vadd.f32 0.0, %v5653
      %v5655 = vpop.f32.mrb[0].mxu0
      %v5656 = vpop.f32.mrb[0].mxu0
      %v5657 = vadd.f32 0.0, %v5656
      %v5658 = vpop.f32.mrb[0].mxu0
      %5659 = vmatprep.mubr.bf16.mxu0 0
      %5660 = vmatmul.mubr.bf16.gmra.mrb[0].mxu0 %v3295
      %v5661 = vpop.f32.mrb[0].mxu0
      %v5662 = vadd.f32 0.0, %v5661
      %v5663 = vpop.f32.mrb[0].mxu0
      %v5664 = vpop.f32.mrb[0].mxu0
      %v5665 = vadd.f32 0.0, %v5664
      %v5666 = vpop.f32.mrb[0].mxu0
      %5667 = vmatprep.mubr.bf16.mxu0 0
      %5668 = vmatmul.mubr.bf16.gmra.mrb[0].mxu0 %v3298
      %v5669 = vpop.f32.mrb[0].mxu0
      %v5670 = vadd.f32 0.0, %v5669
      %v5671 = vpop.f32.mrb[0].mxu0
      %v5672 = vpop.f32.mrb[0].mxu0
      %v5673 = vadd.f32 0.0, %v5672
      %v5674 = vpop.f32.mrb[0].mxu0
      %5675 = vmatprep.mubr.bf16.mxu0 0
      %5676 = vmatmul.mubr.bf16.gmra.mrb[0].mxu0 %v3301
      %v5677 = vpop.f32.mrb[0].mxu0
      %v5678 = vadd.f32 0.0, %v5677
      %v5679 = vpop.f32.mrb[0].mxu0
      %v5680 = vpop.f32.mrb[0].mxu0
      %v5681 = vadd.f32 0.0, %v5680
      %v5682 = vpop.f32.mrb[0].mxu0
      %5683 = vmatprep.mubr.bf16.mxu0 0
      %5684 = vmatmul.mubr.bf16.gmra.mrb[0].mxu0 %v3304
      %v5685 = vpop.f32.mrb[0].mxu0
      %v5686 = vadd.f32 0.0, %v5685
      %v5687 = vpop.f32.mrb[0].mxu0
      %v5688 = vpop.f32.mrb[0].mxu0
      %v5689 = vadd.f32 0.0, %v5688
      %v5690 = vpop.f32.mrb[0].mxu0
      %5691 = vmatprep.mubr.bf16.mxu0 0
      %5692 = vmatmul.mubr.bf16.gmra.mrb[0].mxu0 %v3307
      %v5693 = vpop.f32.mrb[0].mxu0
      %v5694 = vadd.f32 0.0, %v5693
      %v5695 = vpop.f32.mrb[0].mxu0
      %v5696 = vpop.f32.mrb[0].mxu0
      %v5697 = vadd.f32 0.0, %v5696
      %v5698 = vpop.f32.mrb[0].mxu0
      %5699 = vmatprep.mubr.bf16.mxu0 0
      %5700 = vmatmul.mubr.bf16.gmra.mrb[0].mxu0 %v3310
      %v5701 = vpop.f32.mrb[0].mxu0
      %v5702 = vadd.f32 0.0, %v5701
      %v5703 = vpop.f32.mrb[0].mxu0
      %v5704 = vpop.f32.mrb[0].mxu0
      %v5705 = vadd.f32 0.0, %v5704
      %v5706 = vpop.f32.mrb[0].mxu0
      %5707 = vmatprep.mubr.bf16.mxu0 0
      %5708 = vmatmul.mubr.bf16.gmra.mrb[0].mxu0 %v3313
      %v5709 = vpop.f32.mrb[0].mxu0
      %v5710 = vadd.f32 0.0, %v5709
      %v5711 = vpop.f32.mrb[0].mxu0
      %v5712 = vpop.f32.mrb[0].mxu0
      %v5713 = vadd.f32 0.0, %v5712
      %v5714 = vpop.f32.mrb[0].mxu0
      %5715 = vmatprep.mubr.bf16.mxu0 0
      %5716 = vmatmul.mubr.bf16.gmra.mrb[0].mxu0 %v3316
      %v5717 = vpop.f32.mrb[0].mxu0
      %v5718 = vadd.f32 0.0, %v5717
      %v5719 = vpop.f32.mrb[0].mxu0
      %v5720 = vpop.f32.mrb[0].mxu0
      %v5721 = vadd.f32 0.0, %v5720
      %v5722 = vpop.f32.mrb[0].mxu0
      %5723 = vmatprep.mubr.bf16.mxu0 0
      %5724 = vmatmul.mubr.bf16.gmra.mrb[0].mxu0 %v3319
      %v5725 = vpop.f32.mrb[0].mxu0
      %v5726 = vadd.f32 0.0, %v5725
      %v5727 = vpop.f32.mrb[0].mxu0
      %v5728 = vpop.f32.mrb[0].mxu0
      %v5729 = vadd.f32 0.0, %v5728
      %v5730 = vpop.f32.mrb[0].mxu0
      %5731 = vmatprep.mubr.bf16.mxu0 0
      %5732 = vmatmul.mubr.bf16.gmra.mrb[0].mxu0 %v3322
      %v5733 = vpop.f32.mrb[0].mxu0
      %v5734 = vadd.f32 0.0, %v5733
      %v5735 = vpop.f32.mrb[0].mxu0
      %v5736 = vpop.f32.mrb[0].mxu0
      %v5737 = vadd.f32 0.0, %v5736
      %v5738 = vpop.f32.mrb[0].mxu0
      %5739 = vmatprep.mubr.bf16.mxu0 0
      %5740 = vmatmul.mubr.bf16.gmra.mrb[0].mxu0 %v3325
      %v5741 = vpop.f32.mrb[0].mxu0
      %v5742 = vadd.f32 0.0, %v5741
      %v5743 = vpop.f32.mrb[0].mxu0
      %v5744 = vpop.f32.mrb[0].mxu0
      %v5745 = vadd.f32 0.0, %v5744
      %v5746 = vpop.f32.mrb[0].mxu0
      %5747 = vmatprep.mubr.bf16.mxu0 0
      %5748 = vmatmul.mubr.bf16.gmra.mrb[0].mxu0 %v3328
      %v5749 = vpop.f32.mrb[0].mxu0
      %v5750 = vadd.f32 0.0, %v5749
      %v5751 = vpop.f32.mrb[0].mxu0
      %v5752 = vpop.f32.mrb[0].mxu0
      %v5753 = vadd.f32 0.0, %v5752
      %v5754 = vpop.f32.mrb[0].mxu0
      %5755 = vmatprep.mubr.bf16.mxu0 0
      %5756 = vmatmul.mubr.bf16.gmra.mrb[0].mxu0 %v3331
      %v5757 = vpop.f32.mrb[0].mxu0
      %v5758 = vadd.f32 0.0, %v5757
      %v5759 = vpop.f32.mrb[0].mxu0
      %v5760 = vpop.f32.mrb[0].mxu0
      %v5761 = vadd.f32 0.0, %v5760
      %v5762 = vpop.f32.mrb[0].mxu0
      %5763 = vmatprep.mubr.bf16.mxu0 0
      %5764 = vmatmul.mubr.bf16.gmra.mrb[0].mxu0 %v3334
      %v5765 = vpop.f32.mrb[0].mxu0
      %v5766 = vadd.f32 0.0, %v5765
      %v5767 = vpop.f32.mrb[0].mxu0
      %v5768 = vpop.f32.mrb[0].mxu0
      %v5769 = vadd.f32 0.0, %v5768
      %v5770 = vpop.f32.mrb[0].mxu0
      %5771 = vmatprep.mubr.bf16.mxu0 0
      %5772 = vmatmul.mubr.bf16.gmra.mrb[0].mxu0 %v3337
      %v5773 = vpop.f32.mrb[0].mxu0
      %v5774 = vadd.f32 0.0, %v5773
      %v5775 = vpop.f32.mrb[0].mxu0
      %v5776 = vpop.f32.mrb[0].mxu0
      %v5777 = vadd.f32 0.0, %v5776
      %v5778 = vpop.f32.mrb[0].mxu0
      %5779 = vmatprep.mubr.bf16.mxu0 0
      %5780 = vmatmul.mubr.bf16.gmra.mrb[0].mxu0 %v3340
      %v5781 = vpop.f32.mrb[0].mxu0
      %v5782 = vadd.f32 0.0, %v5781
      %v5783 = vpop.f32.mrb[0].mxu0
      %v5784 = vpop.f32.mrb[0].mxu0
      %v5785 = vadd.f32 0.0, %v5784
      %v5786 = vpop.f32.mrb[0].mxu0
      %5787 = vmatprep.mubr.bf16.mxu0 0
      %5788 = vmatmul.mubr.bf16.gmra.mrb[0].mxu0 %v3343
      %v5789 = vpop.f32.mrb[0].mxu0
      %v5790 = vadd.f32 0.0, %v5789
      %v5791 = vpop.f32.mrb[0].mxu0
      %v5792 = vpop.f32.mrb[0].mxu0
      %v5793 = vadd.f32 0.0, %v5792
      %v5794 = vpop.f32.mrb[0].mxu0
      %5795 = vmatprep.mubr.bf16.mxu0 0
      %5796 = vmatmul.mubr.bf16.gmra.mrb[0].mxu0 %v3346
      %v5797 = vpop.f32.mrb[0].mxu0
      %v5798 = vadd.f32 0.0, %v5797
      %v5799 = vpop.f32.mrb[0].mxu0
      %v5800 = vpop.f32.mrb[0].mxu0
      %v5801 = vadd.f32 0.0, %v5800
      %v5802 = vpop.f32.mrb[0].mxu0
      %5803 = vmatprep.mubr.bf16.mxu0 0
      %5804 = vmatmul.mubr.bf16.gmra.mrb[0].mxu0 %v3349
      %v5805 = vpop.f32.mrb[0].mxu0
      %v5806 = vadd.f32 0.0, %v5805
      %v5807 = vpop.f32.mrb[0].mxu0
      %v5808 = vpop.f32.mrb[0].mxu0
      %v5809 = vadd.f32 0.0, %v5808
      %v5810 = vpop.f32.mrb[0].mxu0
      %5811 = vmatprep.mubr.bf16.mxu0 0
      %5812 = vmatmul.mubr.bf16.gmra.mrb[0].mxu0 %v3352
      %v5813 = vpop.f32.mrb[0].mxu0
      %v5814 = vadd.f32 0.0, %v5813
      %v5815 = vpop.f32.mrb[0].mxu0
      %v5816 = vpop.f32.mrb[0].mxu0
      %v5817 = vadd.f32 0.0, %v5816
      %v5818 = vpop.f32.mrb[0].mxu0
      %5819 = vmatprep.mubr.bf16.mxu0 0
      %5820 = vmatmul.mubr.bf16.gmra.mrb[0].mxu0 %v3355
      %v5821 = vpop.f32.mrb[0].mxu0
      %v5822 = vadd.f32 0.0, %v5821
      %v5823 = vpop.f32.mrb[0].mxu0
      %v5824 = vpop.f32.mrb[0].mxu0
      %v5825 = vadd.f32 0.0, %v5824
      %v5826 = vpop.f32.mrb[0].mxu0
      %5827 = vmatprep.mubr.bf16.mxu0 0
      %5828 = vmatmul.mubr.bf16.gmra.mrb[0].mxu0 %v3358
      %v5829 = vpop.f32.mrb[0].mxu0
      %v5830 = vadd.f32 0.0, %v5829
      %v5831 = vpop.f32.mrb[0].mxu0
      %v5832 = vpop.f32.mrb[0].mxu0
      %v5833 = vadd.f32 0.0, %v5832
      %v5834 = vpop.f32.mrb[0].mxu0
      %5835 = vmatprep.mubr.bf16.mxu0 0
      %5836 = vmatmul.mubr.bf16.gmra.mrb[0].mxu0 %v3361
      %v5837 = vpop.f32.mrb[0].mxu0
      %v5838 = vadd.f32 0.0, %v5837
      %v5839 = vpop.f32.mrb[0].mxu0
      %v5840 = vpop.f32.mrb[0].mxu0
      %v5841 = vadd.f32 0.0, %v5840
      %v5842 = vpop.f32.mrb[0].mxu0
      %5843 = vmatprep.mubr.bf16.mxu0 0
      %5844 = vmatmul.mubr.bf16.gmra.mrb[0].mxu0 %v3364
      %v5845 = vpop.f32.mrb[0].mxu0
      %v5846 = vadd.f32 0.0, %v5845
      %v5847 = vpop.f32.mrb[0].mxu0
      %v5848 = vpop.f32.mrb[0].mxu0
      %v5849 = vadd.f32 0.0, %v5848
      %v5850 = vpop.f32.mrb[0].mxu0
      %5851 = vmatprep.mubr.bf16.mxu0 0
      %5852 = vmatmul.mubr.bf16.gmra.mrb[0].mxu0 %v3367
      %v5853 = vpop.f32.mrb[0].mxu0
      %v5854 = vadd.f32 0.0, %v5853
      %v5855 = vpop.f32.mrb[0].mxu0
      %v5856 = vpop.f32.mrb[0].mxu0
      %v5857 = vadd.f32 0.0, %v5856
      %v5858 = vpop.f32.mrb[0].mxu0
      %5859 = vmatprep.mubr.bf16.mxu0 0
      %5860 = vmatmul.mubr.bf16.gmra.mrb[0].mxu0 %v3370
      %v5861 = vpop.f32.mrb[0].mxu0
      %v5862 = vadd.f32 0.0, %v5861
      %v5863 = vpop.f32.mrb[0].mxu0
      %v5864 = vpop.f32.mrb[0].mxu0
      %v5865 = vadd.f32 0.0, %v5864
      %v5866 = vpop.f32.mrb[0].mxu0
      %5867 = vmatprep.mubr.bf16.mxu0 0
      %5868 = vmatmul.mubr.bf16.gmra.mrb[0].mxu0 %v3373
      %v5869 = vpop.f32.mrb[0].mxu0
      %v5870 = vadd.f32 0.0, %v5869
      %v5871 = vpop.f32.mrb[0].mxu0
      %v5872 = vpop.f32.mrb[0].mxu0
      %v5873 = vadd.f32 0.0, %v5872
      %v5874 = vpop.f32.mrb[0].mxu0
      %5875 = vmatprep.mubr.bf16.mxu0 0
      %5876 = vmatmul.mubr.bf16.gmra.mrb[0].mxu0 %v3376
      %v5877 = vpop.f32.mrb[0].mxu0
      %v5878 = vadd.f32 0.0, %v5877
      %v5879 = vpop.f32.mrb[0].mxu0
      %v5880 = vpop.f32.mrb[0].mxu0
      %v5881 = vadd.f32 0.0, %v5880
      %v5882 = vpop.f32.mrb[0].mxu0
      %5883 = vmatprep.mubr.bf16.mxu0 0
      %5884 = vmatmul.mubr.bf16.gmra.mrb[0].mxu0 %v3379
      %v5885 = vpop.f32.mrb[0].mxu0
      %v5886 = vadd.f32 0.0, %v5885
      %v5887 = vpop.f32.mrb[0].mxu0
      %v5888 = vpop.f32.mrb[0].mxu0
      %v5889 = vadd.f32 0.0, %v5888
      %v5890 = vpop.f32.mrb[0].mxu0
      %5891 = vmatprep.mubr.bf16.mxu0 0
      %5892 = vmatmul.mubr.bf16.gmra.mrb[0].mxu0 %v3382
      %v5893 = vpop.f32.mrb[0].mxu0
      %v5894 = vadd.f32 0.0, %v5893
      %v5895 = vpop.f32.mrb[0].mxu0
      %v5896 = vpop.f32.mrb[0].mxu0
      %v5897 = vadd.f32 0.0, %v5896
      %v5898 = vpop.f32.mrb[0].mxu0
      %5899 = vmatprep.mubr.bf16.mxu0 0
      %5900 = vmatmul.mubr.bf16.gmra.mrb[0].mxu0 %v3385
      %v5901 = vpop.f32.mrb[0].mxu0
      %v5902 = vadd.f32 0.0, %v5901
      %v5903 = vpop.f32.mrb[0].mxu0
      %v5904 = vpop.f32.mrb[0].mxu0
      %v5905 = vadd.f32 0.0, %v5904
      %v5906 = vpop.f32.mrb[0].mxu0
      %5907 = vmatprep.mubr.bf16.mxu0 0
      %5908 = vmatmul.mubr.bf16.gmra.mrb[0].mxu0 %v3388
      %v5909 = vpop.f32.mrb[0].mxu0
      %v5910 = vadd.f32 0.0, %v5909
      %v5911 = vpop.f32.mrb[0].mxu0
      %v5912 = vpop.f32.mrb[0].mxu0
      %v5913 = vadd.f32 0.0, %v5912
      %v5914 = vpop.f32.mrb[0].mxu0
      %5915 = vmatprep.mubr.bf16.mxu0 0
      %5916 = vmatmul.mubr.bf16.gmra.mrb[0].mxu0 %v3391
      %v5917 = vpop.f32.mrb[0].mxu0
      %v5918 = vadd.f32 0.0, %v5917
      %v5919 = vpop.f32.mrb[0].mxu0
      %v5920 = vpop.f32.mrb[0].mxu0
      %v5921 = vadd.f32 0.0, %v5920
      %v5922 = vpop.f32.mrb[0].mxu0
      %5923 = vmatprep.mubr.bf16.mxu0 0
      %5924 = vmatmul.mubr.bf16.gmra.mrb[0].mxu0 %v3394
      %v5925 = vpop.f32.mrb[0].mxu0
      %v5926 = vadd.f32 0.0, %v5925
      %v5927 = vpop.f32.mrb[0].mxu0
      %v5928 = vpop.f32.mrb[0].mxu0
      %v5929 = vadd.f32 0.0, %v5928
      %v5930 = vpop.f32.mrb[0].mxu0
      %5931 = vmatprep.mubr.bf16.mxu0 0
      %5932 = vmatmul.mubr.bf16.gmra.mrb[0].mxu0 %v3397
      %v5933 = vpop.f32.mrb[0].mxu0
      %v5934 = vadd.f32 0.0, %v5933
      %v5935 = vpop.f32.mrb[0].mxu0
      %v5936 = vpop.f32.mrb[0].mxu0
      %v5937 = vadd.f32 0.0, %v5936
      %v5938 = vpop.f32.mrb[0].mxu0
      %5939 = vmatprep.mubr.bf16.mxu0 0
      %5940 = vmatmul.mubr.bf16.gmra.mrb[0].mxu0 %v3400
      %v5941 = vpop.f32.mrb[0].mxu0
      %v5942 = vadd.f32 0.0, %v5941
      %v5943 = vpop.f32.mrb[0].mxu0
      %v5944 = vpop.f32.mrb[0].mxu0
      %v5945 = vadd.f32 0.0, %v5944
      %v5946 = vpop.f32.mrb[0].mxu0
      %5947 = vmatprep.mubr.bf16.mxu0 0
      %5948 = vmatmul.mubr.bf16.gmra.mrb[0].mxu0 %v3403
      %v5949 = vpop.f32.mrb[0].mxu0
      %v5950 = vadd.f32 0.0, %v5949
      %v5951 = vpop.f32.mrb[0].mxu0
      %v5952 = vpop.f32.mrb[0].mxu0
      %v5953 = vadd.f32 0.0, %v5952
      %v5954 = vpop.f32.mrb[0].mxu0
      %5955 = vmatprep.mubr.bf16.mxu0 0
      %5956 = vmatmul.mubr.bf16.gmra.mrb[0].mxu0 %v3406
      %v5957 = vpop.f32.mrb[0].mxu0
      %v5958 = vadd.f32 0.0, %v5957
      %v5959 = vpop.f32.mrb[0].mxu0
      %v5960 = vpop.f32.mrb[0].mxu0
      %v5961 = vadd.f32 0.0, %v5960
      %v5962 = vpop.f32.mrb[0].mxu0
      %5963 = vmatprep.mubr.bf16.mxu0 0
      %5964 = vmatmul.mubr.bf16.gmra.mrb[0].mxu0 %v3409
      %v5965 = vpop.f32.mrb[0].mxu0
      %v5966 = vadd.f32 0.0, %v5965
      %v5967 = vpop.f32.mrb[0].mxu0
      %v5968 = vpop.f32.mrb[0].mxu0
      %v5969 = vadd.f32 0.0, %v5968
      %v5970 = vpop.f32.mrb[0].mxu0
      %5971 = vmatprep.mubr.bf16.mxu0 0
      %5972 = vmatmul.mubr.bf16.gmra.mrb[0].mxu0 %v3412
      %v5973 = vpop.f32.mrb[0].mxu0
      %v5974 = vadd.f32 0.0, %v5973
      %v5975 = vpop.f32.mrb[0].mxu0
      %v5976 = vpop.f32.mrb[0].mxu0
      %v5977 = vadd.f32 0.0, %v5976
      %v5978 = vpop.f32.mrb[0].mxu0
      %5979 = vmatprep.mubr.bf16.mxu0 0
      %5980 = vmatmul.mubr.bf16.gmra.mrb[0].mxu0 %v3415
      %v5981 = vpop.f32.mrb[0].mxu0
      %v5982 = vadd.f32 0.0, %v5981
      %v5983 = vpop.f32.mrb[0].mxu0
      %v5984 = vpop.f32.mrb[0].mxu0
      %v5985 = vadd.f32 0.0, %v5984
      %v5986 = vpop.f32.mrb[0].mxu0
      %5987 = vmatprep.mubr.bf16.mxu0 0
      %5988 = vmatmul.mubr.bf16.gmra.mrb[0].mxu0 %v3418
      %v5989 = vpop.f32.mrb[0].mxu0
      %v5990 = vadd.f32 0.0, %v5989
      %v5991 = vpop.f32.mrb[0].mxu0
      %v5992 = vpop.f32.mrb[0].mxu0
      %v5993 = vadd.f32 0.0, %v5992
      %v5994 = vpop.f32.mrb[0].mxu0
      %5995 = vmatprep.mubr.bf16.mxu0 0
      %5996 = vmatmul.mubr.bf16.gmra.mrb[0].mxu0 %v3421
      %v5997 = vpop.f32.mrb[0].mxu0
      %v5998 = vadd.f32 0.0, %v5997
      %v5999 = vpop.f32.mrb[0].mxu0
      %v6000 = vpop.f32.mrb[0].mxu0
      %v6001 = vadd.f32 0.0, %v6000
      %v6002 = vpop.f32.mrb[0].mxu0
      %6003 = vmatprep.mubr.bf16.mxu0 0
      %6004 = vmatmul.mubr.bf16.gmra.mrb[0].mxu0 %v3424
      %v6005 = vpop.f32.mrb[0].mxu0
      %v6006 = vadd.f32 0.0, %v6005
      %v6007 = vpop.f32.mrb[0].mxu0
      %v6008 = vpop.f32.mrb[0].mxu0
      %v6009 = vadd.f32 0.0, %v6008
      %v6010 = vpop.f32.mrb[0].mxu0
      %6011 = vmatprep.mubr.bf16.mxu0 0
      %6012 = vmatmul.mubr.bf16.gmra.mrb[0].mxu0 %v3427
      %v6013 = vpop.f32.mrb[0].mxu0
      %v6014 = vadd.f32 0.0, %v6013
      %v6015 = vpop.f32.mrb[0].mxu0
      %v6016 = vpop.f32.mrb[0].mxu0
      %v6017 = vadd.f32 0.0, %v6016
      %v6018 = vpop.f32.mrb[0].mxu0
      %6019 = vmatprep.mubr.bf16.mxu0 0
      %6020 = vmatmul.mubr.bf16.gmra.mrb[0].mxu0 %v3430
      %v6021 = vpop.f32.mrb[0].mxu0
      %v6022 = vadd.f32 0.0, %v6021
      %v6023 = vpop.f32.mrb[0].mxu0
      %v6024 = vpop.f32.mrb[0].mxu0
      %v6025 = vadd.f32 0.0, %v6024
      %v6026 = vpop.f32.mrb[0].mxu0
      %6027 = vmatprep.mubr.bf16.mxu0 0
      %6028 = vmatmul.mubr.bf16.gmra.mrb[0].mxu0 %v3433
      %v6029 = vpop.f32.mrb[0].mxu0
      %v6030 = vadd.f32 0.0, %v6029
      %v6031 = vpop.f32.mrb[0].mxu0
      %v6032 = vpop.f32.mrb[0].mxu0
      %v6033 = vadd.f32 0.0, %v6032
      %v6034 = vpop.f32.mrb[0].mxu0
      %6035 = vmatprep.mubr.bf16.mxu0 0
      %6036 = vmatmul.mubr.bf16.gmra.mrb[0].mxu0 %v3436
      %v6037 = vpop.f32.mrb[0].mxu0
      %v6038 = vadd.f32 0.0, %v6037
      %v6039 = vpop.f32.mrb[0].mxu0
      %v6040 = vpop.f32.mrb[0].mxu0
      %v6041 = vadd.f32 0.0, %v6040
      %v6042 = vpop.f32.mrb[0].mxu0
      %6043 = vmatprep.mubr.bf16.mxu0 0
      %6044 = vmatmul.mubr.bf16.gmra.mrb[0].mxu0 %v3439
      %v6045 = vpop.f32.mrb[0].mxu0
      %v6046 = vadd.f32 0.0, %v6045
      %v6047 = vpop.f32.mrb[0].mxu0
      %v6048 = vpop.f32.mrb[0].mxu0
      %v6049 = vadd.f32 0.0, %v6048
      %v6050 = vpop.f32.mrb[0].mxu0
      %6051 = vmatprep.mubr.bf16.mxu0 0
      %6052 = vmatmul.mubr.bf16.gmra.mrb[0].mxu0 %v3442
      %v6053 = vpop.f32.mrb[0].mxu0
      %v6054 = vadd.f32 0.0, %v6053
      %v6055 = vpop.f32.mrb[0].mxu0
      %v6056 = vpop.f32.mrb[0].mxu0
      %v6057 = vadd.f32 0.0, %v6056
      %v6058 = vpop.f32.mrb[0].mxu0
      %6059 = vmatprep.mubr.bf16.mxu0 0
      %6060 = vmatmul.mubr.bf16.gmra.mrb[0].mxu0 %v3445
      %v6061 = vpop.f32.mrb[0].mxu0
      %v6062 = vadd.f32 0.0, %v6061
      %v6063 = vpop.f32.mrb[0].mxu0
      %v6064 = vpop.f32.mrb[0].mxu0
      %v6065 = vadd.f32 0.0, %v6064
      %v6066 = vpop.f32.mrb[0].mxu0
      %6067 = vmatprep.mubr.bf16.mxu0 0
      %6068 = vmatmul.mubr.bf16.gmra.mrb[0].mxu0 %v5531
      %v6069 = vpop.f32.mrb[0].mxu0
      %v6070 = vadd.f32 0.0, %v6069
      %v6071 = vpop.f32.mrb[0].mxu0
      %v6072 = vpop.f32.mrb[0].mxu0
      %v6073 = vadd.f32 0.0, %v6072
      %v6074 = vpop.f32.mrb[0].mxu0
      %6075 = vmatprep.mubr.bf16.mxu0 0
      %6076 = vmatmul.mubr.bf16.gmra.mrb[0].mxu0 %v5534
      %v6077 = vpop.f32.mrb[0].mxu0
      %v6078 = vadd.f32 0.0, %v6077
      %v6079 = vpop.f32.mrb[0].mxu0
      %v6080 = vpop.f32.mrb[0].mxu0
      %v6081 = vadd.f32 0.0, %v6080
      %v6082 = vpop.f32.mrb[0].mxu0
      %6083 = vdwg.mxu0
      %v6084 = vadd.f32 %v5385, %v5574
      %v6085 = vadd.f32 %v5386, %v5577
      %v6086 = vadd.f32 %v5387, %v5582
      %v6087 = vadd.f32 %v5388, %v5585
      %v6088 = vadd.f32 %v5389, %v5590
      %v6089 = vadd.f32 %v5390, %v5593
      %v6090 = vadd.f32 %v5391, %v5598
      %v6091 = vadd.f32 %v5392, %v5601
      %v6092 = vadd.f32 %v5393, %v5606
      %v6093 = vadd.f32 %v5394, %v5609
      %v6094 = vadd.f32 %v5395, %v5614
      %v6095 = vadd.f32 %v5396, %v5617
      %v6096 = vadd.f32 %v5397, %v5622
      %v6097 = vadd.f32 %v5398, %v5625
      %v6098 = vadd.f32 %v5399, %v5630
      %v6099 = vadd.f32 %v5400, %v5633
      %v6100 = vadd.f32 %v5401, %v5638
      %v6101 = vadd.f32 %v5402, %v5641
      %v6102 = vadd.f32 %v5403, %v5646
      %v6103 = vadd.f32 %v5404, %v5649
      %v6104 = vadd.f32 %v5405, %v5654
      %v6105 = vadd.f32 %v5406, %v5657
      %v6106 = vadd.f32 %v5407, %v5662
      %v6107 = vadd.f32 %v5408, %v5665
      %v6108 = vadd.f32 %v5409, %v5670
      %v6109 = vadd.f32 %v5410, %v5673
      %v6110 = vadd.f32 %v5411, %v5678
      %v6111 = vadd.f32 %v5412, %v5681
      %v6112 = vadd.f32 %v5413, %v5686
      %v6113 = vadd.f32 %v5414, %v5689
      %v6114 = vadd.f32 %v5415, %v5694
      %v6115 = vadd.f32 %v5416, %v5697
      %v6116 = vadd.f32 %v5417, %v5702
      %v6117 = vadd.f32 %v5418, %v5705
      %v6118 = vadd.f32 %v5419, %v5710
      %v6119 = vadd.f32 %v5420, %v5713
      %v6120 = vadd.f32 %v5421, %v5718
      %v6121 = vadd.f32 %v5422, %v5721
      %v6122 = vadd.f32 %v5423, %v5726
      %v6123 = vadd.f32 %v5424, %v5729
      %v6124 = vadd.f32 %v5425, %v5734
      %v6125 = vadd.f32 %v5426, %v5737
      %v6126 = vadd.f32 %v5427, %v5742
      %v6127 = vadd.f32 %v5428, %v5745
      %v6128 = vadd.f32 %v5429, %v5750
      %v6129 = vadd.f32 %v5430, %v5753
      %v6130 = vadd.f32 %v5431, %v5758
      %v6131 = vadd.f32 %v5432, %v5761
      %v6132 = vadd.f32 %v5433, %v5766
      %v6133 = vadd.f32 %v5434, %v5769
      %v6134 = vadd.f32 %v5435, %v5774
      %v6135 = vadd.f32 %v5436, %v5777
      %v6136 = vadd.f32 %v5437, %v5782
      %v6137 = vadd.f32 %v5438, %v5785
      %v6138 = vadd.f32 %v5439, %v5790
      %v6139 = vadd.f32 %v5440, %v5793
      %v6140 = vadd.f32 %v5441, %v5798
      %v6141 = vadd.f32 %v5442, %v5801
      %v6142 = vadd.f32 %v5443, %v5806
      %v6143 = vadd.f32 %v5444, %v5809
      %v6144 = vadd.f32 %v5445, %v5814
      %v6145 = vadd.f32 %v5446, %v5817
      %v6146 = vadd.f32 %v5447, %v5822
      %v6147 = vadd.f32 %v5448, %v5825
      %v6148 = vadd.f32 %v5449, %v5830
      %v6149 = vadd.f32 %v5450, %v5833
      %v6150 = vadd.f32 %v5451, %v5838
      %v6151 = vadd.f32 %v5452, %v5841
      %v6152 = vadd.f32 %v5453, %v5846
      %v6153 = vadd.f32 %v5454, %v5849
      %v6154 = vadd.f32 %v5455, %v5854
      %v6155 = vadd.f32 %v5456, %v5857
      %v6156 = vadd.f32 %v5457, %v5862
      %v6157 = vadd.f32 %v5458, %v5865
      %v6158 = vadd.f32 %v5459, %v5870
      %v6159 = vadd.f32 %v5460, %v5873
      %v6160 = vadd.f32 %v5461, %v5878
      %v6161 = vadd.f32 %v5462, %v5881
      %v6162 = vadd.f32 %v5463, %v5886
      %v6163 = vadd.f32 %v5464, %v5889
      %v6164 = vadd.f32 %v5465, %v5894
      %v6165 = vadd.f32 %v5466, %v5897
      %v6166 = vadd.f32 %v5467, %v5902
      %v6167 = vadd.f32 %v5468, %v5905
      %v6168 = vadd.f32 %v5469, %v5910
      %v6169 = vadd.f32 %v5470, %v5913
      %v6170 = vadd.f32 %v5471, %v5918
      %v6171 = vadd.f32 %v5472, %v5921
      %v6172 = vadd.f32 %v5473, %v5926
      %v6173 = vadd.f32 %v5474, %v5929
      %v6174 = vadd.f32 %v5475, %v5934
      %v6175 = vadd.f32 %v5476, %v5937
      %v6176 = vadd.f32 %v5477, %v5942
      %v6177 = vadd.f32 %v5478, %v5945
      %v6178 = vadd.f32 %v5479, %v5950
      %v6179 = vadd.f32 %v5480, %v5953
      %v6180 = vadd.f32 %v5481, %v5958
      %v6181 = vadd.f32 %v5482, %v5961
      %v6182 = vadd.f32 %v5483, %v5966
      %v6183 = vadd.f32 %v5484, %v5969
      %v6184 = vadd.f32 %v5485, %v5974
      %v6185 = vadd.f32 %v5486, %v5977
      %v6186 = vadd.f32 %v5487, %v5982
      %v6187 = vadd.f32 %v5488, %v5985
      %v6188 = vadd.f32 %v5489, %v5990
      %v6189 = vadd.f32 %v5490, %v5993
      %v6190 = vadd.f32 %v5491, %v5998
      %v6191 = vadd.f32 %v5492, %v6001
      %v6192 = vadd.f32 %v5493, %v6006
      %v6193 = vadd.f32 %v5494, %v6009
      %v6194 = vadd.f32 %v5495, %v6014
      %v6195 = vadd.f32 %v5496, %v6017
      %v6196 = vadd.f32 %v5497, %v6022
      %v6197 = vadd.f32 %v5498, %v6025
      %v6198 = vadd.f32 %v5499, %v6030
      %v6199 = vadd.f32 %v5500, %v6033
      %v6200 = vadd.f32 %v5501, %v6038
      %v6201 = vadd.f32 %v5502, %v6041
      %v6202 = vadd.f32 %v5503, %v6046
      %v6203 = vadd.f32 %v5504, %v6049
      %v6204 = vadd.f32 %v5505, %v6054
      %v6205 = vadd.f32 %v5506, %v6057
      %v6206 = vadd.f32 %v5507, %v6062
      %v6207 = vadd.f32 %v5508, %v6065
      %v6208 = vadd.f32 %v5509, %v6070
      %v6209 = vadd.f32 %v5510, %v6073
      %v6210 = vadd.f32 %v5511, %v6078
      %v6211 = vadd.f32 %v5512, %v6081
      %v6212 = vpack.c.bf16 %v575, %v574
      %v6213 = vpack.c.bf16 %v577, %v576
      %s6214 = scalar_lea.vmem %s1, 12
      %v6215 = vld [vmem:[%s6214] sm:$0x3]
      %v6217 = vsel %vm1287, %v6212, 0
      %v6220 = vsel %vm1287, %v6213, 0
      %v6223 = vand.u32 %v6215, %v1483
      %6225 = vmatprep.subr.bf16.mxu0 0
      %6226 = vmatpush1.bf16.msra.mxu0 %v6223
      %6227 = vmatprep.subr.bf16.mxu0 0
      %6228 = vmatpush1.bf16.msra.mxu0 0
      %6229 = vmatprep.subr.bf16.mxu0 0
      %6230 = vmatpush1.bf16.msra.mxu0 0
      %6231 = vmatprep.subr.bf16.mxu0 0
      %6232 = vmatpush1.bf16.msra.mxu0 0
      %6233 = vmatprep.subr.bf16.mxu0 0
      %6234 = vmatpush1.bf16.msra.mxu0 0
      %6235 = vmatprep.subr.bf16.mxu0 0
      %6236 = vmatpush1.bf16.msra.mxu0 0
      %6237 = vmatprep.subr.bf16.mxu0 0
      %6238 = vmatpush1.bf16.msra.mxu0 0
      %6239 = vmatprep.subr.bf16.mxu0 0
      %6240 = vmatpush1.bf16.msra.mxu0 0
      %6241 = vmatprep.subr.bf16.mxu0 0
      %6242 = vmatpush1.bf16.msra.mxu0 0
      %6243 = vmatprep.subr.bf16.mxu0 0
      %6244 = vmatpush1.bf16.msra.mxu0 0
      %6245 = vmatprep.subr.bf16.mxu0 0
      %6246 = vmatpush1.bf16.msra.mxu0 0
      %6247 = vmatprep.subr.bf16.mxu0 0
      %6248 = vmatpush1.bf16.msra.mxu0 0
      %6249 = vmatprep.subr.bf16.mxu0 0
      %6250 = vmatpush1.bf16.msra.mxu0 0
      %6251 = vmatprep.subr.bf16.mxu0 0
      %6252 = vmatpush1.bf16.msra.mxu0 0
      %6253 = vmatprep.subr.bf16.mxu0 0
      %6254 = vmatpush1.bf16.msra.mxu0 0
      %6255 = vmatprep.subr.bf16.mxu0 0
      %6256 = vmatpush1.bf16.msra.mxu0 0
      %6257 = vmatprep.mubr.bf16.mxu0 0
      %6258 = vmatmul.mubr.bf16.gmra.mrb[0].mxu0 %v2045
      %v6259 = vpop.f32.mrb[0].mxu0
      %v6260 = vadd.f32 0.0, %v6259
      %v6261 = vpop.f32.mrb[0].mxu0
      %v6262 = vpop.f32.mrb[0].mxu0
      %v6263 = vadd.f32 0.0, %v6262
      %v6264 = vpop.f32.mrb[0].mxu0
      %6265 = vmatprep.mubr.bf16.mxu0 0
      %6266 = vmatmul.mubr.bf16.gmra.mrb[0].mxu0 %v2048
      %v6267 = vpop.f32.mrb[0].mxu0
      %v6268 = vadd.f32 0.0, %v6267
      %v6269 = vpop.f32.mrb[0].mxu0
      %v6270 = vpop.f32.mrb[0].mxu0
      %v6271 = vadd.f32 0.0, %v6270
      %v6272 = vpop.f32.mrb[0].mxu0
      %6273 = vmatprep.mubr.bf16.mxu0 0
      %6274 = vmatmul.mubr.bf16.gmra.mrb[0].mxu0 %v2051
      %v6275 = vpop.f32.mrb[0].mxu0
      %v6276 = vadd.f32 0.0, %v6275
      %v6277 = vpop.f32.mrb[0].mxu0
      %v6278 = vpop.f32.mrb[0].mxu0
      %v6279 = vadd.f32 0.0, %v6278
      %v6280 = vpop.f32.mrb[0].mxu0
      %6281 = vmatprep.mubr.bf16.mxu0 0
      %6282 = vmatmul.mubr.bf16.gmra.mrb[0].mxu0 %v2054
      %v6283 = vpop.f32.mrb[0].mxu0
      %v6284 = vadd.f32 0.0, %v6283
      %v6285 = vpop.f32.mrb[0].mxu0
      %v6286 = vpop.f32.mrb[0].mxu0
      %v6287 = vadd.f32 0.0, %v6286
      %v6288 = vpop.f32.mrb[0].mxu0
      %6289 = vmatprep.mubr.bf16.mxu0 0
      %6290 = vmatmul.mubr.bf16.gmra.mrb[0].mxu0 %v2057
      %v6291 = vpop.f32.mrb[0].mxu0
      %v6292 = vadd.f32 0.0, %v6291
      %v6293 = vpop.f32.mrb[0].mxu0
      %v6294 = vpop.f32.mrb[0].mxu0
      %v6295 = vadd.f32 0.0, %v6294
      %v6296 = vpop.f32.mrb[0].mxu0
      %6297 = vmatprep.mubr.bf16.mxu0 0
      %6298 = vmatmul.mubr.bf16.gmra.mrb[0].mxu0 %v2060
      %v6299 = vpop.f32.mrb[0].mxu0
      %v6300 = vadd.f32 0.0, %v6299
      %v6301 = vpop.f32.mrb[0].mxu0
      %v6302 = vpop.f32.mrb[0].mxu0
      %v6303 = vadd.f32 0.0, %v6302
      %v6304 = vpop.f32.mrb[0].mxu0
      %6305 = vmatprep.mubr.bf16.mxu0 0
      %6306 = vmatmul.mubr.bf16.gmra.mrb[0].mxu0 %v2063
      %v6307 = vpop.f32.mrb[0].mxu0
      %v6308 = vadd.f32 0.0, %v6307
      %v6309 = vpop.f32.mrb[0].mxu0
      %v6310 = vpop.f32.mrb[0].mxu0
      %v6311 = vadd.f32 0.0, %v6310
      %v6312 = vpop.f32.mrb[0].mxu0
      %6313 = vmatprep.mubr.bf16.mxu0 0
      %6314 = vmatmul.mubr.bf16.gmra.mrb[0].mxu0 %v2066
      %v6315 = vpop.f32.mrb[0].mxu0
      %v6316 = vadd.f32 0.0, %v6315
      %v6317 = vpop.f32.mrb[0].mxu0
      %v6318 = vpop.f32.mrb[0].mxu0
      %v6319 = vadd.f32 0.0, %v6318
      %v6320 = vpop.f32.mrb[0].mxu0
      %6321 = vmatprep.mubr.bf16.mxu0 0
      %6322 = vmatmul.mubr.bf16.gmra.mrb[0].mxu0 %v2069
      %v6323 = vpop.f32.mrb[0].mxu0
      %v6324 = vadd.f32 0.0, %v6323
      %v6325 = vpop.f32.mrb[0].mxu0
      %v6326 = vpop.f32.mrb[0].mxu0
      %v6327 = vadd.f32 0.0, %v6326
      %v6328 = vpop.f32.mrb[0].mxu0
      %6329 = vmatprep.mubr.bf16.mxu0 0
      %6330 = vmatmul.mubr.bf16.gmra.mrb[0].mxu0 %v2072
      %v6331 = vpop.f32.mrb[0].mxu0
      %v6332 = vadd.f32 0.0, %v6331
      %v6333 = vpop.f32.mrb[0].mxu0
      %v6334 = vpop.f32.mrb[0].mxu0
      %v6335 = vadd.f32 0.0, %v6334
      %v6336 = vpop.f32.mrb[0].mxu0
      %6337 = vmatprep.mubr.bf16.mxu0 0
      %6338 = vmatmul.mubr.bf16.gmra.mrb[0].mxu0 %v2075
      %v6339 = vpop.f32.mrb[0].mxu0
      %v6340 = vadd.f32 0.0, %v6339
      %v6341 = vpop.f32.mrb[0].mxu0
      %v6342 = vpop.f32.mrb[0].mxu0
      %v6343 = vadd.f32 0.0, %v6342
      %v6344 = vpop.f32.mrb[0].mxu0
      %6345 = vmatprep.mubr.bf16.mxu0 0
      %6346 = vmatmul.mubr.bf16.gmra.mrb[0].mxu0 %v2078
      %v6347 = vpop.f32.mrb[0].mxu0
      %v6348 = vadd.f32 0.0, %v6347
      %v6349 = vpop.f32.mrb[0].mxu0
      %v6350 = vpop.f32.mrb[0].mxu0
      %v6351 = vadd.f32 0.0, %v6350
      %v6352 = vpop.f32.mrb[0].mxu0
      %6353 = vmatprep.mubr.bf16.mxu0 0
      %6354 = vmatmul.mubr.bf16.gmra.mrb[0].mxu0 %v2081
      %v6355 = vpop.f32.mrb[0].mxu0
      %v6356 = vadd.f32 0.0, %v6355
      %v6357 = vpop.f32.mrb[0].mxu0
      %v6358 = vpop.f32.mrb[0].mxu0
      %v6359 = vadd.f32 0.0, %v6358
      %v6360 = vpop.f32.mrb[0].mxu0
      %6361 = vmatprep.mubr.bf16.mxu0 0
      %6362 = vmatmul.mubr.bf16.gmra.mrb[0].mxu0 %v2084
      %v6363 = vpop.f32.mrb[0].mxu0
      %v6364 = vadd.f32 0.0, %v6363
      %v6365 = vpop.f32.mrb[0].mxu0
      %v6366 = vpop.f32.mrb[0].mxu0
      %v6367 = vadd.f32 0.0, %v6366
      %v6368 = vpop.f32.mrb[0].mxu0
      %6369 = vmatprep.mubr.bf16.mxu0 0
      %6370 = vmatmul.mubr.bf16.gmra.mrb[0].mxu0 %v2087
      %v6371 = vpop.f32.mrb[0].mxu0
      %v6372 = vadd.f32 0.0, %v6371
      %v6373 = vpop.f32.mrb[0].mxu0
      %v6374 = vpop.f32.mrb[0].mxu0
      %v6375 = vadd.f32 0.0, %v6374
      %v6376 = vpop.f32.mrb[0].mxu0
      %6377 = vmatprep.mubr.bf16.mxu0 0
      %6378 = vmatmul.mubr.bf16.gmra.mrb[0].mxu0 %v2090
      %v6379 = vpop.f32.mrb[0].mxu0
      %v6380 = vadd.f32 0.0, %v6379
      %v6381 = vpop.f32.mrb[0].mxu0
      %v6382 = vpop.f32.mrb[0].mxu0
      %v6383 = vadd.f32 0.0, %v6382
      %v6384 = vpop.f32.mrb[0].mxu0
      %6385 = vmatprep.mubr.bf16.mxu0 0
      %6386 = vmatmul.mubr.bf16.gmra.mrb[0].mxu0 %v2093
      %v6387 = vpop.f32.mrb[0].mxu0
      %v6388 = vadd.f32 0.0, %v6387
      %v6389 = vpop.f32.mrb[0].mxu0
      %v6390 = vpop.f32.mrb[0].mxu0
      %v6391 = vadd.f32 0.0, %v6390
      %v6392 = vpop.f32.mrb[0].mxu0
      %6393 = vmatprep.mubr.bf16.mxu0 0
      %6394 = vmatmul.mubr.bf16.gmra.mrb[0].mxu0 %v2096
      %v6395 = vpop.f32.mrb[0].mxu0
      %v6396 = vadd.f32 0.0, %v6395
      %v6397 = vpop.f32.mrb[0].mxu0
      %v6398 = vpop.f32.mrb[0].mxu0
      %v6399 = vadd.f32 0.0, %v6398
      %v6400 = vpop.f32.mrb[0].mxu0
      %6401 = vmatprep.mubr.bf16.mxu0 0
      %6402 = vmatmul.mubr.bf16.gmra.mrb[0].mxu0 %v2099
      %v6403 = vpop.f32.mrb[0].mxu0
      %v6404 = vadd.f32 0.0, %v6403
      %v6405 = vpop.f32.mrb[0].mxu0
      %v6406 = vpop.f32.mrb[0].mxu0
      %v6407 = vadd.f32 0.0, %v6406
      %v6408 = vpop.f32.mrb[0].mxu0
      %6409 = vmatprep.mubr.bf16.mxu0 0
      %6410 = vmatmul.mubr.bf16.gmra.mrb[0].mxu0 %v2102
      %v6411 = vpop.f32.mrb[0].mxu0
      %v6412 = vadd.f32 0.0, %v6411
      %v6413 = vpop.f32.mrb[0].mxu0
      %v6414 = vpop.f32.mrb[0].mxu0
      %v6415 = vadd.f32 0.0, %v6414
      %v6416 = vpop.f32.mrb[0].mxu0
      %6417 = vmatprep.mubr.bf16.mxu0 0
      %6418 = vmatmul.mubr.bf16.gmra.mrb[0].mxu0 %v2105
      %v6419 = vpop.f32.mrb[0].mxu0
      %v6420 = vadd.f32 0.0, %v6419
      %v6421 = vpop.f32.mrb[0].mxu0
      %v6422 = vpop.f32.mrb[0].mxu0
      %v6423 = vadd.f32 0.0, %v6422
      %v6424 = vpop.f32.mrb[0].mxu0
      %6425 = vmatprep.mubr.bf16.mxu0 0
      %6426 = vmatmul.mubr.bf16.gmra.mrb[0].mxu0 %v2108
      %v6427 = vpop.f32.mrb[0].mxu0
      %v6428 = vadd.f32 0.0, %v6427
      %v6429 = vpop.f32.mrb[0].mxu0
      %v6430 = vpop.f32.mrb[0].mxu0
      %v6431 = vadd.f32 0.0, %v6430
      %v6432 = vpop.f32.mrb[0].mxu0
      %6433 = vmatprep.mubr.bf16.mxu0 0
      %6434 = vmatmul.mubr.bf16.gmra.mrb[0].mxu0 %v2111
      %v6435 = vpop.f32.mrb[0].mxu0
      %v6436 = vadd.f32 0.0, %v6435
      %v6437 = vpop.f32.mrb[0].mxu0
      %v6438 = vpop.f32.mrb[0].mxu0
      %v6439 = vadd.f32 0.0, %v6438
      %v6440 = vpop.f32.mrb[0].mxu0
      %6441 = vmatprep.mubr.bf16.mxu0 0
      %6442 = vmatmul.mubr.bf16.gmra.mrb[0].mxu0 %v2114
      %v6443 = vpop.f32.mrb[0].mxu0
      %v6444 = vadd.f32 0.0, %v6443
      %v6445 = vpop.f32.mrb[0].mxu0
      %v6446 = vpop.f32.mrb[0].mxu0
      %v6447 = vadd.f32 0.0, %v6446
      %v6448 = vpop.f32.mrb[0].mxu0
      %6449 = vmatprep.mubr.bf16.mxu0 0
      %6450 = vmatmul.mubr.bf16.gmra.mrb[0].mxu0 %v2117
      %v6451 = vpop.f32.mrb[0].mxu0
      %v6452 = vadd.f32 0.0, %v6451
      %v6453 = vpop.f32.mrb[0].mxu0
      %v6454 = vpop.f32.mrb[0].mxu0
      %v6455 = vadd.f32 0.0, %v6454
      %v6456 = vpop.f32.mrb[0].mxu0
      %6457 = vmatprep.mubr.bf16.mxu0 0
      %6458 = vmatmul.mubr.bf16.gmra.mrb[0].mxu0 %v2120
      %v6459 = vpop.f32.mrb[0].mxu0
      %v6460 = vadd.f32 0.0, %v6459
      %v6461 = vpop.f32.mrb[0].mxu0
      %v6462 = vpop.f32.mrb[0].mxu0
      %v6463 = vadd.f32 0.0, %v6462
      %v6464 = vpop.f32.mrb[0].mxu0
      %6465 = vmatprep.mubr.bf16.mxu0 0
      %6466 = vmatmul.mubr.bf16.gmra.mrb[0].mxu0 %v2123
      %v6467 = vpop.f32.mrb[0].mxu0
      %v6468 = vadd.f32 0.0, %v6467
      %v6469 = vpop.f32.mrb[0].mxu0
      %v6470 = vpop.f32.mrb[0].mxu0
      %v6471 = vadd.f32 0.0, %v6470
      %v6472 = vpop.f32.mrb[0].mxu0
      %6473 = vmatprep.mubr.bf16.mxu0 0
      %6474 = vmatmul.mubr.bf16.gmra.mrb[0].mxu0 %v2126
      %v6475 = vpop.f32.mrb[0].mxu0
      %v6476 = vadd.f32 0.0, %v6475
      %v6477 = vpop.f32.mrb[0].mxu0
      %v6478 = vpop.f32.mrb[0].mxu0
      %v6479 = vadd.f32 0.0, %v6478
      %v6480 = vpop.f32.mrb[0].mxu0
      %6481 = vmatprep.mubr.bf16.mxu0 0
      %6482 = vmatmul.mubr.bf16.gmra.mrb[0].mxu0 %v2129
      %v6483 = vpop.f32.mrb[0].mxu0
      %v6484 = vadd.f32 0.0, %v6483
      %v6485 = vpop.f32.mrb[0].mxu0
      %v6486 = vpop.f32.mrb[0].mxu0
      %v6487 = vadd.f32 0.0, %v6486
      %v6488 = vpop.f32.mrb[0].mxu0
      %6489 = vmatprep.mubr.bf16.mxu0 0
      %6490 = vmatmul.mubr.bf16.gmra.mrb[0].mxu0 %v2132
      %v6491 = vpop.f32.mrb[0].mxu0
      %v6492 = vadd.f32 0.0, %v6491
      %v6493 = vpop.f32.mrb[0].mxu0
      %v6494 = vpop.f32.mrb[0].mxu0
      %v6495 = vadd.f32 0.0, %v6494
      %v6496 = vpop.f32.mrb[0].mxu0
      %6497 = vmatprep.mubr.bf16.mxu0 0
      %6498 = vmatmul.mubr.bf16.gmra.mrb[0].mxu0 %v2135
      %v6499 = vpop.f32.mrb[0].mxu0
      %v6500 = vadd.f32 0.0, %v6499
      %v6501 = vpop.f32.mrb[0].mxu0
      %v6502 = vpop.f32.mrb[0].mxu0
      %v6503 = vadd.f32 0.0, %v6502
      %v6504 = vpop.f32.mrb[0].mxu0
      %6505 = vmatprep.mubr.bf16.mxu0 0
      %6506 = vmatmul.mubr.bf16.gmra.mrb[0].mxu0 %v2138
      %v6507 = vpop.f32.mrb[0].mxu0
      %v6508 = vadd.f32 0.0, %v6507
      %v6509 = vpop.f32.mrb[0].mxu0
      %v6510 = vpop.f32.mrb[0].mxu0
      %v6511 = vadd.f32 0.0, %v6510
      %v6512 = vpop.f32.mrb[0].mxu0
      %6513 = vmatprep.mubr.bf16.mxu0 0
      %6514 = vmatmul.mubr.bf16.gmra.mrb[0].mxu0 %v2141
      %v6515 = vpop.f32.mrb[0].mxu0
      %v6516 = vadd.f32 0.0, %v6515
      %v6517 = vpop.f32.mrb[0].mxu0
      %v6518 = vpop.f32.mrb[0].mxu0
      %v6519 = vadd.f32 0.0, %v6518
      %v6520 = vpop.f32.mrb[0].mxu0
      %6521 = vmatprep.mubr.bf16.mxu0 0
      %6522 = vmatmul.mubr.bf16.gmra.mrb[0].mxu0 %v2144
      %v6523 = vpop.f32.mrb[0].mxu0
      %v6524 = vadd.f32 0.0, %v6523
      %v6525 = vpop.f32.mrb[0].mxu0
      %v6526 = vpop.f32.mrb[0].mxu0
      %v6527 = vadd.f32 0.0, %v6526
      %v6528 = vpop.f32.mrb[0].mxu0
      %6529 = vmatprep.mubr.bf16.mxu0 0
      %6530 = vmatmul.mubr.bf16.gmra.mrb[0].mxu0 %v2147
      %v6531 = vpop.f32.mrb[0].mxu0
      %v6532 = vadd.f32 0.0, %v6531
      %v6533 = vpop.f32.mrb[0].mxu0
      %v6534 = vpop.f32.mrb[0].mxu0
      %v6535 = vadd.f32 0.0, %v6534
      %v6536 = vpop.f32.mrb[0].mxu0
      %6537 = vmatprep.mubr.bf16.mxu0 0
      %6538 = vmatmul.mubr.bf16.gmra.mrb[0].mxu0 %v2150
      %v6539 = vpop.f32.mrb[0].mxu0
      %v6540 = vadd.f32 0.0, %v6539
      %v6541 = vpop.f32.mrb[0].mxu0
      %v6542 = vpop.f32.mrb[0].mxu0
      %v6543 = vadd.f32 0.0, %v6542
      %v6544 = vpop.f32.mrb[0].mxu0
      %6545 = vmatprep.mubr.bf16.mxu0 0
      %6546 = vmatmul.mubr.bf16.gmra.mrb[0].mxu0 %v2153
      %v6547 = vpop.f32.mrb[0].mxu0
      %v6548 = vadd.f32 0.0, %v6547
      %v6549 = vpop.f32.mrb[0].mxu0
      %v6550 = vpop.f32.mrb[0].mxu0
      %v6551 = vadd.f32 0.0, %v6550
      %v6552 = vpop.f32.mrb[0].mxu0
      %6553 = vmatprep.mubr.bf16.mxu0 0
      %6554 = vmatmul.mubr.bf16.gmra.mrb[0].mxu0 %v2156
      %v6555 = vpop.f32.mrb[0].mxu0
      %v6556 = vadd.f32 0.0, %v6555
      %v6557 = vpop.f32.mrb[0].mxu0
      %v6558 = vpop.f32.mrb[0].mxu0
      %v6559 = vadd.f32 0.0, %v6558
      %v6560 = vpop.f32.mrb[0].mxu0
      %6561 = vmatprep.mubr.bf16.mxu0 0
      %6562 = vmatmul.mubr.bf16.gmra.mrb[0].mxu0 %v2159
      %v6563 = vpop.f32.mrb[0].mxu0
      %v6564 = vadd.f32 0.0, %v6563
      %v6565 = vpop.f32.mrb[0].mxu0
      %v6566 = vpop.f32.mrb[0].mxu0
      %v6567 = vadd.f32 0.0, %v6566
      %v6568 = vpop.f32.mrb[0].mxu0
      %6569 = vmatprep.mubr.bf16.mxu0 0
      %6570 = vmatmul.mubr.bf16.gmra.mrb[0].mxu0 %v2162
      %v6571 = vpop.f32.mrb[0].mxu0
      %v6572 = vadd.f32 0.0, %v6571
      %v6573 = vpop.f32.mrb[0].mxu0
      %v6574 = vpop.f32.mrb[0].mxu0
      %v6575 = vadd.f32 0.0, %v6574
      %v6576 = vpop.f32.mrb[0].mxu0
      %6577 = vmatprep.mubr.bf16.mxu0 0
      %6578 = vmatmul.mubr.bf16.gmra.mrb[0].mxu0 %v2165
      %v6579 = vpop.f32.mrb[0].mxu0
      %v6580 = vadd.f32 0.0, %v6579
      %v6581 = vpop.f32.mrb[0].mxu0
      %v6582 = vpop.f32.mrb[0].mxu0
      %v6583 = vadd.f32 0.0, %v6582
      %v6584 = vpop.f32.mrb[0].mxu0
      %6585 = vmatprep.mubr.bf16.mxu0 0
      %6586 = vmatmul.mubr.bf16.gmra.mrb[0].mxu0 %v2168
      %v6587 = vpop.f32.mrb[0].mxu0
      %v6588 = vadd.f32 0.0, %v6587
      %v6589 = vpop.f32.mrb[0].mxu0
      %v6590 = vpop.f32.mrb[0].mxu0
      %v6591 = vadd.f32 0.0, %v6590
      %v6592 = vpop.f32.mrb[0].mxu0
      %6593 = vmatprep.mubr.bf16.mxu0 0
      %6594 = vmatmul.mubr.bf16.gmra.mrb[0].mxu0 %v2171
      %v6595 = vpop.f32.mrb[0].mxu0
      %v6596 = vadd.f32 0.0, %v6595
      %v6597 = vpop.f32.mrb[0].mxu0
      %v6598 = vpop.f32.mrb[0].mxu0
      %v6599 = vadd.f32 0.0, %v6598
      %v6600 = vpop.f32.mrb[0].mxu0
      %6601 = vmatprep.mubr.bf16.mxu0 0
      %6602 = vmatmul.mubr.bf16.gmra.mrb[0].mxu0 %v2174
      %v6603 = vpop.f32.mrb[0].mxu0
      %v6604 = vadd.f32 0.0, %v6603
      %v6605 = vpop.f32.mrb[0].mxu0
      %v6606 = vpop.f32.mrb[0].mxu0
      %v6607 = vadd.f32 0.0, %v6606
      %v6608 = vpop.f32.mrb[0].mxu0
      %6609 = vmatprep.mubr.bf16.mxu0 0
      %6610 = vmatmul.mubr.bf16.gmra.mrb[0].mxu0 %v2177
      %v6611 = vpop.f32.mrb[0].mxu0
      %v6612 = vadd.f32 0.0, %v6611
      %v6613 = vpop.f32.mrb[0].mxu0
      %v6614 = vpop.f32.mrb[0].mxu0
      %v6615 = vadd.f32 0.0, %v6614
      %v6616 = vpop.f32.mrb[0].mxu0
      %6617 = vmatprep.mubr.bf16.mxu0 0
      %6618 = vmatmul.mubr.bf16.gmra.mrb[0].mxu0 %v2180
      %v6619 = vpop.f32.mrb[0].mxu0
      %v6620 = vadd.f32 0.0, %v6619
      %v6621 = vpop.f32.mrb[0].mxu0
      %v6622 = vpop.f32.mrb[0].mxu0
      %v6623 = vadd.f32 0.0, %v6622
      %v6624 = vpop.f32.mrb[0].mxu0
      %6625 = vmatprep.mubr.bf16.mxu0 0
      %6626 = vmatmul.mubr.bf16.gmra.mrb[0].mxu0 %v2183
      %v6627 = vpop.f32.mrb[0].mxu0
      %v6628 = vadd.f32 0.0, %v6627
      %v6629 = vpop.f32.mrb[0].mxu0
      %v6630 = vpop.f32.mrb[0].mxu0
      %v6631 = vadd.f32 0.0, %v6630
      %v6632 = vpop.f32.mrb[0].mxu0
      %6633 = vmatprep.mubr.bf16.mxu0 0
      %6634 = vmatmul.mubr.bf16.gmra.mrb[0].mxu0 %v2186
      %v6635 = vpop.f32.mrb[0].mxu0
      %v6636 = vadd.f32 0.0, %v6635
      %v6637 = vpop.f32.mrb[0].mxu0
      %v6638 = vpop.f32.mrb[0].mxu0
      %v6639 = vadd.f32 0.0, %v6638
      %v6640 = vpop.f32.mrb[0].mxu0
      %6641 = vmatprep.mubr.bf16.mxu0 0
      %6642 = vmatmul.mubr.bf16.gmra.mrb[0].mxu0 %v2189
      %v6643 = vpop.f32.mrb[0].mxu0
      %v6644 = vadd.f32 0.0, %v6643
      %v6645 = vpop.f32.mrb[0].mxu0
      %v6646 = vpop.f32.mrb[0].mxu0
      %v6647 = vadd.f32 0.0, %v6646
      %v6648 = vpop.f32.mrb[0].mxu0
      %6649 = vmatprep.mubr.bf16.mxu0 0
      %6650 = vmatmul.mubr.bf16.gmra.mrb[0].mxu0 %v2192
      %v6651 = vpop.f32.mrb[0].mxu0
      %v6652 = vadd.f32 0.0, %v6651
      %v6653 = vpop.f32.mrb[0].mxu0
      %v6654 = vpop.f32.mrb[0].mxu0
      %v6655 = vadd.f32 0.0, %v6654
      %v6656 = vpop.f32.mrb[0].mxu0
      %6657 = vmatprep.mubr.bf16.mxu0 0
      %6658 = vmatmul.mubr.bf16.gmra.mrb[0].mxu0 %v2195
      %v6659 = vpop.f32.mrb[0].mxu0
      %v6660 = vadd.f32 0.0, %v6659
      %v6661 = vpop.f32.mrb[0].mxu0
      %v6662 = vpop.f32.mrb[0].mxu0
      %v6663 = vadd.f32 0.0, %v6662
      %v6664 = vpop.f32.mrb[0].mxu0
      %6665 = vmatprep.mubr.bf16.mxu0 0
      %6666 = vmatmul.mubr.bf16.gmra.mrb[0].mxu0 %v2198
      %v6667 = vpop.f32.mrb[0].mxu0
      %v6668 = vadd.f32 0.0, %v6667
      %v6669 = vpop.f32.mrb[0].mxu0
      %v6670 = vpop.f32.mrb[0].mxu0
      %v6671 = vadd.f32 0.0, %v6670
      %v6672 = vpop.f32.mrb[0].mxu0
      %6673 = vmatprep.mubr.bf16.mxu0 0
      %6674 = vmatmul.mubr.bf16.gmra.mrb[0].mxu0 %v2201
      %v6675 = vpop.f32.mrb[0].mxu0
      %v6676 = vadd.f32 0.0, %v6675
      %v6677 = vpop.f32.mrb[0].mxu0
      %v6678 = vpop.f32.mrb[0].mxu0
      %v6679 = vadd.f32 0.0, %v6678
      %v6680 = vpop.f32.mrb[0].mxu0
      %6681 = vmatprep.mubr.bf16.mxu0 0
      %6682 = vmatmul.mubr.bf16.gmra.mrb[0].mxu0 %v2204
      %v6683 = vpop.f32.mrb[0].mxu0
      %v6684 = vadd.f32 0.0, %v6683
      %v6685 = vpop.f32.mrb[0].mxu0
      %v6686 = vpop.f32.mrb[0].mxu0
      %v6687 = vadd.f32 0.0, %v6686
      %v6688 = vpop.f32.mrb[0].mxu0
      %6689 = vmatprep.mubr.bf16.mxu0 0
      %6690 = vmatmul.mubr.bf16.gmra.mrb[0].mxu0 %v2207
      %v6691 = vpop.f32.mrb[0].mxu0
      %v6692 = vadd.f32 0.0, %v6691
      %v6693 = vpop.f32.mrb[0].mxu0
      %v6694 = vpop.f32.mrb[0].mxu0
      %v6695 = vadd.f32 0.0, %v6694
      %v6696 = vpop.f32.mrb[0].mxu0
      %6697 = vmatprep.mubr.bf16.mxu0 0
      %6698 = vmatmul.mubr.bf16.gmra.mrb[0].mxu0 %v2210
      %v6699 = vpop.f32.mrb[0].mxu0
      %v6700 = vadd.f32 0.0, %v6699
      %v6701 = vpop.f32.mrb[0].mxu0
      %v6702 = vpop.f32.mrb[0].mxu0
      %v6703 = vadd.f32 0.0, %v6702
      %v6704 = vpop.f32.mrb[0].mxu0
      %6705 = vmatprep.mubr.bf16.mxu0 0
      %6706 = vmatmul.mubr.bf16.gmra.mrb[0].mxu0 %v2213
      %v6707 = vpop.f32.mrb[0].mxu0
      %v6708 = vadd.f32 0.0, %v6707
      %v6709 = vpop.f32.mrb[0].mxu0
      %v6710 = vpop.f32.mrb[0].mxu0
      %v6711 = vadd.f32 0.0, %v6710
      %v6712 = vpop.f32.mrb[0].mxu0
      %6713 = vmatprep.mubr.bf16.mxu0 0
      %6714 = vmatmul.mubr.bf16.gmra.mrb[0].mxu0 %v2216
      %v6715 = vpop.f32.mrb[0].mxu0
      %v6716 = vadd.f32 0.0, %v6715
      %v6717 = vpop.f32.mrb[0].mxu0
      %v6718 = vpop.f32.mrb[0].mxu0
      %v6719 = vadd.f32 0.0, %v6718
      %v6720 = vpop.f32.mrb[0].mxu0
      %6721 = vmatprep.mubr.bf16.mxu0 0
      %6722 = vmatmul.mubr.bf16.gmra.mrb[0].mxu0 %v2219
      %v6723 = vpop.f32.mrb[0].mxu0
      %v6724 = vadd.f32 0.0, %v6723
      %v6725 = vpop.f32.mrb[0].mxu0
      %v6726 = vpop.f32.mrb[0].mxu0
      %v6727 = vadd.f32 0.0, %v6726
      %v6728 = vpop.f32.mrb[0].mxu0
      %6729 = vmatprep.mubr.bf16.mxu0 0
      %6730 = vmatmul.mubr.bf16.gmra.mrb[0].mxu0 %v2222
      %v6731 = vpop.f32.mrb[0].mxu0
      %v6732 = vadd.f32 0.0, %v6731
      %v6733 = vpop.f32.mrb[0].mxu0
      %v6734 = vpop.f32.mrb[0].mxu0
      %v6735 = vadd.f32 0.0, %v6734
      %v6736 = vpop.f32.mrb[0].mxu0
      %6737 = vmatprep.mubr.bf16.mxu0 0
      %6738 = vmatmul.mubr.bf16.gmra.mrb[0].mxu0 %v4128
      %v6739 = vpop.f32.mrb[0].mxu0
      %v6740 = vadd.f32 0.0, %v6739
      %v6741 = vpop.f32.mrb[0].mxu0
      %v6742 = vpop.f32.mrb[0].mxu0
      %v6743 = vadd.f32 0.0, %v6742
      %v6744 = vpop.f32.mrb[0].mxu0
      %6745 = vmatprep.mubr.bf16.mxu0 0
      %6746 = vmatmul.mubr.bf16.gmra.mrb[0].mxu0 %v4131
      %v6747 = vpop.f32.mrb[0].mxu0
      %v6748 = vadd.f32 0.0, %v6747
      %v6749 = vpop.f32.mrb[0].mxu0
      %v6750 = vpop.f32.mrb[0].mxu0
      %v6751 = vadd.f32 0.0, %v6750
      %v6752 = vpop.f32.mrb[0].mxu0
      %6753 = vmatprep.mubr.bf16.mxu0 0
      %6754 = vmatmul.mubr.bf16.gmra.mrb[0].mxu0 %v6217
      %v6755 = vpop.f32.mrb[0].mxu0
      %v6756 = vadd.f32 0.0, %v6755
      %v6757 = vpop.f32.mrb[0].mxu0
      %v6758 = vpop.f32.mrb[0].mxu0
      %v6759 = vadd.f32 0.0, %v6758
      %v6760 = vpop.f32.mrb[0].mxu0
      %6761 = vmatprep.mubr.bf16.mxu0 0
      %6762 = vmatmul.mubr.bf16.gmra.mrb[0].mxu0 %v6220
      %v6763 = vpop.f32.mrb[0].mxu0
      %v6764 = vadd.f32 0.0, %v6763
      %v6765 = vpop.f32.mrb[0].mxu0
      %v6766 = vpop.f32.mrb[0].mxu0
      %v6767 = vadd.f32 0.0, %v6766
      %v6768 = vpop.f32.mrb[0].mxu0
      %6769 = vdwg.mxu0
      %v6770 = vadd.f32 %v6084, %v6260
      %v6771 = vadd.f32 %v6085, %v6263
      %v6772 = vadd.f32 %v6086, %v6268
      %v6773 = vadd.f32 %v6087, %v6271
      %v6774 = vadd.f32 %v6088, %v6276
      %v6775 = vadd.f32 %v6089, %v6279
      %v6776 = vadd.f32 %v6090, %v6284
      %v6777 = vadd.f32 %v6091, %v6287
      %v6778 = vadd.f32 %v6092, %v6292
      %v6779 = vadd.f32 %v6093, %v6295
      %v6780 = vadd.f32 %v6094, %v6300
      %v6781 = vadd.f32 %v6095, %v6303
      %v6782 = vadd.f32 %v6096, %v6308
      %v6783 = vadd.f32 %v6097, %v6311
      %v6784 = vadd.f32 %v6098, %v6316
      %v6785 = vadd.f32 %v6099, %v6319
      %v6786 = vadd.f32 %v6100, %v6324
      %v6787 = vadd.f32 %v6101, %v6327
      %v6788 = vadd.f32 %v6102, %v6332
      %v6789 = vadd.f32 %v6103, %v6335
      %v6790 = vadd.f32 %v6104, %v6340
      %v6791 = vadd.f32 %v6105, %v6343
      %v6792 = vadd.f32 %v6106, %v6348
      %v6793 = vadd.f32 %v6107, %v6351
      %v6794 = vadd.f32 %v6108, %v6356
      %v6795 = vadd.f32 %v6109, %v6359
      %v6796 = vadd.f32 %v6110, %v6364
      %v6797 = vadd.f32 %v6111, %v6367
      %v6798 = vadd.f32 %v6112, %v6372
      %v6799 = vadd.f32 %v6113, %v6375
      %v6800 = vadd.f32 %v6114, %v6380
      %v6801 = vadd.f32 %v6115, %v6383
      %v6802 = vadd.f32 %v6116, %v6388
      %v6803 = vadd.f32 %v6117, %v6391
      %v6804 = vadd.f32 %v6118, %v6396
      %v6805 = vadd.f32 %v6119, %v6399
      %v6806 = vadd.f32 %v6120, %v6404
      %v6807 = vadd.f32 %v6121, %v6407
      %v6808 = vadd.f32 %v6122, %v6412
      %v6809 = vadd.f32 %v6123, %v6415
      %v6810 = vadd.f32 %v6124, %v6420
      %v6811 = vadd.f32 %v6125, %v6423
      %v6812 = vadd.f32 %v6126, %v6428
      %v6813 = vadd.f32 %v6127, %v6431
      %v6814 = vadd.f32 %v6128, %v6436
      %v6815 = vadd.f32 %v6129, %v6439
      %v6816 = vadd.f32 %v6130, %v6444
      %v6817 = vadd.f32 %v6131, %v6447
      %v6818 = vadd.f32 %v6132, %v6452
      %v6819 = vadd.f32 %v6133, %v6455
      %v6820 = vadd.f32 %v6134, %v6460
      %v6821 = vadd.f32 %v6135, %v6463
      %v6822 = vadd.f32 %v6136, %v6468
      %v6823 = vadd.f32 %v6137, %v6471
      %v6824 = vadd.f32 %v6138, %v6476
      %v6825 = vadd.f32 %v6139, %v6479
      %v6826 = vadd.f32 %v6140, %v6484
      %v6827 = vadd.f32 %v6141, %v6487
      %v6828 = vadd.f32 %v6142, %v6492
      %v6829 = vadd.f32 %v6143, %v6495
      %v6830 = vadd.f32 %v6144, %v6500
      %v6831 = vadd.f32 %v6145, %v6503
      %v6832 = vadd.f32 %v6146, %v6508
      %v6833 = vadd.f32 %v6147, %v6511
      %v6834 = vadd.f32 %v6148, %v6516
      %v6835 = vadd.f32 %v6149, %v6519
      %v6836 = vadd.f32 %v6150, %v6524
      %v6837 = vadd.f32 %v6151, %v6527
      %v6838 = vadd.f32 %v6152, %v6532
      %v6839 = vadd.f32 %v6153, %v6535
      %v6840 = vadd.f32 %v6154, %v6540
      %v6841 = vadd.f32 %v6155, %v6543
      %v6842 = vadd.f32 %v6156, %v6548
      %v6843 = vadd.f32 %v6157, %v6551
      %v6844 = vadd.f32 %v6158, %v6556
      %v6845 = vadd.f32 %v6159, %v6559
      %v6846 = vadd.f32 %v6160, %v6564
      %v6847 = vadd.f32 %v6161, %v6567
      %v6848 = vadd.f32 %v6162, %v6572
      %v6849 = vadd.f32 %v6163, %v6575
      %v6850 = vadd.f32 %v6164, %v6580
      %v6851 = vadd.f32 %v6165, %v6583
      %v6852 = vadd.f32 %v6166, %v6588
      %v6853 = vadd.f32 %v6167, %v6591
      %v6854 = vadd.f32 %v6168, %v6596
      %v6855 = vadd.f32 %v6169, %v6599
      %v6856 = vadd.f32 %v6170, %v6604
      %v6857 = vadd.f32 %v6171, %v6607
      %v6858 = vadd.f32 %v6172, %v6612
      %v6859 = vadd.f32 %v6173, %v6615
      %v6860 = vadd.f32 %v6174, %v6620
      %v6861 = vadd.f32 %v6175, %v6623
      %v6862 = vadd.f32 %v6176, %v6628
      %v6863 = vadd.f32 %v6177, %v6631
      %v6864 = vadd.f32 %v6178, %v6636
      %v6865 = vadd.f32 %v6179, %v6639
      %v6866 = vadd.f32 %v6180, %v6644
      %v6867 = vadd.f32 %v6181, %v6647
      %v6868 = vadd.f32 %v6182, %v6652
      %v6869 = vadd.f32 %v6183, %v6655
      %v6870 = vadd.f32 %v6184, %v6660
      %v6871 = vadd.f32 %v6185, %v6663
      %v6872 = vadd.f32 %v6186, %v6668
      %v6873 = vadd.f32 %v6187, %v6671
      %v6874 = vadd.f32 %v6188, %v6676
      %v6875 = vadd.f32 %v6189, %v6679
      %v6876 = vadd.f32 %v6190, %v6684
      %v6877 = vadd.f32 %v6191, %v6687
      %v6878 = vadd.f32 %v6192, %v6692
      %v6879 = vadd.f32 %v6193, %v6695
      %v6880 = vadd.f32 %v6194, %v6700
      %v6881 = vadd.f32 %v6195, %v6703
      %v6882 = vadd.f32 %v6196, %v6708
      %v6883 = vadd.f32 %v6197, %v6711
      %v6884 = vadd.f32 %v6198, %v6716
      %v6885 = vadd.f32 %v6199, %v6719
      %v6886 = vadd.f32 %v6200, %v6724
      %v6887 = vadd.f32 %v6201, %v6727
      %v6888 = vadd.f32 %v6202, %v6732
      %v6889 = vadd.f32 %v6203, %v6735
      %v6890 = vadd.f32 %v6204, %v6740
      %v6891 = vadd.f32 %v6205, %v6743
      %v6892 = vadd.f32 %v6206, %v6748
      %v6893 = vadd.f32 %v6207, %v6751
      %v6894 = vadd.f32 %v6208, %v6756
      %v6895 = vadd.f32 %v6209, %v6759
      %v6896 = vadd.f32 %v6210, %v6764
      %v6897 = vadd.f32 %v6211, %v6767
      %v6903 = vrot.slane %v574, 1
      %v6904 = vrot.slane %v575, 1
      %v6905 = vsel %vm804, %v6903, %v6904
      %v6906 = vrot.slane %v576, 1
      %v6907 = vsel %vm804, %v6904, %v6906
      %v6908 = vrot.slane %v577, 1
      %v6909 = vsel %vm804, %v6906, %v6908
      %v6910 = vrot.slane %v578, 1
      %v6911 = vsel %vm804, %v6908, %v6910
      %v6916 = vpack.c.bf16 %v6907, %v6905
      %v6917 = vpack.c.bf16 %v6911, %v6909
      %s6918 = scalar_lea.vmem %s1, 14
      %v6919 = vld [vmem:[%s6918] sm:$0x3]
      %v6921 = vsel %vm1287, %v6916, 0
      %v6924 = vsel %vm1287, %v6917, 0
      %v6927 = vand.u32 %v6919, %v1483
      %6929 = vmatprep.subr.bf16.mxu0 0
      %6930 = vmatpush1.bf16.msra.mxu0 %v6927
      %6931 = vmatprep.subr.bf16.mxu0 0
      %6932 = vmatpush1.bf16.msra.mxu0 0
      %6933 = vmatprep.subr.bf16.mxu0 0
      %6934 = vmatpush1.bf16.msra.mxu0 0
      %6935 = vmatprep.subr.bf16.mxu0 0
      %6936 = vmatpush1.bf16.msra.mxu0 0
      %6937 = vmatprep.subr.bf16.mxu0 0
      %6938 = vmatpush1.bf16.msra.mxu0 0
      %6939 = vmatprep.subr.bf16.mxu0 0
      %6940 = vmatpush1.bf16.msra.mxu0 0
      %6941 = vmatprep.subr.bf16.mxu0 0
      %6942 = vmatpush1.bf16.msra.mxu0 0
      %6943 = vmatprep.subr.bf16.mxu0 0
      %6944 = vmatpush1.bf16.msra.mxu0 0
      %6945 = vmatprep.subr.bf16.mxu0 0
      %6946 = vmatpush1.bf16.msra.mxu0 0
      %6947 = vmatprep.subr.bf16.mxu0 0
      %6948 = vmatpush1.bf16.msra.mxu0 0
      %6949 = vmatprep.subr.bf16.mxu0 0
      %6950 = vmatpush1.bf16.msra.mxu0 0
      %6951 = vmatprep.subr.bf16.mxu0 0
      %6952 = vmatpush1.bf16.msra.mxu0 0
      %6953 = vmatprep.subr.bf16.mxu0 0
      %6954 = vmatpush1.bf16.msra.mxu0 0
      %6955 = vmatprep.subr.bf16.mxu0 0
      %6956 = vmatpush1.bf16.msra.mxu0 0
      %6957 = vmatprep.subr.bf16.mxu0 0
      %6958 = vmatpush1.bf16.msra.mxu0 0
      %6959 = vmatprep.subr.bf16.mxu0 0
      %6960 = vmatpush1.bf16.msra.mxu0 0
      %6961 = vmatprep.mubr.bf16.mxu0 0
      %6962 = vmatmul.mubr.bf16.gmra.mrb[0].mxu0 %v1301
      %v6963 = vpop.f32.mrb[0].mxu0
      %v6964 = vadd.f32 0.0, %v6963
      %v6965 = vpop.f32.mrb[0].mxu0
      %v6966 = vpop.f32.mrb[0].mxu0
      %v6967 = vadd.f32 0.0, %v6966
      %v6968 = vpop.f32.mrb[0].mxu0
      %6969 = vmatprep.mubr.bf16.mxu0 0
      %6970 = vmatmul.mubr.bf16.gmra.mrb[0].mxu0 %v1304
      %v6971 = vpop.f32.mrb[0].mxu0
      %v6972 = vadd.f32 0.0, %v6971
      %v6973 = vpop.f32.mrb[0].mxu0
      %v6974 = vpop.f32.mrb[0].mxu0
      %v6975 = vadd.f32 0.0, %v6974
      %v6976 = vpop.f32.mrb[0].mxu0
      %6977 = vmatprep.mubr.bf16.mxu0 0
      %6978 = vmatmul.mubr.bf16.gmra.mrb[0].mxu0 %v1307
      %v6979 = vpop.f32.mrb[0].mxu0
      %v6980 = vadd.f32 0.0, %v6979
      %v6981 = vpop.f32.mrb[0].mxu0
      %v6982 = vpop.f32.mrb[0].mxu0
      %v6983 = vadd.f32 0.0, %v6982
      %v6984 = vpop.f32.mrb[0].mxu0
      %6985 = vmatprep.mubr.bf16.mxu0 0
      %6986 = vmatmul.mubr.bf16.gmra.mrb[0].mxu0 %v1310
      %v6987 = vpop.f32.mrb[0].mxu0
      %v6988 = vadd.f32 0.0, %v6987
      %v6989 = vpop.f32.mrb[0].mxu0
      %v6990 = vpop.f32.mrb[0].mxu0
      %v6991 = vadd.f32 0.0, %v6990
      %v6992 = vpop.f32.mrb[0].mxu0
      %6993 = vmatprep.mubr.bf16.mxu0 0
      %6994 = vmatmul.mubr.bf16.gmra.mrb[0].mxu0 %v1313
      %v6995 = vpop.f32.mrb[0].mxu0
      %v6996 = vadd.f32 0.0, %v6995
      %v6997 = vpop.f32.mrb[0].mxu0
      %v6998 = vpop.f32.mrb[0].mxu0
      %v6999 = vadd.f32 0.0, %v6998
      %v7000 = vpop.f32.mrb[0].mxu0
      %7001 = vmatprep.mubr.bf16.mxu0 0
      %7002 = vmatmul.mubr.bf16.gmra.mrb[0].mxu0 %v1316
      %v7003 = vpop.f32.mrb[0].mxu0
      %v7004 = vadd.f32 0.0, %v7003
      %v7005 = vpop.f32.mrb[0].mxu0
      %v7006 = vpop.f32.mrb[0].mxu0
      %v7007 = vadd.f32 0.0, %v7006
      %v7008 = vpop.f32.mrb[0].mxu0
      %7009 = vmatprep.mubr.bf16.mxu0 0
      %7010 = vmatmul.mubr.bf16.gmra.mrb[0].mxu0 %v1319
      %v7011 = vpop.f32.mrb[0].mxu0
      %v7012 = vadd.f32 0.0, %v7011
      %v7013 = vpop.f32.mrb[0].mxu0
      %v7014 = vpop.f32.mrb[0].mxu0
      %v7015 = vadd.f32 0.0, %v7014
      %v7016 = vpop.f32.mrb[0].mxu0
      %7017 = vmatprep.mubr.bf16.mxu0 0
      %7018 = vmatmul.mubr.bf16.gmra.mrb[0].mxu0 %v1322
      %v7019 = vpop.f32.mrb[0].mxu0
      %v7020 = vadd.f32 0.0, %v7019
      %v7021 = vpop.f32.mrb[0].mxu0
      %v7022 = vpop.f32.mrb[0].mxu0
      %v7023 = vadd.f32 0.0, %v7022
      %v7024 = vpop.f32.mrb[0].mxu0
      %7025 = vmatprep.mubr.bf16.mxu0 0
      %7026 = vmatmul.mubr.bf16.gmra.mrb[0].mxu0 %v1325
      %v7027 = vpop.f32.mrb[0].mxu0
      %v7028 = vadd.f32 0.0, %v7027
      %v7029 = vpop.f32.mrb[0].mxu0
      %v7030 = vpop.f32.mrb[0].mxu0
      %v7031 = vadd.f32 0.0, %v7030
      %v7032 = vpop.f32.mrb[0].mxu0
      %7033 = vmatprep.mubr.bf16.mxu0 0
      %7034 = vmatmul.mubr.bf16.gmra.mrb[0].mxu0 %v1328
      %v7035 = vpop.f32.mrb[0].mxu0
      %v7036 = vadd.f32 0.0, %v7035
      %v7037 = vpop.f32.mrb[0].mxu0
      %v7038 = vpop.f32.mrb[0].mxu0
      %v7039 = vadd.f32 0.0, %v7038
      %v7040 = vpop.f32.mrb[0].mxu0
      %7041 = vmatprep.mubr.bf16.mxu0 0
      %7042 = vmatmul.mubr.bf16.gmra.mrb[0].mxu0 %v1331
      %v7043 = vpop.f32.mrb[0].mxu0
      %v7044 = vadd.f32 0.0, %v7043
      %v7045 = vpop.f32.mrb[0].mxu0
      %v7046 = vpop.f32.mrb[0].mxu0
      %v7047 = vadd.f32 0.0, %v7046
      %v7048 = vpop.f32.mrb[0].mxu0
      %7049 = vmatprep.mubr.bf16.mxu0 0
      %7050 = vmatmul.mubr.bf16.gmra.mrb[0].mxu0 %v1334
      %v7051 = vpop.f32.mrb[0].mxu0
      %v7052 = vadd.f32 0.0, %v7051
      %v7053 = vpop.f32.mrb[0].mxu0
      %v7054 = vpop.f32.mrb[0].mxu0
      %v7055 = vadd.f32 0.0, %v7054
      %v7056 = vpop.f32.mrb[0].mxu0
      %7057 = vmatprep.mubr.bf16.mxu0 0
      %7058 = vmatmul.mubr.bf16.gmra.mrb[0].mxu0 %v1337
      %v7059 = vpop.f32.mrb[0].mxu0
      %v7060 = vadd.f32 0.0, %v7059
      %v7061 = vpop.f32.mrb[0].mxu0
      %v7062 = vpop.f32.mrb[0].mxu0
      %v7063 = vadd.f32 0.0, %v7062
      %v7064 = vpop.f32.mrb[0].mxu0
      %7065 = vmatprep.mubr.bf16.mxu0 0
      %7066 = vmatmul.mubr.bf16.gmra.mrb[0].mxu0 %v1340
      %v7067 = vpop.f32.mrb[0].mxu0
      %v7068 = vadd.f32 0.0, %v7067
      %v7069 = vpop.f32.mrb[0].mxu0
      %v7070 = vpop.f32.mrb[0].mxu0
      %v7071 = vadd.f32 0.0, %v7070
      %v7072 = vpop.f32.mrb[0].mxu0
      %7073 = vmatprep.mubr.bf16.mxu0 0
      %7074 = vmatmul.mubr.bf16.gmra.mrb[0].mxu0 %v1343
      %v7075 = vpop.f32.mrb[0].mxu0
      %v7076 = vadd.f32 0.0, %v7075
      %v7077 = vpop.f32.mrb[0].mxu0
      %v7078 = vpop.f32.mrb[0].mxu0
      %v7079 = vadd.f32 0.0, %v7078
      %v7080 = vpop.f32.mrb[0].mxu0
      %7081 = vmatprep.mubr.bf16.mxu0 0
      %7082 = vmatmul.mubr.bf16.gmra.mrb[0].mxu0 %v1346
      %v7083 = vpop.f32.mrb[0].mxu0
      %v7084 = vadd.f32 0.0, %v7083
      %v7085 = vpop.f32.mrb[0].mxu0
      %v7086 = vpop.f32.mrb[0].mxu0
      %v7087 = vadd.f32 0.0, %v7086
      %v7088 = vpop.f32.mrb[0].mxu0
      %7089 = vmatprep.mubr.bf16.mxu0 0
      %7090 = vmatmul.mubr.bf16.gmra.mrb[0].mxu0 %v1349
      %v7091 = vpop.f32.mrb[0].mxu0
      %v7092 = vadd.f32 0.0, %v7091
      %v7093 = vpop.f32.mrb[0].mxu0
      %v7094 = vpop.f32.mrb[0].mxu0
      %v7095 = vadd.f32 0.0, %v7094
      %v7096 = vpop.f32.mrb[0].mxu0
      %7097 = vmatprep.mubr.bf16.mxu0 0
      %7098 = vmatmul.mubr.bf16.gmra.mrb[0].mxu0 %v1352
      %v7099 = vpop.f32.mrb[0].mxu0
      %v7100 = vadd.f32 0.0, %v7099
      %v7101 = vpop.f32.mrb[0].mxu0
      %v7102 = vpop.f32.mrb[0].mxu0
      %v7103 = vadd.f32 0.0, %v7102
      %v7104 = vpop.f32.mrb[0].mxu0
      %7105 = vmatprep.mubr.bf16.mxu0 0
      %7106 = vmatmul.mubr.bf16.gmra.mrb[0].mxu0 %v1355
      %v7107 = vpop.f32.mrb[0].mxu0
      %v7108 = vadd.f32 0.0, %v7107
      %v7109 = vpop.f32.mrb[0].mxu0
      %v7110 = vpop.f32.mrb[0].mxu0
      %v7111 = vadd.f32 0.0, %v7110
      %v7112 = vpop.f32.mrb[0].mxu0
      %7113 = vmatprep.mubr.bf16.mxu0 0
      %7114 = vmatmul.mubr.bf16.gmra.mrb[0].mxu0 %v1358
      %v7115 = vpop.f32.mrb[0].mxu0
      %v7116 = vadd.f32 0.0, %v7115
      %v7117 = vpop.f32.mrb[0].mxu0
      %v7118 = vpop.f32.mrb[0].mxu0
      %v7119 = vadd.f32 0.0, %v7118
      %v7120 = vpop.f32.mrb[0].mxu0
      %7121 = vmatprep.mubr.bf16.mxu0 0
      %7122 = vmatmul.mubr.bf16.gmra.mrb[0].mxu0 %v1361
      %v7123 = vpop.f32.mrb[0].mxu0
      %v7124 = vadd.f32 0.0, %v7123
      %v7125 = vpop.f32.mrb[0].mxu0
      %v7126 = vpop.f32.mrb[0].mxu0
      %v7127 = vadd.f32 0.0, %v7126
      %v7128 = vpop.f32.mrb[0].mxu0
      %7129 = vmatprep.mubr.bf16.mxu0 0
      %7130 = vmatmul.mubr.bf16.gmra.mrb[0].mxu0 %v1364
      %v7131 = vpop.f32.mrb[0].mxu0
      %v7132 = vadd.f32 0.0, %v7131
      %v7133 = vpop.f32.mrb[0].mxu0
      %v7134 = vpop.f32.mrb[0].mxu0
      %v7135 = vadd.f32 0.0, %v7134
      %v7136 = vpop.f32.mrb[0].mxu0
      %7137 = vmatprep.mubr.bf16.mxu0 0
      %7138 = vmatmul.mubr.bf16.gmra.mrb[0].mxu0 %v1367
      %v7139 = vpop.f32.mrb[0].mxu0
      %v7140 = vadd.f32 0.0, %v7139
      %v7141 = vpop.f32.mrb[0].mxu0
      %v7142 = vpop.f32.mrb[0].mxu0
      %v7143 = vadd.f32 0.0, %v7142
      %v7144 = vpop.f32.mrb[0].mxu0
      %7145 = vmatprep.mubr.bf16.mxu0 0
      %7146 = vmatmul.mubr.bf16.gmra.mrb[0].mxu0 %v1370
      %v7147 = vpop.f32.mrb[0].mxu0
      %v7148 = vadd.f32 0.0, %v7147
      %v7149 = vpop.f32.mrb[0].mxu0
      %v7150 = vpop.f32.mrb[0].mxu0
      %v7151 = vadd.f32 0.0, %v7150
      %v7152 = vpop.f32.mrb[0].mxu0
      %7153 = vmatprep.mubr.bf16.mxu0 0
      %7154 = vmatmul.mubr.bf16.gmra.mrb[0].mxu0 %v1373
      %v7155 = vpop.f32.mrb[0].mxu0
      %v7156 = vadd.f32 0.0, %v7155
      %v7157 = vpop.f32.mrb[0].mxu0
      %v7158 = vpop.f32.mrb[0].mxu0
      %v7159 = vadd.f32 0.0, %v7158
      %v7160 = vpop.f32.mrb[0].mxu0
      %7161 = vmatprep.mubr.bf16.mxu0 0
      %7162 = vmatmul.mubr.bf16.gmra.mrb[0].mxu0 %v1376
      %v7163 = vpop.f32.mrb[0].mxu0
      %v7164 = vadd.f32 0.0, %v7163
      %v7165 = vpop.f32.mrb[0].mxu0
      %v7166 = vpop.f32.mrb[0].mxu0
      %v7167 = vadd.f32 0.0, %v7166
      %v7168 = vpop.f32.mrb[0].mxu0
      %7169 = vmatprep.mubr.bf16.mxu0 0
      %7170 = vmatmul.mubr.bf16.gmra.mrb[0].mxu0 %v1379
      %v7171 = vpop.f32.mrb[0].mxu0
      %v7172 = vadd.f32 0.0, %v7171
      %v7173 = vpop.f32.mrb[0].mxu0
      %v7174 = vpop.f32.mrb[0].mxu0
      %v7175 = vadd.f32 0.0, %v7174
      %v7176 = vpop.f32.mrb[0].mxu0
      %7177 = vmatprep.mubr.bf16.mxu0 0
      %7178 = vmatmul.mubr.bf16.gmra.mrb[0].mxu0 %v1382
      %v7179 = vpop.f32.mrb[0].mxu0
      %v7180 = vadd.f32 0.0, %v7179
      %v7181 = vpop.f32.mrb[0].mxu0
      %v7182 = vpop.f32.mrb[0].mxu0
      %v7183 = vadd.f32 0.0, %v7182
      %v7184 = vpop.f32.mrb[0].mxu0
      %7185 = vmatprep.mubr.bf16.mxu0 0
      %7186 = vmatmul.mubr.bf16.gmra.mrb[0].mxu0 %v1385
      %v7187 = vpop.f32.mrb[0].mxu0
      %v7188 = vadd.f32 0.0, %v7187
      %v7189 = vpop.f32.mrb[0].mxu0
      %v7190 = vpop.f32.mrb[0].mxu0
      %v7191 = vadd.f32 0.0, %v7190
      %v7192 = vpop.f32.mrb[0].mxu0
      %7193 = vmatprep.mubr.bf16.mxu0 0
      %7194 = vmatmul.mubr.bf16.gmra.mrb[0].mxu0 %v1388
      %v7195 = vpop.f32.mrb[0].mxu0
      %v7196 = vadd.f32 0.0, %v7195
      %v7197 = vpop.f32.mrb[0].mxu0
      %v7198 = vpop.f32.mrb[0].mxu0
      %v7199 = vadd.f32 0.0, %v7198
      %v7200 = vpop.f32.mrb[0].mxu0
      %7201 = vmatprep.mubr.bf16.mxu0 0
      %7202 = vmatmul.mubr.bf16.gmra.mrb[0].mxu0 %v1391
      %v7203 = vpop.f32.mrb[0].mxu0
      %v7204 = vadd.f32 0.0, %v7203
      %v7205 = vpop.f32.mrb[0].mxu0
      %v7206 = vpop.f32.mrb[0].mxu0
      %v7207 = vadd.f32 0.0, %v7206
      %v7208 = vpop.f32.mrb[0].mxu0
      %7209 = vmatprep.mubr.bf16.mxu0 0
      %7210 = vmatmul.mubr.bf16.gmra.mrb[0].mxu0 %v1394
      %v7211 = vpop.f32.mrb[0].mxu0
      %v7212 = vadd.f32 0.0, %v7211
      %v7213 = vpop.f32.mrb[0].mxu0
      %v7214 = vpop.f32.mrb[0].mxu0
      %v7215 = vadd.f32 0.0, %v7214
      %v7216 = vpop.f32.mrb[0].mxu0
      %7217 = vmatprep.mubr.bf16.mxu0 0
      %7218 = vmatmul.mubr.bf16.gmra.mrb[0].mxu0 %v1397
      %v7219 = vpop.f32.mrb[0].mxu0
      %v7220 = vadd.f32 0.0, %v7219
      %v7221 = vpop.f32.mrb[0].mxu0
      %v7222 = vpop.f32.mrb[0].mxu0
      %v7223 = vadd.f32 0.0, %v7222
      %v7224 = vpop.f32.mrb[0].mxu0
      %7225 = vmatprep.mubr.bf16.mxu0 0
      %7226 = vmatmul.mubr.bf16.gmra.mrb[0].mxu0 %v1400
      %v7227 = vpop.f32.mrb[0].mxu0
      %v7228 = vadd.f32 0.0, %v7227
      %v7229 = vpop.f32.mrb[0].mxu0
      %v7230 = vpop.f32.mrb[0].mxu0
      %v7231 = vadd.f32 0.0, %v7230
      %v7232 = vpop.f32.mrb[0].mxu0
      %7233 = vmatprep.mubr.bf16.mxu0 0
      %7234 = vmatmul.mubr.bf16.gmra.mrb[0].mxu0 %v1403
      %v7235 = vpop.f32.mrb[0].mxu0
      %v7236 = vadd.f32 0.0, %v7235
      %v7237 = vpop.f32.mrb[0].mxu0
      %v7238 = vpop.f32.mrb[0].mxu0
      %v7239 = vadd.f32 0.0, %v7238
      %v7240 = vpop.f32.mrb[0].mxu0
      %7241 = vmatprep.mubr.bf16.mxu0 0
      %7242 = vmatmul.mubr.bf16.gmra.mrb[0].mxu0 %v1406
      %v7243 = vpop.f32.mrb[0].mxu0
      %v7244 = vadd.f32 0.0, %v7243
      %v7245 = vpop.f32.mrb[0].mxu0
      %v7246 = vpop.f32.mrb[0].mxu0
      %v7247 = vadd.f32 0.0, %v7246
      %v7248 = vpop.f32.mrb[0].mxu0
      %7249 = vmatprep.mubr.bf16.mxu0 0
      %7250 = vmatmul.mubr.bf16.gmra.mrb[0].mxu0 %v1409
      %v7251 = vpop.f32.mrb[0].mxu0
      %v7252 = vadd.f32 0.0, %v7251
      %v7253 = vpop.f32.mrb[0].mxu0
      %v7254 = vpop.f32.mrb[0].mxu0
      %v7255 = vadd.f32 0.0, %v7254
      %v7256 = vpop.f32.mrb[0].mxu0
      %7257 = vmatprep.mubr.bf16.mxu0 0
      %7258 = vmatmul.mubr.bf16.gmra.mrb[0].mxu0 %v1412
      %v7259 = vpop.f32.mrb[0].mxu0
      %v7260 = vadd.f32 0.0, %v7259
      %v7261 = vpop.f32.mrb[0].mxu0
      %v7262 = vpop.f32.mrb[0].mxu0
      %v7263 = vadd.f32 0.0, %v7262
      %v7264 = vpop.f32.mrb[0].mxu0
      %7265 = vmatprep.mubr.bf16.mxu0 0
      %7266 = vmatmul.mubr.bf16.gmra.mrb[0].mxu0 %v1415
      %v7267 = vpop.f32.mrb[0].mxu0
      %v7268 = vadd.f32 0.0, %v7267
      %v7269 = vpop.f32.mrb[0].mxu0
      %v7270 = vpop.f32.mrb[0].mxu0
      %v7271 = vadd.f32 0.0, %v7270
      %v7272 = vpop.f32.mrb[0].mxu0
      %7273 = vmatprep.mubr.bf16.mxu0 0
      %7274 = vmatmul.mubr.bf16.gmra.mrb[0].mxu0 %v1418
      %v7275 = vpop.f32.mrb[0].mxu0
      %v7276 = vadd.f32 0.0, %v7275
      %v7277 = vpop.f32.mrb[0].mxu0
      %v7278 = vpop.f32.mrb[0].mxu0
      %v7279 = vadd.f32 0.0, %v7278
      %v7280 = vpop.f32.mrb[0].mxu0
      %7281 = vmatprep.mubr.bf16.mxu0 0
      %7282 = vmatmul.mubr.bf16.gmra.mrb[0].mxu0 %v1421
      %v7283 = vpop.f32.mrb[0].mxu0
      %v7284 = vadd.f32 0.0, %v7283
      %v7285 = vpop.f32.mrb[0].mxu0
      %v7286 = vpop.f32.mrb[0].mxu0
      %v7287 = vadd.f32 0.0, %v7286
      %v7288 = vpop.f32.mrb[0].mxu0
      %7289 = vmatprep.mubr.bf16.mxu0 0
      %7290 = vmatmul.mubr.bf16.gmra.mrb[0].mxu0 %v1424
      %v7291 = vpop.f32.mrb[0].mxu0
      %v7292 = vadd.f32 0.0, %v7291
      %v7293 = vpop.f32.mrb[0].mxu0
      %v7294 = vpop.f32.mrb[0].mxu0
      %v7295 = vadd.f32 0.0, %v7294
      %v7296 = vpop.f32.mrb[0].mxu0
      %7297 = vmatprep.mubr.bf16.mxu0 0
      %7298 = vmatmul.mubr.bf16.gmra.mrb[0].mxu0 %v1427
      %v7299 = vpop.f32.mrb[0].mxu0
      %v7300 = vadd.f32 0.0, %v7299
      %v7301 = vpop.f32.mrb[0].mxu0
      %v7302 = vpop.f32.mrb[0].mxu0
      %v7303 = vadd.f32 0.0, %v7302
      %v7304 = vpop.f32.mrb[0].mxu0
      %7305 = vmatprep.mubr.bf16.mxu0 0
      %7306 = vmatmul.mubr.bf16.gmra.mrb[0].mxu0 %v1430
      %v7307 = vpop.f32.mrb[0].mxu0
      %v7308 = vadd.f32 0.0, %v7307
      %v7309 = vpop.f32.mrb[0].mxu0
      %v7310 = vpop.f32.mrb[0].mxu0
      %v7311 = vadd.f32 0.0, %v7310
      %v7312 = vpop.f32.mrb[0].mxu0
      %7313 = vmatprep.mubr.bf16.mxu0 0
      %7314 = vmatmul.mubr.bf16.gmra.mrb[0].mxu0 %v1433
      %v7315 = vpop.f32.mrb[0].mxu0
      %v7316 = vadd.f32 0.0, %v7315
      %v7317 = vpop.f32.mrb[0].mxu0
      %v7318 = vpop.f32.mrb[0].mxu0
      %v7319 = vadd.f32 0.0, %v7318
      %v7320 = vpop.f32.mrb[0].mxu0
      %7321 = vmatprep.mubr.bf16.mxu0 0
      %7322 = vmatmul.mubr.bf16.gmra.mrb[0].mxu0 %v1436
      %v7323 = vpop.f32.mrb[0].mxu0
      %v7324 = vadd.f32 0.0, %v7323
      %v7325 = vpop.f32.mrb[0].mxu0
      %v7326 = vpop.f32.mrb[0].mxu0
      %v7327 = vadd.f32 0.0, %v7326
      %v7328 = vpop.f32.mrb[0].mxu0
      %7329 = vmatprep.mubr.bf16.mxu0 0
      %7330 = vmatmul.mubr.bf16.gmra.mrb[0].mxu0 %v1439
      %v7331 = vpop.f32.mrb[0].mxu0
      %v7332 = vadd.f32 0.0, %v7331
      %v7333 = vpop.f32.mrb[0].mxu0
      %v7334 = vpop.f32.mrb[0].mxu0
      %v7335 = vadd.f32 0.0, %v7334
      %v7336 = vpop.f32.mrb[0].mxu0
      %7337 = vmatprep.mubr.bf16.mxu0 0
      %7338 = vmatmul.mubr.bf16.gmra.mrb[0].mxu0 %v1442
      %v7339 = vpop.f32.mrb[0].mxu0
      %v7340 = vadd.f32 0.0, %v7339
      %v7341 = vpop.f32.mrb[0].mxu0
      %v7342 = vpop.f32.mrb[0].mxu0
      %v7343 = vadd.f32 0.0, %v7342
      %v7344 = vpop.f32.mrb[0].mxu0
      %7345 = vmatprep.mubr.bf16.mxu0 0
      %7346 = vmatmul.mubr.bf16.gmra.mrb[0].mxu0 %v1445
      %v7347 = vpop.f32.mrb[0].mxu0
      %v7348 = vadd.f32 0.0, %v7347
      %v7349 = vpop.f32.mrb[0].mxu0
      %v7350 = vpop.f32.mrb[0].mxu0
      %v7351 = vadd.f32 0.0, %v7350
      %v7352 = vpop.f32.mrb[0].mxu0
      %7353 = vmatprep.mubr.bf16.mxu0 0
      %7354 = vmatmul.mubr.bf16.gmra.mrb[0].mxu0 %v1448
      %v7355 = vpop.f32.mrb[0].mxu0
      %v7356 = vadd.f32 0.0, %v7355
      %v7357 = vpop.f32.mrb[0].mxu0
      %v7358 = vpop.f32.mrb[0].mxu0
      %v7359 = vadd.f32 0.0, %v7358
      %v7360 = vpop.f32.mrb[0].mxu0
      %7361 = vmatprep.mubr.bf16.mxu0 0
      %7362 = vmatmul.mubr.bf16.gmra.mrb[0].mxu0 %v1451
      %v7363 = vpop.f32.mrb[0].mxu0
      %v7364 = vadd.f32 0.0, %v7363
      %v7365 = vpop.f32.mrb[0].mxu0
      %v7366 = vpop.f32.mrb[0].mxu0
      %v7367 = vadd.f32 0.0, %v7366
      %v7368 = vpop.f32.mrb[0].mxu0
      %7369 = vmatprep.mubr.bf16.mxu0 0
      %7370 = vmatmul.mubr.bf16.gmra.mrb[0].mxu0 %v1454
      %v7371 = vpop.f32.mrb[0].mxu0
      %v7372 = vadd.f32 0.0, %v7371
      %v7373 = vpop.f32.mrb[0].mxu0
      %v7374 = vpop.f32.mrb[0].mxu0
      %v7375 = vadd.f32 0.0, %v7374
      %v7376 = vpop.f32.mrb[0].mxu0
      %7377 = vmatprep.mubr.bf16.mxu0 0
      %7378 = vmatmul.mubr.bf16.gmra.mrb[0].mxu0 %v1457
      %v7379 = vpop.f32.mrb[0].mxu0
      %v7380 = vadd.f32 0.0, %v7379
      %v7381 = vpop.f32.mrb[0].mxu0
      %v7382 = vpop.f32.mrb[0].mxu0
      %v7383 = vadd.f32 0.0, %v7382
      %v7384 = vpop.f32.mrb[0].mxu0
      %7385 = vmatprep.mubr.bf16.mxu0 0
      %7386 = vmatmul.mubr.bf16.gmra.mrb[0].mxu0 %v1460
      %v7387 = vpop.f32.mrb[0].mxu0
      %v7388 = vadd.f32 0.0, %v7387
      %v7389 = vpop.f32.mrb[0].mxu0
      %v7390 = vpop.f32.mrb[0].mxu0
      %v7391 = vadd.f32 0.0, %v7390
      %v7392 = vpop.f32.mrb[0].mxu0
      %7393 = vmatprep.mubr.bf16.mxu0 0
      %7394 = vmatmul.mubr.bf16.gmra.mrb[0].mxu0 %v1463
      %v7395 = vpop.f32.mrb[0].mxu0
      %v7396 = vadd.f32 0.0, %v7395
      %v7397 = vpop.f32.mrb[0].mxu0
      %v7398 = vpop.f32.mrb[0].mxu0
      %v7399 = vadd.f32 0.0, %v7398
      %v7400 = vpop.f32.mrb[0].mxu0
      %7401 = vmatprep.mubr.bf16.mxu0 0
      %7402 = vmatmul.mubr.bf16.gmra.mrb[0].mxu0 %v1466
      %v7403 = vpop.f32.mrb[0].mxu0
      %v7404 = vadd.f32 0.0, %v7403
      %v7405 = vpop.f32.mrb[0].mxu0
      %v7406 = vpop.f32.mrb[0].mxu0
      %v7407 = vadd.f32 0.0, %v7406
      %v7408 = vpop.f32.mrb[0].mxu0
      %7409 = vmatprep.mubr.bf16.mxu0 0
      %7410 = vmatmul.mubr.bf16.gmra.mrb[0].mxu0 %v1469
      %v7411 = vpop.f32.mrb[0].mxu0
      %v7412 = vadd.f32 0.0, %v7411
      %v7413 = vpop.f32.mrb[0].mxu0
      %v7414 = vpop.f32.mrb[0].mxu0
      %v7415 = vadd.f32 0.0, %v7414
      %v7416 = vpop.f32.mrb[0].mxu0
      %7417 = vmatprep.mubr.bf16.mxu0 0
      %7418 = vmatmul.mubr.bf16.gmra.mrb[0].mxu0 %v1472
      %v7419 = vpop.f32.mrb[0].mxu0
      %v7420 = vadd.f32 0.0, %v7419
      %v7421 = vpop.f32.mrb[0].mxu0
      %v7422 = vpop.f32.mrb[0].mxu0
      %v7423 = vadd.f32 0.0, %v7422
      %v7424 = vpop.f32.mrb[0].mxu0
      %7425 = vmatprep.mubr.bf16.mxu0 0
      %7426 = vmatmul.mubr.bf16.gmra.mrb[0].mxu0 %v1475
      %v7427 = vpop.f32.mrb[0].mxu0
      %v7428 = vadd.f32 0.0, %v7427
      %v7429 = vpop.f32.mrb[0].mxu0
      %v7430 = vpop.f32.mrb[0].mxu0
      %v7431 = vadd.f32 0.0, %v7430
      %v7432 = vpop.f32.mrb[0].mxu0
      %7433 = vmatprep.mubr.bf16.mxu0 0
      %7434 = vmatmul.mubr.bf16.gmra.mrb[0].mxu0 %v1478
      %v7435 = vpop.f32.mrb[0].mxu0
      %v7436 = vadd.f32 0.0, %v7435
      %v7437 = vpop.f32.mrb[0].mxu0
      %v7438 = vpop.f32.mrb[0].mxu0
      %v7439 = vadd.f32 0.0, %v7438
      %v7440 = vpop.f32.mrb[0].mxu0
      %7441 = vmatprep.mubr.bf16.mxu0 0
      %7442 = vmatmul.mubr.bf16.gmra.mrb[0].mxu0 %v4832
      %v7443 = vpop.f32.mrb[0].mxu0
      %v7444 = vadd.f32 0.0, %v7443
      %v7445 = vpop.f32.mrb[0].mxu0
      %v7446 = vpop.f32.mrb[0].mxu0
      %v7447 = vadd.f32 0.0, %v7446
      %v7448 = vpop.f32.mrb[0].mxu0
      %7449 = vmatprep.mubr.bf16.mxu0 0
      %7450 = vmatmul.mubr.bf16.gmra.mrb[0].mxu0 %v4835
      %v7451 = vpop.f32.mrb[0].mxu0
      %v7452 = vadd.f32 0.0, %v7451
      %v7453 = vpop.f32.mrb[0].mxu0
      %v7454 = vpop.f32.mrb[0].mxu0
      %v7455 = vadd.f32 0.0, %v7454
      %v7456 = vpop.f32.mrb[0].mxu0
      %7457 = vmatprep.mubr.bf16.mxu0 0
      %7458 = vmatmul.mubr.bf16.gmra.mrb[0].mxu0 %v6921
      %v7459 = vpop.f32.mrb[0].mxu0
      %v7460 = vadd.f32 0.0, %v7459
      %v7461 = vpop.f32.mrb[0].mxu0
      %v7462 = vpop.f32.mrb[0].mxu0
      %v7463 = vadd.f32 0.0, %v7462
      %v7464 = vpop.f32.mrb[0].mxu0
      %7465 = vmatprep.mubr.bf16.mxu0 0
      %7466 = vmatmul.mubr.bf16.gmra.mrb[0].mxu0 %v6924
      %v7467 = vpop.f32.mrb[0].mxu0
      %v7468 = vadd.f32 0.0, %v7467
      %v7469 = vpop.f32.mrb[0].mxu0
      %v7470 = vpop.f32.mrb[0].mxu0
      %v7471 = vadd.f32 0.0, %v7470
      %v7472 = vpop.f32.mrb[0].mxu0
      %7473 = vdwg.mxu0
      %v7474 = vadd.f32 %v6770, %v6964
      %v7475 = vadd.f32 %v6771, %v6967
      %v7476 = vadd.f32 %v6772, %v6972
      %v7477 = vadd.f32 %v6773, %v6975
      %v7478 = vadd.f32 %v6774, %v6980
      %v7479 = vadd.f32 %v6775, %v6983
      %v7480 = vadd.f32 %v6776, %v6988
      %v7481 = vadd.f32 %v6777, %v6991
      %v7482 = vadd.f32 %v6778, %v6996
      %v7483 = vadd.f32 %v6779, %v6999
      %v7484 = vadd.f32 %v6780, %v7004
      %v7485 = vadd.f32 %v6781, %v7007
      %v7486 = vadd.f32 %v6782, %v7012
      %v7487 = vadd.f32 %v6783, %v7015
      %v7488 = vadd.f32 %v6784, %v7020
      %v7489 = vadd.f32 %v6785, %v7023
      %v7490 = vadd.f32 %v6786, %v7028
      %v7491 = vadd.f32 %v6787, %v7031
      %v7492 = vadd.f32 %v6788, %v7036
      %v7493 = vadd.f32 %v6789, %v7039
      %v7494 = vadd.f32 %v6790, %v7044
      %v7495 = vadd.f32 %v6791, %v7047
      %v7496 = vadd.f32 %v6792, %v7052
      %v7497 = vadd.f32 %v6793, %v7055
      %v7498 = vadd.f32 %v6794, %v7060
      %v7499 = vadd.f32 %v6795, %v7063
      %v7500 = vadd.f32 %v6796, %v7068
      %v7501 = vadd.f32 %v6797, %v7071
      %v7502 = vadd.f32 %v6798, %v7076
      %v7503 = vadd.f32 %v6799, %v7079
      %v7504 = vadd.f32 %v6800, %v7084
      %v7505 = vadd.f32 %v6801, %v7087
      %v7506 = vadd.f32 %v6802, %v7092
      %v7507 = vadd.f32 %v6803, %v7095
      %v7508 = vadd.f32 %v6804, %v7100
      %v7509 = vadd.f32 %v6805, %v7103
      %v7510 = vadd.f32 %v6806, %v7108
      %v7511 = vadd.f32 %v6807, %v7111
      %v7512 = vadd.f32 %v6808, %v7116
      %v7513 = vadd.f32 %v6809, %v7119
      %v7514 = vadd.f32 %v6810, %v7124
      %v7515 = vadd.f32 %v6811, %v7127
      %v7516 = vadd.f32 %v6812, %v7132
      %v7517 = vadd.f32 %v6813, %v7135
      %v7518 = vadd.f32 %v6814, %v7140
      %v7519 = vadd.f32 %v6815, %v7143
      %v7520 = vadd.f32 %v6816, %v7148
      %v7521 = vadd.f32 %v6817, %v7151
      %v7522 = vadd.f32 %v6818, %v7156
      %v7523 = vadd.f32 %v6819, %v7159
      %v7524 = vadd.f32 %v6820, %v7164
      %v7525 = vadd.f32 %v6821, %v7167
      %v7526 = vadd.f32 %v6822, %v7172
      %v7527 = vadd.f32 %v6823, %v7175
      %v7528 = vadd.f32 %v6824, %v7180
      %v7529 = vadd.f32 %v6825, %v7183
      %v7530 = vadd.f32 %v6826, %v7188
      %v7531 = vadd.f32 %v6827, %v7191
      %v7532 = vadd.f32 %v6828, %v7196
      %v7533 = vadd.f32 %v6829, %v7199
      %v7534 = vadd.f32 %v6830, %v7204
      %v7535 = vadd.f32 %v6831, %v7207
      %v7536 = vadd.f32 %v6832, %v7212
      %v7537 = vadd.f32 %v6833, %v7215
      %v7538 = vadd.f32 %v6834, %v7220
      %v7539 = vadd.f32 %v6835, %v7223
      %v7540 = vadd.f32 %v6836, %v7228
      %v7541 = vadd.f32 %v6837, %v7231
      %v7542 = vadd.f32 %v6838, %v7236
      %v7543 = vadd.f32 %v6839, %v7239
      %v7544 = vadd.f32 %v6840, %v7244
      %v7545 = vadd.f32 %v6841, %v7247
      %v7546 = vadd.f32 %v6842, %v7252
      %v7547 = vadd.f32 %v6843, %v7255
      %v7548 = vadd.f32 %v6844, %v7260
      %v7549 = vadd.f32 %v6845, %v7263
      %v7550 = vadd.f32 %v6846, %v7268
      %v7551 = vadd.f32 %v6847, %v7271
      %v7552 = vadd.f32 %v6848, %v7276
      %v7553 = vadd.f32 %v6849, %v7279
      %v7554 = vadd.f32 %v6850, %v7284
      %v7555 = vadd.f32 %v6851, %v7287
      %v7556 = vadd.f32 %v6852, %v7292
      %v7557 = vadd.f32 %v6853, %v7295
      %v7558 = vadd.f32 %v6854, %v7300
      %v7559 = vadd.f32 %v6855, %v7303
      %v7560 = vadd.f32 %v6856, %v7308
      %v7561 = vadd.f32 %v6857, %v7311
      %v7562 = vadd.f32 %v6858, %v7316
      %v7563 = vadd.f32 %v6859, %v7319
      %v7564 = vadd.f32 %v6860, %v7324
      %v7565 = vadd.f32 %v6861, %v7327
      %v7566 = vadd.f32 %v6862, %v7332
      %v7567 = vadd.f32 %v6863, %v7335
      %v7568 = vadd.f32 %v6864, %v7340
      %v7569 = vadd.f32 %v6865, %v7343
      %v7570 = vadd.f32 %v6866, %v7348
      %v7571 = vadd.f32 %v6867, %v7351
      %v7572 = vadd.f32 %v6868, %v7356
      %v7573 = vadd.f32 %v6869, %v7359
      %v7574 = vadd.f32 %v6870, %v7364
      %v7575 = vadd.f32 %v6871, %v7367
      %v7576 = vadd.f32 %v6872, %v7372
      %v7577 = vadd.f32 %v6873, %v7375
      %v7578 = vadd.f32 %v6874, %v7380
      %v7579 = vadd.f32 %v6875, %v7383
      %v7580 = vadd.f32 %v6876, %v7388
      %v7581 = vadd.f32 %v6877, %v7391
      %v7582 = vadd.f32 %v6878, %v7396
      %v7583 = vadd.f32 %v6879, %v7399
      %v7584 = vadd.f32 %v6880, %v7404
      %v7585 = vadd.f32 %v6881, %v7407
      %v7586 = vadd.f32 %v6882, %v7412
      %v7587 = vadd.f32 %v6883, %v7415
      %v7588 = vadd.f32 %v6884, %v7420
      %v7589 = vadd.f32 %v6885, %v7423
      %v7590 = vadd.f32 %v6886, %v7428
      %v7591 = vadd.f32 %v6887, %v7431
      %v7592 = vadd.f32 %v6888, %v7436
      %v7593 = vadd.f32 %v6889, %v7439
      %v7594 = vadd.f32 %v6890, %v7444
      %v7595 = vadd.f32 %v6891, %v7447
      %v7596 = vadd.f32 %v6892, %v7452
      %v7597 = vadd.f32 %v6893, %v7455
      %v7598 = vadd.f32 %v6894, %v7460
      %v7599 = vadd.f32 %v6895, %v7463
      %v7600 = vadd.f32 %v6896, %v7468
      %v7601 = vadd.f32 %v6897, %v7471
      %v7602 = vrot.slane %v574, 2
      %v7603 = vrot.slane %v575, 2
      %v7604 = vsel %vm2772, %v7602, %v7603
      %v7605 = vrot.slane %v576, 2
      %v7606 = vsel %vm2772, %v7603, %v7605
      %v7607 = vrot.slane %v577, 2
      %v7608 = vsel %vm2772, %v7605, %v7607
      %v7609 = vrot.slane %v578, 2
      %v7610 = vsel %vm2772, %v7607, %v7609
      %v7615 = vpack.c.bf16 %v7606, %v7604
      %v7616 = vpack.c.bf16 %v7610, %v7608
      %s7617 = scalar_lea.vmem %s1, 16
      %v7618 = vld [vmem:[%s7617] sm:$0x3]
      %v7620 = vsel %vm1287, %v7615, 0
      %v7623 = vsel %vm1287, %v7616, 0
      %v7626 = vand.u32 %v7618, %v1483
      %7628 = vmatprep.subr.bf16.mxu0 0
      %7629 = vmatpush1.bf16.msra.mxu0 %v7626
      %7630 = vmatprep.subr.bf16.mxu0 0
      %7631 = vmatpush1.bf16.msra.mxu0 0
      %7632 = vmatprep.subr.bf16.mxu0 0
      %7633 = vmatpush1.bf16.msra.mxu0 0
      %7634 = vmatprep.subr.bf16.mxu0 0
      %7635 = vmatpush1.bf16.msra.mxu0 0
      %7636 = vmatprep.subr.bf16.mxu0 0
      %7637 = vmatpush1.bf16.msra.mxu0 0
      %7638 = vmatprep.subr.bf16.mxu0 0
      %7639 = vmatpush1.bf16.msra.mxu0 0
      %7640 = vmatprep.subr.bf16.mxu0 0
      %7641 = vmatpush1.bf16.msra.mxu0 0
      %7642 = vmatprep.subr.bf16.mxu0 0
      %7643 = vmatpush1.bf16.msra.mxu0 0
      %7644 = vmatprep.subr.bf16.mxu0 0
      %7645 = vmatpush1.bf16.msra.mxu0 0
      %7646 = vmatprep.subr.bf16.mxu0 0
      %7647 = vmatpush1.bf16.msra.mxu0 0
      %7648 = vmatprep.subr.bf16.mxu0 0
      %7649 = vmatpush1.bf16.msra.mxu0 0
      %7650 = vmatprep.subr.bf16.mxu0 0
      %7651 = vmatpush1.bf16.msra.mxu0 0
      %7652 = vmatprep.subr.bf16.mxu0 0
      %7653 = vmatpush1.bf16.msra.mxu0 0
      %7654 = vmatprep.subr.bf16.mxu0 0
      %7655 = vmatpush1.bf16.msra.mxu0 0
      %7656 = vmatprep.subr.bf16.mxu0 0
      %7657 = vmatpush1.bf16.msra.mxu0 0
      %7658 = vmatprep.subr.bf16.mxu0 0
      %7659 = vmatpush1.bf16.msra.mxu0 0
      %7660 = vmatprep.mubr.bf16.mxu0 0
      %7661 = vmatmul.mubr.bf16.gmra.mrb[0].mxu0 %v3268
      %v7662 = vpop.f32.mrb[0].mxu0
      %v7663 = vadd.f32 0.0, %v7662
      %v7664 = vpop.f32.mrb[0].mxu0
      %v7665 = vpop.f32.mrb[0].mxu0
      %v7666 = vadd.f32 0.0, %v7665
      %v7667 = vpop.f32.mrb[0].mxu0
      %7668 = vmatprep.mubr.bf16.mxu0 0
      %7669 = vmatmul.mubr.bf16.gmra.mrb[0].mxu0 %v3271
      %v7670 = vpop.f32.mrb[0].mxu0
      %v7671 = vadd.f32 0.0, %v7670
      %v7672 = vpop.f32.mrb[0].mxu0
      %v7673 = vpop.f32.mrb[0].mxu0
      %v7674 = vadd.f32 0.0, %v7673
      %v7675 = vpop.f32.mrb[0].mxu0
      %7676 = vmatprep.mubr.bf16.mxu0 0
      %7677 = vmatmul.mubr.bf16.gmra.mrb[0].mxu0 %v3274
      %v7678 = vpop.f32.mrb[0].mxu0
      %v7679 = vadd.f32 0.0, %v7678
      %v7680 = vpop.f32.mrb[0].mxu0
      %v7681 = vpop.f32.mrb[0].mxu0
      %v7682 = vadd.f32 0.0, %v7681
      %v7683 = vpop.f32.mrb[0].mxu0
      %7684 = vmatprep.mubr.bf16.mxu0 0
      %7685 = vmatmul.mubr.bf16.gmra.mrb[0].mxu0 %v3277
      %v7686 = vpop.f32.mrb[0].mxu0
      %v7687 = vadd.f32 0.0, %v7686
      %v7688 = vpop.f32.mrb[0].mxu0
      %v7689 = vpop.f32.mrb[0].mxu0
      %v7690 = vadd.f32 0.0, %v7689
      %v7691 = vpop.f32.mrb[0].mxu0
      %7692 = vmatprep.mubr.bf16.mxu0 0
      %7693 = vmatmul.mubr.bf16.gmra.mrb[0].mxu0 %v3280
      %v7694 = vpop.f32.mrb[0].mxu0
      %v7695 = vadd.f32 0.0, %v7694
      %v7696 = vpop.f32.mrb[0].mxu0
      %v7697 = vpop.f32.mrb[0].mxu0
      %v7698 = vadd.f32 0.0, %v7697
      %v7699 = vpop.f32.mrb[0].mxu0
      %7700 = vmatprep.mubr.bf16.mxu0 0
      %7701 = vmatmul.mubr.bf16.gmra.mrb[0].mxu0 %v3283
      %v7702 = vpop.f32.mrb[0].mxu0
      %v7703 = vadd.f32 0.0, %v7702
      %v7704 = vpop.f32.mrb[0].mxu0
      %v7705 = vpop.f32.mrb[0].mxu0
      %v7706 = vadd.f32 0.0, %v7705
      %v7707 = vpop.f32.mrb[0].mxu0
      %7708 = vmatprep.mubr.bf16.mxu0 0
      %7709 = vmatmul.mubr.bf16.gmra.mrb[0].mxu0 %v3286
      %v7710 = vpop.f32.mrb[0].mxu0
      %v7711 = vadd.f32 0.0, %v7710
      %v7712 = vpop.f32.mrb[0].mxu0
      %v7713 = vpop.f32.mrb[0].mxu0
      %v7714 = vadd.f32 0.0, %v7713
      %v7715 = vpop.f32.mrb[0].mxu0
      %7716 = vmatprep.mubr.bf16.mxu0 0
      %7717 = vmatmul.mubr.bf16.gmra.mrb[0].mxu0 %v3289
      %v7718 = vpop.f32.mrb[0].mxu0
      %v7719 = vadd.f32 0.0, %v7718
      %v7720 = vpop.f32.mrb[0].mxu0
      %v7721 = vpop.f32.mrb[0].mxu0
      %v7722 = vadd.f32 0.0, %v7721
      %v7723 = vpop.f32.mrb[0].mxu0
      %7724 = vmatprep.mubr.bf16.mxu0 0
      %7725 = vmatmul.mubr.bf16.gmra.mrb[0].mxu0 %v3292
      %v7726 = vpop.f32.mrb[0].mxu0
      %v7727 = vadd.f32 0.0, %v7726
      %v7728 = vpop.f32.mrb[0].mxu0
      %v7729 = vpop.f32.mrb[0].mxu0
      %v7730 = vadd.f32 0.0, %v7729
      %v7731 = vpop.f32.mrb[0].mxu0
      %7732 = vmatprep.mubr.bf16.mxu0 0
      %7733 = vmatmul.mubr.bf16.gmra.mrb[0].mxu0 %v3295
      %v7734 = vpop.f32.mrb[0].mxu0
      %v7735 = vadd.f32 0.0, %v7734
      %v7736 = vpop.f32.mrb[0].mxu0
      %v7737 = vpop.f32.mrb[0].mxu0
      %v7738 = vadd.f32 0.0, %v7737
      %v7739 = vpop.f32.mrb[0].mxu0
      %7740 = vmatprep.mubr.bf16.mxu0 0
      %7741 = vmatmul.mubr.bf16.gmra.mrb[0].mxu0 %v3298
      %v7742 = vpop.f32.mrb[0].mxu0
      %v7743 = vadd.f32 0.0, %v7742
      %v7744 = vpop.f32.mrb[0].mxu0
      %v7745 = vpop.f32.mrb[0].mxu0
      %v7746 = vadd.f32 0.0, %v7745
      %v7747 = vpop.f32.mrb[0].mxu0
      %7748 = vmatprep.mubr.bf16.mxu0 0
      %7749 = vmatmul.mubr.bf16.gmra.mrb[0].mxu0 %v3301
      %v7750 = vpop.f32.mrb[0].mxu0
      %v7751 = vadd.f32 0.0, %v7750
      %v7752 = vpop.f32.mrb[0].mxu0
      %v7753 = vpop.f32.mrb[0].mxu0
      %v7754 = vadd.f32 0.0, %v7753
      %v7755 = vpop.f32.mrb[0].mxu0
      %7756 = vmatprep.mubr.bf16.mxu0 0
      %7757 = vmatmul.mubr.bf16.gmra.mrb[0].mxu0 %v3304
      %v7758 = vpop.f32.mrb[0].mxu0
      %v7759 = vadd.f32 0.0, %v7758
      %v7760 = vpop.f32.mrb[0].mxu0
      %v7761 = vpop.f32.mrb[0].mxu0
      %v7762 = vadd.f32 0.0, %v7761
      %v7763 = vpop.f32.mrb[0].mxu0
      %7764 = vmatprep.mubr.bf16.mxu0 0
      %7765 = vmatmul.mubr.bf16.gmra.mrb[0].mxu0 %v3307
      %v7766 = vpop.f32.mrb[0].mxu0
      %v7767 = vadd.f32 0.0, %v7766
      %v7768 = vpop.f32.mrb[0].mxu0
      %v7769 = vpop.f32.mrb[0].mxu0
      %v7770 = vadd.f32 0.0, %v7769
      %v7771 = vpop.f32.mrb[0].mxu0
      %7772 = vmatprep.mubr.bf16.mxu0 0
      %7773 = vmatmul.mubr.bf16.gmra.mrb[0].mxu0 %v3310
      %v7774 = vpop.f32.mrb[0].mxu0
      %v7775 = vadd.f32 0.0, %v7774
      %v7776 = vpop.f32.mrb[0].mxu0
      %v7777 = vpop.f32.mrb[0].mxu0
      %v7778 = vadd.f32 0.0, %v7777
      %v7779 = vpop.f32.mrb[0].mxu0
      %7780 = vmatprep.mubr.bf16.mxu0 0
      %7781 = vmatmul.mubr.bf16.gmra.mrb[0].mxu0 %v3313
      %v7782 = vpop.f32.mrb[0].mxu0
      %v7783 = vadd.f32 0.0, %v7782
      %v7784 = vpop.f32.mrb[0].mxu0
      %v7785 = vpop.f32.mrb[0].mxu0
      %v7786 = vadd.f32 0.0, %v7785
      %v7787 = vpop.f32.mrb[0].mxu0
      %7788 = vmatprep.mubr.bf16.mxu0 0
      %7789 = vmatmul.mubr.bf16.gmra.mrb[0].mxu0 %v3316
      %v7790 = vpop.f32.mrb[0].mxu0
      %v7791 = vadd.f32 0.0, %v7790
      %v7792 = vpop.f32.mrb[0].mxu0
      %v7793 = vpop.f32.mrb[0].mxu0
      %v7794 = vadd.f32 0.0, %v7793
      %v7795 = vpop.f32.mrb[0].mxu0
      %7796 = vmatprep.mubr.bf16.mxu0 0
      %7797 = vmatmul.mubr.bf16.gmra.mrb[0].mxu0 %v3319
      %v7798 = vpop.f32.mrb[0].mxu0
      %v7799 = vadd.f32 0.0, %v7798
      %v7800 = vpop.f32.mrb[0].mxu0
      %v7801 = vpop.f32.mrb[0].mxu0
      %v7802 = vadd.f32 0.0, %v7801
      %v7803 = vpop.f32.mrb[0].mxu0
      %7804 = vmatprep.mubr.bf16.mxu0 0
      %7805 = vmatmul.mubr.bf16.gmra.mrb[0].mxu0 %v3322
      %v7806 = vpop.f32.mrb[0].mxu0
      %v7807 = vadd.f32 0.0, %v7806
      %v7808 = vpop.f32.mrb[0].mxu0
      %v7809 = vpop.f32.mrb[0].mxu0
      %v7810 = vadd.f32 0.0, %v7809
      %v7811 = vpop.f32.mrb[0].mxu0
      %7812 = vmatprep.mubr.bf16.mxu0 0
      %7813 = vmatmul.mubr.bf16.gmra.mrb[0].mxu0 %v3325
      %v7814 = vpop.f32.mrb[0].mxu0
      %v7815 = vadd.f32 0.0, %v7814
      %v7816 = vpop.f32.mrb[0].mxu0
      %v7817 = vpop.f32.mrb[0].mxu0
      %v7818 = vadd.f32 0.0, %v7817
      %v7819 = vpop.f32.mrb[0].mxu0
      %7820 = vmatprep.mubr.bf16.mxu0 0
      %7821 = vmatmul.mubr.bf16.gmra.mrb[0].mxu0 %v3328
      %v7822 = vpop.f32.mrb[0].mxu0
      %v7823 = vadd.f32 0.0, %v7822
      %v7824 = vpop.f32.mrb[0].mxu0
      %v7825 = vpop.f32.mrb[0].mxu0
      %v7826 = vadd.f32 0.0, %v7825
      %v7827 = vpop.f32.mrb[0].mxu0
      %7828 = vmatprep.mubr.bf16.mxu0 0
      %7829 = vmatmul.mubr.bf16.gmra.mrb[0].mxu0 %v3331
      %v7830 = vpop.f32.mrb[0].mxu0
      %v7831 = vadd.f32 0.0, %v7830
      %v7832 = vpop.f32.mrb[0].mxu0
      %v7833 = vpop.f32.mrb[0].mxu0
      %v7834 = vadd.f32 0.0, %v7833
      %v7835 = vpop.f32.mrb[0].mxu0
      %7836 = vmatprep.mubr.bf16.mxu0 0
      %7837 = vmatmul.mubr.bf16.gmra.mrb[0].mxu0 %v3334
      %v7838 = vpop.f32.mrb[0].mxu0
      %v7839 = vadd.f32 0.0, %v7838
      %v7840 = vpop.f32.mrb[0].mxu0
      %v7841 = vpop.f32.mrb[0].mxu0
      %v7842 = vadd.f32 0.0, %v7841
      %v7843 = vpop.f32.mrb[0].mxu0
      %7844 = vmatprep.mubr.bf16.mxu0 0
      %7845 = vmatmul.mubr.bf16.gmra.mrb[0].mxu0 %v3337
      %v7846 = vpop.f32.mrb[0].mxu0
      %v7847 = vadd.f32 0.0, %v7846
      %v7848 = vpop.f32.mrb[0].mxu0
      %v7849 = vpop.f32.mrb[0].mxu0
      %v7850 = vadd.f32 0.0, %v7849
      %v7851 = vpop.f32.mrb[0].mxu0
      %7852 = vmatprep.mubr.bf16.mxu0 0
      %7853 = vmatmul.mubr.bf16.gmra.mrb[0].mxu0 %v3340
      %v7854 = vpop.f32.mrb[0].mxu0
      %v7855 = vadd.f32 0.0, %v7854
      %v7856 = vpop.f32.mrb[0].mxu0
      %v7857 = vpop.f32.mrb[0].mxu0
      %v7858 = vadd.f32 0.0, %v7857
      %v7859 = vpop.f32.mrb[0].mxu0
      %7860 = vmatprep.mubr.bf16.mxu0 0
      %7861 = vmatmul.mubr.bf16.gmra.mrb[0].mxu0 %v3343
      %v7862 = vpop.f32.mrb[0].mxu0
      %v7863 = vadd.f32 0.0, %v7862
      %v7864 = vpop.f32.mrb[0].mxu0
      %v7865 = vpop.f32.mrb[0].mxu0
      %v7866 = vadd.f32 0.0, %v7865
      %v7867 = vpop.f32.mrb[0].mxu0
      %7868 = vmatprep.mubr.bf16.mxu0 0
      %7869 = vmatmul.mubr.bf16.gmra.mrb[0].mxu0 %v3346
      %v7870 = vpop.f32.mrb[0].mxu0
      %v7871 = vadd.f32 0.0, %v7870
      %v7872 = vpop.f32.mrb[0].mxu0
      %v7873 = vpop.f32.mrb[0].mxu0
      %v7874 = vadd.f32 0.0, %v7873
      %v7875 = vpop.f32.mrb[0].mxu0
      %7876 = vmatprep.mubr.bf16.mxu0 0
      %7877 = vmatmul.mubr.bf16.gmra.mrb[0].mxu0 %v3349
      %v7878 = vpop.f32.mrb[0].mxu0
      %v7879 = vadd.f32 0.0, %v7878
      %v7880 = vpop.f32.mrb[0].mxu0
      %v7881 = vpop.f32.mrb[0].mxu0
      %v7882 = vadd.f32 0.0, %v7881
      %v7883 = vpop.f32.mrb[0].mxu0
      %7884 = vmatprep.mubr.bf16.mxu0 0
      %7885 = vmatmul.mubr.bf16.gmra.mrb[0].mxu0 %v3352
      %v7886 = vpop.f32.mrb[0].mxu0
      %v7887 = vadd.f32 0.0, %v7886
      %v7888 = vpop.f32.mrb[0].mxu0
      %v7889 = vpop.f32.mrb[0].mxu0
      %v7890 = vadd.f32 0.0, %v7889
      %v7891 = vpop.f32.mrb[0].mxu0
      %7892 = vmatprep.mubr.bf16.mxu0 0
      %7893 = vmatmul.mubr.bf16.gmra.mrb[0].mxu0 %v3355
      %v7894 = vpop.f32.mrb[0].mxu0
      %v7895 = vadd.f32 0.0, %v7894
      %v7896 = vpop.f32.mrb[0].mxu0
      %v7897 = vpop.f32.mrb[0].mxu0
      %v7898 = vadd.f32 0.0, %v7897
      %v7899 = vpop.f32.mrb[0].mxu0
      %7900 = vmatprep.mubr.bf16.mxu0 0
      %7901 = vmatmul.mubr.bf16.gmra.mrb[0].mxu0 %v3358
      %v7902 = vpop.f32.mrb[0].mxu0
      %v7903 = vadd.f32 0.0, %v7902
      %v7904 = vpop.f32.mrb[0].mxu0
      %v7905 = vpop.f32.mrb[0].mxu0
      %v7906 = vadd.f32 0.0, %v7905
      %v7907 = vpop.f32.mrb[0].mxu0
      %7908 = vmatprep.mubr.bf16.mxu0 0
      %7909 = vmatmul.mubr.bf16.gmra.mrb[0].mxu0 %v3361
      %v7910 = vpop.f32.mrb[0].mxu0
      %v7911 = vadd.f32 0.0, %v7910
      %v7912 = vpop.f32.mrb[0].mxu0
      %v7913 = vpop.f32.mrb[0].mxu0
      %v7914 = vadd.f32 0.0, %v7913
      %v7915 = vpop.f32.mrb[0].mxu0
      %7916 = vmatprep.mubr.bf16.mxu0 0
      %7917 = vmatmul.mubr.bf16.gmra.mrb[0].mxu0 %v3364
      %v7918 = vpop.f32.mrb[0].mxu0
      %v7919 = vadd.f32 0.0, %v7918
      %v7920 = vpop.f32.mrb[0].mxu0
      %v7921 = vpop.f32.mrb[0].mxu0
      %v7922 = vadd.f32 0.0, %v7921
      %v7923 = vpop.f32.mrb[0].mxu0
      %7924 = vmatprep.mubr.bf16.mxu0 0
      %7925 = vmatmul.mubr.bf16.gmra.mrb[0].mxu0 %v3367
      %v7926 = vpop.f32.mrb[0].mxu0
      %v7927 = vadd.f32 0.0, %v7926
      %v7928 = vpop.f32.mrb[0].mxu0
      %v7929 = vpop.f32.mrb[0].mxu0
      %v7930 = vadd.f32 0.0, %v7929
      %v7931 = vpop.f32.mrb[0].mxu0
      %7932 = vmatprep.mubr.bf16.mxu0 0
      %7933 = vmatmul.mubr.bf16.gmra.mrb[0].mxu0 %v3370
      %v7934 = vpop.f32.mrb[0].mxu0
      %v7935 = vadd.f32 0.0, %v7934
      %v7936 = vpop.f32.mrb[0].mxu0
      %v7937 = vpop.f32.mrb[0].mxu0
      %v7938 = vadd.f32 0.0, %v7937
      %v7939 = vpop.f32.mrb[0].mxu0
      %7940 = vmatprep.mubr.bf16.mxu0 0
      %7941 = vmatmul.mubr.bf16.gmra.mrb[0].mxu0 %v3373
      %v7942 = vpop.f32.mrb[0].mxu0
      %v7943 = vadd.f32 0.0, %v7942
      %v7944 = vpop.f32.mrb[0].mxu0
      %v7945 = vpop.f32.mrb[0].mxu0
      %v7946 = vadd.f32 0.0, %v7945
      %v7947 = vpop.f32.mrb[0].mxu0
      %7948 = vmatprep.mubr.bf16.mxu0 0
      %7949 = vmatmul.mubr.bf16.gmra.mrb[0].mxu0 %v3376
      %v7950 = vpop.f32.mrb[0].mxu0
      %v7951 = vadd.f32 0.0, %v7950
      %v7952 = vpop.f32.mrb[0].mxu0
      %v7953 = vpop.f32.mrb[0].mxu0
      %v7954 = vadd.f32 0.0, %v7953
      %v7955 = vpop.f32.mrb[0].mxu0
      %7956 = vmatprep.mubr.bf16.mxu0 0
      %7957 = vmatmul.mubr.bf16.gmra.mrb[0].mxu0 %v3379
      %v7958 = vpop.f32.mrb[0].mxu0
      %v7959 = vadd.f32 0.0, %v7958
      %v7960 = vpop.f32.mrb[0].mxu0
      %v7961 = vpop.f32.mrb[0].mxu0
      %v7962 = vadd.f32 0.0, %v7961
      %v7963 = vpop.f32.mrb[0].mxu0
      %7964 = vmatprep.mubr.bf16.mxu0 0
      %7965 = vmatmul.mubr.bf16.gmra.mrb[0].mxu0 %v3382
      %v7966 = vpop.f32.mrb[0].mxu0
      %v7967 = vadd.f32 0.0, %v7966
      %v7968 = vpop.f32.mrb[0].mxu0
      %v7969 = vpop.f32.mrb[0].mxu0
      %v7970 = vadd.f32 0.0, %v7969
      %v7971 = vpop.f32.mrb[0].mxu0
      %7972 = vmatprep.mubr.bf16.mxu0 0
      %7973 = vmatmul.mubr.bf16.gmra.mrb[0].mxu0 %v3385
      %v7974 = vpop.f32.mrb[0].mxu0
      %v7975 = vadd.f32 0.0, %v7974
      %v7976 = vpop.f32.mrb[0].mxu0
      %v7977 = vpop.f32.mrb[0].mxu0
      %v7978 = vadd.f32 0.0, %v7977
      %v7979 = vpop.f32.mrb[0].mxu0
      %7980 = vmatprep.mubr.bf16.mxu0 0
      %7981 = vmatmul.mubr.bf16.gmra.mrb[0].mxu0 %v3388
      %v7982 = vpop.f32.mrb[0].mxu0
      %v7983 = vadd.f32 0.0, %v7982
      %v7984 = vpop.f32.mrb[0].mxu0
      %v7985 = vpop.f32.mrb[0].mxu0
      %v7986 = vadd.f32 0.0, %v7985
      %v7987 = vpop.f32.mrb[0].mxu0
      %7988 = vmatprep.mubr.bf16.mxu0 0
      %7989 = vmatmul.mubr.bf16.gmra.mrb[0].mxu0 %v3391
      %v7990 = vpop.f32.mrb[0].mxu0
      %v7991 = vadd.f32 0.0, %v7990
      %v7992 = vpop.f32.mrb[0].mxu0
      %v7993 = vpop.f32.mrb[0].mxu0
      %v7994 = vadd.f32 0.0, %v7993
      %v7995 = vpop.f32.mrb[0].mxu0
      %7996 = vmatprep.mubr.bf16.mxu0 0
      %7997 = vmatmul.mubr.bf16.gmra.mrb[0].mxu0 %v3394
      %v7998 = vpop.f32.mrb[0].mxu0
      %v7999 = vadd.f32 0.0, %v7998
      %v8000 = vpop.f32.mrb[0].mxu0
      %v8001 = vpop.f32.mrb[0].mxu0
      %v8002 = vadd.f32 0.0, %v8001
      %v8003 = vpop.f32.mrb[0].mxu0
      %8004 = vmatprep.mubr.bf16.mxu0 0
      %8005 = vmatmul.mubr.bf16.gmra.mrb[0].mxu0 %v3397
      %v8006 = vpop.f32.mrb[0].mxu0
      %v8007 = vadd.f32 0.0, %v8006
      %v8008 = vpop.f32.mrb[0].mxu0
      %v8009 = vpop.f32.mrb[0].mxu0
      %v8010 = vadd.f32 0.0, %v8009
      %v8011 = vpop.f32.mrb[0].mxu0
      %8012 = vmatprep.mubr.bf16.mxu0 0
      %8013 = vmatmul.mubr.bf16.gmra.mrb[0].mxu0 %v3400
      %v8014 = vpop.f32.mrb[0].mxu0
      %v8015 = vadd.f32 0.0, %v8014
      %v8016 = vpop.f32.mrb[0].mxu0
      %v8017 = vpop.f32.mrb[0].mxu0
      %v8018 = vadd.f32 0.0, %v8017
      %v8019 = vpop.f32.mrb[0].mxu0
      %8020 = vmatprep.mubr.bf16.mxu0 0
      %8021 = vmatmul.mubr.bf16.gmra.mrb[0].mxu0 %v3403
      %v8022 = vpop.f32.mrb[0].mxu0
      %v8023 = vadd.f32 0.0, %v8022
      %v8024 = vpop.f32.mrb[0].mxu0
      %v8025 = vpop.f32.mrb[0].mxu0
      %v8026 = vadd.f32 0.0, %v8025
      %v8027 = vpop.f32.mrb[0].mxu0
      %8028 = vmatprep.mubr.bf16.mxu0 0
      %8029 = vmatmul.mubr.bf16.gmra.mrb[0].mxu0 %v3406
      %v8030 = vpop.f32.mrb[0].mxu0
      %v8031 = vadd.f32 0.0, %v8030
      %v8032 = vpop.f32.mrb[0].mxu0
      %v8033 = vpop.f32.mrb[0].mxu0
      %v8034 = vadd.f32 0.0, %v8033
      %v8035 = vpop.f32.mrb[0].mxu0
      %8036 = vmatprep.mubr.bf16.mxu0 0
      %8037 = vmatmul.mubr.bf16.gmra.mrb[0].mxu0 %v3409
      %v8038 = vpop.f32.mrb[0].mxu0
      %v8039 = vadd.f32 0.0, %v8038
      %v8040 = vpop.f32.mrb[0].mxu0
      %v8041 = vpop.f32.mrb[0].mxu0
      %v8042 = vadd.f32 0.0, %v8041
      %v8043 = vpop.f32.mrb[0].mxu0
      %8044 = vmatprep.mubr.bf16.mxu0 0
      %8045 = vmatmul.mubr.bf16.gmra.mrb[0].mxu0 %v3412
      %v8046 = vpop.f32.mrb[0].mxu0
      %v8047 = vadd.f32 0.0, %v8046
      %v8048 = vpop.f32.mrb[0].mxu0
      %v8049 = vpop.f32.mrb[0].mxu0
      %v8050 = vadd.f32 0.0, %v8049
      %v8051 = vpop.f32.mrb[0].mxu0
      %8052 = vmatprep.mubr.bf16.mxu0 0
      %8053 = vmatmul.mubr.bf16.gmra.mrb[0].mxu0 %v3415
      %v8054 = vpop.f32.mrb[0].mxu0
      %v8055 = vadd.f32 0.0, %v8054
      %v8056 = vpop.f32.mrb[0].mxu0
      %v8057 = vpop.f32.mrb[0].mxu0
      %v8058 = vadd.f32 0.0, %v8057
      %v8059 = vpop.f32.mrb[0].mxu0
      %8060 = vmatprep.mubr.bf16.mxu0 0
      %8061 = vmatmul.mubr.bf16.gmra.mrb[0].mxu0 %v3418
      %v8062 = vpop.f32.mrb[0].mxu0
      %v8063 = vadd.f32 0.0, %v8062
      %v8064 = vpop.f32.mrb[0].mxu0
      %v8065 = vpop.f32.mrb[0].mxu0
      %v8066 = vadd.f32 0.0, %v8065
      %v8067 = vpop.f32.mrb[0].mxu0
      %8068 = vmatprep.mubr.bf16.mxu0 0
      %8069 = vmatmul.mubr.bf16.gmra.mrb[0].mxu0 %v3421
      %v8070 = vpop.f32.mrb[0].mxu0
      %v8071 = vadd.f32 0.0, %v8070
      %v8072 = vpop.f32.mrb[0].mxu0
      %v8073 = vpop.f32.mrb[0].mxu0
      %v8074 = vadd.f32 0.0, %v8073
      %v8075 = vpop.f32.mrb[0].mxu0
      %8076 = vmatprep.mubr.bf16.mxu0 0
      %8077 = vmatmul.mubr.bf16.gmra.mrb[0].mxu0 %v3424
      %v8078 = vpop.f32.mrb[0].mxu0
      %v8079 = vadd.f32 0.0, %v8078
      %v8080 = vpop.f32.mrb[0].mxu0
      %v8081 = vpop.f32.mrb[0].mxu0
      %v8082 = vadd.f32 0.0, %v8081
      %v8083 = vpop.f32.mrb[0].mxu0
      %8084 = vmatprep.mubr.bf16.mxu0 0
      %8085 = vmatmul.mubr.bf16.gmra.mrb[0].mxu0 %v3427
      %v8086 = vpop.f32.mrb[0].mxu0
      %v8087 = vadd.f32 0.0, %v8086
      %v8088 = vpop.f32.mrb[0].mxu0
      %v8089 = vpop.f32.mrb[0].mxu0
      %v8090 = vadd.f32 0.0, %v8089
      %v8091 = vpop.f32.mrb[0].mxu0
      %8092 = vmatprep.mubr.bf16.mxu0 0
      %8093 = vmatmul.mubr.bf16.gmra.mrb[0].mxu0 %v3430
      %v8094 = vpop.f32.mrb[0].mxu0
      %v8095 = vadd.f32 0.0, %v8094
      %v8096 = vpop.f32.mrb[0].mxu0
      %v8097 = vpop.f32.mrb[0].mxu0
      %v8098 = vadd.f32 0.0, %v8097
      %v8099 = vpop.f32.mrb[0].mxu0
      %8100 = vmatprep.mubr.bf16.mxu0 0
      %8101 = vmatmul.mubr.bf16.gmra.mrb[0].mxu0 %v3433
      %v8102 = vpop.f32.mrb[0].mxu0
      %v8103 = vadd.f32 0.0, %v8102
      %v8104 = vpop.f32.mrb[0].mxu0
      %v8105 = vpop.f32.mrb[0].mxu0
      %v8106 = vadd.f32 0.0, %v8105
      %v8107 = vpop.f32.mrb[0].mxu0
      %8108 = vmatprep.mubr.bf16.mxu0 0
      %8109 = vmatmul.mubr.bf16.gmra.mrb[0].mxu0 %v3436
      %v8110 = vpop.f32.mrb[0].mxu0
      %v8111 = vadd.f32 0.0, %v8110
      %v8112 = vpop.f32.mrb[0].mxu0
      %v8113 = vpop.f32.mrb[0].mxu0
      %v8114 = vadd.f32 0.0, %v8113
      %v8115 = vpop.f32.mrb[0].mxu0
      %8116 = vmatprep.mubr.bf16.mxu0 0
      %8117 = vmatmul.mubr.bf16.gmra.mrb[0].mxu0 %v3439
      %v8118 = vpop.f32.mrb[0].mxu0
      %v8119 = vadd.f32 0.0, %v8118
      %v8120 = vpop.f32.mrb[0].mxu0
      %v8121 = vpop.f32.mrb[0].mxu0
      %v8122 = vadd.f32 0.0, %v8121
      %v8123 = vpop.f32.mrb[0].mxu0
      %8124 = vmatprep.mubr.bf16.mxu0 0
      %8125 = vmatmul.mubr.bf16.gmra.mrb[0].mxu0 %v3442
      %v8126 = vpop.f32.mrb[0].mxu0
      %v8127 = vadd.f32 0.0, %v8126
      %v8128 = vpop.f32.mrb[0].mxu0
      %v8129 = vpop.f32.mrb[0].mxu0
      %v8130 = vadd.f32 0.0, %v8129
      %v8131 = vpop.f32.mrb[0].mxu0
      %8132 = vmatprep.mubr.bf16.mxu0 0
      %8133 = vmatmul.mubr.bf16.gmra.mrb[0].mxu0 %v3445
      %v8134 = vpop.f32.mrb[0].mxu0
      %v8135 = vadd.f32 0.0, %v8134
      %v8136 = vpop.f32.mrb[0].mxu0
      %v8137 = vpop.f32.mrb[0].mxu0
      %v8138 = vadd.f32 0.0, %v8137
      %v8139 = vpop.f32.mrb[0].mxu0
      %8140 = vmatprep.mubr.bf16.mxu0 0
      %8141 = vmatmul.mubr.bf16.gmra.mrb[0].mxu0 %v5531
      %v8142 = vpop.f32.mrb[0].mxu0
      %v8143 = vadd.f32 0.0, %v8142
      %v8144 = vpop.f32.mrb[0].mxu0
      %v8145 = vpop.f32.mrb[0].mxu0
      %v8146 = vadd.f32 0.0, %v8145
      %v8147 = vpop.f32.mrb[0].mxu0
      %8148 = vmatprep.mubr.bf16.mxu0 0
      %8149 = vmatmul.mubr.bf16.gmra.mrb[0].mxu0 %v5534
      %v8150 = vpop.f32.mrb[0].mxu0
      %v8151 = vadd.f32 0.0, %v8150
      %v8152 = vpop.f32.mrb[0].mxu0
      %v8153 = vpop.f32.mrb[0].mxu0
      %v8154 = vadd.f32 0.0, %v8153
      %v8155 = vpop.f32.mrb[0].mxu0
      %8156 = vmatprep.mubr.bf16.mxu0 0
      %8157 = vmatmul.mubr.bf16.gmra.mrb[0].mxu0 %v7620
      %v8158 = vpop.f32.mrb[0].mxu0
      %v8159 = vadd.f32 0.0, %v8158
      %v8160 = vpop.f32.mrb[0].mxu0
      %v8161 = vpop.f32.mrb[0].mxu0
      %v8162 = vadd.f32 0.0, %v8161
      %v8163 = vpop.f32.mrb[0].mxu0
      %8164 = vmatprep.mubr.bf16.mxu0 0
      %8165 = vmatmul.mubr.bf16.gmra.mrb[0].mxu0 %v7623
      %v8166 = vpop.f32.mrb[0].mxu0
      %v8167 = vadd.f32 0.0, %v8166
      %v8168 = vpop.f32.mrb[0].mxu0
      %v8169 = vpop.f32.mrb[0].mxu0
      %v8170 = vadd.f32 0.0, %v8169
      %v8171 = vpop.f32.mrb[0].mxu0
      %8172 = vdwg.mxu0
      %v8173 = vadd.f32 %v7474, %v7663
      %v8174 = vadd.f32 %v7475, %v7666
      %v8175 = vadd.f32 %v7476, %v7671
      %v8176 = vadd.f32 %v7477, %v7674
      %v8177 = vadd.f32 %v7478, %v7679
      %v8178 = vadd.f32 %v7479, %v7682
      %v8179 = vadd.f32 %v7480, %v7687
      %v8180 = vadd.f32 %v7481, %v7690
      %v8181 = vadd.f32 %v7482, %v7695
      %v8182 = vadd.f32 %v7483, %v7698
      %v8183 = vadd.f32 %v7484, %v7703
      %v8184 = vadd.f32 %v7485, %v7706
      %v8185 = vadd.f32 %v7486, %v7711
      %v8186 = vadd.f32 %v7487, %v7714
      %v8187 = vadd.f32 %v7488, %v7719
      %v8188 = vadd.f32 %v7489, %v7722
      %v8189 = vadd.f32 %v7490, %v7727
      %v8190 = vadd.f32 %v7491, %v7730
      %v8191 = vadd.f32 %v7492, %v7735
      %v8192 = vadd.f32 %v7493, %v7738
      %v8193 = vadd.f32 %v7494, %v7743
      %v8194 = vadd.f32 %v7495, %v7746
      %v8195 = vadd.f32 %v7496, %v7751
      %v8196 = vadd.f32 %v7497, %v7754
      %v8197 = vadd.f32 %v7498, %v7759
      %v8198 = vadd.f32 %v7499, %v7762
      %v8199 = vadd.f32 %v7500, %v7767
      %v8200 = vadd.f32 %v7501, %v7770
      %v8201 = vadd.f32 %v7502, %v7775
      %v8202 = vadd.f32 %v7503, %v7778
      %v8203 = vadd.f32 %v7504, %v7783
      %v8204 = vadd.f32 %v7505, %v7786
      %v8205 = vadd.f32 %v7506, %v7791
      %v8206 = vadd.f32 %v7507, %v7794
      %v8207 = vadd.f32 %v7508, %v7799
      %v8208 = vadd.f32 %v7509, %v7802
      %v8209 = vadd.f32 %v7510, %v7807
      %v8210 = vadd.f32 %v7511, %v7810
      %v8211 = vadd.f32 %v7512, %v7815
      %v8212 = vadd.f32 %v7513, %v7818
      %v8213 = vadd.f32 %v7514, %v7823
      %v8214 = vadd.f32 %v7515, %v7826
      %v8215 = vadd.f32 %v7516, %v7831
      %v8216 = vadd.f32 %v7517, %v7834
      %v8217 = vadd.f32 %v7518, %v7839
      %v8218 = vadd.f32 %v7519, %v7842
      %v8219 = vadd.f32 %v7520, %v7847
      %v8220 = vadd.f32 %v7521, %v7850
      %v8221 = vadd.f32 %v7522, %v7855
      %v8222 = vadd.f32 %v7523, %v7858
      %v8223 = vadd.f32 %v7524, %v7863
      %v8224 = vadd.f32 %v7525, %v7866
      %v8225 = vadd.f32 %v7526, %v7871
      %v8226 = vadd.f32 %v7527, %v7874
      %v8227 = vadd.f32 %v7528, %v7879
      %v8228 = vadd.f32 %v7529, %v7882
      %v8229 = vadd.f32 %v7530, %v7887
      %v8230 = vadd.f32 %v7531, %v7890
      %v8231 = vadd.f32 %v7532, %v7895
      %v8232 = vadd.f32 %v7533, %v7898
      %v8233 = vadd.f32 %v7534, %v7903
      %v8234 = vadd.f32 %v7535, %v7906
      %v8235 = vadd.f32 %v7536, %v7911
      %v8236 = vadd.f32 %v7537, %v7914
      %v8237 = vadd.f32 %v7538, %v7919
      %v8238 = vadd.f32 %v7539, %v7922
      %v8239 = vadd.f32 %v7540, %v7927
      %v8240 = vadd.f32 %v7541, %v7930
      %v8241 = vadd.f32 %v7542, %v7935
      %v8242 = vadd.f32 %v7543, %v7938
      %v8243 = vadd.f32 %v7544, %v7943
      %v8244 = vadd.f32 %v7545, %v7946
      %v8245 = vadd.f32 %v7546, %v7951
      %v8246 = vadd.f32 %v7547, %v7954
      %v8247 = vadd.f32 %v7548, %v7959
      %v8248 = vadd.f32 %v7549, %v7962
      %v8249 = vadd.f32 %v7550, %v7967
      %v8250 = vadd.f32 %v7551, %v7970
      %v8251 = vadd.f32 %v7552, %v7975
      %v8252 = vadd.f32 %v7553, %v7978
      %v8253 = vadd.f32 %v7554, %v7983
      %v8254 = vadd.f32 %v7555, %v7986
      %v8255 = vadd.f32 %v7556, %v7991
      %v8256 = vadd.f32 %v7557, %v7994
      %v8257 = vadd.f32 %v7558, %v7999
      %v8258 = vadd.f32 %v7559, %v8002
      %v8259 = vadd.f32 %v7560, %v8007
      %v8260 = vadd.f32 %v7561, %v8010
      %v8261 = vadd.f32 %v7562, %v8015
      %v8262 = vadd.f32 %v7563, %v8018
      %v8263 = vadd.f32 %v7564, %v8023
      %v8264 = vadd.f32 %v7565, %v8026
      %v8265 = vadd.f32 %v7566, %v8031
      %v8266 = vadd.f32 %v7567, %v8034
      %v8267 = vadd.f32 %v7568, %v8039
      %v8268 = vadd.f32 %v7569, %v8042
      %v8269 = vadd.f32 %v7570, %v8047
      %v8270 = vadd.f32 %v7571, %v8050
      %v8271 = vadd.f32 %v7572, %v8055
      %v8272 = vadd.f32 %v7573, %v8058
      %v8273 = vadd.f32 %v7574, %v8063
      %v8274 = vadd.f32 %v7575, %v8066
      %v8275 = vadd.f32 %v7576, %v8071
      %v8276 = vadd.f32 %v7577, %v8074
      %v8277 = vadd.f32 %v7578, %v8079
      %v8278 = vadd.f32 %v7579, %v8082
      %v8279 = vadd.f32 %v7580, %v8087
      %v8280 = vadd.f32 %v7581, %v8090
      %v8281 = vadd.f32 %v7582, %v8095
      %v8282 = vadd.f32 %v7583, %v8098
      %v8283 = vadd.f32 %v7584, %v8103
      %v8284 = vadd.f32 %v7585, %v8106
      %v8285 = vadd.f32 %v7586, %v8111
      %v8286 = vadd.f32 %v7587, %v8114
      %v8287 = vadd.f32 %v7588, %v8119
      %v8288 = vadd.f32 %v7589, %v8122
      %v8289 = vadd.f32 %v7590, %v8127
      %v8290 = vadd.f32 %v7591, %v8130
      %v8291 = vadd.f32 %v7592, %v8135
      %v8292 = vadd.f32 %v7593, %v8138
      %v8293 = vadd.f32 %v7594, %v8143
      %v8294 = vadd.f32 %v7595, %v8146
      %v8295 = vadd.f32 %v7596, %v8151
      %v8296 = vadd.f32 %v7597, %v8154
      %v8297 = vadd.f32 %v7598, %v8159
      %v8298 = vadd.f32 %v7599, %v8162
      %v8299 = vadd.f32 %v7600, %v8167
      %v8300 = vadd.f32 %v7601, %v8170
      %vm8301 = vcmask 130048
      %8302 = vst.msk [vmem:[%s232] sm:$0xff] %vm8301, %v8173
      %8303 = vst.msk [vmem:[%s232 + $0x8] sm:$0xff] %vm8301, %v8174
      %8304 = vst.msk [vmem:[%s232 + $0x10] sm:$0xff] %vm8301, %v8175
      %8305 = vst.msk [vmem:[%s232 + $0x18] sm:$0xff] %vm8301, %v8176
      %8306 = vst.msk [vmem:[%s232 + $0x20] sm:$0xff] %vm8301, %v8177
      %8307 = vst.msk [vmem:[%s232 + $0x28] sm:$0xff] %vm8301, %v8178
      %8308 = vst.msk [vmem:[%s232 + $0x30] sm:$0xff] %vm8301, %v8179
      %8309 = vst.msk [vmem:[%s232 + $0x38] sm:$0xff] %vm8301, %v8180
      %8310 = vst.msk [vmem:[%s232 + $0x40] sm:$0xff] %vm8301, %v8181
      %8311 = vst.msk [vmem:[%s232 + $0x48] sm:$0xff] %vm8301, %v8182
      %8312 = vst.msk [vmem:[%s232 + $0x50] sm:$0xff] %vm8301, %v8183
      %8313 = vst.msk [vmem:[%s232 + $0x58] sm:$0xff] %vm8301, %v8184
      %8314 = vst.msk [vmem:[%s232 + $0x60] sm:$0xff] %vm8301, %v8185
      %8315 = vst.msk [vmem:[%s232 + $0x68] sm:$0xff] %vm8301, %v8186
      %8316 = vst.msk [vmem:[%s232 + $0x70] sm:$0xff] %vm8301, %v8187
      %8317 = vst.msk [vmem:[%s232 + $0x78] sm:$0xff] %vm8301, %v8188
      %8318 = vst.msk [vmem:[%s232 + $0x80] sm:$0xff] %vm8301, %v8189
      %8319 = vst.msk [vmem:[%s232 + $0x88] sm:$0xff] %vm8301, %v8190
      %8320 = vst.msk [vmem:[%s232 + $0x90] sm:$0xff] %vm8301, %v8191
      %8321 = vst.msk [vmem:[%s232 + $0x98] sm:$0xff] %vm8301, %v8192
      %8322 = vst.msk [vmem:[%s232 + $0xa0] sm:$0xff] %vm8301, %v8193
      %8323 = vst.msk [vmem:[%s232 + $0xa8] sm:$0xff] %vm8301, %v8194
      %8324 = vst.msk [vmem:[%s232 + $0xb0] sm:$0xff] %vm8301, %v8195
      %8325 = vst.msk [vmem:[%s232 + $0xb8] sm:$0xff] %vm8301, %v8196
      %8326 = vst.msk [vmem:[%s232 + $0xc0] sm:$0xff] %vm8301, %v8197
      %8327 = vst.msk [vmem:[%s232 + $0xc8] sm:$0xff] %vm8301, %v8198
      %8328 = vst.msk [vmem:[%s232 + $0xd0] sm:$0xff] %vm8301, %v8199
      %8329 = vst.msk [vmem:[%s232 + $0xd8] sm:$0xff] %vm8301, %v8200
      %8330 = vst.msk [vmem:[%s232 + $0xe0] sm:$0xff] %vm8301, %v8201
      %8331 = vst.msk [vmem:[%s232 + $0xe8] sm:$0xff] %vm8301, %v8202
      %8332 = vst.msk [vmem:[%s232 + $0xf0] sm:$0xff] %vm8301, %v8203
      %8333 = vst.msk [vmem:[%s232 + $0xf8] sm:$0xff] %vm8301, %v8204
      %8334 = vst.msk [vmem:[%s232 + $0x100] sm:$0xff] %vm8301, %v8205
      %8335 = vst.msk [vmem:[%s232 + $0x108] sm:$0xff] %vm8301, %v8206
      %8336 = vst.msk [vmem:[%s232 + $0x110] sm:$0xff] %vm8301, %v8207
      %8337 = vst.msk [vmem:[%s232 + $0x118] sm:$0xff] %vm8301, %v8208
      %8338 = vst.msk [vmem:[%s232 + $0x120] sm:$0xff] %vm8301, %v8209
      %8339 = vst.msk [vmem:[%s232 + $0x128] sm:$0xff] %vm8301, %v8210
      %8340 = vst.msk [vmem:[%s232 + $0x130] sm:$0xff] %vm8301, %v8211
      %8341 = vst.msk [vmem:[%s232 + $0x138] sm:$0xff] %vm8301, %v8212
      %8342 = vst.msk [vmem:[%s232 + $0x140] sm:$0xff] %vm8301, %v8213
      %8343 = vst.msk [vmem:[%s232 + $0x148] sm:$0xff] %vm8301, %v8214
      %8344 = vst.msk [vmem:[%s232 + $0x150] sm:$0xff] %vm8301, %v8215
      %8345 = vst.msk [vmem:[%s232 + $0x158] sm:$0xff] %vm8301, %v8216
      %8346 = vst.msk [vmem:[%s232 + $0x160] sm:$0xff] %vm8301, %v8217
      %8347 = vst.msk [vmem:[%s232 + $0x168] sm:$0xff] %vm8301, %v8218
      %8348 = vst.msk [vmem:[%s232 + $0x170] sm:$0xff] %vm8301, %v8219
      %8349 = vst.msk [vmem:[%s232 + $0x178] sm:$0xff] %vm8301, %v8220
      %8350 = vst.msk [vmem:[%s232 + $0x180] sm:$0xff] %vm8301, %v8221
      %8351 = vst.msk [vmem:[%s232 + $0x188] sm:$0xff] %vm8301, %v8222
      %8352 = vst.msk [vmem:[%s232 + $0x190] sm:$0xff] %vm8301, %v8223
      %8353 = vst.msk [vmem:[%s232 + $0x198] sm:$0xff] %vm8301, %v8224
      %8354 = vst.msk [vmem:[%s232 + $0x1a0] sm:$0xff] %vm8301, %v8225
      %8355 = vst.msk [vmem:[%s232 + $0x1a8] sm:$0xff] %vm8301, %v8226
      %8356 = vst.msk [vmem:[%s232 + $0x1b0] sm:$0xff] %vm8301, %v8227
      %8357 = vst.msk [vmem:[%s232 + $0x1b8] sm:$0xff] %vm8301, %v8228
      %8358 = vst.msk [vmem:[%s232 + $0x1c0] sm:$0xff] %vm8301, %v8229
      %8359 = vst.msk [vmem:[%s232 + $0x1c8] sm:$0xff] %vm8301, %v8230
      %8360 = vst.msk [vmem:[%s232 + $0x1d0] sm:$0xff] %vm8301, %v8231
      %8361 = vst.msk [vmem:[%s232 + $0x1d8] sm:$0xff] %vm8301, %v8232
      %8362 = vst.msk [vmem:[%s232 + $0x1e0] sm:$0xff] %vm8301, %v8233
      %8363 = vst.msk [vmem:[%s232 + $0x1e8] sm:$0xff] %vm8301, %v8234
      %8364 = vst.msk [vmem:[%s232 + $0x1f0] sm:$0xff] %vm8301, %v8235
      %8365 = vst.msk [vmem:[%s232 + $0x1f8] sm:$0xff] %vm8301, %v8236
      %8366 = vst.msk [vmem:[%s232 + $0x200] sm:$0xff] %vm8301, %v8237
      %8367 = vst.msk [vmem:[%s232 + $0x208] sm:$0xff] %vm8301, %v8238
      %8368 = vst.msk [vmem:[%s232 + $0x210] sm:$0xff] %vm8301, %v8239
      %8369 = vst.msk [vmem:[%s232 + $0x218] sm:$0xff] %vm8301, %v8240
      %8370 = vst.msk [vmem:[%s232 + $0x220] sm:$0xff] %vm8301, %v8241
      %8371 = vst.msk [vmem:[%s232 + $0x228] sm:$0xff] %vm8301, %v8242
      %8372 = vst.msk [vmem:[%s232 + $0x230] sm:$0xff] %vm8301, %v8243
      %8373 = vst.msk [vmem:[%s232 + $0x238] sm:$0xff] %vm8301, %v8244
      %8374 = vst.msk [vmem:[%s232 + $0x240] sm:$0xff] %vm8301, %v8245
      %8375 = vst.msk [vmem:[%s232 + $0x248] sm:$0xff] %vm8301, %v8246
      %8376 = vst.msk [vmem:[%s232 + $0x250] sm:$0xff] %vm8301, %v8247
      %8377 = vst.msk [vmem:[%s232 + $0x258] sm:$0xff] %vm8301, %v8248
      %8378 = vst.msk [vmem:[%s232 + $0x260] sm:$0xff] %vm8301, %v8249
      %8379 = vst.msk [vmem:[%s232 + $0x268] sm:$0xff] %vm8301, %v8250
      %8380 = vst.msk [vmem:[%s232 + $0x270] sm:$0xff] %vm8301, %v8251
      %8381 = vst.msk [vmem:[%s232 + $0x278] sm:$0xff] %vm8301, %v8252
      %8382 = vst.msk [vmem:[%s232 + $0x280] sm:$0xff] %vm8301, %v8253
      %8383 = vst.msk [vmem:[%s232 + $0x288] sm:$0xff] %vm8301, %v8254
      %8384 = vst.msk [vmem:[%s232 + $0x290] sm:$0xff] %vm8301, %v8255
      %8385 = vst.msk [vmem:[%s232 + $0x298] sm:$0xff] %vm8301, %v8256
      %8386 = vst.msk [vmem:[%s232 + $0x2a0] sm:$0xff] %vm8301, %v8257
      %8387 = vst.msk [vmem:[%s232 + $0x2a8] sm:$0xff] %vm8301, %v8258
      %8388 = vst.msk [vmem:[%s232 + $0x2b0] sm:$0xff] %vm8301, %v8259
      %8389 = vst.msk [vmem:[%s232 + $0x2b8] sm:$0xff] %vm8301, %v8260
      %8390 = vst.msk [vmem:[%s232 + $0x2c0] sm:$0xff] %vm8301, %v8261
      %8391 = vst.msk [vmem:[%s232 + $0x2c8] sm:$0xff] %vm8301, %v8262
      %8392 = vst.msk [vmem:[%s232 + $0x2d0] sm:$0xff] %vm8301, %v8263
      %8393 = vst.msk [vmem:[%s232 + $0x2d8] sm:$0xff] %vm8301, %v8264
      %8394 = vst.msk [vmem:[%s232 + $0x2e0] sm:$0xff] %vm8301, %v8265
      %8395 = vst.msk [vmem:[%s232 + $0x2e8] sm:$0xff] %vm8301, %v8266
      %8396 = vst.msk [vmem:[%s232 + $0x2f0] sm:$0xff] %vm8301, %v8267
      %8397 = vst.msk [vmem:[%s232 + $0x2f8] sm:$0xff] %vm8301, %v8268
      %8398 = vst.msk [vmem:[%s232 + $0x300] sm:$0xff] %vm8301, %v8269
      %8399 = vst.msk [vmem:[%s232 + $0x308] sm:$0xff] %vm8301, %v8270
      %8400 = vst.msk [vmem:[%s232 + $0x310] sm:$0xff] %vm8301, %v8271
      %8401 = vst.msk [vmem:[%s232 + $0x318] sm:$0xff] %vm8301, %v8272
      %8402 = vst.msk [vmem:[%s232 + $0x320] sm:$0xff] %vm8301, %v8273
      %8403 = vst.msk [vmem:[%s232 + $0x328] sm:$0xff] %vm8301, %v8274
      %8404 = vst.msk [vmem:[%s232 + $0x330] sm:$0xff] %vm8301, %v8275
      %8405 = vst.msk [vmem:[%s232 + $0x338] sm:$0xff] %vm8301, %v8276
      %8406 = vst.msk [vmem:[%s232 + $0x340] sm:$0xff] %vm8301, %v8277
      %8407 = vst.msk [vmem:[%s232 + $0x348] sm:$0xff] %vm8301, %v8278
      %8408 = vst.msk [vmem:[%s232 + $0x350] sm:$0xff] %vm8301, %v8279
      %8409 = vst.msk [vmem:[%s232 + $0x358] sm:$0xff] %vm8301, %v8280
      %8410 = vst.msk [vmem:[%s232 + $0x360] sm:$0xff] %vm8301, %v8281
      %8411 = vst.msk [vmem:[%s232 + $0x368] sm:$0xff] %vm8301, %v8282
      %8412 = vst.msk [vmem:[%s232 + $0x370] sm:$0xff] %vm8301, %v8283
      %8413 = vst.msk [vmem:[%s232 + $0x378] sm:$0xff] %vm8301, %v8284
      %8414 = vst.msk [vmem:[%s232 + $0x380] sm:$0xff] %vm8301, %v8285
      %8415 = vst.msk [vmem:[%s232 + $0x388] sm:$0xff] %vm8301, %v8286
      %8416 = vst.msk [vmem:[%s232 + $0x390] sm:$0xff] %vm8301, %v8287
      %8417 = vst.msk [vmem:[%s232 + $0x398] sm:$0xff] %vm8301, %v8288
      %8418 = vst.msk [vmem:[%s232 + $0x3a0] sm:$0xff] %vm8301, %v8289
      %8419 = vst.msk [vmem:[%s232 + $0x3a8] sm:$0xff] %vm8301, %v8290
      %8420 = vst.msk [vmem:[%s232 + $0x3b0] sm:$0xff] %vm8301, %v8291
      %8421 = vst.msk [vmem:[%s232 + $0x3b8] sm:$0xff] %vm8301, %v8292
      %8422 = vst.msk [vmem:[%s232 + $0x3c0] sm:$0xff] %vm8301, %v8293
      %8423 = vst.msk [vmem:[%s232 + $0x3c8] sm:$0xff] %vm8301, %v8294
      %8424 = vst.msk [vmem:[%s232 + $0x3d0] sm:$0xff] %vm8301, %v8295
      %8425 = vst.msk [vmem:[%s232 + $0x3d8] sm:$0xff] %vm8301, %v8296
      %8426 = vst.msk [vmem:[%s232 + $0x3e0] sm:$0xff] %vm8301, %v8297
      %8427 = vst.msk [vmem:[%s232 + $0x3e8] sm:$0xff] %vm8301, %v8298
      %8428 = vst.msk [vmem:[%s232 + $0x3f0] sm:$0xff] %vm8301, %v8299
      %8429 = vst.msk [vmem:[%s232 + $0x3f8] sm:$0xff] %vm8301, %v8300
      %v8430 = vld [vmem:[%s2] sm:$0x1]
      %v8432 = vlaneseq
      %v8433 = vshrl.u32 %v8432, 7
      %v8434 = vsub.s32 0, %v8433
      %v8435 = vrot.slane %v8430, %v8434
      %v8437 = vmul.f32 %v8173, %v8435
      %v8438 = vmul.f32 %v8174, %v8435
      %v8439 = vmul.f32 %v8175, %v8435
      %v8440 = vmul.f32 %v8176, %v8435
      %v8441 = vmul.f32 %v8177, %v8435
      %v8442 = vmul.f32 %v8178, %v8435
      %v8443 = vmul.f32 %v8179, %v8435
      %v8444 = vmul.f32 %v8180, %v8435
      %v8445 = vmul.f32 %v8181, %v8435
      %v8446 = vmul.f32 %v8182, %v8435
      %v8447 = vmul.f32 %v8183, %v8435
      %v8448 = vmul.f32 %v8184, %v8435
      %v8449 = vmul.f32 %v8185, %v8435
      %v8450 = vmul.f32 %v8186, %v8435
      %v8451 = vmul.f32 %v8187, %v8435
      %v8452 = vmul.f32 %v8188, %v8435
      %v8453 = vmul.f32 %v8189, %v8435
      %v8454 = vmul.f32 %v8190, %v8435
      %v8455 = vmul.f32 %v8191, %v8435
      %v8456 = vmul.f32 %v8192, %v8435
      %v8457 = vmul.f32 %v8193, %v8435
      %v8458 = vmul.f32 %v8194, %v8435
      %v8459 = vmul.f32 %v8195, %v8435
      %v8460 = vmul.f32 %v8196, %v8435
      %v8461 = vmul.f32 %v8197, %v8435
      %v8462 = vmul.f32 %v8198, %v8435
      %v8463 = vmul.f32 %v8199, %v8435
      %v8464 = vmul.f32 %v8200, %v8435
      %v8465 = vmul.f32 %v8201, %v8435
      %v8466 = vmul.f32 %v8202, %v8435
      %v8467 = vmul.f32 %v8203, %v8435
      %v8468 = vmul.f32 %v8204, %v8435
      %v8469 = vmul.f32 %v8205, %v8435
      %v8470 = vmul.f32 %v8206, %v8435
      %v8471 = vmul.f32 %v8207, %v8435
      %v8472 = vmul.f32 %v8208, %v8435
      %v8473 = vmul.f32 %v8209, %v8435
      %v8474 = vmul.f32 %v8210, %v8435
      %v8475 = vmul.f32 %v8211, %v8435
      %v8476 = vmul.f32 %v8212, %v8435
      %v8477 = vmul.f32 %v8213, %v8435
      %v8478 = vmul.f32 %v8214, %v8435
      %v8479 = vmul.f32 %v8215, %v8435
      %v8480 = vmul.f32 %v8216, %v8435
      %v8481 = vmul.f32 %v8217, %v8435
      %v8482 = vmul.f32 %v8218, %v8435
      %v8483 = vmul.f32 %v8219, %v8435
      %v8484 = vmul.f32 %v8220, %v8435
      %v8485 = vmul.f32 %v8221, %v8435
      %v8486 = vmul.f32 %v8222, %v8435
      %v8487 = vmul.f32 %v8223, %v8435
      %v8488 = vmul.f32 %v8224, %v8435
      %v8489 = vmul.f32 %v8225, %v8435
      %v8490 = vmul.f32 %v8226, %v8435
      %v8491 = vmul.f32 %v8227, %v8435
      %v8492 = vmul.f32 %v8228, %v8435
      %v8493 = vmul.f32 %v8229, %v8435
      %v8494 = vmul.f32 %v8230, %v8435
      %v8495 = vmul.f32 %v8231, %v8435
      %v8496 = vmul.f32 %v8232, %v8435
      %v8497 = vmul.f32 %v8233, %v8435
      %v8498 = vmul.f32 %v8234, %v8435
      %v8499 = vmul.f32 %v8235, %v8435
      %v8500 = vmul.f32 %v8236, %v8435
      %v8501 = vmul.f32 %v8237, %v8435
      %v8502 = vmul.f32 %v8238, %v8435
      %v8503 = vmul.f32 %v8239, %v8435
      %v8504 = vmul.f32 %v8240, %v8435
      %v8505 = vmul.f32 %v8241, %v8435
      %v8506 = vmul.f32 %v8242, %v8435
      %v8507 = vmul.f32 %v8243, %v8435
      %v8508 = vmul.f32 %v8244, %v8435
      %v8509 = vmul.f32 %v8245, %v8435
      %v8510 = vmul.f32 %v8246, %v8435
      %v8511 = vmul.f32 %v8247, %v8435
      %v8512 = vmul.f32 %v8248, %v8435
      %v8513 = vmul.f32 %v8249, %v8435
      %v8514 = vmul.f32 %v8250, %v8435
      %v8515 = vmul.f32 %v8251, %v8435
      %v8516 = vmul.f32 %v8252, %v8435
      %v8517 = vmul.f32 %v8253, %v8435
      %v8518 = vmul.f32 %v8254, %v8435
      %v8519 = vmul.f32 %v8255, %v8435
      %v8520 = vmul.f32 %v8256, %v8435
      %v8521 = vmul.f32 %v8257, %v8435
      %v8522 = vmul.f32 %v8258, %v8435
      %v8523 = vmul.f32 %v8259, %v8435
      %v8524 = vmul.f32 %v8260, %v8435
      %v8525 = vmul.f32 %v8261, %v8435
      %v8526 = vmul.f32 %v8262, %v8435
      %v8527 = vmul.f32 %v8263, %v8435
      %v8528 = vmul.f32 %v8264, %v8435
      %v8529 = vmul.f32 %v8265, %v8435
      %v8530 = vmul.f32 %v8266, %v8435
      %v8531 = vmul.f32 %v8267, %v8435
      %v8532 = vmul.f32 %v8268, %v8435
      %v8533 = vmul.f32 %v8269, %v8435
      %v8534 = vmul.f32 %v8270, %v8435
      %v8535 = vmul.f32 %v8271, %v8435
      %v8536 = vmul.f32 %v8272, %v8435
      %v8537 = vmul.f32 %v8273, %v8435
      %v8538 = vmul.f32 %v8274, %v8435
      %v8539 = vmul.f32 %v8275, %v8435
      %v8540 = vmul.f32 %v8276, %v8435
      %v8541 = vmul.f32 %v8277, %v8435
      %v8542 = vmul.f32 %v8278, %v8435
      %v8543 = vmul.f32 %v8279, %v8435
      %v8544 = vmul.f32 %v8280, %v8435
      %v8545 = vmul.f32 %v8281, %v8435
      %v8546 = vmul.f32 %v8282, %v8435
      %v8547 = vmul.f32 %v8283, %v8435
      %v8548 = vmul.f32 %v8284, %v8435
      %v8549 = vmul.f32 %v8285, %v8435
      %v8550 = vmul.f32 %v8286, %v8435
      %v8551 = vmul.f32 %v8287, %v8435
      %v8552 = vmul.f32 %v8288, %v8435
      %v8553 = vmul.f32 %v8289, %v8435
      %v8554 = vmul.f32 %v8290, %v8435
      %v8555 = vmul.f32 %v8291, %v8435
      %v8556 = vmul.f32 %v8292, %v8435
      %v8557 = vmul.f32 %v8293, %v8435
      %v8558 = vmul.f32 %v8294, %v8435
      %v8559 = vmul.f32 %v8295, %v8435
      %v8560 = vmul.f32 %v8296, %v8435
      %v8561 = vmul.f32 %v8297, %v8435
      %v8562 = vmul.f32 %v8298, %v8435
      %v8563 = vmul.f32 %v8299, %v8435
      %v8564 = vmul.f32 %v8300, %v8435
      %v8565 = vld [vmem:[%s3] sm:$0x1]
      %v8567 = vlaneseq
      %v8568 = vshrl.u32 %v8567, 7
      %v8569 = vsub.s32 0, %v8568
      %v8570 = vrot.slane %v8565, %v8569
      %v8572 = vadd.f32 %v8437, %v8570
      %v8573 = vadd.f32 %v8438, %v8570
      %v8574 = vadd.f32 %v8439, %v8570
      %v8575 = vadd.f32 %v8440, %v8570
      %v8576 = vadd.f32 %v8441, %v8570
      %v8577 = vadd.f32 %v8442, %v8570
      %v8578 = vadd.f32 %v8443, %v8570
      %v8579 = vadd.f32 %v8444, %v8570
      %v8580 = vadd.f32 %v8445, %v8570
      %v8581 = vadd.f32 %v8446, %v8570
      %v8582 = vadd.f32 %v8447, %v8570
      %v8583 = vadd.f32 %v8448, %v8570
      %v8584 = vadd.f32 %v8449, %v8570
      %v8585 = vadd.f32 %v8450, %v8570
      %v8586 = vadd.f32 %v8451, %v8570
      %v8587 = vadd.f32 %v8452, %v8570
      %v8588 = vadd.f32 %v8453, %v8570
      %v8589 = vadd.f32 %v8454, %v8570
      %v8590 = vadd.f32 %v8455, %v8570
      %v8591 = vadd.f32 %v8456, %v8570
      %v8592 = vadd.f32 %v8457, %v8570
      %v8593 = vadd.f32 %v8458, %v8570
      %v8594 = vadd.f32 %v8459, %v8570
      %v8595 = vadd.f32 %v8460, %v8570
      %v8596 = vadd.f32 %v8461, %v8570
      %v8597 = vadd.f32 %v8462, %v8570
      %v8598 = vadd.f32 %v8463, %v8570
      %v8599 = vadd.f32 %v8464, %v8570
      %v8600 = vadd.f32 %v8465, %v8570
      %v8601 = vadd.f32 %v8466, %v8570
      %v8602 = vadd.f32 %v8467, %v8570
      %v8603 = vadd.f32 %v8468, %v8570
      %v8604 = vadd.f32 %v8469, %v8570
      %v8605 = vadd.f32 %v8470, %v8570
      %v8606 = vadd.f32 %v8471, %v8570
      %v8607 = vadd.f32 %v8472, %v8570
      %v8608 = vadd.f32 %v8473, %v8570
      %v8609 = vadd.f32 %v8474, %v8570
      %v8610 = vadd.f32 %v8475, %v8570
      %v8611 = vadd.f32 %v8476, %v8570
      %v8612 = vadd.f32 %v8477, %v8570
      %v8613 = vadd.f32 %v8478, %v8570
      %v8614 = vadd.f32 %v8479, %v8570
      %v8615 = vadd.f32 %v8480, %v8570
      %v8616 = vadd.f32 %v8481, %v8570
      %v8617 = vadd.f32 %v8482, %v8570
      %v8618 = vadd.f32 %v8483, %v8570
      %v8619 = vadd.f32 %v8484, %v8570
      %v8620 = vadd.f32 %v8485, %v8570
      %v8621 = vadd.f32 %v8486, %v8570
      %v8622 = vadd.f32 %v8487, %v8570
      %v8623 = vadd.f32 %v8488, %v8570
      %v8624 = vadd.f32 %v8489, %v8570
      %v8625 = vadd.f32 %v8490, %v8570
      %v8626 = vadd.f32 %v8491, %v8570
      %v8627 = vadd.f32 %v8492, %v8570
      %v8628 = vadd.f32 %v8493, %v8570
      %v8629 = vadd.f32 %v8494, %v8570
      %v8630 = vadd.f32 %v8495, %v8570
      %v8631 = vadd.f32 %v8496, %v8570
      %v8632 = vadd.f32 %v8497, %v8570
      %v8633 = vadd.f32 %v8498, %v8570
      %v8634 = vadd.f32 %v8499, %v8570
      %v8635 = vadd.f32 %v8500, %v8570
      %v8636 = vadd.f32 %v8501, %v8570
      %v8637 = vadd.f32 %v8502, %v8570
      %v8638 = vadd.f32 %v8503, %v8570
      %v8639 = vadd.f32 %v8504, %v8570
      %v8640 = vadd.f32 %v8505, %v8570
      %v8641 = vadd.f32 %v8506, %v8570
      %v8642 = vadd.f32 %v8507, %v8570
      %v8643 = vadd.f32 %v8508, %v8570
      %v8644 = vadd.f32 %v8509, %v8570
      %v8645 = vadd.f32 %v8510, %v8570
      %v8646 = vadd.f32 %v8511, %v8570
      %v8647 = vadd.f32 %v8512, %v8570
      %v8648 = vadd.f32 %v8513, %v8570
      %v8649 = vadd.f32 %v8514, %v8570
      %v8650 = vadd.f32 %v8515, %v8570
      %v8651 = vadd.f32 %v8516, %v8570
      %v8652 = vadd.f32 %v8517, %v8570
      %v8653 = vadd.f32 %v8518, %v8570
      %v8654 = vadd.f32 %v8519, %v8570
      %v8655 = vadd.f32 %v8520, %v8570
      %v8656 = vadd.f32 %v8521, %v8570
      %v8657 = vadd.f32 %v8522, %v8570
      %v8658 = vadd.f32 %v8523, %v8570
      %v8659 = vadd.f32 %v8524, %v8570
      %v8660 = vadd.f32 %v8525, %v8570
      %v8661 = vadd.f32 %v8526, %v8570
      %v8662 = vadd.f32 %v8527, %v8570
      %v8663 = vadd.f32 %v8528, %v8570
      %v8664 = vadd.f32 %v8529, %v8570
      %v8665 = vadd.f32 %v8530, %v8570
      %v8666 = vadd.f32 %v8531, %v8570
      %v8667 = vadd.f32 %v8532, %v8570
      %v8668 = vadd.f32 %v8533, %v8570
      %v8669 = vadd.f32 %v8534, %v8570
      %v8670 = vadd.f32 %v8535, %v8570
      %v8671 = vadd.f32 %v8536, %v8570
      %v8672 = vadd.f32 %v8537, %v8570
      %v8673 = vadd.f32 %v8538, %v8570
      %v8674 = vadd.f32 %v8539, %v8570
      %v8675 = vadd.f32 %v8540, %v8570
      %v8676 = vadd.f32 %v8541, %v8570
      %v8677 = vadd.f32 %v8542, %v8570
      %v8678 = vadd.f32 %v8543, %v8570
      %v8679 = vadd.f32 %v8544, %v8570
      %v8680 = vadd.f32 %v8545, %v8570
      %v8681 = vadd.f32 %v8546, %v8570
      %v8682 = vadd.f32 %v8547, %v8570
      %v8683 = vadd.f32 %v8548, %v8570
      %v8684 = vadd.f32 %v8549, %v8570
      %v8685 = vadd.f32 %v8550, %v8570
      %v8686 = vadd.f32 %v8551, %v8570
      %v8687 = vadd.f32 %v8552, %v8570
      %v8688 = vadd.f32 %v8553, %v8570
      %v8689 = vadd.f32 %v8554, %v8570
      %v8690 = vadd.f32 %v8555, %v8570
      %v8691 = vadd.f32 %v8556, %v8570
      %v8692 = vadd.f32 %v8557, %v8570
      %v8693 = vadd.f32 %v8558, %v8570
      %v8694 = vadd.f32 %v8559, %v8570
      %v8695 = vadd.f32 %v8560, %v8570
      %v8696 = vadd.f32 %v8561, %v8570
      %v8697 = vadd.f32 %v8562, %v8570
      %v8698 = vadd.f32 %v8563, %v8570
      %v8699 = vadd.f32 %v8564, %v8570
      %v8700 = vmax.f32 %v8572, 0.0
      %v8701 = vmax.f32 %v8573, 0.0
      %v8702 = vmax.f32 %v8574, 0.0
      %v8703 = vmax.f32 %v8575, 0.0
      %v8704 = vmax.f32 %v8576, 0.0
      %v8705 = vmax.f32 %v8577, 0.0
      %v8706 = vmax.f32 %v8578, 0.0
      %v8707 = vmax.f32 %v8579, 0.0
      %v8708 = vmax.f32 %v8580, 0.0
      %v8709 = vmax.f32 %v8581, 0.0
      %v8710 = vmax.f32 %v8582, 0.0
      %v8711 = vmax.f32 %v8583, 0.0
      %v8712 = vmax.f32 %v8584, 0.0
      %v8713 = vmax.f32 %v8585, 0.0
      %v8714 = vmax.f32 %v8586, 0.0
      %v8715 = vmax.f32 %v8587, 0.0
      %v8716 = vmax.f32 %v8588, 0.0
      %v8717 = vmax.f32 %v8589, 0.0
      %v8718 = vmax.f32 %v8590, 0.0
      %v8719 = vmax.f32 %v8591, 0.0
      %v8720 = vmax.f32 %v8592, 0.0
      %v8721 = vmax.f32 %v8593, 0.0
      %v8722 = vmax.f32 %v8594, 0.0
      %v8723 = vmax.f32 %v8595, 0.0
      %v8724 = vmax.f32 %v8596, 0.0
      %v8725 = vmax.f32 %v8597, 0.0
      %v8726 = vmax.f32 %v8598, 0.0
      %v8727 = vmax.f32 %v8599, 0.0
      %v8728 = vmax.f32 %v8600, 0.0
      %v8729 = vmax.f32 %v8601, 0.0
      %v8730 = vmax.f32 %v8602, 0.0
      %v8731 = vmax.f32 %v8603, 0.0
      %v8732 = vmax.f32 %v8604, 0.0
      %v8733 = vmax.f32 %v8605, 0.0
      %v8734 = vmax.f32 %v8606, 0.0
      %v8735 = vmax.f32 %v8607, 0.0
      %v8736 = vmax.f32 %v8608, 0.0
      %v8737 = vmax.f32 %v8609, 0.0
      %v8738 = vmax.f32 %v8610, 0.0
      %v8739 = vmax.f32 %v8611, 0.0
      %v8740 = vmax.f32 %v8612, 0.0
      %v8741 = vmax.f32 %v8613, 0.0
      %v8742 = vmax.f32 %v8614, 0.0
      %v8743 = vmax.f32 %v8615, 0.0
      %v8744 = vmax.f32 %v8616, 0.0
      %v8745 = vmax.f32 %v8617, 0.0
      %v8746 = vmax.f32 %v8618, 0.0
      %v8747 = vmax.f32 %v8619, 0.0
      %v8748 = vmax.f32 %v8620, 0.0
      %v8749 = vmax.f32 %v8621, 0.0
      %v8750 = vmax.f32 %v8622, 0.0
      %v8751 = vmax.f32 %v8623, 0.0
      %v8752 = vmax.f32 %v8624, 0.0
      %v8753 = vmax.f32 %v8625, 0.0
      %v8754 = vmax.f32 %v8626, 0.0
      %v8755 = vmax.f32 %v8627, 0.0
      %v8756 = vmax.f32 %v8628, 0.0
      %v8757 = vmax.f32 %v8629, 0.0
      %v8758 = vmax.f32 %v8630, 0.0
      %v8759 = vmax.f32 %v8631, 0.0
      %v8760 = vmax.f32 %v8632, 0.0
      %v8761 = vmax.f32 %v8633, 0.0
      %v8762 = vmax.f32 %v8634, 0.0
      %v8763 = vmax.f32 %v8635, 0.0
      %v8764 = vmax.f32 %v8636, 0.0
      %v8765 = vmax.f32 %v8637, 0.0
      %v8766 = vmax.f32 %v8638, 0.0
      %v8767 = vmax.f32 %v8639, 0.0
      %v8768 = vmax.f32 %v8640, 0.0
      %v8769 = vmax.f32 %v8641, 0.0
      %v8770 = vmax.f32 %v8642, 0.0
      %v8771 = vmax.f32 %v8643, 0.0
      %v8772 = vmax.f32 %v8644, 0.0
      %v8773 = vmax.f32 %v8645, 0.0
      %v8774 = vmax.f32 %v8646, 0.0
      %v8775 = vmax.f32 %v8647, 0.0
      %v8776 = vmax.f32 %v8648, 0.0
      %v8777 = vmax.f32 %v8649, 0.0
      %v8778 = vmax.f32 %v8650, 0.0
      %v8779 = vmax.f32 %v8651, 0.0
      %v8780 = vmax.f32 %v8652, 0.0
      %v8781 = vmax.f32 %v8653, 0.0
      %v8782 = vmax.f32 %v8654, 0.0
      %v8783 = vmax.f32 %v8655, 0.0
      %v8784 = vmax.f32 %v8656, 0.0
      %v8785 = vmax.f32 %v8657, 0.0
      %v8786 = vmax.f32 %v8658, 0.0
      %v8787 = vmax.f32 %v8659, 0.0
      %v8788 = vmax.f32 %v8660, 0.0
      %v8789 = vmax.f32 %v8661, 0.0
      %v8790 = vmax.f32 %v8662, 0.0
      %v8791 = vmax.f32 %v8663, 0.0
      %v8792 = vmax.f32 %v8664, 0.0
      %v8793 = vmax.f32 %v8665, 0.0
      %v8794 = vmax.f32 %v8666, 0.0
      %v8795 = vmax.f32 %v8667, 0.0
      %v8796 = vmax.f32 %v8668, 0.0
      %v8797 = vmax.f32 %v8669, 0.0
      %v8798 = vmax.f32 %v8670, 0.0
      %v8799 = vmax.f32 %v8671, 0.0
      %v8800 = vmax.f32 %v8672, 0.0
      %v8801 = vmax.f32 %v8673, 0.0
      %v8802 = vmax.f32 %v8674, 0.0
      %v8803 = vmax.f32 %v8675, 0.0
      %v8804 = vmax.f32 %v8676, 0.0
      %v8805 = vmax.f32 %v8677, 0.0
      %v8806 = vmax.f32 %v8678, 0.0
      %v8807 = vmax.f32 %v8679, 0.0
      %v8808 = vmax.f32 %v8680, 0.0
      %v8809 = vmax.f32 %v8681, 0.0
      %v8810 = vmax.f32 %v8682, 0.0
      %v8811 = vmax.f32 %v8683, 0.0
      %v8812 = vmax.f32 %v8684, 0.0
      %v8813 = vmax.f32 %v8685, 0.0
      %v8814 = vmax.f32 %v8686, 0.0
      %v8815 = vmax.f32 %v8687, 0.0
      %v8816 = vmax.f32 %v8688, 0.0
      %v8817 = vmax.f32 %v8689, 0.0
      %v8818 = vmax.f32 %v8690, 0.0
      %v8819 = vmax.f32 %v8691, 0.0
      %v8820 = vmax.f32 %v8692, 0.0
      %v8821 = vmax.f32 %v8693, 0.0
      %v8822 = vmax.f32 %v8694, 0.0
      %v8823 = vmax.f32 %v8695, 0.0
      %v8824 = vmax.f32 %v8696, 0.0
      %v8825 = vmax.f32 %v8697, 0.0
      %v8826 = vmax.f32 %v8698, 0.0
      %v8827 = vmax.f32 %v8699, 0.0
      %v8828 = vpack.c.bf16 %v8701, %v8700
      %v8829 = vpack.c.bf16 %v8703, %v8702
      %v8830 = vpack.c.bf16 %v8705, %v8704
      %v8831 = vpack.c.bf16 %v8707, %v8706
      %v8832 = vpack.c.bf16 %v8709, %v8708
      %v8833 = vpack.c.bf16 %v8711, %v8710
      %v8834 = vpack.c.bf16 %v8713, %v8712
      %v8835 = vpack.c.bf16 %v8715, %v8714
      %v8836 = vpack.c.bf16 %v8717, %v8716
      %v8837 = vpack.c.bf16 %v8719, %v8718
      %v8838 = vpack.c.bf16 %v8721, %v8720
      %v8839 = vpack.c.bf16 %v8723, %v8722
      %v8840 = vpack.c.bf16 %v8725, %v8724
      %v8841 = vpack.c.bf16 %v8727, %v8726
      %v8842 = vpack.c.bf16 %v8729, %v8728
      %v8843 = vpack.c.bf16 %v8731, %v8730
      %v8844 = vpack.c.bf16 %v8733, %v8732
      %v8845 = vpack.c.bf16 %v8735, %v8734
      %v8846 = vpack.c.bf16 %v8737, %v8736
      %v8847 = vpack.c.bf16 %v8739, %v8738
      %v8848 = vpack.c.bf16 %v8741, %v8740
      %v8849 = vpack.c.bf16 %v8743, %v8742
      %v8850 = vpack.c.bf16 %v8745, %v8744
      %v8851 = vpack.c.bf16 %v8747, %v8746
      %v8852 = vpack.c.bf16 %v8749, %v8748
      %v8853 = vpack.c.bf16 %v8751, %v8750
      %v8854 = vpack.c.bf16 %v8753, %v8752
      %v8855 = vpack.c.bf16 %v8755, %v8754
      %v8856 = vpack.c.bf16 %v8757, %v8756
      %v8857 = vpack.c.bf16 %v8759, %v8758
      %v8858 = vpack.c.bf16 %v8761, %v8760
      %v8859 = vpack.c.bf16 %v8763, %v8762
      %v8860 = vpack.c.bf16 %v8765, %v8764
      %v8861 = vpack.c.bf16 %v8767, %v8766
      %v8862 = vpack.c.bf16 %v8769, %v8768
      %v8863 = vpack.c.bf16 %v8771, %v8770
      %v8864 = vpack.c.bf16 %v8773, %v8772
      %v8865 = vpack.c.bf16 %v8775, %v8774
      %v8866 = vpack.c.bf16 %v8777, %v8776
      %v8867 = vpack.c.bf16 %v8779, %v8778
      %v8868 = vpack.c.bf16 %v8781, %v8780
      %v8869 = vpack.c.bf16 %v8783, %v8782
      %v8870 = vpack.c.bf16 %v8785, %v8784
      %v8871 = vpack.c.bf16 %v8787, %v8786
      %v8872 = vpack.c.bf16 %v8789, %v8788
      %v8873 = vpack.c.bf16 %v8791, %v8790
      %v8874 = vpack.c.bf16 %v8793, %v8792
      %v8875 = vpack.c.bf16 %v8795, %v8794
      %v8876 = vpack.c.bf16 %v8797, %v8796
      %v8877 = vpack.c.bf16 %v8799, %v8798
      %v8878 = vpack.c.bf16 %v8801, %v8800
      %v8879 = vpack.c.bf16 %v8803, %v8802
      %v8880 = vpack.c.bf16 %v8805, %v8804
      %v8881 = vpack.c.bf16 %v8807, %v8806
      %v8882 = vpack.c.bf16 %v8809, %v8808
      %v8883 = vpack.c.bf16 %v8811, %v8810
      %v8884 = vpack.c.bf16 %v8813, %v8812
      %v8885 = vpack.c.bf16 %v8815, %v8814
      %v8886 = vpack.c.bf16 %v8817, %v8816
      %v8887 = vpack.c.bf16 %v8819, %v8818
      %v8888 = vpack.c.bf16 %v8821, %v8820
      %v8889 = vpack.c.bf16 %v8823, %v8822
      %v8890 = vpack.c.bf16 %v8825, %v8824
      %v8891 = vpack.c.bf16 %v8827, %v8826
      %v8956 = vunpack.c.l.b16 %v8828
      %v8957 = vunpack.c.h.b16 %v8828
      %v8958 = vunpack.c.l.b16 %v8829
      %v8959 = vunpack.c.h.b16 %v8829
      %v8960 = vunpack.c.l.b16 %v8830
      %v8961 = vunpack.c.h.b16 %v8830
      %v8962 = vunpack.c.l.b16 %v8831
      %v8963 = vunpack.c.h.b16 %v8831
      %v8964 = vunpack.c.l.b16 %v8832
      %v8965 = vunpack.c.h.b16 %v8832
      %v8966 = vunpack.c.l.b16 %v8833
      %v8967 = vunpack.c.h.b16 %v8833
      %v8968 = vunpack.c.l.b16 %v8834
      %v8969 = vunpack.c.h.b16 %v8834
      %v8970 = vunpack.c.l.b16 %v8835
      %v8971 = vunpack.c.h.b16 %v8835
      %v8972 = vunpack.c.l.b16 %v8836
      %v8973 = vunpack.c.h.b16 %v8836
      %v8974 = vunpack.c.l.b16 %v8837
      %v8975 = vunpack.c.h.b16 %v8837
      %v8976 = vunpack.c.l.b16 %v8838
      %v8977 = vunpack.c.h.b16 %v8838
      %v8978 = vunpack.c.l.b16 %v8839
      %v8979 = vunpack.c.h.b16 %v8839
      %v8980 = vunpack.c.l.b16 %v8840
      %v8981 = vunpack.c.h.b16 %v8840
      %v8982 = vunpack.c.l.b16 %v8841
      %v8983 = vunpack.c.h.b16 %v8841
      %v8984 = vunpack.c.l.b16 %v8842
      %v8985 = vunpack.c.h.b16 %v8842
      %v8986 = vunpack.c.l.b16 %v8843
      %v8987 = vunpack.c.h.b16 %v8843
      %v8988 = vunpack.c.l.b16 %v8844
      %v8989 = vunpack.c.h.b16 %v8844
      %v8990 = vunpack.c.l.b16 %v8845
      %v8991 = vunpack.c.h.b16 %v8845
      %v8992 = vunpack.c.l.b16 %v8846
      %v8993 = vunpack.c.h.b16 %v8846
      %v8994 = vunpack.c.l.b16 %v8847
      %v8995 = vunpack.c.h.b16 %v8847
      %v8996 = vunpack.c.l.b16 %v8848
      %v8997 = vunpack.c.h.b16 %v8848
      %v8998 = vunpack.c.l.b16 %v8849
      %v8999 = vunpack.c.h.b16 %v8849
      %v9000 = vunpack.c.l.b16 %v8850
      %v9001 = vunpack.c.h.b16 %v8850
      %v9002 = vunpack.c.l.b16 %v8851
      %v9003 = vunpack.c.h.b16 %v8851
      %v9004 = vunpack.c.l.b16 %v8852
      %v9005 = vunpack.c.h.b16 %v8852
      %v9006 = vunpack.c.l.b16 %v8853
      %v9007 = vunpack.c.h.b16 %v8853
      %v9008 = vunpack.c.l.b16 %v8854
      %v9009 = vunpack.c.h.b16 %v8854
      %v9010 = vunpack.c.l.b16 %v8855
      %v9011 = vunpack.c.h.b16 %v8855
      %v9012 = vunpack.c.l.b16 %v8856
      %v9013 = vunpack.c.h.b16 %v8856
      %v9014 = vunpack.c.l.b16 %v8857
      %v9015 = vunpack.c.h.b16 %v8857
      %v9016 = vunpack.c.l.b16 %v8858
      %v9017 = vunpack.c.h.b16 %v8858
      %v9018 = vunpack.c.l.b16 %v8859
      %v9019 = vunpack.c.h.b16 %v8859
      %v9020 = vunpack.c.l.b16 %v8860
      %v9021 = vunpack.c.h.b16 %v8860
      %v9022 = vunpack.c.l.b16 %v8861
      %v9023 = vunpack.c.h.b16 %v8861
      %v9024 = vunpack.c.l.b16 %v8862
      %v9025 = vunpack.c.h.b16 %v8862
      %v9026 = vunpack.c.l.b16 %v8863
      %v9027 = vunpack.c.h.b16 %v8863
      %v9028 = vunpack.c.l.b16 %v8864
      %v9029 = vunpack.c.h.b16 %v8864
      %v9030 = vunpack.c.l.b16 %v8865
      %v9031 = vunpack.c.h.b16 %v8865
      %v9032 = vunpack.c.l.b16 %v8866
      %v9033 = vunpack.c.h.b16 %v8866
      %v9034 = vunpack.c.l.b16 %v8867
      %v9035 = vunpack.c.h.b16 %v8867
      %v9036 = vunpack.c.l.b16 %v8868
      %v9037 = vunpack.c.h.b16 %v8868
      %v9038 = vunpack.c.l.b16 %v8869
      %v9039 = vunpack.c.h.b16 %v8869
      %v9040 = vunpack.c.l.b16 %v8870
      %v9041 = vunpack.c.h.b16 %v8870
      %v9042 = vunpack.c.l.b16 %v8871
      %v9043 = vunpack.c.h.b16 %v8871
      %v9044 = vunpack.c.l.b16 %v8872
      %v9045 = vunpack.c.h.b16 %v8872
      %v9046 = vunpack.c.l.b16 %v8873
      %v9047 = vunpack.c.h.b16 %v8873
      %v9048 = vunpack.c.l.b16 %v8874
      %v9049 = vunpack.c.h.b16 %v8874
      %v9050 = vunpack.c.l.b16 %v8875
      %v9051 = vunpack.c.h.b16 %v8875
      %v9052 = vunpack.c.l.b16 %v8876
      %v9053 = vunpack.c.h.b16 %v8876
      %v9054 = vunpack.c.l.b16 %v8877
      %v9055 = vunpack.c.h.b16 %v8877
      %v9056 = vunpack.c.l.b16 %v8878
      %v9057 = vunpack.c.h.b16 %v8878
      %v9058 = vunpack.c.l.b16 %v8879
      %v9059 = vunpack.c.h.b16 %v8879
      %v9060 = vunpack.c.l.b16 %v8880
      %v9061 = vunpack.c.h.b16 %v8880
      %v9062 = vunpack.c.l.b16 %v8881
      %v9063 = vunpack.c.h.b16 %v8881
      %v9064 = vunpack.c.l.b16 %v8882
      %v9065 = vunpack.c.h.b16 %v8882
      %v9066 = vunpack.c.l.b16 %v8883
      %v9067 = vunpack.c.h.b16 %v8883
      %v9068 = vunpack.c.l.b16 %v8884
      %v9069 = vunpack.c.h.b16 %v8884
      %v9070 = vunpack.c.l.b16 %v8885
      %v9071 = vunpack.c.h.b16 %v8885
      %v9072 = vunpack.c.l.b16 %v8886
      %v9073 = vunpack.c.h.b16 %v8886
      %v9074 = vunpack.c.l.b16 %v8887
      %v9075 = vunpack.c.h.b16 %v8887
      %v9076 = vunpack.c.l.b16 %v8888
      %v9077 = vunpack.c.h.b16 %v8888
      %v9078 = vunpack.c.l.b16 %v8889
      %v9079 = vunpack.c.h.b16 %v8889
      %v9080 = vunpack.c.l.b16 %v8890
      %v9081 = vunpack.c.h.b16 %v8890
      %v9082 = vunpack.c.l.b16 %v8891
      %v9083 = vunpack.c.h.b16 %v8891
      %v9084 = vpack.c.b16 %v8956, %v8956
      %v9085 = vpack.c.b16 %v8957, %v8957
      %v9086 = vpack.c.b16 %v8958, %v8958
      %v9087 = vpack.c.b16 %v8959, %v8959
      %v9088 = vpack.c.b16 %v8960, %v8960
      %v9089 = vpack.c.b16 %v8961, %v8961
      %v9090 = vpack.c.b16 %v8962, %v8962
      %v9091 = vpack.c.b16 %v8963, %v8963
      %v9092 = vpack.c.b16 %v8964, %v8964
      %v9093 = vpack.c.b16 %v8965, %v8965
      %v9094 = vpack.c.b16 %v8966, %v8966
      %v9095 = vpack.c.b16 %v8967, %v8967
      %v9096 = vpack.c.b16 %v8968, %v8968
      %v9097 = vpack.c.b16 %v8969, %v8969
      %v9098 = vpack.c.b16 %v8970, %v8970
      %v9099 = vpack.c.b16 %v8971, %v8971
      %v9100 = vpack.c.b16 %v8972, %v8972
      %v9101 = vpack.c.b16 %v8973, %v8973
      %v9102 = vpack.c.b16 %v8974, %v8974
      %v9103 = vpack.c.b16 %v8975, %v8975
      %v9104 = vpack.c.b16 %v8976, %v8976
      %v9105 = vpack.c.b16 %v8977, %v8977
      %v9106 = vpack.c.b16 %v8978, %v8978
      %v9107 = vpack.c.b16 %v8979, %v8979
      %v9108 = vpack.c.b16 %v8980, %v8980
      %v9109 = vpack.c.b16 %v8981, %v8981
      %v9110 = vpack.c.b16 %v8982, %v8982
      %v9111 = vpack.c.b16 %v8983, %v8983
      %v9112 = vpack.c.b16 %v8984, %v8984
      %v9113 = vpack.c.b16 %v8985, %v8985
      %v9114 = vpack.c.b16 %v8986, %v8986
      %v9115 = vpack.c.b16 %v8987, %v8987
      %v9116 = vpack.c.b16 %v8988, %v8988
      %v9117 = vpack.c.b16 %v8989, %v8989
      %v9118 = vpack.c.b16 %v8990, %v8990
      %v9119 = vpack.c.b16 %v8991, %v8991
      %v9120 = vpack.c.b16 %v8992, %v8992
      %v9121 = vpack.c.b16 %v8993, %v8993
      %v9122 = vpack.c.b16 %v8994, %v8994
      %v9123 = vpack.c.b16 %v8995, %v8995
      %v9124 = vpack.c.b16 %v8996, %v8996
      %v9125 = vpack.c.b16 %v8997, %v8997
      %v9126 = vpack.c.b16 %v8998, %v8998
      %v9127 = vpack.c.b16 %v8999, %v8999
      %v9128 = vpack.c.b16 %v9000, %v9000
      %v9129 = vpack.c.b16 %v9001, %v9001
      %v9130 = vpack.c.b16 %v9002, %v9002
      %v9131 = vpack.c.b16 %v9003, %v9003
      %v9132 = vpack.c.b16 %v9004, %v9004
      %v9133 = vpack.c.b16 %v9005, %v9005
      %v9134 = vpack.c.b16 %v9006, %v9006
      %v9135 = vpack.c.b16 %v9007, %v9007
      %v9136 = vpack.c.b16 %v9008, %v9008
      %v9137 = vpack.c.b16 %v9009, %v9009
      %v9138 = vpack.c.b16 %v9010, %v9010
      %v9139 = vpack.c.b16 %v9011, %v9011
      %v9140 = vpack.c.b16 %v9012, %v9012
      %v9141 = vpack.c.b16 %v9013, %v9013
      %v9142 = vpack.c.b16 %v9014, %v9014
      %v9143 = vpack.c.b16 %v9015, %v9015
      %v9144 = vpack.c.b16 %v9016, %v9016
      %v9145 = vpack.c.b16 %v9017, %v9017
      %v9146 = vpack.c.b16 %v9018, %v9018
      %v9147 = vpack.c.b16 %v9019, %v9019
      %v9148 = vpack.c.b16 %v9020, %v9020
      %v9149 = vpack.c.b16 %v9021, %v9021
      %v9150 = vpack.c.b16 %v9022, %v9022
      %v9151 = vpack.c.b16 %v9023, %v9023
      %v9152 = vpack.c.b16 %v9024, %v9024
      %v9153 = vpack.c.b16 %v9025, %v9025
      %v9154 = vpack.c.b16 %v9026, %v9026
      %v9155 = vpack.c.b16 %v9027, %v9027
      %v9156 = vpack.c.b16 %v9028, %v9028
      %v9157 = vpack.c.b16 %v9029, %v9029
      %v9158 = vpack.c.b16 %v9030, %v9030
      %v9159 = vpack.c.b16 %v9031, %v9031
      %v9160 = vpack.c.b16 %v9032, %v9032
      %v9161 = vpack.c.b16 %v9033, %v9033
      %v9162 = vpack.c.b16 %v9034, %v9034
      %v9163 = vpack.c.b16 %v9035, %v9035
      %v9164 = vpack.c.b16 %v9036, %v9036
      %v9165 = vpack.c.b16 %v9037, %v9037
      %v9166 = vpack.c.b16 %v9038, %v9038
      %v9167 = vpack.c.b16 %v9039, %v9039
      %v9168 = vpack.c.b16 %v9040, %v9040
      %v9169 = vpack.c.b16 %v9041, %v9041
      %v9170 = vpack.c.b16 %v9042, %v9042
      %v9171 = vpack.c.b16 %v9043, %v9043
      %v9172 = vpack.c.b16 %v9044, %v9044
      %v9173 = vpack.c.b16 %v9045, %v9045
      %v9174 = vpack.c.b16 %v9046, %v9046
      %v9175 = vpack.c.b16 %v9047, %v9047
      %v9176 = vpack.c.b16 %v9048, %v9048
      %v9177 = vpack.c.b16 %v9049, %v9049
      %v9178 = vpack.c.b16 %v9050, %v9050
      %v9179 = vpack.c.b16 %v9051, %v9051
      %v9180 = vpack.c.b16 %v9052, %v9052
      %v9181 = vpack.c.b16 %v9053, %v9053
      %v9182 = vpack.c.b16 %v9054, %v9054
      %v9183 = vpack.c.b16 %v9055, %v9055
      %v9184 = vpack.c.b16 %v9056, %v9056
      %v9185 = vpack.c.b16 %v9057, %v9057
      %v9186 = vpack.c.b16 %v9058, %v9058
      %v9187 = vpack.c.b16 %v9059, %v9059
      %v9188 = vpack.c.b16 %v9060, %v9060
      %v9189 = vpack.c.b16 %v9061, %v9061
      %v9190 = vpack.c.b16 %v9062, %v9062
      %v9191 = vpack.c.b16 %v9063, %v9063
      %v9192 = vpack.c.b16 %v9064, %v9064
      %v9193 = vpack.c.b16 %v9065, %v9065
      %v9194 = vpack.c.b16 %v9066, %v9066
      %v9195 = vpack.c.b16 %v9067, %v9067
      %v9196 = vpack.c.b16 %v9068, %v9068
      %v9197 = vpack.c.b16 %v9069, %v9069
      %v9198 = vpack.c.b16 %v9070, %v9070
      %v9199 = vpack.c.b16 %v9071, %v9071
      %v9200 = vpack.c.b16 %v9072, %v9072
      %v9201 = vpack.c.b16 %v9073, %v9073
      %v9202 = vpack.c.b16 %v9074, %v9074
      %v9203 = vpack.c.b16 %v9075, %v9075
      %v9204 = vpack.c.b16 %v9076, %v9076
      %v9205 = vpack.c.b16 %v9077, %v9077
      %v9206 = vpack.c.b16 %v9078, %v9078
      %v9207 = vpack.c.b16 %v9079, %v9079
      %v9208 = vpack.c.b16 %v9080, %v9080
      %v9209 = vpack.c.b16 %v9081, %v9081
      %v9210 = vpack.c.b16 %v9082, %v9082
      %v9211 = vpack.c.b16 %v9083, %v9083
      %vm9340 = vcmask 125952
      %9341 = vst.msk [vmem:[%s237] sm:$0xf] %vm9340, %v9084
      %9342 = vst.msk [vmem:[%s237 + $0x4] sm:$0xf] %vm9340, %v9085
      %9343 = vst.msk [vmem:[%s237 + $0x8] sm:$0xf] %vm9340, %v9086
      %9344 = vst.msk [vmem:[%s237 + $0xc] sm:$0xf] %vm9340, %v9087
      %9345 = vst.msk [vmem:[%s237 + $0x10] sm:$0xf] %vm9340, %v9088
      %9346 = vst.msk [vmem:[%s237 + $0x14] sm:$0xf] %vm9340, %v9089
      %9347 = vst.msk [vmem:[%s237 + $0x18] sm:$0xf] %vm9340, %v9090
      %9348 = vst.msk [vmem:[%s237 + $0x1c] sm:$0xf] %vm9340, %v9091
      %9349 = vst.msk [vmem:[%s237 + $0x20] sm:$0xf] %vm9340, %v9092
      %9350 = vst.msk [vmem:[%s237 + $0x24] sm:$0xf] %vm9340, %v9093
      %9351 = vst.msk [vmem:[%s237 + $0x28] sm:$0xf] %vm9340, %v9094
      %9352 = vst.msk [vmem:[%s237 + $0x2c] sm:$0xf] %vm9340, %v9095
      %9353 = vst.msk [vmem:[%s237 + $0x30] sm:$0xf] %vm9340, %v9096
      %9354 = vst.msk [vmem:[%s237 + $0x34] sm:$0xf] %vm9340, %v9097
      %9355 = vst.msk [vmem:[%s237 + $0x38] sm:$0xf] %vm9340, %v9098
      %9356 = vst.msk [vmem:[%s237 + $0x3c] sm:$0xf] %vm9340, %v9099
      %9357 = vst.msk [vmem:[%s237 + $0x40] sm:$0xf] %vm9340, %v9100
      %9358 = vst.msk [vmem:[%s237 + $0x44] sm:$0xf] %vm9340, %v9101
      %9359 = vst.msk [vmem:[%s237 + $0x48] sm:$0xf] %vm9340, %v9102
      %9360 = vst.msk [vmem:[%s237 + $0x4c] sm:$0xf] %vm9340, %v9103
      %9361 = vst.msk [vmem:[%s237 + $0x50] sm:$0xf] %vm9340, %v9104
      %9362 = vst.msk [vmem:[%s237 + $0x54] sm:$0xf] %vm9340, %v9105
      %9363 = vst.msk [vmem:[%s237 + $0x58] sm:$0xf] %vm9340, %v9106
      %9364 = vst.msk [vmem:[%s237 + $0x5c] sm:$0xf] %vm9340, %v9107
      %9365 = vst.msk [vmem:[%s237 + $0x60] sm:$0xf] %vm9340, %v9108
      %9366 = vst.msk [vmem:[%s237 + $0x64] sm:$0xf] %vm9340, %v9109
      %9367 = vst.msk [vmem:[%s237 + $0x68] sm:$0xf] %vm9340, %v9110
      %9368 = vst.msk [vmem:[%s237 + $0x6c] sm:$0xf] %vm9340, %v9111
      %9369 = vst.msk [vmem:[%s237 + $0x70] sm:$0xf] %vm9340, %v9112
      %9370 = vst.msk [vmem:[%s237 + $0x74] sm:$0xf] %vm9340, %v9113
      %9371 = vst.msk [vmem:[%s237 + $0x78] sm:$0xf] %vm9340, %v9114
      %9372 = vst.msk [vmem:[%s237 + $0x7c] sm:$0xf] %vm9340, %v9115
      %9373 = vst.msk [vmem:[%s237 + $0x80] sm:$0xf] %vm9340, %v9116
      %9374 = vst.msk [vmem:[%s237 + $0x84] sm:$0xf] %vm9340, %v9117
      %9375 = vst.msk [vmem:[%s237 + $0x88] sm:$0xf] %vm9340, %v9118
      %9376 = vst.msk [vmem:[%s237 + $0x8c] sm:$0xf] %vm9340, %v9119
      %9377 = vst.msk [vmem:[%s237 + $0x90] sm:$0xf] %vm9340, %v9120
      %9378 = vst.msk [vmem:[%s237 + $0x94] sm:$0xf] %vm9340, %v9121
      %9379 = vst.msk [vmem:[%s237 + $0x98] sm:$0xf] %vm9340, %v9122
      %9380 = vst.msk [vmem:[%s237 + $0x9c] sm:$0xf] %vm9340, %v9123
      %9381 = vst.msk [vmem:[%s237 + $0xa0] sm:$0xf] %vm9340, %v9124
      %9382 = vst.msk [vmem:[%s237 + $0xa4] sm:$0xf] %vm9340, %v9125
      %9383 = vst.msk [vmem:[%s237 + $0xa8] sm:$0xf] %vm9340, %v9126
      %9384 = vst.msk [vmem:[%s237 + $0xac] sm:$0xf] %vm9340, %v9127
      %9385 = vst.msk [vmem:[%s237 + $0xb0] sm:$0xf] %vm9340, %v9128
      %9386 = vst.msk [vmem:[%s237 + $0xb4] sm:$0xf] %vm9340, %v9129
      %9387 = vst.msk [vmem:[%s237 + $0xb8] sm:$0xf] %vm9340, %v9130
      %9388 = vst.msk [vmem:[%s237 + $0xbc] sm:$0xf] %vm9340, %v9131
      %9389 = vst.msk [vmem:[%s237 + $0xc0] sm:$0xf] %vm9340, %v9132
      %9390 = vst.msk [vmem:[%s237 + $0xc4] sm:$0xf] %vm9340, %v9133
      %9391 = vst.msk [vmem:[%s237 + $0xc8] sm:$0xf] %vm9340, %v9134
      %9392 = vst.msk [vmem:[%s237 + $0xcc] sm:$0xf] %vm9340, %v9135
      %9393 = vst.msk [vmem:[%s237 + $0xd0] sm:$0xf] %vm9340, %v9136
      %9394 = vst.msk [vmem:[%s237 + $0xd4] sm:$0xf] %vm9340, %v9137
      %9395 = vst.msk [vmem:[%s237 + $0xd8] sm:$0xf] %vm9340, %v9138
      %9396 = vst.msk [vmem:[%s237 + $0xdc] sm:$0xf] %vm9340, %v9139
      %9397 = vst.msk [vmem:[%s237 + $0xe0] sm:$0xf] %vm9340, %v9140
      %9398 = vst.msk [vmem:[%s237 + $0xe4] sm:$0xf] %vm9340, %v9141
      %9399 = vst.msk [vmem:[%s237 + $0xe8] sm:$0xf] %vm9340, %v9142
      %9400 = vst.msk [vmem:[%s237 + $0xec] sm:$0xf] %vm9340, %v9143
      %9401 = vst.msk [vmem:[%s237 + $0xf0] sm:$0xf] %vm9340, %v9144
      %9402 = vst.msk [vmem:[%s237 + $0xf4] sm:$0xf] %vm9340, %v9145
      %9403 = vst.msk [vmem:[%s237 + $0xf8] sm:$0xf] %vm9340, %v9146
      %9404 = vst.msk [vmem:[%s237 + $0xfc] sm:$0xf] %vm9340, %v9147
      %9405 = vst.msk [vmem:[%s237 + $0x100] sm:$0xf] %vm9340, %v9148
      %9406 = vst.msk [vmem:[%s237 + $0x104] sm:$0xf] %vm9340, %v9149
      %9407 = vst.msk [vmem:[%s237 + $0x108] sm:$0xf] %vm9340, %v9150
      %9408 = vst.msk [vmem:[%s237 + $0x10c] sm:$0xf] %vm9340, %v9151
      %9409 = vst.msk [vmem:[%s237 + $0x110] sm:$0xf] %vm9340, %v9152
      %9410 = vst.msk [vmem:[%s237 + $0x114] sm:$0xf] %vm9340, %v9153
      %9411 = vst.msk [vmem:[%s237 + $0x118] sm:$0xf] %vm9340, %v9154
      %9412 = vst.msk [vmem:[%s237 + $0x11c] sm:$0xf] %vm9340, %v9155
      %9413 = vst.msk [vmem:[%s237 + $0x120] sm:$0xf] %vm9340, %v9156
      %9414 = vst.msk [vmem:[%s237 + $0x124] sm:$0xf] %vm9340, %v9157
      %9415 = vst.msk [vmem:[%s237 + $0x128] sm:$0xf] %vm9340, %v9158
      %9416 = vst.msk [vmem:[%s237 + $0x12c] sm:$0xf] %vm9340, %v9159
      %9417 = vst.msk [vmem:[%s237 + $0x130] sm:$0xf] %vm9340, %v9160
      %9418 = vst.msk [vmem:[%s237 + $0x134] sm:$0xf] %vm9340, %v9161
      %9419 = vst.msk [vmem:[%s237 + $0x138] sm:$0xf] %vm9340, %v9162
      %9420 = vst.msk [vmem:[%s237 + $0x13c] sm:$0xf] %vm9340, %v9163
      %9421 = vst.msk [vmem:[%s237 + $0x140] sm:$0xf] %vm9340, %v9164
      %9422 = vst.msk [vmem:[%s237 + $0x144] sm:$0xf] %vm9340, %v9165
      %9423 = vst.msk [vmem:[%s237 + $0x148] sm:$0xf] %vm9340, %v9166
      %9424 = vst.msk [vmem:[%s237 + $0x14c] sm:$0xf] %vm9340, %v9167
      %9425 = vst.msk [vmem:[%s237 + $0x150] sm:$0xf] %vm9340, %v9168
      %9426 = vst.msk [vmem:[%s237 + $0x154] sm:$0xf] %vm9340, %v9169
      %9427 = vst.msk [vmem:[%s237 + $0x158] sm:$0xf] %vm9340, %v9170
      %9428 = vst.msk [vmem:[%s237 + $0x15c] sm:$0xf] %vm9340, %v9171
      %9429 = vst.msk [vmem:[%s237 + $0x160] sm:$0xf] %vm9340, %v9172
      %9430 = vst.msk [vmem:[%s237 + $0x164] sm:$0xf] %vm9340, %v9173
      %9431 = vst.msk [vmem:[%s237 + $0x168] sm:$0xf] %vm9340, %v9174
      %9432 = vst.msk [vmem:[%s237 + $0x16c] sm:$0xf] %vm9340, %v9175
      %9433 = vst.msk [vmem:[%s237 + $0x170] sm:$0xf] %vm9340, %v9176
      %9434 = vst.msk [vmem:[%s237 + $0x174] sm:$0xf] %vm9340, %v9177
      %9435 = vst.msk [vmem:[%s237 + $0x178] sm:$0xf] %vm9340, %v9178
      %9436 = vst.msk [vmem:[%s237 + $0x17c] sm:$0xf] %vm9340, %v9179
      %9437 = vst.msk [vmem:[%s237 + $0x180] sm:$0xf] %vm9340, %v9180
      %9438 = vst.msk [vmem:[%s237 + $0x184] sm:$0xf] %vm9340, %v9181
      %9439 = vst.msk [vmem:[%s237 + $0x188] sm:$0xf] %vm9340, %v9182
      %9440 = vst.msk [vmem:[%s237 + $0x18c] sm:$0xf] %vm9340, %v9183
      %9441 = vst.msk [vmem:[%s237 + $0x190] sm:$0xf] %vm9340, %v9184
      %9442 = vst.msk [vmem:[%s237 + $0x194] sm:$0xf] %vm9340, %v9185
      %9443 = vst.msk [vmem:[%s237 + $0x198] sm:$0xf] %vm9340, %v9186
      %9444 = vst.msk [vmem:[%s237 + $0x19c] sm:$0xf] %vm9340, %v9187
      %9445 = vst.msk [vmem:[%s237 + $0x1a0] sm:$0xf] %vm9340, %v9188
      %9446 = vst.msk [vmem:[%s237 + $0x1a4] sm:$0xf] %vm9340, %v9189
      %9447 = vst.msk [vmem:[%s237 + $0x1a8] sm:$0xf] %vm9340, %v9190
      %9448 = vst.msk [vmem:[%s237 + $0x1ac] sm:$0xf] %vm9340, %v9191
      %9449 = vst.msk [vmem:[%s237 + $0x1b0] sm:$0xf] %vm9340, %v9192
      %9450 = vst.msk [vmem:[%s237 + $0x1b4] sm:$0xf] %vm9340, %v9193
      %9451 = vst.msk [vmem:[%s237 + $0x1b8] sm:$0xf] %vm9340, %v9194
      %9452 = vst.msk [vmem:[%s237 + $0x1bc] sm:$0xf] %vm9340, %v9195
      %9453 = vst.msk [vmem:[%s237 + $0x1c0] sm:$0xf] %vm9340, %v9196
      %9454 = vst.msk [vmem:[%s237 + $0x1c4] sm:$0xf] %vm9340, %v9197
      %9455 = vst.msk [vmem:[%s237 + $0x1c8] sm:$0xf] %vm9340, %v9198
      %9456 = vst.msk [vmem:[%s237 + $0x1cc] sm:$0xf] %vm9340, %v9199
      %9457 = vst.msk [vmem:[%s237 + $0x1d0] sm:$0xf] %vm9340, %v9200
      %9458 = vst.msk [vmem:[%s237 + $0x1d4] sm:$0xf] %vm9340, %v9201
      %9459 = vst.msk [vmem:[%s237 + $0x1d8] sm:$0xf] %vm9340, %v9202
      %9460 = vst.msk [vmem:[%s237 + $0x1dc] sm:$0xf] %vm9340, %v9203
      %9461 = vst.msk [vmem:[%s237 + $0x1e0] sm:$0xf] %vm9340, %v9204
      %9462 = vst.msk [vmem:[%s237 + $0x1e4] sm:$0xf] %vm9340, %v9205
      %9463 = vst.msk [vmem:[%s237 + $0x1e8] sm:$0xf] %vm9340, %v9206
      %9464 = vst.msk [vmem:[%s237 + $0x1ec] sm:$0xf] %vm9340, %v9207
      %9465 = vst.msk [vmem:[%s237 + $0x1f0] sm:$0xf] %vm9340, %v9208
      %9466 = vst.msk [vmem:[%s237 + $0x1f4] sm:$0xf] %vm9340, %v9209
      %9467 = vst.msk [vmem:[%s237 + $0x1f8] sm:$0xf] %vm9340, %v9210
      %9468 = vst.msk [vmem:[%s237 + $0x1fc] sm:$0xf] %vm9340, %v9211
      %p9469 = scmp.lt.s32.totalorder %s17, 1
      %s9470 = scalar_select %p9469, %s17, 1
      %s9471 = smul.addr %s9470, 128
      %s9472 = smul.addr %s9471, 8
      %s9473 = scalar_lea.vmem %s4, %s9472
      %p9474 = scmp.lt.s32.totalorder %s17, 1
      %s9475 = scalar_select %p9474, %s17, 1
      %s9476 = smul.addr %s9475, 128
      %s9477 = smul.addr %s9476, 4
      %s9478 = scalar_lea.vmem %s5, %s9477
      // Predicated region
      $region37: #{tpu_custom_call.1} parent=35 // pred_check
        %p9479 = pneg %p124
      $region38: #{tpu_custom_call.1} parent=35 // pred_check_branch
        %9481 = sbr.rel (%p9479) target = $region40
      $region39: #{tpu_custom_call.1} parent=35 // pred_region
        _
      $region40: #{tpu_custom_call.1} parent=35 // pred_fallthru
        _
      // Predicated region
      $region41: #{tpu_custom_call.1} parent=35 // pred_check
        %p9482 = pneg %p150
      $region42: #{tpu_custom_call.1} parent=35 // pred_check_branch
        %9484 = sbr.rel (%p9482) target = $region44
      $region43: #{tpu_custom_call.1} parent=35 // pred_region
        _
      $region44: #{tpu_custom_call.1} parent=35 // pred_fallthru
        _
    $region36: #{tpu_custom_call.1} parent=5 // pred_fallthru
      _
    %p9485 = scmp.le.s32.totalorder 2, %s12
    // Predicated region
    $region45: #{tpu_custom_call.1} parent=5 // pred_check
      %p9486 = pneg %p9485
    $region46: #{tpu_custom_call.1} parent=5 // pred_check_branch
      %9488 = sbr.rel (%p9486) target = $region48
    $region47: #{tpu_custom_call.1} parent=5 // pred_region
      %s9489 = ssub.s32 %s12, 2
      // Predicated region
      $region49: #{tpu_custom_call.1} parent=47 // pred_check
        %p9490 = pneg %p130
      $region50: #{tpu_custom_call.1} parent=47 // pred_check_branch
        %9492 = sbr.rel (%p9490) target = $region52
      $region51: #{tpu_custom_call.1} parent=47 // pred_region
        %p9493 = scmp.lt.s32.totalorder %s18, 1
        %s9494 = scalar_select %p9493, %s18, 1
        %s9495 = smul.addr %s9494, 128
        %s9496 = smul.addr %s9495, 8
        %s9497 = scalar_lea.vmem %s4, %s9496
      $region52: #{tpu_custom_call.1} parent=47 // pred_fallthru
        _
      // Predicated region
      $region53: #{tpu_custom_call.1} parent=47 // pred_check
        %p9498 = pneg %p156
      $region54: #{tpu_custom_call.1} parent=47 // pred_check_branch
        %9500 = sbr.rel (%p9498) target = $region56
      $region55: #{tpu_custom_call.1} parent=47 // pred_region
        %p9501 = scmp.lt.s32.totalorder %s18, 1
        %s9502 = scalar_select %p9501, %s18, 1
        %s9503 = smul.addr %s9502, 128
        %s9504 = smul.addr %s9503, 4
        %s9505 = scalar_lea.vmem %s5, %s9504
      $region56: #{tpu_custom_call.1} parent=47 // pred_fallthru
        _
    $region48: #{tpu_custom_call.1} parent=5 // pred_fallthru
      _
  $region6: #{tpu_custom_call.1} parent=0 // loop_footer
    %s16 = sadd.s32 1, %s12
  $region7: #{tpu_custom_call.1} parent=0 // loop_footer_branch
    %11 = sbr.rel target = $region3
  $region8: #{tpu_custom_call.1} parent=0 // loop_exit
    _

</llo_original>
